<compile_context>
chip_gen: v6e
topology: v6e:2x2x1
jax: 0.10.0
libtpu: 0.0.40
codegen_flags: <defaults>
</compile_context>

<pallas_src>
import math
import functools

import jax
import jax.numpy as jnp
from jax.experimental import pallas as pl
from jax.experimental.pallas import tpu as pltpu

NEG_INF = -1.0e9   # matches torch masked_fill value -1000000000.0
LN_EPS = 1e-5


# ----------------------------------------------------------------------------
# Fused whole-forward Pallas kernel (one batch TILE per grid step)
# ----------------------------------------------------------------------------
def _fused_forward_kernel(num_heads, n_enc, n_dec,
                          x_ref, maskb_ref, query_ref,
                          w_dd_ref, w_d4d_ref, w_4dd_ref, v_d_ref, v_4d_ref,
                          o_ref):
    BB, L, D = x_ref.shape
    M = query_ref.shape[0]
    hd = D // num_heads
    f32 = jnp.float32

    mask_bias = maskb_ref[...]                              # (BB, 1, L): 0 / NEG_INF

    # --- static-index cursors into the packed weight slabs (consumption order
    #     must match _pack_params exactly) ---
    cur = [0, 0, 0, 0, 0]   # dd, d4d, 4dd, d, 4d

    def take_dd():
        i = cur[0]; cur[0] += 1
        return w_dd_ref[i]                                  # (D, D)

    def take_d4d():
        i = cur[1]; cur[1] += 1
        return w_d4d_ref[i]                                 # (D, 4D)

    def take_4dd():
        i = cur[2]; cur[2] += 1
        return w_4dd_ref[i]                                 # (4D, D)

    def take_d():
        i = cur[3]; cur[3] += 1
        return v_d_ref[i:i + 1]                             # (1, D)

    def take_4d():
        i = cur[4]; cur[4] += 1
        return v_4d_ref[i:i + 1]                            # (1, 4D)

    # --- building blocks (activations are kept flat as (BB*rows, D)) ---
    def layernorm(y):
        gamma = take_d(); beta = take_d()
        mean = jnp.mean(y, axis=-1, keepdims=True)
        var = jnp.mean((y - mean) ** 2, axis=-1, keepdims=True)
        return (y - mean) * jax.lax.rsqrt(var + LN_EPS) * gamma + beta

    def attention(xq, nq, xkv, nk):
        # Full-width projections; 1/sqrt(D) pre-folded into wq/bq.
        wq = take_dd(); wk = take_dd(); wv = take_dd(); wo = take_dd()
        bq = take_d(); bk = take_d(); bv = take_d(); bo = take_d()
        q = jnp.dot(xq, wq, preferred_element_type=f32) + bq     # (BB*nq, D)
        k = jnp.dot(xkv, wk, preferred_element_type=f32) + bk    # (BB*nk, D)
        v = jnp.dot(xkv, wv, preferred_element_type=f32) + bv    # (BB*nk, D)
        q3 = q.reshape(BB, nq, D)
        k3 = k.reshape(BB, nk, D)
        v3 = v.reshape(BB, nk, D)
        z_heads = []
        for h in range(num_heads):
            sl = slice(h * hd, (h + 1) * hd)
            s = jnp.einsum('bqd,bkd->bqk', q3[:, :, sl], k3[:, :, sl],
                           preferred_element_type=f32)           # (BB, nq, nk)
            s = s + mask_bias                                    # additive key mask
            s = s - jnp.max(s, axis=-1, keepdims=True)
            p = jnp.exp(s)
            p = p * pl.reciprocal(jnp.sum(p, axis=-1, keepdims=True), approx=False)
            z_heads.append(jnp.einsum('bqk,bkd->bqd', p, v3[:, :, sl],
                                      preferred_element_type=f32))  # (BB, nq, hd)
        z = jnp.concatenate(z_heads, axis=-1).reshape(BB * nq, D)
        return jnp.dot(z, wo, preferred_element_type=f32) + bo       # (BB*nq, D)

    def ffn(z):
        w1 = take_d4d(); b1 = take_4d(); w2 = take_4dd(); b2 = take_d()
        h1 = jnp.maximum(jnp.dot(z, w1, preferred_element_type=f32) + b1, 0.0)
        # Reference FeedForward applies relu after the second linear as well.
        return jnp.maximum(jnp.dot(h1, w2, preferred_element_type=f32) + b2, 0.0)

    # ---------------- encoder ----------------
    enc = x_ref[...].reshape(BB * L, D)
    for _ in range(n_enc):
        a = attention(enc, L, enc, L)
        z = layernorm(enc + a)
        enc = layernorm(z + ffn(z))

    # ---------------- decoder ----------------
    qarr = query_ref[...]                                   # (M, D), shared over batch
    dec = qarr if BB == 1 else jnp.concatenate([qarr] * BB, axis=0)   # (BB*M, D)
    for _ in range(n_dec):
        a = attention(dec, M, dec, M)                       # query self-attention
        xq = layernorm(dec + a)
        a = attention(xq, M, enc, L)                        # cross-attention on encoder out
        z = layernorm(xq + a)
        dec = layernorm(z + ffn(z))

    o_ref[...] = dec.reshape(BB, M, D)


# ----------------------------------------------------------------------------
# Wrapper: pack weights into 5 slabs, single pallas_call over batch tiles
# ----------------------------------------------------------------------------
def _pack_params(params, num_heads):
    """Pack all weights into 5 stacked slabs (order must match kernel cursors)."""
    D = params["query"].shape[1]
    scale = 1.0 / math.sqrt(D)                 # torch: scores / sqrt(dim_V)
    w_dd, w_d4d, w_4dd, v_d, v_4d = [], [], [], [], []

    def pack_attn(ap):
        w_dd.extend([ap["wq"] * scale, ap["wk"], ap["wv"], ap["wo"]])
        v_d.extend([ap["bq"].reshape(-1) * scale, ap["bk"].reshape(-1),
                    ap["bv"].reshape(-1), ap["bo"].reshape(-1)])

    def pack_ln(lp):
        v_d.extend([lp["gamma"].reshape(-1), lp["beta"].reshape(-1)])

    def pack_ffn(fp):
        w_d4d.append(fp["w1"]); v_4d.append(fp["b1"].reshape(-1))
        w_4dd.append(fp["w2"]); v_d.append(fp["b2"].reshape(-1))

    for lp in params["encoder"]:
        pack_attn(lp["attn"]); pack_ln(lp["ln_att"])
        pack_ffn(lp["ffn"]); pack_ln(lp["ln_ff"])
    for lp in params["decoder"]:
        pack_attn(lp["attn_q"]); pack_ln(lp["ln_q"])
        pack_attn(lp["attn"]); pack_ln(lp["ln_att"])
        pack_ffn(lp["ffn"]); pack_ln(lp["ln_ff"])

    return (jnp.stack(w_dd), jnp.stack(w_d4d), jnp.stack(w_4dd),
            jnp.stack(v_d), jnp.stack(v_4d))


def setm_forward(params, input_set_feats, padd_mask, num_heads, block_batch=None):
    B, L, D = input_set_feats.shape
    query = params["query"]
    M = query.shape[0]
    # TODO(synk): as in the reference, the length-L padding mask is broadcast
    # against decoder self-attention scores of length MAX_SET; only valid when
    # max_set_size == set length.
    assert M == L, "max_set_size must equal set length (mask broadcast, as in reference)"

    # Batch tile: default gives >=2 "parallel" grid steps (keeps both v7x TCs
    # busy); on single-TC v5e/v6e pass block_batch=B to collapse to one step.
    if block_batch is None:
        block_batch = max(1, (B + 1) // 2)
    BB = min(block_batch, B)
    num_tiles = pl.cdiv(B, BB)
    B_pad = num_tiles * BB

    # Additive key-mask bias precomputed here (0 for valid, NEG_INF for pad).
    mask_bool = padd_mask.astype(jnp.bool_)
    mask_bias = jnp.where(mask_bool, 0.0, NEG_INF).astype(jnp.float32)[:, None, :]  # (B,1,L)

    x = input_set_feats.astype(jnp.float32)
    if B_pad != B:
        x = jnp.concatenate(
            [x, jnp.zeros((B_pad - B, L, D), jnp.float32)], axis=0)
        mask_bias = jnp.concatenate(
            [mask_bias, jnp.zeros((B_pad - B, 1, L), jnp.float32)], axis=0)

    w_dd, w_d4d, w_4dd, v_d, v_4d = _pack_params(params, num_heads)
    n_enc, n_dec = len(params["encoder"]), len(params["decoder"])

    kernel = functools.partial(_fused_forward_kernel, num_heads, n_enc, n_dec)

    def _resident(arr):                                     # full array, constant index map
        nd = arr.ndim
        return pl.BlockSpec(arr.shape, lambda b, _nd=nd: (0,) * _nd)

    in_specs = [
        pl.BlockSpec((BB, L, D), lambda b: (b, 0, 0)),      # x (batch tile)
        pl.BlockSpec((BB, 1, L), lambda b: (b, 0, 0)),      # additive mask bias
        _resident(query),                                   # learned decoder query
        _resident(w_dd), _resident(w_d4d), _resident(w_4dd),
        _resident(v_d), _resident(v_4d),                    # packed, VMEM-resident weights
    ]

    out = pl.pallas_call(
        kernel,
        out_shape=jax.ShapeDtypeStruct((B_pad, M, D), jnp.float32),
        grid=(num_tiles,),
        in_specs=in_specs,
        out_specs=pl.BlockSpec((BB, M, D), lambda b: (b, 0, 0)),
        compiler_params=pltpu.CompilerParams(dimension_semantics=("parallel",)),
    )(x, mask_bias, query, w_dd, w_d4d, w_4dd, v_d, v_4d)
    return out[:B]


# ----------------------------------------------------------------------------
# Pure-JAX reference (for verification)
# ----------------------------------------------------------------------------
def _ref_layernorm(y, ln):
    mean = jnp.mean(y, axis=-1, keepdims=True)
    var = jnp.mean((y - mean) ** 2, axis=-1, keepdims=True)
    return (y - mean) / jnp.sqrt(var + LN_EPS) * ln["gamma"] + ln["beta"]


def _ref_attention(xq, xkv, mask_f, ap, num_heads):
    B, Lq, D = xq.shape
    Lk = xkv.shape[1]
    hd = D // num_heads
    q = xq @ ap["wq"] + ap["bq"]
    k = xkv @ ap["wk"] + ap["bk"]
    v = xkv @ ap["wv"] + ap["bv"]
    q = q.reshape(B, Lq, num_heads, hd).transpose(0, 2, 1, 3)
    k = k.reshape(B, Lk, num_heads, hd).transpose(0, 2, 1, 3)
    v = v.reshape(B, Lk, num_heads, hd).transpose(0, 2, 1, 3)
    s = jnp.einsum("bhqd,bhkd->bhqk", q, k) / math.sqrt(D)
    s = jnp.where(mask_f[:, None, :, :] > 0.5, s, NEG_INF)
    p = jax.nn.softmax(s, axis=-1)
    z = jnp.einsum("bhqk,bhkd->bhqd", p, v).transpose(0, 2, 1, 3).reshape(B, Lq, D)
    return z @ ap["wo"] + ap["bo"]


def _ref_ffn(z, fp):
    h1 = jnp.maximum(z @ fp["w1"] + fp["b1"], 0.0)
    return jnp.maximum(h1 @ fp["w2"] + fp["b2"], 0.0)


def setm_forward_ref(params, input_set_feats, padd_mask, num_heads):
    mask_f = padd_mask.astype(jnp.float32)[:, None, :]
    enc = input_set_feats
    for p in params["encoder"]:
        a = _ref_attention(enc, enc, mask_f, p["attn"], num_heads)
        z = _ref_layernorm(enc + a, p["ln_att"])
        enc = _ref_layernorm(z + _ref_ffn(z, p["ffn"]), p["ln_ff"])
    B = input_set_feats.shape[0]
    dec = jnp.broadcast_to(params["query"][None], (B,) + params["query"].shape)
    for p in params["decoder"]:
        a = _ref_attention(dec, dec, mask_f, p["attn_q"], num_heads)
        x = _ref_layernorm(dec + a, p["ln_q"])
        a = _ref_attention(x, enc, mask_f, p["attn"], num_heads)
        z = _ref_layernorm(x + a, p["ln_att"])
        dec = _ref_layernorm(z + _ref_ffn(z, p["ffn"]), p["ln_ff"])
    return dec


# ----------------------------------------------------------------------------
# Deterministic parameter init
# ----------------------------------------------------------------------------
def init_params(key, model_dim, max_set_size, enc_layers=2, dec_layers=2):
    keys = iter(jax.random.split(key, 128))

    def lin(fi, fo):
        kw, kb = jax.random.split(next(keys))
        bound = 1.0 / math.sqrt(fi)
        w = jax.random.uniform(kw, (fi, fo), jnp.float32, -bound, bound)
        b = jax.random.uniform(kb, (1, fo), jnp.float32, -bound, bound)
        return w, b

    def attn():
        wq, bq = lin(model_dim, model_dim)
        wk, bk = lin(model_dim, model_dim)
        wv, bv = lin(model_dim, model_dim)
        wo, bo = lin(model_dim, model_dim)
        return dict(wq=wq, bq=bq, wk=wk, bk=bk, wv=wv, bv=bv, wo=wo, bo=bo)

    def ln():
        return dict(gamma=jnp.ones((1, model_dim), jnp.float32),
                    beta=jnp.zeros((1, model_dim), jnp.float32))

    def ffn():
        w1, b1 = lin(model_dim, 4 * model_dim)
        w2, b2 = lin(4 * model_dim, model_dim)
        return dict(w1=w1, b1=b1, w2=w2, b2=b2)

    encoder = [dict(attn=attn(), ln_att=ln(), ffn=ffn(), ln_ff=ln())
               for _ in range(enc_layers)]
    decoder = [dict(attn_q=attn(), ln_q=ln(),
                    attn=attn(), ln_att=ln(),
                    ffn=ffn(), ln_ff=ln())
               for _ in range(dec_layers)]
    # ElementQuery 'l_embed': learned randn(max_set_size, model_dim) query.
    query = jax.random.normal(next(keys), (max_set_size, model_dim), jnp.float32)
    return dict(encoder=encoder, decoder=decoder, query=query)


# ----------------------------------------------------------------------------
if __name__ == "__main__":
    B, L, D, H = 2, 8, 32, 4          # batch, set length, model_dim, heads
    MAX_SET = L                        # max_set_size == set length (as in reference usage)

    key = jax.random.PRNGKey(0)
    kp, kx = jax.random.split(key)
    params = init_params(kp, model_dim=D, max_set_size=MAX_SET,
                         enc_layers=2, dec_layers=2)

    input_set_feats = jax.random.normal(kx, (B, L, D), jnp.float32)
    lengths = jnp.array([L, L - 3], dtype=jnp.int32)
    padd_mask = jnp.arange(L)[None, :] < lengths[:, None]     # (B, L) bool, True = valid

    out = jax.block_until_ready(setm_forward(params, input_set_feats, padd_mask, H))
    ref = jax.block_until_ready(setm_forward_ref(params, input_set_feats, padd_mask, H))

    assert out.shape == (B, MAX_SET, D), out.shape
    max_err = float(jnp.max(jnp.abs(out - ref)))
    assert jnp.allclose(out, ref, rtol=1e-3, atol=1e-3), f"max abs err = {max_err}"
    print("KERNEL_OK")
</pallas_src>

<mosaic_0001>
module attributes {stable_mosaic.version = 11 : i64} {
  func.func @_fused_forward_kernel(%arg0: i32, %arg1: memref<1x8x32xf32, #tpu.memory_space<vmem>>, %arg2: memref<1x1x8xf32, #tpu.memory_space<vmem>>, %arg3: memref<8x32xf32, #tpu.memory_space<vmem>>, %arg4: memref<24x32x32xf32, #tpu.memory_space<vmem>>, %arg5: memref<4x32x128xf32, #tpu.memory_space<vmem>>, %arg6: memref<4x128x32xf32, #tpu.memory_space<vmem>>, %arg7: memref<48x32xf32, #tpu.memory_space<vmem>>, %arg8: memref<4x128xf32, #tpu.memory_space<vmem>>, %arg9: memref<1x8x32xf32, #tpu.memory_space<vmem>>) attributes {dimension_semantics = [#tpu.dimension_semantics<parallel>], iteration_bounds = array<i64: 2>, scalar_prefetch = 0 : i64, scratch_operands = 0 : i64, tpu.core_type = #tpu.core_type<tc>, window_params = [{transform_indices = @transform_0, window_bounds = array<i64: 1, 8, 32>}, {transform_indices = @transform_1, window_bounds = array<i64: 1, 1, 8>}, {pipeline_mode = #tpu.pipeline_mode<synchronous>, transform_indices = @transform_2, window_bounds = array<i64: 8, 32>}, {pipeline_mode = #tpu.pipeline_mode<synchronous>, transform_indices = @transform_3, window_bounds = array<i64: 24, 32, 32>}, {pipeline_mode = #tpu.pipeline_mode<synchronous>, transform_indices = @transform_4, window_bounds = array<i64: 4, 32, 128>}, {pipeline_mode = #tpu.pipeline_mode<synchronous>, transform_indices = @transform_5, window_bounds = array<i64: 4, 128, 32>}, {pipeline_mode = #tpu.pipeline_mode<synchronous>, transform_indices = @transform_6, window_bounds = array<i64: 48, 32>}, {pipeline_mode = #tpu.pipeline_mode<synchronous>, transform_indices = @transform_7, window_bounds = array<i64: 4, 128>}, {transform_indices = @transform_8, window_bounds = array<i64: 1, 8, 32>}]} {
    %c0 = arith.constant 0 : index
    %c0_0 = arith.constant 0 : index
    %c0_1 = arith.constant 0 : index
    %0 = vector.load %arg2[%c0, %c0_0, %c0_1] : memref<1x1x8xf32, #tpu.memory_space<vmem>>, vector<1x1x8xf32>
    %c0_2 = arith.constant 0 : index
    %c0_3 = arith.constant 0 : index
    %c0_4 = arith.constant 0 : index
    %1 = vector.load %arg1[%c0_2, %c0_3, %c0_4] : memref<1x8x32xf32, #tpu.memory_space<vmem>>, vector<1x8x32xf32>
    %2 = vector.shape_cast %1 : vector<1x8x32xf32> to vector<8x32xf32>
    %c0_5 = arith.constant 0 : index
    %c0_6 = arith.constant 0 : index
    %c0_7 = arith.constant 0 : index
    %3 = vector.load %arg4[%c0_5, %c0_6, %c0_7] : memref<24x32x32xf32, #tpu.memory_space<vmem>>, vector<1x32x32xf32>
    %4 = vector.shape_cast %3 : vector<1x32x32xf32> to vector<32x32xf32>
    %c1 = arith.constant 1 : index
    %c0_8 = arith.constant 0 : index
    %c0_9 = arith.constant 0 : index
    %5 = vector.load %arg4[%c1, %c0_8, %c0_9] : memref<24x32x32xf32, #tpu.memory_space<vmem>>, vector<1x32x32xf32>
    %6 = vector.shape_cast %5 : vector<1x32x32xf32> to vector<32x32xf32>
    %c2 = arith.constant 2 : index
    %c0_10 = arith.constant 0 : index
    %c0_11 = arith.constant 0 : index
    %7 = vector.load %arg4[%c2, %c0_10, %c0_11] : memref<24x32x32xf32, #tpu.memory_space<vmem>>, vector<1x32x32xf32>
    %8 = vector.shape_cast %7 : vector<1x32x32xf32> to vector<32x32xf32>
    %c3 = arith.constant 3 : index
    %c0_12 = arith.constant 0 : index
    %c0_13 = arith.constant 0 : index
    %9 = vector.load %arg4[%c3, %c0_12, %c0_13] : memref<24x32x32xf32, #tpu.memory_space<vmem>>, vector<1x32x32xf32>
    %10 = vector.shape_cast %9 : vector<1x32x32xf32> to vector<32x32xf32>
    %c0_14 = arith.constant 0 : index
    %c0_15 = arith.constant 0 : index
    %11 = vector.load %arg7[%c0_14, %c0_15] : memref<48x32xf32, #tpu.memory_space<vmem>>, vector<1x32xf32>
    %c1_16 = arith.constant 1 : index
    %c0_17 = arith.constant 0 : index
    %12 = vector.load %arg7[%c1_16, %c0_17] : memref<48x32xf32, #tpu.memory_space<vmem>>, vector<1x32xf32>
    %c2_18 = arith.constant 2 : index
    %c0_19 = arith.constant 0 : index
    %13 = vector.load %arg7[%c2_18, %c0_19] : memref<48x32xf32, #tpu.memory_space<vmem>>, vector<1x32xf32>
    %c3_20 = arith.constant 3 : index
    %c0_21 = arith.constant 0 : index
    %14 = vector.load %arg7[%c3_20, %c0_21] : memref<48x32xf32, #tpu.memory_space<vmem>>, vector<1x32xf32>
    %cst = arith.constant dense<0.000000e+00> : vector<8x32xf32>
    %15 = tpu.matmul %2, %4, %cst {dimension_numbers = #tpu.dot_dimension_numbers<[1], [0], [0], [1], [0, 0, 1, 1], [], []>} : vector<8x32xf32>, vector<32x32xf32>, vector<8x32xf32> -> vector<8x32xf32>
    %16 = vector.broadcast %11 : vector<1x32xf32> to vector<8x32xf32>
    %17 = arith.addf %15, %16 : vector<8x32xf32>
    %cst_22 = arith.constant dense<0.000000e+00> : vector<8x32xf32>
    %18 = tpu.matmul %2, %6, %cst_22 {dimension_numbers = #tpu.dot_dimension_numbers<[1], [0], [0], [1], [0, 0, 1, 1], [], []>} : vector<8x32xf32>, vector<32x32xf32>, vector<8x32xf32> -> vector<8x32xf32>
    %19 = vector.broadcast %12 : vector<1x32xf32> to vector<8x32xf32>
    %20 = arith.addf %18, %19 : vector<8x32xf32>
    %cst_23 = arith.constant dense<0.000000e+00> : vector<8x32xf32>
    %21 = tpu.matmul %2, %8, %cst_23 {dimension_numbers = #tpu.dot_dimension_numbers<[1], [0], [0], [1], [0, 0, 1, 1], [], []>} : vector<8x32xf32>, vector<32x32xf32>, vector<8x32xf32> -> vector<8x32xf32>
    %22 = vector.broadcast %13 : vector<1x32xf32> to vector<8x32xf32>
    %23 = arith.addf %21, %22 : vector<8x32xf32>
    %24 = vector.shape_cast %17 : vector<8x32xf32> to vector<1x8x32xf32>
    %25 = vector.shape_cast %20 : vector<8x32xf32> to vector<1x8x32xf32>
    %26 = vector.shape_cast %23 : vector<8x32xf32> to vector<1x8x32xf32>
    %27 = vector.extract_strided_slice %24 {offsets = [0, 0, 0], sizes = [1, 8, 8], strides = [1, 1, 1]} : vector<1x8x32xf32> to vector<1x8x8xf32>
    %28 = vector.extract_strided_slice %25 {offsets = [0, 0, 0], sizes = [1, 8, 8], strides = [1, 1, 1]} : vector<1x8x32xf32> to vector<1x8x8xf32>
    "tpu.trace_start"() <{level = 10 : i32, message = "bqd,bkd->bqk"}> : () -> ()
    %cst_24 = arith.constant dense<0.000000e+00> : vector<1x8x8xf32>
    %29 = tpu.matmul %27, %28, %cst_24 {dimension_numbers = #tpu.dot_dimension_numbers<[2], [2], [1], [1], [0, 0, 0, 1, 1, 1], [0], [0]>} : vector<1x8x8xf32>, vector<1x8x8xf32>, vector<1x8x8xf32> -> vector<1x8x8xf32>
    "tpu.trace_stop"() : () -> ()
    %30 = vector.broadcast %0 : vector<1x1x8xf32> to vector<1x8x8xf32>
    %31 = arith.addf %29, %30 : vector<1x8x8xf32>
    %cst_25 = arith.constant dense<0xFF800000> : vector<1x8xf32>
    %32 = vector.multi_reduction <maximumf>, %31, %cst_25 [2] : vector<1x8x8xf32> to vector<1x8xf32>
    %33 = vector.shape_cast %32 : vector<1x8xf32> to vector<1x8x1xf32>
    %34 = vector.broadcast %33 : vector<1x8x1xf32> to vector<1x8x8xf32>
    %35 = arith.subf %31, %34 : vector<1x8x8xf32>
    %36 = math.exp %35 : vector<1x8x8xf32>
    %cst_26 = arith.constant dense<0.000000e+00> : vector<1x8xf32>
    %37 = vector.multi_reduction <add>, %36, %cst_26 [2] : vector<1x8x8xf32> to vector<1x8xf32>
    %38 = vector.shape_cast %37 : vector<1x8xf32> to vector<1x8x1xf32>
    %39 = tpu.reciprocal %38 : vector<1x8x1xf32> -> vector<1x8x1xf32>
    %40 = vector.broadcast %39 : vector<1x8x1xf32> to vector<1x8x8xf32>
    %41 = arith.mulf %36, %40 : vector<1x8x8xf32>
    %42 = vector.extract_strided_slice %26 {offsets = [0, 0, 0], sizes = [1, 8, 8], strides = [1, 1, 1]} : vector<1x8x32xf32> to vector<1x8x8xf32>
    "tpu.trace_start"() <{level = 10 : i32, message = "bqk,bkd->bqd"}> : () -> ()
    %cst_27 = arith.constant dense<0.000000e+00> : vector<1x8x8xf32>
    %43 = tpu.matmul %41, %42, %cst_27 {dimension_numbers = #tpu.dot_dimension_numbers<[2], [1], [1], [2], [0, 0, 0, 1, 1, 2], [0], [0]>} : vector<1x8x8xf32>, vector<1x8x8xf32>, vector<1x8x8xf32> -> vector<1x8x8xf32>
    "tpu.trace_stop"() : () -> ()
    %44 = vector.extract_strided_slice %24 {offsets = [0, 0, 8], sizes = [1, 8, 8], strides = [1, 1, 1]} : vector<1x8x32xf32> to vector<1x8x8xf32>
    %45 = vector.extract_strided_slice %25 {offsets = [0, 0, 8], sizes = [1, 8, 8], strides = [1, 1, 1]} : vector<1x8x32xf32> to vector<1x8x8xf32>
    "tpu.trace_start"() <{level = 10 : i32, message = "bqd,bkd->bqk"}> : () -> ()
    %cst_28 = arith.constant dense<0.000000e+00> : vector<1x8x8xf32>
    %46 = tpu.matmul %44, %45, %cst_28 {dimension_numbers = #tpu.dot_dimension_numbers<[2], [2], [1], [1], [0, 0, 0, 1, 1, 1], [0], [0]>} : vector<1x8x8xf32>, vector<1x8x8xf32>, vector<1x8x8xf32> -> vector<1x8x8xf32>
    "tpu.trace_stop"() : () -> ()
    %47 = vector.broadcast %0 : vector<1x1x8xf32> to vector<1x8x8xf32>
    %48 = arith.addf %46, %47 : vector<1x8x8xf32>
    %cst_29 = arith.constant dense<0xFF800000> : vector<1x8xf32>
    %49 = vector.multi_reduction <maximumf>, %48, %cst_29 [2] : vector<1x8x8xf32> to vector<1x8xf32>
    %50 = vector.shape_cast %49 : vector<1x8xf32> to vector<1x8x1xf32>
    %51 = vector.broadcast %50 : vector<1x8x1xf32> to vector<1x8x8xf32>
    %52 = arith.subf %48, %51 : vector<1x8x8xf32>
    %53 = math.exp %52 : vector<1x8x8xf32>
    %cst_30 = arith.constant dense<0.000000e+00> : vector<1x8xf32>
    %54 = vector.multi_reduction <add>, %53, %cst_30 [2] : vector<1x8x8xf32> to vector<1x8xf32>
    %55 = vector.shape_cast %54 : vector<1x8xf32> to vector<1x8x1xf32>
    %56 = tpu.reciprocal %55 : vector<1x8x1xf32> -> vector<1x8x1xf32>
    %57 = vector.broadcast %56 : vector<1x8x1xf32> to vector<1x8x8xf32>
    %58 = arith.mulf %53, %57 : vector<1x8x8xf32>
    %59 = vector.extract_strided_slice %26 {offsets = [0, 0, 8], sizes = [1, 8, 8], strides = [1, 1, 1]} : vector<1x8x32xf32> to vector<1x8x8xf32>
    "tpu.trace_start"() <{level = 10 : i32, message = "bqk,bkd->bqd"}> : () -> ()
    %cst_31 = arith.constant dense<0.000000e+00> : vector<1x8x8xf32>
    %60 = tpu.matmul %58, %59, %cst_31 {dimension_numbers = #tpu.dot_dimension_numbers<[2], [1], [1], [2], [0, 0, 0, 1, 1, 2], [0], [0]>} : vector<1x8x8xf32>, vector<1x8x8xf32>, vector<1x8x8xf32> -> vector<1x8x8xf32>
    "tpu.trace_stop"() : () -> ()
    %61 = vector.extract_strided_slice %24 {offsets = [0, 0, 16], sizes = [1, 8, 8], strides = [1, 1, 1]} : vector<1x8x32xf32> to vector<1x8x8xf32>
    %62 = vector.extract_strided_slice %25 {offsets = [0, 0, 16], sizes = [1, 8, 8], strides = [1, 1, 1]} : vector<1x8x32xf32> to vector<1x8x8xf32>
    "tpu.trace_start"() <{level = 10 : i32, message = "bqd,bkd->bqk"}> : () -> ()
    %cst_32 = arith.constant dense<0.000000e+00> : vector<1x8x8xf32>
    %63 = tpu.matmul %61, %62, %cst_32 {dimension_numbers = #tpu.dot_dimension_numbers<[2], [2], [1], [1], [0, 0, 0, 1, 1, 1], [0], [0]>} : vector<1x8x8xf32>, vector<1x8x8xf32>, vector<1x8x8xf32> -> vector<1x8x8xf32>
    "tpu.trace_stop"() : () -> ()
    %64 = vector.broadcast %0 : vector<1x1x8xf32> to vector<1x8x8xf32>
    %65 = arith.addf %63, %64 : vector<1x8x8xf32>
    %cst_33 = arith.constant dense<0xFF800000> : vector<1x8xf32>
    %66 = vector.multi_reduction <maximumf>, %65, %cst_33 [2] : vector<1x8x8xf32> to vector<1x8xf32>
    %67 = vector.shape_cast %66 : vector<1x8xf32> to vector<1x8x1xf32>
    %68 = vector.broadcast %67 : vector<1x8x1xf32> to vector<1x8x8xf32>
    %69 = arith.subf %65, %68 : vector<1x8x8xf32>
    %70 = math.exp %69 : vector<1x8x8xf32>
    %cst_34 = arith.constant dense<0.000000e+00> : vector<1x8xf32>
    %71 = vector.multi_reduction <add>, %70, %cst_34 [2] : vector<1x8x8xf32> to vector<1x8xf32>
    %72 = vector.shape_cast %71 : vector<1x8xf32> to vector<1x8x1xf32>
    %73 = tpu.reciprocal %72 : vector<1x8x1xf32> -> vector<1x8x1xf32>
    %74 = vector.broadcast %73 : vector<1x8x1xf32> to vector<1x8x8xf32>
    %75 = arith.mulf %70, %74 : vector<1x8x8xf32>
    %76 = vector.extract_strided_slice %26 {offsets = [0, 0, 16], sizes = [1, 8, 8], strides = [1, 1, 1]} : vector<1x8x32xf32> to vector<1x8x8xf32>
    "tpu.trace_start"() <{level = 10 : i32, message = "bqk,bkd->bqd"}> : () -> ()
    %cst_35 = arith.constant dense<0.000000e+00> : vector<1x8x8xf32>
    %77 = tpu.matmul %75, %76, %cst_35 {dimension_numbers = #tpu.dot_dimension_numbers<[2], [1], [1], [2], [0, 0, 0, 1, 1, 2], [0], [0]>} : vector<1x8x8xf32>, vector<1x8x8xf32>, vector<1x8x8xf32> -> vector<1x8x8xf32>
    "tpu.trace_stop"() : () -> ()
    %78 = vector.extract_strided_slice %24 {offsets = [0, 0, 24], sizes = [1, 8, 8], strides = [1, 1, 1]} : vector<1x8x32xf32> to vector<1x8x8xf32>
    %79 = vector.extract_strided_slice %25 {offsets = [0, 0, 24], sizes = [1, 8, 8], strides = [1, 1, 1]} : vector<1x8x32xf32> to vector<1x8x8xf32>
    "tpu.trace_start"() <{level = 10 : i32, message = "bqd,bkd->bqk"}> : () -> ()
    %cst_36 = arith.constant dense<0.000000e+00> : vector<1x8x8xf32>
    %80 = tpu.matmul %78, %79, %cst_36 {dimension_numbers = #tpu.dot_dimension_numbers<[2], [2], [1], [1], [0, 0, 0, 1, 1, 1], [0], [0]>} : vector<1x8x8xf32>, vector<1x8x8xf32>, vector<1x8x8xf32> -> vector<1x8x8xf32>
    "tpu.trace_stop"() : () -> ()
    %81 = vector.broadcast %0 : vector<1x1x8xf32> to vector<1x8x8xf32>
    %82 = arith.addf %80, %81 : vector<1x8x8xf32>
    %cst_37 = arith.constant dense<0xFF800000> : vector<1x8xf32>
    %83 = vector.multi_reduction <maximumf>, %82, %cst_37 [2] : vector<1x8x8xf32> to vector<1x8xf32>
    %84 = vector.shape_cast %83 : vector<1x8xf32> to vector<1x8x1xf32>
    %85 = vector.broadcast %84 : vector<1x8x1xf32> to vector<1x8x8xf32>
    %86 = arith.subf %82, %85 : vector<1x8x8xf32>
    %87 = math.exp %86 : vector<1x8x8xf32>
    %cst_38 = arith.constant dense<0.000000e+00> : vector<1x8xf32>
    %88 = vector.multi_reduction <add>, %87, %cst_38 [2] : vector<1x8x8xf32> to vector<1x8xf32>
    %89 = vector.shape_cast %88 : vector<1x8xf32> to vector<1x8x1xf32>
    %90 = tpu.reciprocal %89 : vector<1x8x1xf32> -> vector<1x8x1xf32>
    %91 = vector.broadcast %90 : vector<1x8x1xf32> to vector<1x8x8xf32>
    %92 = arith.mulf %87, %91 : vector<1x8x8xf32>
    %93 = vector.extract_strided_slice %26 {offsets = [0, 0, 24], sizes = [1, 8, 8], strides = [1, 1, 1]} : vector<1x8x32xf32> to vector<1x8x8xf32>
    "tpu.trace_start"() <{level = 10 : i32, message = "bqk,bkd->bqd"}> : () -> ()
    %cst_39 = arith.constant dense<0.000000e+00> : vector<1x8x8xf32>
    %94 = tpu.matmul %92, %93, %cst_39 {dimension_numbers = #tpu.dot_dimension_numbers<[2], [1], [1], [2], [0, 0, 0, 1, 1, 2], [0], [0]>} : vector<1x8x8xf32>, vector<1x8x8xf32>, vector<1x8x8xf32> -> vector<1x8x8xf32>
    "tpu.trace_stop"() : () -> ()
    %95 = tpu.concatenate %43, %60, %77, %94 in 2 : vector<1x8x8xf32>, vector<1x8x8xf32>, vector<1x8x8xf32>, vector<1x8x8xf32> -> vector<1x8x32xf32>
    %96 = vector.shape_cast %95 : vector<1x8x32xf32> to vector<8x32xf32>
    %cst_40 = arith.constant dense<0.000000e+00> : vector<8x32xf32>
    %97 = tpu.matmul %96, %10, %cst_40 {dimension_numbers = #tpu.dot_dimension_numbers<[1], [0], [0], [1], [0, 0, 1, 1], [], []>} : vector<8x32xf32>, vector<32x32xf32>, vector<8x32xf32> -> vector<8x32xf32>
    %98 = vector.broadcast %14 : vector<1x32xf32> to vector<8x32xf32>
    %99 = arith.addf %97, %98 : vector<8x32xf32>
    %100 = arith.addf %2, %99 : vector<8x32xf32>
    %c4 = arith.constant 4 : index
    %c0_41 = arith.constant 0 : index
    %101 = vector.load %arg7[%c4, %c0_41] : memref<48x32xf32, #tpu.memory_space<vmem>>, vector<1x32xf32>
    %c5 = arith.constant 5 : index
    %c0_42 = arith.constant 0 : index
    %102 = vector.load %arg7[%c5, %c0_42] : memref<48x32xf32, #tpu.memory_space<vmem>>, vector<1x32xf32>
    %cst_43 = arith.constant dense<0.000000e+00> : vector<8xf32>
    %103 = vector.multi_reduction <add>, %100, %cst_43 [1] : vector<8x32xf32> to vector<8xf32>
    %104 = vector.shape_cast %103 : vector<8xf32> to vector<8x1xf32>
    %cst_44 = arith.constant 3.200000e+01 : f32
    %105 = vector.broadcast %cst_44 : f32 to vector<8x1xf32>
    %106 = arith.divf %104, %105 : vector<8x1xf32>
    %107 = vector.broadcast %106 : vector<8x1xf32> to vector<8x32xf32>
    %108 = arith.subf %100, %107 : vector<8x32xf32>
    %109 = arith.mulf %108, %108 : vector<8x32xf32>
    %cst_45 = arith.constant dense<0.000000e+00> : vector<8xf32>
    %110 = vector.multi_reduction <add>, %109, %cst_45 [1] : vector<8x32xf32> to vector<8xf32>
    %111 = vector.shape_cast %110 : vector<8xf32> to vector<8x1xf32>
    %cst_46 = arith.constant 3.200000e+01 : f32
    %112 = vector.broadcast %cst_46 : f32 to vector<8x1xf32>
    %113 = arith.divf %111, %112 : vector<8x1xf32>
    %114 = vector.broadcast %106 : vector<8x1xf32> to vector<8x32xf32>
    %115 = arith.subf %100, %114 : vector<8x32xf32>
    %cst_47 = arith.constant 9.99999974E-6 : f32
    %116 = vector.broadcast %cst_47 : f32 to vector<8x1xf32>
    %117 = arith.addf %113, %116 : vector<8x1xf32>
    %118 = math.rsqrt %117 : vector<8x1xf32>
    %119 = vector.broadcast %118 : vector<8x1xf32> to vector<8x32xf32>
    %120 = arith.mulf %115, %119 : vector<8x32xf32>
    %121 = vector.broadcast %101 : vector<1x32xf32> to vector<8x32xf32>
    %122 = arith.mulf %120, %121 : vector<8x32xf32>
    %123 = vector.broadcast %102 : vector<1x32xf32> to vector<8x32xf32>
    %124 = arith.addf %122, %123 : vector<8x32xf32>
    %c0_48 = arith.constant 0 : index
    %c0_49 = arith.constant 0 : index
    %c0_50 = arith.constant 0 : index
    %125 = vector.load %arg5[%c0_48, %c0_49, %c0_50] : memref<4x32x128xf32, #tpu.memory_space<vmem>>, vector<1x32x128xf32>
    %126 = vector.shape_cast %125 : vector<1x32x128xf32> to vector<32x128xf32>
    %c0_51 = arith.constant 0 : index
    %c0_52 = arith.constant 0 : index
    %127 = vector.load %arg8[%c0_51, %c0_52] : memref<4x128xf32, #tpu.memory_space<vmem>>, vector<1x128xf32>
    %c0_53 = arith.constant 0 : index
    %c0_54 = arith.constant 0 : index
    %c0_55 = arith.constant 0 : index
    %128 = vector.load %arg6[%c0_53, %c0_54, %c0_55] : memref<4x128x32xf32, #tpu.memory_space<vmem>>, vector<1x128x32xf32>
    %129 = vector.shape_cast %128 : vector<1x128x32xf32> to vector<128x32xf32>
    %c6 = arith.constant 6 : index
    %c0_56 = arith.constant 0 : index
    %130 = vector.load %arg7[%c6, %c0_56] : memref<48x32xf32, #tpu.memory_space<vmem>>, vector<1x32xf32>
    %cst_57 = arith.constant dense<0.000000e+00> : vector<8x128xf32>
    %131 = tpu.matmul %124, %126, %cst_57 {dimension_numbers = #tpu.dot_dimension_numbers<[1], [0], [0], [1], [0, 0, 1, 1], [], []>} : vector<8x32xf32>, vector<32x128xf32>, vector<8x128xf32> -> vector<8x128xf32>
    %132 = vector.broadcast %127 : vector<1x128xf32> to vector<8x128xf32>
    %133 = arith.addf %131, %132 : vector<8x128xf32>
    %cst_58 = arith.constant 0.000000e+00 : f32
    %134 = vector.broadcast %cst_58 : f32 to vector<8x128xf32>
    %135 = arith.maximumf %133, %134 : vector<8x128xf32>
    %cst_59 = arith.constant dense<0.000000e+00> : vector<8x32xf32>
    %136 = tpu.matmul %135, %129, %cst_59 {dimension_numbers = #tpu.dot_dimension_numbers<[1], [0], [0], [1], [0, 0, 1, 1], [], []>} : vector<8x128xf32>, vector<128x32xf32>, vector<8x32xf32> -> vector<8x32xf32>
    %137 = vector.broadcast %130 : vector<1x32xf32> to vector<8x32xf32>
    %138 = arith.addf %136, %137 : vector<8x32xf32>
    %cst_60 = arith.constant 0.000000e+00 : f32
    %139 = vector.broadcast %cst_60 : f32 to vector<8x32xf32>
    %140 = arith.maximumf %138, %139 : vector<8x32xf32>
    %141 = arith.addf %124, %140 : vector<8x32xf32>
    %c7 = arith.constant 7 : index
    %c0_61 = arith.constant 0 : index
    %142 = vector.load %arg7[%c7, %c0_61] : memref<48x32xf32, #tpu.memory_space<vmem>>, vector<1x32xf32>
    %c8 = arith.constant 8 : index
    %c0_62 = arith.constant 0 : index
    %143 = vector.load %arg7[%c8, %c0_62] : memref<48x32xf32, #tpu.memory_space<vmem>>, vector<1x32xf32>
    %cst_63 = arith.constant dense<0.000000e+00> : vector<8xf32>
    %144 = vector.multi_reduction <add>, %141, %cst_63 [1] : vector<8x32xf32> to vector<8xf32>
    %145 = vector.shape_cast %144 : vector<8xf32> to vector<8x1xf32>
    %cst_64 = arith.constant 3.200000e+01 : f32
    %146 = vector.broadcast %cst_64 : f32 to vector<8x1xf32>
    %147 = arith.divf %145, %146 : vector<8x1xf32>
    %148 = vector.broadcast %147 : vector<8x1xf32> to vector<8x32xf32>
    %149 = arith.subf %141, %148 : vector<8x32xf32>
    %150 = arith.mulf %149, %149 : vector<8x32xf32>
    %cst_65 = arith.constant dense<0.000000e+00> : vector<8xf32>
    %151 = vector.multi_reduction <add>, %150, %cst_65 [1] : vector<8x32xf32> to vector<8xf32>
    %152 = vector.shape_cast %151 : vector<8xf32> to vector<8x1xf32>
    %cst_66 = arith.constant 3.200000e+01 : f32
    %153 = vector.broadcast %cst_66 : f32 to vector<8x1xf32>
    %154 = arith.divf %152, %153 : vector<8x1xf32>
    %155 = vector.broadcast %147 : vector<8x1xf32> to vector<8x32xf32>
    %156 = arith.subf %141, %155 : vector<8x32xf32>
    %cst_67 = arith.constant 9.99999974E-6 : f32
    %157 = vector.broadcast %cst_67 : f32 to vector<8x1xf32>
    %158 = arith.addf %154, %157 : vector<8x1xf32>
    %159 = math.rsqrt %158 : vector<8x1xf32>
    %160 = vector.broadcast %159 : vector<8x1xf32> to vector<8x32xf32>
    %161 = arith.mulf %156, %160 : vector<8x32xf32>
    %162 = vector.broadcast %142 : vector<1x32xf32> to vector<8x32xf32>
    %163 = arith.mulf %161, %162 : vector<8x32xf32>
    %164 = vector.broadcast %143 : vector<1x32xf32> to vector<8x32xf32>
    %165 = arith.addf %163, %164 : vector<8x32xf32>
    %c4_68 = arith.constant 4 : index
    %c0_69 = arith.constant 0 : index
    %c0_70 = arith.constant 0 : index
    %166 = vector.load %arg4[%c4_68, %c0_69, %c0_70] : memref<24x32x32xf32, #tpu.memory_space<vmem>>, vector<1x32x32xf32>
    %167 = vector.shape_cast %166 : vector<1x32x32xf32> to vector<32x32xf32>
    %c5_71 = arith.constant 5 : index
    %c0_72 = arith.constant 0 : index
    %c0_73 = arith.constant 0 : index
    %168 = vector.load %arg4[%c5_71, %c0_72, %c0_73] : memref<24x32x32xf32, #tpu.memory_space<vmem>>, vector<1x32x32xf32>
    %169 = vector.shape_cast %168 : vector<1x32x32xf32> to vector<32x32xf32>
    %c6_74 = arith.constant 6 : index
    %c0_75 = arith.constant 0 : index
    %c0_76 = arith.constant 0 : index
    %170 = vector.load %arg4[%c6_74, %c0_75, %c0_76] : memref<24x32x32xf32, #tpu.memory_space<vmem>>, vector<1x32x32xf32>
    %171 = vector.shape_cast %170 : vector<1x32x32xf32> to vector<32x32xf32>
    %c7_77 = arith.constant 7 : index
    %c0_78 = arith.constant 0 : index
    %c0_79 = arith.constant 0 : index
    %172 = vector.load %arg4[%c7_77, %c0_78, %c0_79] : memref<24x32x32xf32, #tpu.memory_space<vmem>>, vector<1x32x32xf32>
    %173 = vector.shape_cast %172 : vector<1x32x32xf32> to vector<32x32xf32>
    %c9 = arith.constant 9 : index
    %c0_80 = arith.constant 0 : index
    %174 = vector.load %arg7[%c9, %c0_80] : memref<48x32xf32, #tpu.memory_space<vmem>>, vector<1x32xf32>
    %c10 = arith.constant 10 : index
    %c0_81 = arith.constant 0 : index
    %175 = vector.load %arg7[%c10, %c0_81] : memref<48x32xf32, #tpu.memory_space<vmem>>, vector<1x32xf32>
    %c11 = arith.constant 11 : index
    %c0_82 = arith.constant 0 : index
    %176 = vector.load %arg7[%c11, %c0_82] : memref<48x32xf32, #tpu.memory_space<vmem>>, vector<1x32xf32>
    %c12 = arith.constant 12 : index
    %c0_83 = arith.constant 0 : index
    %177 = vector.load %arg7[%c12, %c0_83] : memref<48x32xf32, #tpu.memory_space<vmem>>, vector<1x32xf32>
    %cst_84 = arith.constant dense<0.000000e+00> : vector<8x32xf32>
    %178 = tpu.matmul %165, %167, %cst_84 {dimension_numbers = #tpu.dot_dimension_numbers<[1], [0], [0], [1], [0, 0, 1, 1], [], []>} : vector<8x32xf32>, vector<32x32xf32>, vector<8x32xf32> -> vector<8x32xf32>
    %179 = vector.broadcast %174 : vector<1x32xf32> to vector<8x32xf32>
    %180 = arith.addf %178, %179 : vector<8x32xf32>
    %cst_85 = arith.constant dense<0.000000e+00> : vector<8x32xf32>
    %181 = tpu.matmul %165, %169, %cst_85 {dimension_numbers = #tpu.dot_dimension_numbers<[1], [0], [0], [1], [0, 0, 1, 1], [], []>} : vector<8x32xf32>, vector<32x32xf32>, vector<8x32xf32> -> vector<8x32xf32>
    %182 = vector.broadcast %175 : vector<1x32xf32> to vector<8x32xf32>
    %183 = arith.addf %181, %182 : vector<8x32xf32>
    %cst_86 = arith.constant dense<0.000000e+00> : vector<8x32xf32>
    %184 = tpu.matmul %165, %171, %cst_86 {dimension_numbers = #tpu.dot_dimension_numbers<[1], [0], [0], [1], [0, 0, 1, 1], [], []>} : vector<8x32xf32>, vector<32x32xf32>, vector<8x32xf32> -> vector<8x32xf32>
    %185 = vector.broadcast %176 : vector<1x32xf32> to vector<8x32xf32>
    %186 = arith.addf %184, %185 : vector<8x32xf32>
    %187 = vector.shape_cast %180 : vector<8x32xf32> to vector<1x8x32xf32>
    %188 = vector.shape_cast %183 : vector<8x32xf32> to vector<1x8x32xf32>
    %189 = vector.shape_cast %186 : vector<8x32xf32> to vector<1x8x32xf32>
    %190 = vector.extract_strided_slice %187 {offsets = [0, 0, 0], sizes = [1, 8, 8], strides = [1, 1, 1]} : vector<1x8x32xf32> to vector<1x8x8xf32>
    %191 = vector.extract_strided_slice %188 {offsets = [0, 0, 0], sizes = [1, 8, 8], strides = [1, 1, 1]} : vector<1x8x32xf32> to vector<1x8x8xf32>
    "tpu.trace_start"() <{level = 10 : i32, message = "bqd,bkd->bqk"}> : () -> ()
    %cst_87 = arith.constant dense<0.000000e+00> : vector<1x8x8xf32>
    %192 = tpu.matmul %190, %191, %cst_87 {dimension_numbers = #tpu.dot_dimension_numbers<[2], [2], [1], [1], [0, 0, 0, 1, 1, 1], [0], [0]>} : vector<1x8x8xf32>, vector<1x8x8xf32>, vector<1x8x8xf32> -> vector<1x8x8xf32>
    "tpu.trace_stop"() : () -> ()
    %193 = vector.broadcast %0 : vector<1x1x8xf32> to vector<1x8x8xf32>
    %194 = arith.addf %192, %193 : vector<1x8x8xf32>
    %cst_88 = arith.constant dense<0xFF800000> : vector<1x8xf32>
    %195 = vector.multi_reduction <maximumf>, %194, %cst_88 [2] : vector<1x8x8xf32> to vector<1x8xf32>
    %196 = vector.shape_cast %195 : vector<1x8xf32> to vector<1x8x1xf32>
    %197 = vector.broadcast %196 : vector<1x8x1xf32> to vector<1x8x8xf32>
    %198 = arith.subf %194, %197 : vector<1x8x8xf32>
    %199 = math.exp %198 : vector<1x8x8xf32>
    %cst_89 = arith.constant dense<0.000000e+00> : vector<1x8xf32>
    %200 = vector.multi_reduction <add>, %199, %cst_89 [2] : vector<1x8x8xf32> to vector<1x8xf32>
    %201 = vector.shape_cast %200 : vector<1x8xf32> to vector<1x8x1xf32>
    %202 = tpu.reciprocal %201 : vector<1x8x1xf32> -> vector<1x8x1xf32>
    %203 = vector.broadcast %202 : vector<1x8x1xf32> to vector<1x8x8xf32>
    %204 = arith.mulf %199, %203 : vector<1x8x8xf32>
    %205 = vector.extract_strided_slice %189 {offsets = [0, 0, 0], sizes = [1, 8, 8], strides = [1, 1, 1]} : vector<1x8x32xf32> to vector<1x8x8xf32>
    "tpu.trace_start"() <{level = 10 : i32, message = "bqk,bkd->bqd"}> : () -> ()
    %cst_90 = arith.constant dense<0.000000e+00> : vector<1x8x8xf32>
    %206 = tpu.matmul %204, %205, %cst_90 {dimension_numbers = #tpu.dot_dimension_numbers<[2], [1], [1], [2], [0, 0, 0, 1, 1, 2], [0], [0]>} : vector<1x8x8xf32>, vector<1x8x8xf32>, vector<1x8x8xf32> -> vector<1x8x8xf32>
    "tpu.trace_stop"() : () -> ()
    %207 = vector.extract_strided_slice %187 {offsets = [0, 0, 8], sizes = [1, 8, 8], strides = [1, 1, 1]} : vector<1x8x32xf32> to vector<1x8x8xf32>
    %208 = vector.extract_strided_slice %188 {offsets = [0, 0, 8], sizes = [1, 8, 8], strides = [1, 1, 1]} : vector<1x8x32xf32> to vector<1x8x8xf32>
    "tpu.trace_start"() <{level = 10 : i32, message = "bqd,bkd->bqk"}> : () -> ()
    %cst_91 = arith.constant dense<0.000000e+00> : vector<1x8x8xf32>
    %209 = tpu.matmul %207, %208, %cst_91 {dimension_numbers = #tpu.dot_dimension_numbers<[2], [2], [1], [1], [0, 0, 0, 1, 1, 1], [0], [0]>} : vector<1x8x8xf32>, vector<1x8x8xf32>, vector<1x8x8xf32> -> vector<1x8x8xf32>
    "tpu.trace_stop"() : () -> ()
    %210 = vector.broadcast %0 : vector<1x1x8xf32> to vector<1x8x8xf32>
    %211 = arith.addf %209, %210 : vector<1x8x8xf32>
    %cst_92 = arith.constant dense<0xFF800000> : vector<1x8xf32>
    %212 = vector.multi_reduction <maximumf>, %211, %cst_92 [2] : vector<1x8x8xf32> to vector<1x8xf32>
    %213 = vector.shape_cast %212 : vector<1x8xf32> to vector<1x8x1xf32>
    %214 = vector.broadcast %213 : vector<1x8x1xf32> to vector<1x8x8xf32>
    %215 = arith.subf %211, %214 : vector<1x8x8xf32>
    %216 = math.exp %215 : vector<1x8x8xf32>
    %cst_93 = arith.constant dense<0.000000e+00> : vector<1x8xf32>
    %217 = vector.multi_reduction <add>, %216, %cst_93 [2] : vector<1x8x8xf32> to vector<1x8xf32>
    %218 = vector.shape_cast %217 : vector<1x8xf32> to vector<1x8x1xf32>
    %219 = tpu.reciprocal %218 : vector<1x8x1xf32> -> vector<1x8x1xf32>
    %220 = vector.broadcast %219 : vector<1x8x1xf32> to vector<1x8x8xf32>
    %221 = arith.mulf %216, %220 : vector<1x8x8xf32>
    %222 = vector.extract_strided_slice %189 {offsets = [0, 0, 8], sizes = [1, 8, 8], strides = [1, 1, 1]} : vector<1x8x32xf32> to vector<1x8x8xf32>
    "tpu.trace_start"() <{level = 10 : i32, message = "bqk,bkd->bqd"}> : () -> ()
    %cst_94 = arith.constant dense<0.000000e+00> : vector<1x8x8xf32>
    %223 = tpu.matmul %221, %222, %cst_94 {dimension_numbers = #tpu.dot_dimension_numbers<[2], [1], [1], [2], [0, 0, 0, 1, 1, 2], [0], [0]>} : vector<1x8x8xf32>, vector<1x8x8xf32>, vector<1x8x8xf32> -> vector<1x8x8xf32>
    "tpu.trace_stop"() : () -> ()
    %224 = vector.extract_strided_slice %187 {offsets = [0, 0, 16], sizes = [1, 8, 8], strides = [1, 1, 1]} : vector<1x8x32xf32> to vector<1x8x8xf32>
    %225 = vector.extract_strided_slice %188 {offsets = [0, 0, 16], sizes = [1, 8, 8], strides = [1, 1, 1]} : vector<1x8x32xf32> to vector<1x8x8xf32>
    "tpu.trace_start"() <{level = 10 : i32, message = "bqd,bkd->bqk"}> : () -> ()
    %cst_95 = arith.constant dense<0.000000e+00> : vector<1x8x8xf32>
    %226 = tpu.matmul %224, %225, %cst_95 {dimension_numbers = #tpu.dot_dimension_numbers<[2], [2], [1], [1], [0, 0, 0, 1, 1, 1], [0], [0]>} : vector<1x8x8xf32>, vector<1x8x8xf32>, vector<1x8x8xf32> -> vector<1x8x8xf32>
    "tpu.trace_stop"() : () -> ()
    %227 = vector.broadcast %0 : vector<1x1x8xf32> to vector<1x8x8xf32>
    %228 = arith.addf %226, %227 : vector<1x8x8xf32>
    %cst_96 = arith.constant dense<0xFF800000> : vector<1x8xf32>
    %229 = vector.multi_reduction <maximumf>, %228, %cst_96 [2] : vector<1x8x8xf32> to vector<1x8xf32>
    %230 = vector.shape_cast %229 : vector<1x8xf32> to vector<1x8x1xf32>
    %231 = vector.broadcast %230 : vector<1x8x1xf32> to vector<1x8x8xf32>
    %232 = arith.subf %228, %231 : vector<1x8x8xf32>
    %233 = math.exp %232 : vector<1x8x8xf32>
    %cst_97 = arith.constant dense<0.000000e+00> : vector<1x8xf32>
    %234 = vector.multi_reduction <add>, %233, %cst_97 [2] : vector<1x8x8xf32> to vector<1x8xf32>
    %235 = vector.shape_cast %234 : vector<1x8xf32> to vector<1x8x1xf32>
    %236 = tpu.reciprocal %235 : vector<1x8x1xf32> -> vector<1x8x1xf32>
    %237 = vector.broadcast %236 : vector<1x8x1xf32> to vector<1x8x8xf32>
    %238 = arith.mulf %233, %237 : vector<1x8x8xf32>
    %239 = vector.extract_strided_slice %189 {offsets = [0, 0, 16], sizes = [1, 8, 8], strides = [1, 1, 1]} : vector<1x8x32xf32> to vector<1x8x8xf32>
    "tpu.trace_start"() <{level = 10 : i32, message = "bqk,bkd->bqd"}> : () -> ()
    %cst_98 = arith.constant dense<0.000000e+00> : vector<1x8x8xf32>
    %240 = tpu.matmul %238, %239, %cst_98 {dimension_numbers = #tpu.dot_dimension_numbers<[2], [1], [1], [2], [0, 0, 0, 1, 1, 2], [0], [0]>} : vector<1x8x8xf32>, vector<1x8x8xf32>, vector<1x8x8xf32> -> vector<1x8x8xf32>
    "tpu.trace_stop"() : () -> ()
    %241 = vector.extract_strided_slice %187 {offsets = [0, 0, 24], sizes = [1, 8, 8], strides = [1, 1, 1]} : vector<1x8x32xf32> to vector<1x8x8xf32>
    %242 = vector.extract_strided_slice %188 {offsets = [0, 0, 24], sizes = [1, 8, 8], strides = [1, 1, 1]} : vector<1x8x32xf32> to vector<1x8x8xf32>
    "tpu.trace_start"() <{level = 10 : i32, message = "bqd,bkd->bqk"}> : () -> ()
    %cst_99 = arith.constant dense<0.000000e+00> : vector<1x8x8xf32>
    %243 = tpu.matmul %241, %242, %cst_99 {dimension_numbers = #tpu.dot_dimension_numbers<[2], [2], [1], [1], [0, 0, 0, 1, 1, 1], [0], [0]>} : vector<1x8x8xf32>, vector<1x8x8xf32>, vector<1x8x8xf32> -> vector<1x8x8xf32>
    "tpu.trace_stop"() : () -> ()
    %244 = vector.broadcast %0 : vector<1x1x8xf32> to vector<1x8x8xf32>
    %245 = arith.addf %243, %244 : vector<1x8x8xf32>
    %cst_100 = arith.constant dense<0xFF800000> : vector<1x8xf32>
    %246 = vector.multi_reduction <maximumf>, %245, %cst_100 [2] : vector<1x8x8xf32> to vector<1x8xf32>
    %247 = vector.shape_cast %246 : vector<1x8xf32> to vector<1x8x1xf32>
    %248 = vector.broadcast %247 : vector<1x8x1xf32> to vector<1x8x8xf32>
    %249 = arith.subf %245, %248 : vector<1x8x8xf32>
    %250 = math.exp %249 : vector<1x8x8xf32>
    %cst_101 = arith.constant dense<0.000000e+00> : vector<1x8xf32>
    %251 = vector.multi_reduction <add>, %250, %cst_101 [2] : vector<1x8x8xf32> to vector<1x8xf32>
    %252 = vector.shape_cast %251 : vector<1x8xf32> to vector<1x8x1xf32>
    %253 = tpu.reciprocal %252 : vector<1x8x1xf32> -> vector<1x8x1xf32>
    %254 = vector.broadcast %253 : vector<1x8x1xf32> to vector<1x8x8xf32>
    %255 = arith.mulf %250, %254 : vector<1x8x8xf32>
    %256 = vector.extract_strided_slice %189 {offsets = [0, 0, 24], sizes = [1, 8, 8], strides = [1, 1, 1]} : vector<1x8x32xf32> to vector<1x8x8xf32>
    "tpu.trace_start"() <{level = 10 : i32, message = "bqk,bkd->bqd"}> : () -> ()
    %cst_102 = arith.constant dense<0.000000e+00> : vector<1x8x8xf32>
    %257 = tpu.matmul %255, %256, %cst_102 {dimension_numbers = #tpu.dot_dimension_numbers<[2], [1], [1], [2], [0, 0, 0, 1, 1, 2], [0], [0]>} : vector<1x8x8xf32>, vector<1x8x8xf32>, vector<1x8x8xf32> -> vector<1x8x8xf32>
    "tpu.trace_stop"() : () -> ()
    %258 = tpu.concatenate %206, %223, %240, %257 in 2 : vector<1x8x8xf32>, vector<1x8x8xf32>, vector<1x8x8xf32>, vector<1x8x8xf32> -> vector<1x8x32xf32>
    %259 = vector.shape_cast %258 : vector<1x8x32xf32> to vector<8x32xf32>
    %cst_103 = arith.constant dense<0.000000e+00> : vector<8x32xf32>
    %260 = tpu.matmul %259, %173, %cst_103 {dimension_numbers = #tpu.dot_dimension_numbers<[1], [0], [0], [1], [0, 0, 1, 1], [], []>} : vector<8x32xf32>, vector<32x32xf32>, vector<8x32xf32> -> vector<8x32xf32>
    %261 = vector.broadcast %177 : vector<1x32xf32> to vector<8x32xf32>
    %262 = arith.addf %260, %261 : vector<8x32xf32>
    %263 = arith.addf %165, %262 : vector<8x32xf32>
    %c13 = arith.constant 13 : index
    %c0_104 = arith.constant 0 : index
    %264 = vector.load %arg7[%c13, %c0_104] : memref<48x32xf32, #tpu.memory_space<vmem>>, vector<1x32xf32>
    %c14 = arith.constant 14 : index
    %c0_105 = arith.constant 0 : index
    %265 = vector.load %arg7[%c14, %c0_105] : memref<48x32xf32, #tpu.memory_space<vmem>>, vector<1x32xf32>
    %cst_106 = arith.constant dense<0.000000e+00> : vector<8xf32>
    %266 = vector.multi_reduction <add>, %263, %cst_106 [1] : vector<8x32xf32> to vector<8xf32>
    %267 = vector.shape_cast %266 : vector<8xf32> to vector<8x1xf32>
    %cst_107 = arith.constant 3.200000e+01 : f32
    %268 = vector.broadcast %cst_107 : f32 to vector<8x1xf32>
    %269 = arith.divf %267, %268 : vector<8x1xf32>
    %270 = vector.broadcast %269 : vector<8x1xf32> to vector<8x32xf32>
    %271 = arith.subf %263, %270 : vector<8x32xf32>
    %272 = arith.mulf %271, %271 : vector<8x32xf32>
    %cst_108 = arith.constant dense<0.000000e+00> : vector<8xf32>
    %273 = vector.multi_reduction <add>, %272, %cst_108 [1] : vector<8x32xf32> to vector<8xf32>
    %274 = vector.shape_cast %273 : vector<8xf32> to vector<8x1xf32>
    %cst_109 = arith.constant 3.200000e+01 : f32
    %275 = vector.broadcast %cst_109 : f32 to vector<8x1xf32>
    %276 = arith.divf %274, %275 : vector<8x1xf32>
    %277 = vector.broadcast %269 : vector<8x1xf32> to vector<8x32xf32>
    %278 = arith.subf %263, %277 : vector<8x32xf32>
    %cst_110 = arith.constant 9.99999974E-6 : f32
    %279 = vector.broadcast %cst_110 : f32 to vector<8x1xf32>
    %280 = arith.addf %276, %279 : vector<8x1xf32>
    %281 = math.rsqrt %280 : vector<8x1xf32>
    %282 = vector.broadcast %281 : vector<8x1xf32> to vector<8x32xf32>
    %283 = arith.mulf %278, %282 : vector<8x32xf32>
    %284 = vector.broadcast %264 : vector<1x32xf32> to vector<8x32xf32>
    %285 = arith.mulf %283, %284 : vector<8x32xf32>
    %286 = vector.broadcast %265 : vector<1x32xf32> to vector<8x32xf32>
    %287 = arith.addf %285, %286 : vector<8x32xf32>
    %c1_111 = arith.constant 1 : index
    %c0_112 = arith.constant 0 : index
    %c0_113 = arith.constant 0 : index
    %288 = vector.load %arg5[%c1_111, %c0_112, %c0_113] : memref<4x32x128xf32, #tpu.memory_space<vmem>>, vector<1x32x128xf32>
    %289 = vector.shape_cast %288 : vector<1x32x128xf32> to vector<32x128xf32>
    %c1_114 = arith.constant 1 : index
    %c0_115 = arith.constant 0 : index
    %290 = vector.load %arg8[%c1_114, %c0_115] : memref<4x128xf32, #tpu.memory_space<vmem>>, vector<1x128xf32>
    %c1_116 = arith.constant 1 : index
    %c0_117 = arith.constant 0 : index
    %c0_118 = arith.constant 0 : index
    %291 = vector.load %arg6[%c1_116, %c0_117, %c0_118] : memref<4x128x32xf32, #tpu.memory_space<vmem>>, vector<1x128x32xf32>
    %292 = vector.shape_cast %291 : vector<1x128x32xf32> to vector<128x32xf32>
    %c15 = arith.constant 15 : index
    %c0_119 = arith.constant 0 : index
    %293 = vector.load %arg7[%c15, %c0_119] : memref<48x32xf32, #tpu.memory_space<vmem>>, vector<1x32xf32>
    %cst_120 = arith.constant dense<0.000000e+00> : vector<8x128xf32>
    %294 = tpu.matmul %287, %289, %cst_120 {dimension_numbers = #tpu.dot_dimension_numbers<[1], [0], [0], [1], [0, 0, 1, 1], [], []>} : vector<8x32xf32>, vector<32x128xf32>, vector<8x128xf32> -> vector<8x128xf32>
    %295 = vector.broadcast %290 : vector<1x128xf32> to vector<8x128xf32>
    %296 = arith.addf %294, %295 : vector<8x128xf32>
    %cst_121 = arith.constant 0.000000e+00 : f32
    %297 = vector.broadcast %cst_121 : f32 to vector<8x128xf32>
    %298 = arith.maximumf %296, %297 : vector<8x128xf32>
    %cst_122 = arith.constant dense<0.000000e+00> : vector<8x32xf32>
    %299 = tpu.matmul %298, %292, %cst_122 {dimension_numbers = #tpu.dot_dimension_numbers<[1], [0], [0], [1], [0, 0, 1, 1], [], []>} : vector<8x128xf32>, vector<128x32xf32>, vector<8x32xf32> -> vector<8x32xf32>
    %300 = vector.broadcast %293 : vector<1x32xf32> to vector<8x32xf32>
    %301 = arith.addf %299, %300 : vector<8x32xf32>
    %cst_123 = arith.constant 0.000000e+00 : f32
    %302 = vector.broadcast %cst_123 : f32 to vector<8x32xf32>
    %303 = arith.maximumf %301, %302 : vector<8x32xf32>
    %304 = arith.addf %287, %303 : vector<8x32xf32>
    %c16 = arith.constant 16 : index
    %c0_124 = arith.constant 0 : index
    %305 = vector.load %arg7[%c16, %c0_124] : memref<48x32xf32, #tpu.memory_space<vmem>>, vector<1x32xf32>
    %c17 = arith.constant 17 : index
    %c0_125 = arith.constant 0 : index
    %306 = vector.load %arg7[%c17, %c0_125] : memref<48x32xf32, #tpu.memory_space<vmem>>, vector<1x32xf32>
    %cst_126 = arith.constant dense<0.000000e+00> : vector<8xf32>
    %307 = vector.multi_reduction <add>, %304, %cst_126 [1] : vector<8x32xf32> to vector<8xf32>
    %308 = vector.shape_cast %307 : vector<8xf32> to vector<8x1xf32>
    %cst_127 = arith.constant 3.200000e+01 : f32
    %309 = vector.broadcast %cst_127 : f32 to vector<8x1xf32>
    %310 = arith.divf %308, %309 : vector<8x1xf32>
    %311 = vector.broadcast %310 : vector<8x1xf32> to vector<8x32xf32>
    %312 = arith.subf %304, %311 : vector<8x32xf32>
    %313 = arith.mulf %312, %312 : vector<8x32xf32>
    %cst_128 = arith.constant dense<0.000000e+00> : vector<8xf32>
    %314 = vector.multi_reduction <add>, %313, %cst_128 [1] : vector<8x32xf32> to vector<8xf32>
    %315 = vector.shape_cast %314 : vector<8xf32> to vector<8x1xf32>
    %cst_129 = arith.constant 3.200000e+01 : f32
    %316 = vector.broadcast %cst_129 : f32 to vector<8x1xf32>
    %317 = arith.divf %315, %316 : vector<8x1xf32>
    %318 = vector.broadcast %310 : vector<8x1xf32> to vector<8x32xf32>
    %319 = arith.subf %304, %318 : vector<8x32xf32>
    %cst_130 = arith.constant 9.99999974E-6 : f32
    %320 = vector.broadcast %cst_130 : f32 to vector<8x1xf32>
    %321 = arith.addf %317, %320 : vector<8x1xf32>
    %322 = math.rsqrt %321 : vector<8x1xf32>
    %323 = vector.broadcast %322 : vector<8x1xf32> to vector<8x32xf32>
    %324 = arith.mulf %319, %323 : vector<8x32xf32>
    %325 = vector.broadcast %305 : vector<1x32xf32> to vector<8x32xf32>
    %326 = arith.mulf %324, %325 : vector<8x32xf32>
    %327 = vector.broadcast %306 : vector<1x32xf32> to vector<8x32xf32>
    %328 = arith.addf %326, %327 : vector<8x32xf32>
    %c0_131 = arith.constant 0 : index
    %c0_132 = arith.constant 0 : index
    %329 = vector.load %arg3[%c0_131, %c0_132] : memref<8x32xf32, #tpu.memory_space<vmem>>, vector<8x32xf32>
    %c8_133 = arith.constant 8 : index
    %c0_134 = arith.constant 0 : index
    %c0_135 = arith.constant 0 : index
    %330 = vector.load %arg4[%c8_133, %c0_134, %c0_135] : memref<24x32x32xf32, #tpu.memory_space<vmem>>, vector<1x32x32xf32>
    %331 = vector.shape_cast %330 : vector<1x32x32xf32> to vector<32x32xf32>
    %c9_136 = arith.constant 9 : index
    %c0_137 = arith.constant 0 : index
    %c0_138 = arith.constant 0 : index
    %332 = vector.load %arg4[%c9_136, %c0_137, %c0_138] : memref<24x32x32xf32, #tpu.memory_space<vmem>>, vector<1x32x32xf32>
    %333 = vector.shape_cast %332 : vector<1x32x32xf32> to vector<32x32xf32>
    %c10_139 = arith.constant 10 : index
    %c0_140 = arith.constant 0 : index
    %c0_141 = arith.constant 0 : index
    %334 = vector.load %arg4[%c10_139, %c0_140, %c0_141] : memref<24x32x32xf32, #tpu.memory_space<vmem>>, vector<1x32x32xf32>
    %335 = vector.shape_cast %334 : vector<1x32x32xf32> to vector<32x32xf32>
    %c11_142 = arith.constant 11 : index
    %c0_143 = arith.constant 0 : index
    %c0_144 = arith.constant 0 : index
    %336 = vector.load %arg4[%c11_142, %c0_143, %c0_144] : memref<24x32x32xf32, #tpu.memory_space<vmem>>, vector<1x32x32xf32>
    %337 = vector.shape_cast %336 : vector<1x32x32xf32> to vector<32x32xf32>
    %c18 = arith.constant 18 : index
    %c0_145 = arith.constant 0 : index
    %338 = vector.load %arg7[%c18, %c0_145] : memref<48x32xf32, #tpu.memory_space<vmem>>, vector<1x32xf32>
    %c19 = arith.constant 19 : index
    %c0_146 = arith.constant 0 : index
    %339 = vector.load %arg7[%c19, %c0_146] : memref<48x32xf32, #tpu.memory_space<vmem>>, vector<1x32xf32>
    %c20 = arith.constant 20 : index
    %c0_147 = arith.constant 0 : index
    %340 = vector.load %arg7[%c20, %c0_147] : memref<48x32xf32, #tpu.memory_space<vmem>>, vector<1x32xf32>
    %c21 = arith.constant 21 : index
    %c0_148 = arith.constant 0 : index
    %341 = vector.load %arg7[%c21, %c0_148] : memref<48x32xf32, #tpu.memory_space<vmem>>, vector<1x32xf32>
    %cst_149 = arith.constant dense<0.000000e+00> : vector<8x32xf32>
    %342 = tpu.matmul %329, %331, %cst_149 {dimension_numbers = #tpu.dot_dimension_numbers<[1], [0], [0], [1], [0, 0, 1, 1], [], []>} : vector<8x32xf32>, vector<32x32xf32>, vector<8x32xf32> -> vector<8x32xf32>
    %343 = vector.broadcast %338 : vector<1x32xf32> to vector<8x32xf32>
    %344 = arith.addf %342, %343 : vector<8x32xf32>
    %cst_150 = arith.constant dense<0.000000e+00> : vector<8x32xf32>
    %345 = tpu.matmul %329, %333, %cst_150 {dimension_numbers = #tpu.dot_dimension_numbers<[1], [0], [0], [1], [0, 0, 1, 1], [], []>} : vector<8x32xf32>, vector<32x32xf32>, vector<8x32xf32> -> vector<8x32xf32>
    %346 = vector.broadcast %339 : vector<1x32xf32> to vector<8x32xf32>
    %347 = arith.addf %345, %346 : vector<8x32xf32>
    %cst_151 = arith.constant dense<0.000000e+00> : vector<8x32xf32>
    %348 = tpu.matmul %329, %335, %cst_151 {dimension_numbers = #tpu.dot_dimension_numbers<[1], [0], [0], [1], [0, 0, 1, 1], [], []>} : vector<8x32xf32>, vector<32x32xf32>, vector<8x32xf32> -> vector<8x32xf32>
    %349 = vector.broadcast %340 : vector<1x32xf32> to vector<8x32xf32>
    %350 = arith.addf %348, %349 : vector<8x32xf32>
    %351 = vector.shape_cast %344 : vector<8x32xf32> to vector<1x8x32xf32>
    %352 = vector.shape_cast %347 : vector<8x32xf32> to vector<1x8x32xf32>
    %353 = vector.shape_cast %350 : vector<8x32xf32> to vector<1x8x32xf32>
    %354 = vector.extract_strided_slice %351 {offsets = [0, 0, 0], sizes = [1, 8, 8], strides = [1, 1, 1]} : vector<1x8x32xf32> to vector<1x8x8xf32>
    %355 = vector.extract_strided_slice %352 {offsets = [0, 0, 0], sizes = [1, 8, 8], strides = [1, 1, 1]} : vector<1x8x32xf32> to vector<1x8x8xf32>
    "tpu.trace_start"() <{level = 10 : i32, message = "bqd,bkd->bqk"}> : () -> ()
    %cst_152 = arith.constant dense<0.000000e+00> : vector<1x8x8xf32>
    %356 = tpu.matmul %354, %355, %cst_152 {dimension_numbers = #tpu.dot_dimension_numbers<[2], [2], [1], [1], [0, 0, 0, 1, 1, 1], [0], [0]>} : vector<1x8x8xf32>, vector<1x8x8xf32>, vector<1x8x8xf32> -> vector<1x8x8xf32>
    "tpu.trace_stop"() : () -> ()
    %357 = vector.broadcast %0 : vector<1x1x8xf32> to vector<1x8x8xf32>
    %358 = arith.addf %356, %357 : vector<1x8x8xf32>
    %cst_153 = arith.constant dense<0xFF800000> : vector<1x8xf32>
    %359 = vector.multi_reduction <maximumf>, %358, %cst_153 [2] : vector<1x8x8xf32> to vector<1x8xf32>
    %360 = vector.shape_cast %359 : vector<1x8xf32> to vector<1x8x1xf32>
    %361 = vector.broadcast %360 : vector<1x8x1xf32> to vector<1x8x8xf32>
    %362 = arith.subf %358, %361 : vector<1x8x8xf32>
    %363 = math.exp %362 : vector<1x8x8xf32>
    %cst_154 = arith.constant dense<0.000000e+00> : vector<1x8xf32>
    %364 = vector.multi_reduction <add>, %363, %cst_154 [2] : vector<1x8x8xf32> to vector<1x8xf32>
    %365 = vector.shape_cast %364 : vector<1x8xf32> to vector<1x8x1xf32>
    %366 = tpu.reciprocal %365 : vector<1x8x1xf32> -> vector<1x8x1xf32>
    %367 = vector.broadcast %366 : vector<1x8x1xf32> to vector<1x8x8xf32>
    %368 = arith.mulf %363, %367 : vector<1x8x8xf32>
    %369 = vector.extract_strided_slice %353 {offsets = [0, 0, 0], sizes = [1, 8, 8], strides = [1, 1, 1]} : vector<1x8x32xf32> to vector<1x8x8xf32>
    "tpu.trace_start"() <{level = 10 : i32, message = "bqk,bkd->bqd"}> : () -> ()
    %cst_155 = arith.constant dense<0.000000e+00> : vector<1x8x8xf32>
    %370 = tpu.matmul %368, %369, %cst_155 {dimension_numbers = #tpu.dot_dimension_numbers<[2], [1], [1], [2], [0, 0, 0, 1, 1, 2], [0], [0]>} : vector<1x8x8xf32>, vector<1x8x8xf32>, vector<1x8x8xf32> -> vector<1x8x8xf32>
    "tpu.trace_stop"() : () -> ()
    %371 = vector.extract_strided_slice %351 {offsets = [0, 0, 8], sizes = [1, 8, 8], strides = [1, 1, 1]} : vector<1x8x32xf32> to vector<1x8x8xf32>
    %372 = vector.extract_strided_slice %352 {offsets = [0, 0, 8], sizes = [1, 8, 8], strides = [1, 1, 1]} : vector<1x8x32xf32> to vector<1x8x8xf32>
    "tpu.trace_start"() <{level = 10 : i32, message = "bqd,bkd->bqk"}> : () -> ()
    %cst_156 = arith.constant dense<0.000000e+00> : vector<1x8x8xf32>
    %373 = tpu.matmul %371, %372, %cst_156 {dimension_numbers = #tpu.dot_dimension_numbers<[2], [2], [1], [1], [0, 0, 0, 1, 1, 1], [0], [0]>} : vector<1x8x8xf32>, vector<1x8x8xf32>, vector<1x8x8xf32> -> vector<1x8x8xf32>
    "tpu.trace_stop"() : () -> ()
    %374 = vector.broadcast %0 : vector<1x1x8xf32> to vector<1x8x8xf32>
    %375 = arith.addf %373, %374 : vector<1x8x8xf32>
    %cst_157 = arith.constant dense<0xFF800000> : vector<1x8xf32>
    %376 = vector.multi_reduction <maximumf>, %375, %cst_157 [2] : vector<1x8x8xf32> to vector<1x8xf32>
    %377 = vector.shape_cast %376 : vector<1x8xf32> to vector<1x8x1xf32>
    %378 = vector.broadcast %377 : vector<1x8x1xf32> to vector<1x8x8xf32>
    %379 = arith.subf %375, %378 : vector<1x8x8xf32>
    %380 = math.exp %379 : vector<1x8x8xf32>
    %cst_158 = arith.constant dense<0.000000e+00> : vector<1x8xf32>
    %381 = vector.multi_reduction <add>, %380, %cst_158 [2] : vector<1x8x8xf32> to vector<1x8xf32>
    %382 = vector.shape_cast %381 : vector<1x8xf32> to vector<1x8x1xf32>
    %383 = tpu.reciprocal %382 : vector<1x8x1xf32> -> vector<1x8x1xf32>
    %384 = vector.broadcast %383 : vector<1x8x1xf32> to vector<1x8x8xf32>
    %385 = arith.mulf %380, %384 : vector<1x8x8xf32>
    %386 = vector.extract_strided_slice %353 {offsets = [0, 0, 8], sizes = [1, 8, 8], strides = [1, 1, 1]} : vector<1x8x32xf32> to vector<1x8x8xf32>
    "tpu.trace_start"() <{level = 10 : i32, message = "bqk,bkd->bqd"}> : () -> ()
    %cst_159 = arith.constant dense<0.000000e+00> : vector<1x8x8xf32>
    %387 = tpu.matmul %385, %386, %cst_159 {dimension_numbers = #tpu.dot_dimension_numbers<[2], [1], [1], [2], [0, 0, 0, 1, 1, 2], [0], [0]>} : vector<1x8x8xf32>, vector<1x8x8xf32>, vector<1x8x8xf32> -> vector<1x8x8xf32>
    "tpu.trace_stop"() : () -> ()
    %388 = vector.extract_strided_slice %351 {offsets = [0, 0, 16], sizes = [1, 8, 8], strides = [1, 1, 1]} : vector<1x8x32xf32> to vector<1x8x8xf32>
    %389 = vector.extract_strided_slice %352 {offsets = [0, 0, 16], sizes = [1, 8, 8], strides = [1, 1, 1]} : vector<1x8x32xf32> to vector<1x8x8xf32>
    "tpu.trace_start"() <{level = 10 : i32, message = "bqd,bkd->bqk"}> : () -> ()
    %cst_160 = arith.constant dense<0.000000e+00> : vector<1x8x8xf32>
    %390 = tpu.matmul %388, %389, %cst_160 {dimension_numbers = #tpu.dot_dimension_numbers<[2], [2], [1], [1], [0, 0, 0, 1, 1, 1], [0], [0]>} : vector<1x8x8xf32>, vector<1x8x8xf32>, vector<1x8x8xf32> -> vector<1x8x8xf32>
    "tpu.trace_stop"() : () -> ()
    %391 = vector.broadcast %0 : vector<1x1x8xf32> to vector<1x8x8xf32>
    %392 = arith.addf %390, %391 : vector<1x8x8xf32>
    %cst_161 = arith.constant dense<0xFF800000> : vector<1x8xf32>
    %393 = vector.multi_reduction <maximumf>, %392, %cst_161 [2] : vector<1x8x8xf32> to vector<1x8xf32>
    %394 = vector.shape_cast %393 : vector<1x8xf32> to vector<1x8x1xf32>
    %395 = vector.broadcast %394 : vector<1x8x1xf32> to vector<1x8x8xf32>
    %396 = arith.subf %392, %395 : vector<1x8x8xf32>
    %397 = math.exp %396 : vector<1x8x8xf32>
    %cst_162 = arith.constant dense<0.000000e+00> : vector<1x8xf32>
    %398 = vector.multi_reduction <add>, %397, %cst_162 [2] : vector<1x8x8xf32> to vector<1x8xf32>
    %399 = vector.shape_cast %398 : vector<1x8xf32> to vector<1x8x1xf32>
    %400 = tpu.reciprocal %399 : vector<1x8x1xf32> -> vector<1x8x1xf32>
    %401 = vector.broadcast %400 : vector<1x8x1xf32> to vector<1x8x8xf32>
    %402 = arith.mulf %397, %401 : vector<1x8x8xf32>
    %403 = vector.extract_strided_slice %353 {offsets = [0, 0, 16], sizes = [1, 8, 8], strides = [1, 1, 1]} : vector<1x8x32xf32> to vector<1x8x8xf32>
    "tpu.trace_start"() <{level = 10 : i32, message = "bqk,bkd->bqd"}> : () -> ()
    %cst_163 = arith.constant dense<0.000000e+00> : vector<1x8x8xf32>
    %404 = tpu.matmul %402, %403, %cst_163 {dimension_numbers = #tpu.dot_dimension_numbers<[2], [1], [1], [2], [0, 0, 0, 1, 1, 2], [0], [0]>} : vector<1x8x8xf32>, vector<1x8x8xf32>, vector<1x8x8xf32> -> vector<1x8x8xf32>
    "tpu.trace_stop"() : () -> ()
    %405 = vector.extract_strided_slice %351 {offsets = [0, 0, 24], sizes = [1, 8, 8], strides = [1, 1, 1]} : vector<1x8x32xf32> to vector<1x8x8xf32>
    %406 = vector.extract_strided_slice %352 {offsets = [0, 0, 24], sizes = [1, 8, 8], strides = [1, 1, 1]} : vector<1x8x32xf32> to vector<1x8x8xf32>
    "tpu.trace_start"() <{level = 10 : i32, message = "bqd,bkd->bqk"}> : () -> ()
    %cst_164 = arith.constant dense<0.000000e+00> : vector<1x8x8xf32>
    %407 = tpu.matmul %405, %406, %cst_164 {dimension_numbers = #tpu.dot_dimension_numbers<[2], [2], [1], [1], [0, 0, 0, 1, 1, 1], [0], [0]>} : vector<1x8x8xf32>, vector<1x8x8xf32>, vector<1x8x8xf32> -> vector<1x8x8xf32>
    "tpu.trace_stop"() : () -> ()
    %408 = vector.broadcast %0 : vector<1x1x8xf32> to vector<1x8x8xf32>
    %409 = arith.addf %407, %408 : vector<1x8x8xf32>
    %cst_165 = arith.constant dense<0xFF800000> : vector<1x8xf32>
    %410 = vector.multi_reduction <maximumf>, %409, %cst_165 [2] : vector<1x8x8xf32> to vector<1x8xf32>
    %411 = vector.shape_cast %410 : vector<1x8xf32> to vector<1x8x1xf32>
    %412 = vector.broadcast %411 : vector<1x8x1xf32> to vector<1x8x8xf32>
    %413 = arith.subf %409, %412 : vector<1x8x8xf32>
    %414 = math.exp %413 : vector<1x8x8xf32>
    %cst_166 = arith.constant dense<0.000000e+00> : vector<1x8xf32>
    %415 = vector.multi_reduction <add>, %414, %cst_166 [2] : vector<1x8x8xf32> to vector<1x8xf32>
    %416 = vector.shape_cast %415 : vector<1x8xf32> to vector<1x8x1xf32>
    %417 = tpu.reciprocal %416 : vector<1x8x1xf32> -> vector<1x8x1xf32>
    %418 = vector.broadcast %417 : vector<1x8x1xf32> to vector<1x8x8xf32>
    %419 = arith.mulf %414, %418 : vector<1x8x8xf32>
    %420 = vector.extract_strided_slice %353 {offsets = [0, 0, 24], sizes = [1, 8, 8], strides = [1, 1, 1]} : vector<1x8x32xf32> to vector<1x8x8xf32>
    "tpu.trace_start"() <{level = 10 : i32, message = "bqk,bkd->bqd"}> : () -> ()
    %cst_167 = arith.constant dense<0.000000e+00> : vector<1x8x8xf32>
    %421 = tpu.matmul %419, %420, %cst_167 {dimension_numbers = #tpu.dot_dimension_numbers<[2], [1], [1], [2], [0, 0, 0, 1, 1, 2], [0], [0]>} : vector<1x8x8xf32>, vector<1x8x8xf32>, vector<1x8x8xf32> -> vector<1x8x8xf32>
    "tpu.trace_stop"() : () -> ()
    %422 = tpu.concatenate %370, %387, %404, %421 in 2 : vector<1x8x8xf32>, vector<1x8x8xf32>, vector<1x8x8xf32>, vector<1x8x8xf32> -> vector<1x8x32xf32>
    %423 = vector.shape_cast %422 : vector<1x8x32xf32> to vector<8x32xf32>
    %cst_168 = arith.constant dense<0.000000e+00> : vector<8x32xf32>
    %424 = tpu.matmul %423, %337, %cst_168 {dimension_numbers = #tpu.dot_dimension_numbers<[1], [0], [0], [1], [0, 0, 1, 1], [], []>} : vector<8x32xf32>, vector<32x32xf32>, vector<8x32xf32> -> vector<8x32xf32>
    %425 = vector.broadcast %341 : vector<1x32xf32> to vector<8x32xf32>
    %426 = arith.addf %424, %425 : vector<8x32xf32>
    %427 = arith.addf %329, %426 : vector<8x32xf32>
    %c22 = arith.constant 22 : index
    %c0_169 = arith.constant 0 : index
    %428 = vector.load %arg7[%c22, %c0_169] : memref<48x32xf32, #tpu.memory_space<vmem>>, vector<1x32xf32>
    %c23 = arith.constant 23 : index
    %c0_170 = arith.constant 0 : index
    %429 = vector.load %arg7[%c23, %c0_170] : memref<48x32xf32, #tpu.memory_space<vmem>>, vector<1x32xf32>
    %cst_171 = arith.constant dense<0.000000e+00> : vector<8xf32>
    %430 = vector.multi_reduction <add>, %427, %cst_171 [1] : vector<8x32xf32> to vector<8xf32>
    %431 = vector.shape_cast %430 : vector<8xf32> to vector<8x1xf32>
    %cst_172 = arith.constant 3.200000e+01 : f32
    %432 = vector.broadcast %cst_172 : f32 to vector<8x1xf32>
    %433 = arith.divf %431, %432 : vector<8x1xf32>
    %434 = vector.broadcast %433 : vector<8x1xf32> to vector<8x32xf32>
    %435 = arith.subf %427, %434 : vector<8x32xf32>
    %436 = arith.mulf %435, %435 : vector<8x32xf32>
    %cst_173 = arith.constant dense<0.000000e+00> : vector<8xf32>
    %437 = vector.multi_reduction <add>, %436, %cst_173 [1] : vector<8x32xf32> to vector<8xf32>
    %438 = vector.shape_cast %437 : vector<8xf32> to vector<8x1xf32>
    %cst_174 = arith.constant 3.200000e+01 : f32
    %439 = vector.broadcast %cst_174 : f32 to vector<8x1xf32>
    %440 = arith.divf %438, %439 : vector<8x1xf32>
    %441 = vector.broadcast %433 : vector<8x1xf32> to vector<8x32xf32>
    %442 = arith.subf %427, %441 : vector<8x32xf32>
    %cst_175 = arith.constant 9.99999974E-6 : f32
    %443 = vector.broadcast %cst_175 : f32 to vector<8x1xf32>
    %444 = arith.addf %440, %443 : vector<8x1xf32>
    %445 = math.rsqrt %444 : vector<8x1xf32>
    %446 = vector.broadcast %445 : vector<8x1xf32> to vector<8x32xf32>
    %447 = arith.mulf %442, %446 : vector<8x32xf32>
    %448 = vector.broadcast %428 : vector<1x32xf32> to vector<8x32xf32>
    %449 = arith.mulf %447, %448 : vector<8x32xf32>
    %450 = vector.broadcast %429 : vector<1x32xf32> to vector<8x32xf32>
    %451 = arith.addf %449, %450 : vector<8x32xf32>
    %c12_176 = arith.constant 12 : index
    %c0_177 = arith.constant 0 : index
    %c0_178 = arith.constant 0 : index
    %452 = vector.load %arg4[%c12_176, %c0_177, %c0_178] : memref<24x32x32xf32, #tpu.memory_space<vmem>>, vector<1x32x32xf32>
    %453 = vector.shape_cast %452 : vector<1x32x32xf32> to vector<32x32xf32>
    %c13_179 = arith.constant 13 : index
    %c0_180 = arith.constant 0 : index
    %c0_181 = arith.constant 0 : index
    %454 = vector.load %arg4[%c13_179, %c0_180, %c0_181] : memref<24x32x32xf32, #tpu.memory_space<vmem>>, vector<1x32x32xf32>
    %455 = vector.shape_cast %454 : vector<1x32x32xf32> to vector<32x32xf32>
    %c14_182 = arith.constant 14 : index
    %c0_183 = arith.constant 0 : index
    %c0_184 = arith.constant 0 : index
    %456 = vector.load %arg4[%c14_182, %c0_183, %c0_184] : memref<24x32x32xf32, #tpu.memory_space<vmem>>, vector<1x32x32xf32>
    %457 = vector.shape_cast %456 : vector<1x32x32xf32> to vector<32x32xf32>
    %c15_185 = arith.constant 15 : index
    %c0_186 = arith.constant 0 : index
    %c0_187 = arith.constant 0 : index
    %458 = vector.load %arg4[%c15_185, %c0_186, %c0_187] : memref<24x32x32xf32, #tpu.memory_space<vmem>>, vector<1x32x32xf32>
    %459 = vector.shape_cast %458 : vector<1x32x32xf32> to vector<32x32xf32>
    %c24 = arith.constant 24 : index
    %c0_188 = arith.constant 0 : index
    %460 = vector.load %arg7[%c24, %c0_188] : memref<48x32xf32, #tpu.memory_space<vmem>>, vector<1x32xf32>
    %c25 = arith.constant 25 : index
    %c0_189 = arith.constant 0 : index
    %461 = vector.load %arg7[%c25, %c0_189] : memref<48x32xf32, #tpu.memory_space<vmem>>, vector<1x32xf32>
    %c26 = arith.constant 26 : index
    %c0_190 = arith.constant 0 : index
    %462 = vector.load %arg7[%c26, %c0_190] : memref<48x32xf32, #tpu.memory_space<vmem>>, vector<1x32xf32>
    %c27 = arith.constant 27 : index
    %c0_191 = arith.constant 0 : index
    %463 = vector.load %arg7[%c27, %c0_191] : memref<48x32xf32, #tpu.memory_space<vmem>>, vector<1x32xf32>
    %cst_192 = arith.constant dense<0.000000e+00> : vector<8x32xf32>
    %464 = tpu.matmul %451, %453, %cst_192 {dimension_numbers = #tpu.dot_dimension_numbers<[1], [0], [0], [1], [0, 0, 1, 1], [], []>} : vector<8x32xf32>, vector<32x32xf32>, vector<8x32xf32> -> vector<8x32xf32>
    %465 = vector.broadcast %460 : vector<1x32xf32> to vector<8x32xf32>
    %466 = arith.addf %464, %465 : vector<8x32xf32>
    %cst_193 = arith.constant dense<0.000000e+00> : vector<8x32xf32>
    %467 = tpu.matmul %328, %455, %cst_193 {dimension_numbers = #tpu.dot_dimension_numbers<[1], [0], [0], [1], [0, 0, 1, 1], [], []>} : vector<8x32xf32>, vector<32x32xf32>, vector<8x32xf32> -> vector<8x32xf32>
    %468 = vector.broadcast %461 : vector<1x32xf32> to vector<8x32xf32>
    %469 = arith.addf %467, %468 : vector<8x32xf32>
    %cst_194 = arith.constant dense<0.000000e+00> : vector<8x32xf32>
    %470 = tpu.matmul %328, %457, %cst_194 {dimension_numbers = #tpu.dot_dimension_numbers<[1], [0], [0], [1], [0, 0, 1, 1], [], []>} : vector<8x32xf32>, vector<32x32xf32>, vector<8x32xf32> -> vector<8x32xf32>
    %471 = vector.broadcast %462 : vector<1x32xf32> to vector<8x32xf32>
    %472 = arith.addf %470, %471 : vector<8x32xf32>
    %473 = vector.shape_cast %466 : vector<8x32xf32> to vector<1x8x32xf32>
    %474 = vector.shape_cast %469 : vector<8x32xf32> to vector<1x8x32xf32>
    %475 = vector.shape_cast %472 : vector<8x32xf32> to vector<1x8x32xf32>
    %476 = vector.extract_strided_slice %473 {offsets = [0, 0, 0], sizes = [1, 8, 8], strides = [1, 1, 1]} : vector<1x8x32xf32> to vector<1x8x8xf32>
    %477 = vector.extract_strided_slice %474 {offsets = [0, 0, 0], sizes = [1, 8, 8], strides = [1, 1, 1]} : vector<1x8x32xf32> to vector<1x8x8xf32>
    "tpu.trace_start"() <{level = 10 : i32, message = "bqd,bkd->bqk"}> : () -> ()
    %cst_195 = arith.constant dense<0.000000e+00> : vector<1x8x8xf32>
    %478 = tpu.matmul %476, %477, %cst_195 {dimension_numbers = #tpu.dot_dimension_numbers<[2], [2], [1], [1], [0, 0, 0, 1, 1, 1], [0], [0]>} : vector<1x8x8xf32>, vector<1x8x8xf32>, vector<1x8x8xf32> -> vector<1x8x8xf32>
    "tpu.trace_stop"() : () -> ()
    %479 = vector.broadcast %0 : vector<1x1x8xf32> to vector<1x8x8xf32>
    %480 = arith.addf %478, %479 : vector<1x8x8xf32>
    %cst_196 = arith.constant dense<0xFF800000> : vector<1x8xf32>
    %481 = vector.multi_reduction <maximumf>, %480, %cst_196 [2] : vector<1x8x8xf32> to vector<1x8xf32>
    %482 = vector.shape_cast %481 : vector<1x8xf32> to vector<1x8x1xf32>
    %483 = vector.broadcast %482 : vector<1x8x1xf32> to vector<1x8x8xf32>
    %484 = arith.subf %480, %483 : vector<1x8x8xf32>
    %485 = math.exp %484 : vector<1x8x8xf32>
    %cst_197 = arith.constant dense<0.000000e+00> : vector<1x8xf32>
    %486 = vector.multi_reduction <add>, %485, %cst_197 [2] : vector<1x8x8xf32> to vector<1x8xf32>
    %487 = vector.shape_cast %486 : vector<1x8xf32> to vector<1x8x1xf32>
    %488 = tpu.reciprocal %487 : vector<1x8x1xf32> -> vector<1x8x1xf32>
    %489 = vector.broadcast %488 : vector<1x8x1xf32> to vector<1x8x8xf32>
    %490 = arith.mulf %485, %489 : vector<1x8x8xf32>
    %491 = vector.extract_strided_slice %475 {offsets = [0, 0, 0], sizes = [1, 8, 8], strides = [1, 1, 1]} : vector<1x8x32xf32> to vector<1x8x8xf32>
    "tpu.trace_start"() <{level = 10 : i32, message = "bqk,bkd->bqd"}> : () -> ()
    %cst_198 = arith.constant dense<0.000000e+00> : vector<1x8x8xf32>
    %492 = tpu.matmul %490, %491, %cst_198 {dimension_numbers = #tpu.dot_dimension_numbers<[2], [1], [1], [2], [0, 0, 0, 1, 1, 2], [0], [0]>} : vector<1x8x8xf32>, vector<1x8x8xf32>, vector<1x8x8xf32> -> vector<1x8x8xf32>
    "tpu.trace_stop"() : () -> ()
    %493 = vector.extract_strided_slice %473 {offsets = [0, 0, 8], sizes = [1, 8, 8], strides = [1, 1, 1]} : vector<1x8x32xf32> to vector<1x8x8xf32>
    %494 = vector.extract_strided_slice %474 {offsets = [0, 0, 8], sizes = [1, 8, 8], strides = [1, 1, 1]} : vector<1x8x32xf32> to vector<1x8x8xf32>
    "tpu.trace_start"() <{level = 10 : i32, message = "bqd,bkd->bqk"}> : () -> ()
    %cst_199 = arith.constant dense<0.000000e+00> : vector<1x8x8xf32>
    %495 = tpu.matmul %493, %494, %cst_199 {dimension_numbers = #tpu.dot_dimension_numbers<[2], [2], [1], [1], [0, 0, 0, 1, 1, 1], [0], [0]>} : vector<1x8x8xf32>, vector<1x8x8xf32>, vector<1x8x8xf32> -> vector<1x8x8xf32>
    "tpu.trace_stop"() : () -> ()
    %496 = vector.broadcast %0 : vector<1x1x8xf32> to vector<1x8x8xf32>
    %497 = arith.addf %495, %496 : vector<1x8x8xf32>
    %cst_200 = arith.constant dense<0xFF800000> : vector<1x8xf32>
    %498 = vector.multi_reduction <maximumf>, %497, %cst_200 [2] : vector<1x8x8xf32> to vector<1x8xf32>
    %499 = vector.shape_cast %498 : vector<1x8xf32> to vector<1x8x1xf32>
    %500 = vector.broadcast %499 : vector<1x8x1xf32> to vector<1x8x8xf32>
    %501 = arith.subf %497, %500 : vector<1x8x8xf32>
    %502 = math.exp %501 : vector<1x8x8xf32>
    %cst_201 = arith.constant dense<0.000000e+00> : vector<1x8xf32>
    %503 = vector.multi_reduction <add>, %502, %cst_201 [2] : vector<1x8x8xf32> to vector<1x8xf32>
    %504 = vector.shape_cast %503 : vector<1x8xf32> to vector<1x8x1xf32>
    %505 = tpu.reciprocal %504 : vector<1x8x1xf32> -> vector<1x8x1xf32>
    %506 = vector.broadcast %505 : vector<1x8x1xf32> to vector<1x8x8xf32>
    %507 = arith.mulf %502, %506 : vector<1x8x8xf32>
    %508 = vector.extract_strided_slice %475 {offsets = [0, 0, 8], sizes = [1, 8, 8], strides = [1, 1, 1]} : vector<1x8x32xf32> to vector<1x8x8xf32>
    "tpu.trace_start"() <{level = 10 : i32, message = "bqk,bkd->bqd"}> : () -> ()
    %cst_202 = arith.constant dense<0.000000e+00> : vector<1x8x8xf32>
    %509 = tpu.matmul %507, %508, %cst_202 {dimension_numbers = #tpu.dot_dimension_numbers<[2], [1], [1], [2], [0, 0, 0, 1, 1, 2], [0], [0]>} : vector<1x8x8xf32>, vector<1x8x8xf32>, vector<1x8x8xf32> -> vector<1x8x8xf32>
    "tpu.trace_stop"() : () -> ()
    %510 = vector.extract_strided_slice %473 {offsets = [0, 0, 16], sizes = [1, 8, 8], strides = [1, 1, 1]} : vector<1x8x32xf32> to vector<1x8x8xf32>
    %511 = vector.extract_strided_slice %474 {offsets = [0, 0, 16], sizes = [1, 8, 8], strides = [1, 1, 1]} : vector<1x8x32xf32> to vector<1x8x8xf32>
    "tpu.trace_start"() <{level = 10 : i32, message = "bqd,bkd->bqk"}> : () -> ()
    %cst_203 = arith.constant dense<0.000000e+00> : vector<1x8x8xf32>
    %512 = tpu.matmul %510, %511, %cst_203 {dimension_numbers = #tpu.dot_dimension_numbers<[2], [2], [1], [1], [0, 0, 0, 1, 1, 1], [0], [0]>} : vector<1x8x8xf32>, vector<1x8x8xf32>, vector<1x8x8xf32> -> vector<1x8x8xf32>
    "tpu.trace_stop"() : () -> ()
    %513 = vector.broadcast %0 : vector<1x1x8xf32> to vector<1x8x8xf32>
    %514 = arith.addf %512, %513 : vector<1x8x8xf32>
    %cst_204 = arith.constant dense<0xFF800000> : vector<1x8xf32>
    %515 = vector.multi_reduction <maximumf>, %514, %cst_204 [2] : vector<1x8x8xf32> to vector<1x8xf32>
    %516 = vector.shape_cast %515 : vector<1x8xf32> to vector<1x8x1xf32>
    %517 = vector.broadcast %516 : vector<1x8x1xf32> to vector<1x8x8xf32>
    %518 = arith.subf %514, %517 : vector<1x8x8xf32>
    %519 = math.exp %518 : vector<1x8x8xf32>
    %cst_205 = arith.constant dense<0.000000e+00> : vector<1x8xf32>
    %520 = vector.multi_reduction <add>, %519, %cst_205 [2] : vector<1x8x8xf32> to vector<1x8xf32>
    %521 = vector.shape_cast %520 : vector<1x8xf32> to vector<1x8x1xf32>
    %522 = tpu.reciprocal %521 : vector<1x8x1xf32> -> vector<1x8x1xf32>
    %523 = vector.broadcast %522 : vector<1x8x1xf32> to vector<1x8x8xf32>
    %524 = arith.mulf %519, %523 : vector<1x8x8xf32>
    %525 = vector.extract_strided_slice %475 {offsets = [0, 0, 16], sizes = [1, 8, 8], strides = [1, 1, 1]} : vector<1x8x32xf32> to vector<1x8x8xf32>
    "tpu.trace_start"() <{level = 10 : i32, message = "bqk,bkd->bqd"}> : () -> ()
    %cst_206 = arith.constant dense<0.000000e+00> : vector<1x8x8xf32>
    %526 = tpu.matmul %524, %525, %cst_206 {dimension_numbers = #tpu.dot_dimension_numbers<[2], [1], [1], [2], [0, 0, 0, 1, 1, 2], [0], [0]>} : vector<1x8x8xf32>, vector<1x8x8xf32>, vector<1x8x8xf32> -> vector<1x8x8xf32>
    "tpu.trace_stop"() : () -> ()
    %527 = vector.extract_strided_slice %473 {offsets = [0, 0, 24], sizes = [1, 8, 8], strides = [1, 1, 1]} : vector<1x8x32xf32> to vector<1x8x8xf32>
    %528 = vector.extract_strided_slice %474 {offsets = [0, 0, 24], sizes = [1, 8, 8], strides = [1, 1, 1]} : vector<1x8x32xf32> to vector<1x8x8xf32>
    "tpu.trace_start"() <{level = 10 : i32, message = "bqd,bkd->bqk"}> : () -> ()
    %cst_207 = arith.constant dense<0.000000e+00> : vector<1x8x8xf32>
    %529 = tpu.matmul %527, %528, %cst_207 {dimension_numbers = #tpu.dot_dimension_numbers<[2], [2], [1], [1], [0, 0, 0, 1, 1, 1], [0], [0]>} : vector<1x8x8xf32>, vector<1x8x8xf32>, vector<1x8x8xf32> -> vector<1x8x8xf32>
    "tpu.trace_stop"() : () -> ()
    %530 = vector.broadcast %0 : vector<1x1x8xf32> to vector<1x8x8xf32>
    %531 = arith.addf %529, %530 : vector<1x8x8xf32>
    %cst_208 = arith.constant dense<0xFF800000> : vector<1x8xf32>
    %532 = vector.multi_reduction <maximumf>, %531, %cst_208 [2] : vector<1x8x8xf32> to vector<1x8xf32>
    %533 = vector.shape_cast %532 : vector<1x8xf32> to vector<1x8x1xf32>
    %534 = vector.broadcast %533 : vector<1x8x1xf32> to vector<1x8x8xf32>
    %535 = arith.subf %531, %534 : vector<1x8x8xf32>
    %536 = math.exp %535 : vector<1x8x8xf32>
    %cst_209 = arith.constant dense<0.000000e+00> : vector<1x8xf32>
    %537 = vector.multi_reduction <add>, %536, %cst_209 [2] : vector<1x8x8xf32> to vector<1x8xf32>
    %538 = vector.shape_cast %537 : vector<1x8xf32> to vector<1x8x1xf32>
    %539 = tpu.reciprocal %538 : vector<1x8x1xf32> -> vector<1x8x1xf32>
    %540 = vector.broadcast %539 : vector<1x8x1xf32> to vector<1x8x8xf32>
    %541 = arith.mulf %536, %540 : vector<1x8x8xf32>
    %542 = vector.extract_strided_slice %475 {offsets = [0, 0, 24], sizes = [1, 8, 8], strides = [1, 1, 1]} : vector<1x8x32xf32> to vector<1x8x8xf32>
    "tpu.trace_start"() <{level = 10 : i32, message = "bqk,bkd->bqd"}> : () -> ()
    %cst_210 = arith.constant dense<0.000000e+00> : vector<1x8x8xf32>
    %543 = tpu.matmul %541, %542, %cst_210 {dimension_numbers = #tpu.dot_dimension_numbers<[2], [1], [1], [2], [0, 0, 0, 1, 1, 2], [0], [0]>} : vector<1x8x8xf32>, vector<1x8x8xf32>, vector<1x8x8xf32> -> vector<1x8x8xf32>
    "tpu.trace_stop"() : () -> ()
    %544 = tpu.concatenate %492, %509, %526, %543 in 2 : vector<1x8x8xf32>, vector<1x8x8xf32>, vector<1x8x8xf32>, vector<1x8x8xf32> -> vector<1x8x32xf32>
    %545 = vector.shape_cast %544 : vector<1x8x32xf32> to vector<8x32xf32>
    %cst_211 = arith.constant dense<0.000000e+00> : vector<8x32xf32>
    %546 = tpu.matmul %545, %459, %cst_211 {dimension_numbers = #tpu.dot_dimension_numbers<[1], [0], [0], [1], [0, 0, 1, 1], [], []>} : vector<8x32xf32>, vector<32x32xf32>, vector<8x32xf32> -> vector<8x32xf32>
    %547 = vector.broadcast %463 : vector<1x32xf32> to vector<8x32xf32>
    %548 = arith.addf %546, %547 : vector<8x32xf32>
    %549 = arith.addf %451, %548 : vector<8x32xf32>
    %c28 = arith.constant 28 : index
    %c0_212 = arith.constant 0 : index
    %550 = vector.load %arg7[%c28, %c0_212] : memref<48x32xf32, #tpu.memory_space<vmem>>, vector<1x32xf32>
    %c29 = arith.constant 29 : index
    %c0_213 = arith.constant 0 : index
    %551 = vector.load %arg7[%c29, %c0_213] : memref<48x32xf32, #tpu.memory_space<vmem>>, vector<1x32xf32>
    %cst_214 = arith.constant dense<0.000000e+00> : vector<8xf32>
    %552 = vector.multi_reduction <add>, %549, %cst_214 [1] : vector<8x32xf32> to vector<8xf32>
    %553 = vector.shape_cast %552 : vector<8xf32> to vector<8x1xf32>
    %cst_215 = arith.constant 3.200000e+01 : f32
    %554 = vector.broadcast %cst_215 : f32 to vector<8x1xf32>
    %555 = arith.divf %553, %554 : vector<8x1xf32>
    %556 = vector.broadcast %555 : vector<8x1xf32> to vector<8x32xf32>
    %557 = arith.subf %549, %556 : vector<8x32xf32>
    %558 = arith.mulf %557, %557 : vector<8x32xf32>
    %cst_216 = arith.constant dense<0.000000e+00> : vector<8xf32>
    %559 = vector.multi_reduction <add>, %558, %cst_216 [1] : vector<8x32xf32> to vector<8xf32>
    %560 = vector.shape_cast %559 : vector<8xf32> to vector<8x1xf32>
    %cst_217 = arith.constant 3.200000e+01 : f32
    %561 = vector.broadcast %cst_217 : f32 to vector<8x1xf32>
    %562 = arith.divf %560, %561 : vector<8x1xf32>
    %563 = vector.broadcast %555 : vector<8x1xf32> to vector<8x32xf32>
    %564 = arith.subf %549, %563 : vector<8x32xf32>
    %cst_218 = arith.constant 9.99999974E-6 : f32
    %565 = vector.broadcast %cst_218 : f32 to vector<8x1xf32>
    %566 = arith.addf %562, %565 : vector<8x1xf32>
    %567 = math.rsqrt %566 : vector<8x1xf32>
    %568 = vector.broadcast %567 : vector<8x1xf32> to vector<8x32xf32>
    %569 = arith.mulf %564, %568 : vector<8x32xf32>
    %570 = vector.broadcast %550 : vector<1x32xf32> to vector<8x32xf32>
    %571 = arith.mulf %569, %570 : vector<8x32xf32>
    %572 = vector.broadcast %551 : vector<1x32xf32> to vector<8x32xf32>
    %573 = arith.addf %571, %572 : vector<8x32xf32>
    %c2_219 = arith.constant 2 : index
    %c0_220 = arith.constant 0 : index
    %c0_221 = arith.constant 0 : index
    %574 = vector.load %arg5[%c2_219, %c0_220, %c0_221] : memref<4x32x128xf32, #tpu.memory_space<vmem>>, vector<1x32x128xf32>
    %575 = vector.shape_cast %574 : vector<1x32x128xf32> to vector<32x128xf32>
    %c2_222 = arith.constant 2 : index
    %c0_223 = arith.constant 0 : index
    %576 = vector.load %arg8[%c2_222, %c0_223] : memref<4x128xf32, #tpu.memory_space<vmem>>, vector<1x128xf32>
    %c2_224 = arith.constant 2 : index
    %c0_225 = arith.constant 0 : index
    %c0_226 = arith.constant 0 : index
    %577 = vector.load %arg6[%c2_224, %c0_225, %c0_226] : memref<4x128x32xf32, #tpu.memory_space<vmem>>, vector<1x128x32xf32>
    %578 = vector.shape_cast %577 : vector<1x128x32xf32> to vector<128x32xf32>
    %c30 = arith.constant 30 : index
    %c0_227 = arith.constant 0 : index
    %579 = vector.load %arg7[%c30, %c0_227] : memref<48x32xf32, #tpu.memory_space<vmem>>, vector<1x32xf32>
    %cst_228 = arith.constant dense<0.000000e+00> : vector<8x128xf32>
    %580 = tpu.matmul %573, %575, %cst_228 {dimension_numbers = #tpu.dot_dimension_numbers<[1], [0], [0], [1], [0, 0, 1, 1], [], []>} : vector<8x32xf32>, vector<32x128xf32>, vector<8x128xf32> -> vector<8x128xf32>
    %581 = vector.broadcast %576 : vector<1x128xf32> to vector<8x128xf32>
    %582 = arith.addf %580, %581 : vector<8x128xf32>
    %cst_229 = arith.constant 0.000000e+00 : f32
    %583 = vector.broadcast %cst_229 : f32 to vector<8x128xf32>
    %584 = arith.maximumf %582, %583 : vector<8x128xf32>
    %cst_230 = arith.constant dense<0.000000e+00> : vector<8x32xf32>
    %585 = tpu.matmul %584, %578, %cst_230 {dimension_numbers = #tpu.dot_dimension_numbers<[1], [0], [0], [1], [0, 0, 1, 1], [], []>} : vector<8x128xf32>, vector<128x32xf32>, vector<8x32xf32> -> vector<8x32xf32>
    %586 = vector.broadcast %579 : vector<1x32xf32> to vector<8x32xf32>
    %587 = arith.addf %585, %586 : vector<8x32xf32>
    %cst_231 = arith.constant 0.000000e+00 : f32
    %588 = vector.broadcast %cst_231 : f32 to vector<8x32xf32>
    %589 = arith.maximumf %587, %588 : vector<8x32xf32>
    %590 = arith.addf %573, %589 : vector<8x32xf32>
    %c31 = arith.constant 31 : index
    %c0_232 = arith.constant 0 : index
    %591 = vector.load %arg7[%c31, %c0_232] : memref<48x32xf32, #tpu.memory_space<vmem>>, vector<1x32xf32>
    %c32 = arith.constant 32 : index
    %c0_233 = arith.constant 0 : index
    %592 = vector.load %arg7[%c32, %c0_233] : memref<48x32xf32, #tpu.memory_space<vmem>>, vector<1x32xf32>
    %cst_234 = arith.constant dense<0.000000e+00> : vector<8xf32>
    %593 = vector.multi_reduction <add>, %590, %cst_234 [1] : vector<8x32xf32> to vector<8xf32>
    %594 = vector.shape_cast %593 : vector<8xf32> to vector<8x1xf32>
    %cst_235 = arith.constant 3.200000e+01 : f32
    %595 = vector.broadcast %cst_235 : f32 to vector<8x1xf32>
    %596 = arith.divf %594, %595 : vector<8x1xf32>
    %597 = vector.broadcast %596 : vector<8x1xf32> to vector<8x32xf32>
    %598 = arith.subf %590, %597 : vector<8x32xf32>
    %599 = arith.mulf %598, %598 : vector<8x32xf32>
    %cst_236 = arith.constant dense<0.000000e+00> : vector<8xf32>
    %600 = vector.multi_reduction <add>, %599, %cst_236 [1] : vector<8x32xf32> to vector<8xf32>
    %601 = vector.shape_cast %600 : vector<8xf32> to vector<8x1xf32>
    %cst_237 = arith.constant 3.200000e+01 : f32
    %602 = vector.broadcast %cst_237 : f32 to vector<8x1xf32>
    %603 = arith.divf %601, %602 : vector<8x1xf32>
    %604 = vector.broadcast %596 : vector<8x1xf32> to vector<8x32xf32>
    %605 = arith.subf %590, %604 : vector<8x32xf32>
    %cst_238 = arith.constant 9.99999974E-6 : f32
    %606 = vector.broadcast %cst_238 : f32 to vector<8x1xf32>
    %607 = arith.addf %603, %606 : vector<8x1xf32>
    %608 = math.rsqrt %607 : vector<8x1xf32>
    %609 = vector.broadcast %608 : vector<8x1xf32> to vector<8x32xf32>
    %610 = arith.mulf %605, %609 : vector<8x32xf32>
    %611 = vector.broadcast %591 : vector<1x32xf32> to vector<8x32xf32>
    %612 = arith.mulf %610, %611 : vector<8x32xf32>
    %613 = vector.broadcast %592 : vector<1x32xf32> to vector<8x32xf32>
    %614 = arith.addf %612, %613 : vector<8x32xf32>
    %c16_239 = arith.constant 16 : index
    %c0_240 = arith.constant 0 : index
    %c0_241 = arith.constant 0 : index
    %615 = vector.load %arg4[%c16_239, %c0_240, %c0_241] : memref<24x32x32xf32, #tpu.memory_space<vmem>>, vector<1x32x32xf32>
    %616 = vector.shape_cast %615 : vector<1x32x32xf32> to vector<32x32xf32>
    %c17_242 = arith.constant 17 : index
    %c0_243 = arith.constant 0 : index
    %c0_244 = arith.constant 0 : index
    %617 = vector.load %arg4[%c17_242, %c0_243, %c0_244] : memref<24x32x32xf32, #tpu.memory_space<vmem>>, vector<1x32x32xf32>
    %618 = vector.shape_cast %617 : vector<1x32x32xf32> to vector<32x32xf32>
    %c18_245 = arith.constant 18 : index
    %c0_246 = arith.constant 0 : index
    %c0_247 = arith.constant 0 : index
    %619 = vector.load %arg4[%c18_245, %c0_246, %c0_247] : memref<24x32x32xf32, #tpu.memory_space<vmem>>, vector<1x32x32xf32>
    %620 = vector.shape_cast %619 : vector<1x32x32xf32> to vector<32x32xf32>
    %c19_248 = arith.constant 19 : index
    %c0_249 = arith.constant 0 : index
    %c0_250 = arith.constant 0 : index
    %621 = vector.load %arg4[%c19_248, %c0_249, %c0_250] : memref<24x32x32xf32, #tpu.memory_space<vmem>>, vector<1x32x32xf32>
    %622 = vector.shape_cast %621 : vector<1x32x32xf32> to vector<32x32xf32>
    %c33 = arith.constant 33 : index
    %c0_251 = arith.constant 0 : index
    %623 = vector.load %arg7[%c33, %c0_251] : memref<48x32xf32, #tpu.memory_space<vmem>>, vector<1x32xf32>
    %c34 = arith.constant 34 : index
    %c0_252 = arith.constant 0 : index
    %624 = vector.load %arg7[%c34, %c0_252] : memref<48x32xf32, #tpu.memory_space<vmem>>, vector<1x32xf32>
    %c35 = arith.constant 35 : index
    %c0_253 = arith.constant 0 : index
    %625 = vector.load %arg7[%c35, %c0_253] : memref<48x32xf32, #tpu.memory_space<vmem>>, vector<1x32xf32>
    %c36 = arith.constant 36 : index
    %c0_254 = arith.constant 0 : index
    %626 = vector.load %arg7[%c36, %c0_254] : memref<48x32xf32, #tpu.memory_space<vmem>>, vector<1x32xf32>
    %cst_255 = arith.constant dense<0.000000e+00> : vector<8x32xf32>
    %627 = tpu.matmul %614, %616, %cst_255 {dimension_numbers = #tpu.dot_dimension_numbers<[1], [0], [0], [1], [0, 0, 1, 1], [], []>} : vector<8x32xf32>, vector<32x32xf32>, vector<8x32xf32> -> vector<8x32xf32>
    %628 = vector.broadcast %623 : vector<1x32xf32> to vector<8x32xf32>
    %629 = arith.addf %627, %628 : vector<8x32xf32>
    %cst_256 = arith.constant dense<0.000000e+00> : vector<8x32xf32>
    %630 = tpu.matmul %614, %618, %cst_256 {dimension_numbers = #tpu.dot_dimension_numbers<[1], [0], [0], [1], [0, 0, 1, 1], [], []>} : vector<8x32xf32>, vector<32x32xf32>, vector<8x32xf32> -> vector<8x32xf32>
    %631 = vector.broadcast %624 : vector<1x32xf32> to vector<8x32xf32>
    %632 = arith.addf %630, %631 : vector<8x32xf32>
    %cst_257 = arith.constant dense<0.000000e+00> : vector<8x32xf32>
    %633 = tpu.matmul %614, %620, %cst_257 {dimension_numbers = #tpu.dot_dimension_numbers<[1], [0], [0], [1], [0, 0, 1, 1], [], []>} : vector<8x32xf32>, vector<32x32xf32>, vector<8x32xf32> -> vector<8x32xf32>
    %634 = vector.broadcast %625 : vector<1x32xf32> to vector<8x32xf32>
    %635 = arith.addf %633, %634 : vector<8x32xf32>
    %636 = vector.shape_cast %629 : vector<8x32xf32> to vector<1x8x32xf32>
    %637 = vector.shape_cast %632 : vector<8x32xf32> to vector<1x8x32xf32>
    %638 = vector.shape_cast %635 : vector<8x32xf32> to vector<1x8x32xf32>
    %639 = vector.extract_strided_slice %636 {offsets = [0, 0, 0], sizes = [1, 8, 8], strides = [1, 1, 1]} : vector<1x8x32xf32> to vector<1x8x8xf32>
    %640 = vector.extract_strided_slice %637 {offsets = [0, 0, 0], sizes = [1, 8, 8], strides = [1, 1, 1]} : vector<1x8x32xf32> to vector<1x8x8xf32>
    "tpu.trace_start"() <{level = 10 : i32, message = "bqd,bkd->bqk"}> : () -> ()
    %cst_258 = arith.constant dense<0.000000e+00> : vector<1x8x8xf32>
    %641 = tpu.matmul %639, %640, %cst_258 {dimension_numbers = #tpu.dot_dimension_numbers<[2], [2], [1], [1], [0, 0, 0, 1, 1, 1], [0], [0]>} : vector<1x8x8xf32>, vector<1x8x8xf32>, vector<1x8x8xf32> -> vector<1x8x8xf32>
    "tpu.trace_stop"() : () -> ()
    %642 = vector.broadcast %0 : vector<1x1x8xf32> to vector<1x8x8xf32>
    %643 = arith.addf %641, %642 : vector<1x8x8xf32>
    %cst_259 = arith.constant dense<0xFF800000> : vector<1x8xf32>
    %644 = vector.multi_reduction <maximumf>, %643, %cst_259 [2] : vector<1x8x8xf32> to vector<1x8xf32>
    %645 = vector.shape_cast %644 : vector<1x8xf32> to vector<1x8x1xf32>
    %646 = vector.broadcast %645 : vector<1x8x1xf32> to vector<1x8x8xf32>
    %647 = arith.subf %643, %646 : vector<1x8x8xf32>
    %648 = math.exp %647 : vector<1x8x8xf32>
    %cst_260 = arith.constant dense<0.000000e+00> : vector<1x8xf32>
    %649 = vector.multi_reduction <add>, %648, %cst_260 [2] : vector<1x8x8xf32> to vector<1x8xf32>
    %650 = vector.shape_cast %649 : vector<1x8xf32> to vector<1x8x1xf32>
    %651 = tpu.reciprocal %650 : vector<1x8x1xf32> -> vector<1x8x1xf32>
    %652 = vector.broadcast %651 : vector<1x8x1xf32> to vector<1x8x8xf32>
    %653 = arith.mulf %648, %652 : vector<1x8x8xf32>
    %654 = vector.extract_strided_slice %638 {offsets = [0, 0, 0], sizes = [1, 8, 8], strides = [1, 1, 1]} : vector<1x8x32xf32> to vector<1x8x8xf32>
    "tpu.trace_start"() <{level = 10 : i32, message = "bqk,bkd->bqd"}> : () -> ()
    %cst_261 = arith.constant dense<0.000000e+00> : vector<1x8x8xf32>
    %655 = tpu.matmul %653, %654, %cst_261 {dimension_numbers = #tpu.dot_dimension_numbers<[2], [1], [1], [2], [0, 0, 0, 1, 1, 2], [0], [0]>} : vector<1x8x8xf32>, vector<1x8x8xf32>, vector<1x8x8xf32> -> vector<1x8x8xf32>
    "tpu.trace_stop"() : () -> ()
    %656 = vector.extract_strided_slice %636 {offsets = [0, 0, 8], sizes = [1, 8, 8], strides = [1, 1, 1]} : vector<1x8x32xf32> to vector<1x8x8xf32>
    %657 = vector.extract_strided_slice %637 {offsets = [0, 0, 8], sizes = [1, 8, 8], strides = [1, 1, 1]} : vector<1x8x32xf32> to vector<1x8x8xf32>
    "tpu.trace_start"() <{level = 10 : i32, message = "bqd,bkd->bqk"}> : () -> ()
    %cst_262 = arith.constant dense<0.000000e+00> : vector<1x8x8xf32>
    %658 = tpu.matmul %656, %657, %cst_262 {dimension_numbers = #tpu.dot_dimension_numbers<[2], [2], [1], [1], [0, 0, 0, 1, 1, 1], [0], [0]>} : vector<1x8x8xf32>, vector<1x8x8xf32>, vector<1x8x8xf32> -> vector<1x8x8xf32>
    "tpu.trace_stop"() : () -> ()
    %659 = vector.broadcast %0 : vector<1x1x8xf32> to vector<1x8x8xf32>
    %660 = arith.addf %658, %659 : vector<1x8x8xf32>
    %cst_263 = arith.constant dense<0xFF800000> : vector<1x8xf32>
    %661 = vector.multi_reduction <maximumf>, %660, %cst_263 [2] : vector<1x8x8xf32> to vector<1x8xf32>
    %662 = vector.shape_cast %661 : vector<1x8xf32> to vector<1x8x1xf32>
    %663 = vector.broadcast %662 : vector<1x8x1xf32> to vector<1x8x8xf32>
    %664 = arith.subf %660, %663 : vector<1x8x8xf32>
    %665 = math.exp %664 : vector<1x8x8xf32>
    %cst_264 = arith.constant dense<0.000000e+00> : vector<1x8xf32>
    %666 = vector.multi_reduction <add>, %665, %cst_264 [2] : vector<1x8x8xf32> to vector<1x8xf32>
    %667 = vector.shape_cast %666 : vector<1x8xf32> to vector<1x8x1xf32>
    %668 = tpu.reciprocal %667 : vector<1x8x1xf32> -> vector<1x8x1xf32>
    %669 = vector.broadcast %668 : vector<1x8x1xf32> to vector<1x8x8xf32>
    %670 = arith.mulf %665, %669 : vector<1x8x8xf32>
    %671 = vector.extract_strided_slice %638 {offsets = [0, 0, 8], sizes = [1, 8, 8], strides = [1, 1, 1]} : vector<1x8x32xf32> to vector<1x8x8xf32>
    "tpu.trace_start"() <{level = 10 : i32, message = "bqk,bkd->bqd"}> : () -> ()
    %cst_265 = arith.constant dense<0.000000e+00> : vector<1x8x8xf32>
    %672 = tpu.matmul %670, %671, %cst_265 {dimension_numbers = #tpu.dot_dimension_numbers<[2], [1], [1], [2], [0, 0, 0, 1, 1, 2], [0], [0]>} : vector<1x8x8xf32>, vector<1x8x8xf32>, vector<1x8x8xf32> -> vector<1x8x8xf32>
    "tpu.trace_stop"() : () -> ()
    %673 = vector.extract_strided_slice %636 {offsets = [0, 0, 16], sizes = [1, 8, 8], strides = [1, 1, 1]} : vector<1x8x32xf32> to vector<1x8x8xf32>
    %674 = vector.extract_strided_slice %637 {offsets = [0, 0, 16], sizes = [1, 8, 8], strides = [1, 1, 1]} : vector<1x8x32xf32> to vector<1x8x8xf32>
    "tpu.trace_start"() <{level = 10 : i32, message = "bqd,bkd->bqk"}> : () -> ()
    %cst_266 = arith.constant dense<0.000000e+00> : vector<1x8x8xf32>
    %675 = tpu.matmul %673, %674, %cst_266 {dimension_numbers = #tpu.dot_dimension_numbers<[2], [2], [1], [1], [0, 0, 0, 1, 1, 1], [0], [0]>} : vector<1x8x8xf32>, vector<1x8x8xf32>, vector<1x8x8xf32> -> vector<1x8x8xf32>
    "tpu.trace_stop"() : () -> ()
    %676 = vector.broadcast %0 : vector<1x1x8xf32> to vector<1x8x8xf32>
    %677 = arith.addf %675, %676 : vector<1x8x8xf32>
    %cst_267 = arith.constant dense<0xFF800000> : vector<1x8xf32>
    %678 = vector.multi_reduction <maximumf>, %677, %cst_267 [2] : vector<1x8x8xf32> to vector<1x8xf32>
    %679 = vector.shape_cast %678 : vector<1x8xf32> to vector<1x8x1xf32>
    %680 = vector.broadcast %679 : vector<1x8x1xf32> to vector<1x8x8xf32>
    %681 = arith.subf %677, %680 : vector<1x8x8xf32>
    %682 = math.exp %681 : vector<1x8x8xf32>
    %cst_268 = arith.constant dense<0.000000e+00> : vector<1x8xf32>
    %683 = vector.multi_reduction <add>, %682, %cst_268 [2] : vector<1x8x8xf32> to vector<1x8xf32>
    %684 = vector.shape_cast %683 : vector<1x8xf32> to vector<1x8x1xf32>
    %685 = tpu.reciprocal %684 : vector<1x8x1xf32> -> vector<1x8x1xf32>
    %686 = vector.broadcast %685 : vector<1x8x1xf32> to vector<1x8x8xf32>
    %687 = arith.mulf %682, %686 : vector<1x8x8xf32>
    %688 = vector.extract_strided_slice %638 {offsets = [0, 0, 16], sizes = [1, 8, 8], strides = [1, 1, 1]} : vector<1x8x32xf32> to vector<1x8x8xf32>
    "tpu.trace_start"() <{level = 10 : i32, message = "bqk,bkd->bqd"}> : () -> ()
    %cst_269 = arith.constant dense<0.000000e+00> : vector<1x8x8xf32>
    %689 = tpu.matmul %687, %688, %cst_269 {dimension_numbers = #tpu.dot_dimension_numbers<[2], [1], [1], [2], [0, 0, 0, 1, 1, 2], [0], [0]>} : vector<1x8x8xf32>, vector<1x8x8xf32>, vector<1x8x8xf32> -> vector<1x8x8xf32>
    "tpu.trace_stop"() : () -> ()
    %690 = vector.extract_strided_slice %636 {offsets = [0, 0, 24], sizes = [1, 8, 8], strides = [1, 1, 1]} : vector<1x8x32xf32> to vector<1x8x8xf32>
    %691 = vector.extract_strided_slice %637 {offsets = [0, 0, 24], sizes = [1, 8, 8], strides = [1, 1, 1]} : vector<1x8x32xf32> to vector<1x8x8xf32>
    "tpu.trace_start"() <{level = 10 : i32, message = "bqd,bkd->bqk"}> : () -> ()
    %cst_270 = arith.constant dense<0.000000e+00> : vector<1x8x8xf32>
    %692 = tpu.matmul %690, %691, %cst_270 {dimension_numbers = #tpu.dot_dimension_numbers<[2], [2], [1], [1], [0, 0, 0, 1, 1, 1], [0], [0]>} : vector<1x8x8xf32>, vector<1x8x8xf32>, vector<1x8x8xf32> -> vector<1x8x8xf32>
    "tpu.trace_stop"() : () -> ()
    %693 = vector.broadcast %0 : vector<1x1x8xf32> to vector<1x8x8xf32>
    %694 = arith.addf %692, %693 : vector<1x8x8xf32>
    %cst_271 = arith.constant dense<0xFF800000> : vector<1x8xf32>
    %695 = vector.multi_reduction <maximumf>, %694, %cst_271 [2] : vector<1x8x8xf32> to vector<1x8xf32>
    %696 = vector.shape_cast %695 : vector<1x8xf32> to vector<1x8x1xf32>
    %697 = vector.broadcast %696 : vector<1x8x1xf32> to vector<1x8x8xf32>
    %698 = arith.subf %694, %697 : vector<1x8x8xf32>
    %699 = math.exp %698 : vector<1x8x8xf32>
    %cst_272 = arith.constant dense<0.000000e+00> : vector<1x8xf32>
    %700 = vector.multi_reduction <add>, %699, %cst_272 [2] : vector<1x8x8xf32> to vector<1x8xf32>
    %701 = vector.shape_cast %700 : vector<1x8xf32> to vector<1x8x1xf32>
    %702 = tpu.reciprocal %701 : vector<1x8x1xf32> -> vector<1x8x1xf32>
    %703 = vector.broadcast %702 : vector<1x8x1xf32> to vector<1x8x8xf32>
    %704 = arith.mulf %699, %703 : vector<1x8x8xf32>
    %705 = vector.extract_strided_slice %638 {offsets = [0, 0, 24], sizes = [1, 8, 8], strides = [1, 1, 1]} : vector<1x8x32xf32> to vector<1x8x8xf32>
    "tpu.trace_start"() <{level = 10 : i32, message = "bqk,bkd->bqd"}> : () -> ()
    %cst_273 = arith.constant dense<0.000000e+00> : vector<1x8x8xf32>
    %706 = tpu.matmul %704, %705, %cst_273 {dimension_numbers = #tpu.dot_dimension_numbers<[2], [1], [1], [2], [0, 0, 0, 1, 1, 2], [0], [0]>} : vector<1x8x8xf32>, vector<1x8x8xf32>, vector<1x8x8xf32> -> vector<1x8x8xf32>
    "tpu.trace_stop"() : () -> ()
    %707 = tpu.concatenate %655, %672, %689, %706 in 2 : vector<1x8x8xf32>, vector<1x8x8xf32>, vector<1x8x8xf32>, vector<1x8x8xf32> -> vector<1x8x32xf32>
    %708 = vector.shape_cast %707 : vector<1x8x32xf32> to vector<8x32xf32>
    %cst_274 = arith.constant dense<0.000000e+00> : vector<8x32xf32>
    %709 = tpu.matmul %708, %622, %cst_274 {dimension_numbers = #tpu.dot_dimension_numbers<[1], [0], [0], [1], [0, 0, 1, 1], [], []>} : vector<8x32xf32>, vector<32x32xf32>, vector<8x32xf32> -> vector<8x32xf32>
    %710 = vector.broadcast %626 : vector<1x32xf32> to vector<8x32xf32>
    %711 = arith.addf %709, %710 : vector<8x32xf32>
    %712 = arith.addf %614, %711 : vector<8x32xf32>
    %c37 = arith.constant 37 : index
    %c0_275 = arith.constant 0 : index
    %713 = vector.load %arg7[%c37, %c0_275] : memref<48x32xf32, #tpu.memory_space<vmem>>, vector<1x32xf32>
    %c38 = arith.constant 38 : index
    %c0_276 = arith.constant 0 : index
    %714 = vector.load %arg7[%c38, %c0_276] : memref<48x32xf32, #tpu.memory_space<vmem>>, vector<1x32xf32>
    %cst_277 = arith.constant dense<0.000000e+00> : vector<8xf32>
    %715 = vector.multi_reduction <add>, %712, %cst_277 [1] : vector<8x32xf32> to vector<8xf32>
    %716 = vector.shape_cast %715 : vector<8xf32> to vector<8x1xf32>
    %cst_278 = arith.constant 3.200000e+01 : f32
    %717 = vector.broadcast %cst_278 : f32 to vector<8x1xf32>
    %718 = arith.divf %716, %717 : vector<8x1xf32>
    %719 = vector.broadcast %718 : vector<8x1xf32> to vector<8x32xf32>
    %720 = arith.subf %712, %719 : vector<8x32xf32>
    %721 = arith.mulf %720, %720 : vector<8x32xf32>
    %cst_279 = arith.constant dense<0.000000e+00> : vector<8xf32>
    %722 = vector.multi_reduction <add>, %721, %cst_279 [1] : vector<8x32xf32> to vector<8xf32>
    %723 = vector.shape_cast %722 : vector<8xf32> to vector<8x1xf32>
    %cst_280 = arith.constant 3.200000e+01 : f32
    %724 = vector.broadcast %cst_280 : f32 to vector<8x1xf32>
    %725 = arith.divf %723, %724 : vector<8x1xf32>
    %726 = vector.broadcast %718 : vector<8x1xf32> to vector<8x32xf32>
    %727 = arith.subf %712, %726 : vector<8x32xf32>
    %cst_281 = arith.constant 9.99999974E-6 : f32
    %728 = vector.broadcast %cst_281 : f32 to vector<8x1xf32>
    %729 = arith.addf %725, %728 : vector<8x1xf32>
    %730 = math.rsqrt %729 : vector<8x1xf32>
    %731 = vector.broadcast %730 : vector<8x1xf32> to vector<8x32xf32>
    %732 = arith.mulf %727, %731 : vector<8x32xf32>
    %733 = vector.broadcast %713 : vector<1x32xf32> to vector<8x32xf32>
    %734 = arith.mulf %732, %733 : vector<8x32xf32>
    %735 = vector.broadcast %714 : vector<1x32xf32> to vector<8x32xf32>
    %736 = arith.addf %734, %735 : vector<8x32xf32>
    %c20_282 = arith.constant 20 : index
    %c0_283 = arith.constant 0 : index
    %c0_284 = arith.constant 0 : index
    %737 = vector.load %arg4[%c20_282, %c0_283, %c0_284] : memref<24x32x32xf32, #tpu.memory_space<vmem>>, vector<1x32x32xf32>
    %738 = vector.shape_cast %737 : vector<1x32x32xf32> to vector<32x32xf32>
    %c21_285 = arith.constant 21 : index
    %c0_286 = arith.constant 0 : index
    %c0_287 = arith.constant 0 : index
    %739 = vector.load %arg4[%c21_285, %c0_286, %c0_287] : memref<24x32x32xf32, #tpu.memory_space<vmem>>, vector<1x32x32xf32>
    %740 = vector.shape_cast %739 : vector<1x32x32xf32> to vector<32x32xf32>
    %c22_288 = arith.constant 22 : index
    %c0_289 = arith.constant 0 : index
    %c0_290 = arith.constant 0 : index
    %741 = vector.load %arg4[%c22_288, %c0_289, %c0_290] : memref<24x32x32xf32, #tpu.memory_space<vmem>>, vector<1x32x32xf32>
    %742 = vector.shape_cast %741 : vector<1x32x32xf32> to vector<32x32xf32>
    %c23_291 = arith.constant 23 : index
    %c0_292 = arith.constant 0 : index
    %c0_293 = arith.constant 0 : index
    %743 = vector.load %arg4[%c23_291, %c0_292, %c0_293] : memref<24x32x32xf32, #tpu.memory_space<vmem>>, vector<1x32x32xf32>
    %744 = vector.shape_cast %743 : vector<1x32x32xf32> to vector<32x32xf32>
    %c39 = arith.constant 39 : index
    %c0_294 = arith.constant 0 : index
    %745 = vector.load %arg7[%c39, %c0_294] : memref<48x32xf32, #tpu.memory_space<vmem>>, vector<1x32xf32>
    %c40 = arith.constant 40 : index
    %c0_295 = arith.constant 0 : index
    %746 = vector.load %arg7[%c40, %c0_295] : memref<48x32xf32, #tpu.memory_space<vmem>>, vector<1x32xf32>
    %c41 = arith.constant 41 : index
    %c0_296 = arith.constant 0 : index
    %747 = vector.load %arg7[%c41, %c0_296] : memref<48x32xf32, #tpu.memory_space<vmem>>, vector<1x32xf32>
    %c42 = arith.constant 42 : index
    %c0_297 = arith.constant 0 : index
    %748 = vector.load %arg7[%c42, %c0_297] : memref<48x32xf32, #tpu.memory_space<vmem>>, vector<1x32xf32>
    %cst_298 = arith.constant dense<0.000000e+00> : vector<8x32xf32>
    %749 = tpu.matmul %736, %738, %cst_298 {dimension_numbers = #tpu.dot_dimension_numbers<[1], [0], [0], [1], [0, 0, 1, 1], [], []>} : vector<8x32xf32>, vector<32x32xf32>, vector<8x32xf32> -> vector<8x32xf32>
    %750 = vector.broadcast %745 : vector<1x32xf32> to vector<8x32xf32>
    %751 = arith.addf %749, %750 : vector<8x32xf32>
    %cst_299 = arith.constant dense<0.000000e+00> : vector<8x32xf32>
    %752 = tpu.matmul %328, %740, %cst_299 {dimension_numbers = #tpu.dot_dimension_numbers<[1], [0], [0], [1], [0, 0, 1, 1], [], []>} : vector<8x32xf32>, vector<32x32xf32>, vector<8x32xf32> -> vector<8x32xf32>
    %753 = vector.broadcast %746 : vector<1x32xf32> to vector<8x32xf32>
    %754 = arith.addf %752, %753 : vector<8x32xf32>
    %cst_300 = arith.constant dense<0.000000e+00> : vector<8x32xf32>
    %755 = tpu.matmul %328, %742, %cst_300 {dimension_numbers = #tpu.dot_dimension_numbers<[1], [0], [0], [1], [0, 0, 1, 1], [], []>} : vector<8x32xf32>, vector<32x32xf32>, vector<8x32xf32> -> vector<8x32xf32>
    %756 = vector.broadcast %747 : vector<1x32xf32> to vector<8x32xf32>
    %757 = arith.addf %755, %756 : vector<8x32xf32>
    %758 = vector.shape_cast %751 : vector<8x32xf32> to vector<1x8x32xf32>
    %759 = vector.shape_cast %754 : vector<8x32xf32> to vector<1x8x32xf32>
    %760 = vector.shape_cast %757 : vector<8x32xf32> to vector<1x8x32xf32>
    %761 = vector.extract_strided_slice %758 {offsets = [0, 0, 0], sizes = [1, 8, 8], strides = [1, 1, 1]} : vector<1x8x32xf32> to vector<1x8x8xf32>
    %762 = vector.extract_strided_slice %759 {offsets = [0, 0, 0], sizes = [1, 8, 8], strides = [1, 1, 1]} : vector<1x8x32xf32> to vector<1x8x8xf32>
    "tpu.trace_start"() <{level = 10 : i32, message = "bqd,bkd->bqk"}> : () -> ()
    %cst_301 = arith.constant dense<0.000000e+00> : vector<1x8x8xf32>
    %763 = tpu.matmul %761, %762, %cst_301 {dimension_numbers = #tpu.dot_dimension_numbers<[2], [2], [1], [1], [0, 0, 0, 1, 1, 1], [0], [0]>} : vector<1x8x8xf32>, vector<1x8x8xf32>, vector<1x8x8xf32> -> vector<1x8x8xf32>
    "tpu.trace_stop"() : () -> ()
    %764 = vector.broadcast %0 : vector<1x1x8xf32> to vector<1x8x8xf32>
    %765 = arith.addf %763, %764 : vector<1x8x8xf32>
    %cst_302 = arith.constant dense<0xFF800000> : vector<1x8xf32>
    %766 = vector.multi_reduction <maximumf>, %765, %cst_302 [2] : vector<1x8x8xf32> to vector<1x8xf32>
    %767 = vector.shape_cast %766 : vector<1x8xf32> to vector<1x8x1xf32>
    %768 = vector.broadcast %767 : vector<1x8x1xf32> to vector<1x8x8xf32>
    %769 = arith.subf %765, %768 : vector<1x8x8xf32>
    %770 = math.exp %769 : vector<1x8x8xf32>
    %cst_303 = arith.constant dense<0.000000e+00> : vector<1x8xf32>
    %771 = vector.multi_reduction <add>, %770, %cst_303 [2] : vector<1x8x8xf32> to vector<1x8xf32>
    %772 = vector.shape_cast %771 : vector<1x8xf32> to vector<1x8x1xf32>
    %773 = tpu.reciprocal %772 : vector<1x8x1xf32> -> vector<1x8x1xf32>
    %774 = vector.broadcast %773 : vector<1x8x1xf32> to vector<1x8x8xf32>
    %775 = arith.mulf %770, %774 : vector<1x8x8xf32>
    %776 = vector.extract_strided_slice %760 {offsets = [0, 0, 0], sizes = [1, 8, 8], strides = [1, 1, 1]} : vector<1x8x32xf32> to vector<1x8x8xf32>
    "tpu.trace_start"() <{level = 10 : i32, message = "bqk,bkd->bqd"}> : () -> ()
    %cst_304 = arith.constant dense<0.000000e+00> : vector<1x8x8xf32>
    %777 = tpu.matmul %775, %776, %cst_304 {dimension_numbers = #tpu.dot_dimension_numbers<[2], [1], [1], [2], [0, 0, 0, 1, 1, 2], [0], [0]>} : vector<1x8x8xf32>, vector<1x8x8xf32>, vector<1x8x8xf32> -> vector<1x8x8xf32>
    "tpu.trace_stop"() : () -> ()
    %778 = vector.extract_strided_slice %758 {offsets = [0, 0, 8], sizes = [1, 8, 8], strides = [1, 1, 1]} : vector<1x8x32xf32> to vector<1x8x8xf32>
    %779 = vector.extract_strided_slice %759 {offsets = [0, 0, 8], sizes = [1, 8, 8], strides = [1, 1, 1]} : vector<1x8x32xf32> to vector<1x8x8xf32>
    "tpu.trace_start"() <{level = 10 : i32, message = "bqd,bkd->bqk"}> : () -> ()
    %cst_305 = arith.constant dense<0.000000e+00> : vector<1x8x8xf32>
    %780 = tpu.matmul %778, %779, %cst_305 {dimension_numbers = #tpu.dot_dimension_numbers<[2], [2], [1], [1], [0, 0, 0, 1, 1, 1], [0], [0]>} : vector<1x8x8xf32>, vector<1x8x8xf32>, vector<1x8x8xf32> -> vector<1x8x8xf32>
    "tpu.trace_stop"() : () -> ()
    %781 = vector.broadcast %0 : vector<1x1x8xf32> to vector<1x8x8xf32>
    %782 = arith.addf %780, %781 : vector<1x8x8xf32>
    %cst_306 = arith.constant dense<0xFF800000> : vector<1x8xf32>
    %783 = vector.multi_reduction <maximumf>, %782, %cst_306 [2] : vector<1x8x8xf32> to vector<1x8xf32>
    %784 = vector.shape_cast %783 : vector<1x8xf32> to vector<1x8x1xf32>
    %785 = vector.broadcast %784 : vector<1x8x1xf32> to vector<1x8x8xf32>
    %786 = arith.subf %782, %785 : vector<1x8x8xf32>
    %787 = math.exp %786 : vector<1x8x8xf32>
    %cst_307 = arith.constant dense<0.000000e+00> : vector<1x8xf32>
    %788 = vector.multi_reduction <add>, %787, %cst_307 [2] : vector<1x8x8xf32> to vector<1x8xf32>
    %789 = vector.shape_cast %788 : vector<1x8xf32> to vector<1x8x1xf32>
    %790 = tpu.reciprocal %789 : vector<1x8x1xf32> -> vector<1x8x1xf32>
    %791 = vector.broadcast %790 : vector<1x8x1xf32> to vector<1x8x8xf32>
    %792 = arith.mulf %787, %791 : vector<1x8x8xf32>
    %793 = vector.extract_strided_slice %760 {offsets = [0, 0, 8], sizes = [1, 8, 8], strides = [1, 1, 1]} : vector<1x8x32xf32> to vector<1x8x8xf32>
    "tpu.trace_start"() <{level = 10 : i32, message = "bqk,bkd->bqd"}> : () -> ()
    %cst_308 = arith.constant dense<0.000000e+00> : vector<1x8x8xf32>
    %794 = tpu.matmul %792, %793, %cst_308 {dimension_numbers = #tpu.dot_dimension_numbers<[2], [1], [1], [2], [0, 0, 0, 1, 1, 2], [0], [0]>} : vector<1x8x8xf32>, vector<1x8x8xf32>, vector<1x8x8xf32> -> vector<1x8x8xf32>
    "tpu.trace_stop"() : () -> ()
    %795 = vector.extract_strided_slice %758 {offsets = [0, 0, 16], sizes = [1, 8, 8], strides = [1, 1, 1]} : vector<1x8x32xf32> to vector<1x8x8xf32>
    %796 = vector.extract_strided_slice %759 {offsets = [0, 0, 16], sizes = [1, 8, 8], strides = [1, 1, 1]} : vector<1x8x32xf32> to vector<1x8x8xf32>
    "tpu.trace_start"() <{level = 10 : i32, message = "bqd,bkd->bqk"}> : () -> ()
    %cst_309 = arith.constant dense<0.000000e+00> : vector<1x8x8xf32>
    %797 = tpu.matmul %795, %796, %cst_309 {dimension_numbers = #tpu.dot_dimension_numbers<[2], [2], [1], [1], [0, 0, 0, 1, 1, 1], [0], [0]>} : vector<1x8x8xf32>, vector<1x8x8xf32>, vector<1x8x8xf32> -> vector<1x8x8xf32>
    "tpu.trace_stop"() : () -> ()
    %798 = vector.broadcast %0 : vector<1x1x8xf32> to vector<1x8x8xf32>
    %799 = arith.addf %797, %798 : vector<1x8x8xf32>
    %cst_310 = arith.constant dense<0xFF800000> : vector<1x8xf32>
    %800 = vector.multi_reduction <maximumf>, %799, %cst_310 [2] : vector<1x8x8xf32> to vector<1x8xf32>
    %801 = vector.shape_cast %800 : vector<1x8xf32> to vector<1x8x1xf32>
    %802 = vector.broadcast %801 : vector<1x8x1xf32> to vector<1x8x8xf32>
    %803 = arith.subf %799, %802 : vector<1x8x8xf32>
    %804 = math.exp %803 : vector<1x8x8xf32>
    %cst_311 = arith.constant dense<0.000000e+00> : vector<1x8xf32>
    %805 = vector.multi_reduction <add>, %804, %cst_311 [2] : vector<1x8x8xf32> to vector<1x8xf32>
    %806 = vector.shape_cast %805 : vector<1x8xf32> to vector<1x8x1xf32>
    %807 = tpu.reciprocal %806 : vector<1x8x1xf32> -> vector<1x8x1xf32>
    %808 = vector.broadcast %807 : vector<1x8x1xf32> to vector<1x8x8xf32>
    %809 = arith.mulf %804, %808 : vector<1x8x8xf32>
    %810 = vector.extract_strided_slice %760 {offsets = [0, 0, 16], sizes = [1, 8, 8], strides = [1, 1, 1]} : vector<1x8x32xf32> to vector<1x8x8xf32>
    "tpu.trace_start"() <{level = 10 : i32, message = "bqk,bkd->bqd"}> : () -> ()
    %cst_312 = arith.constant dense<0.000000e+00> : vector<1x8x8xf32>
    %811 = tpu.matmul %809, %810, %cst_312 {dimension_numbers = #tpu.dot_dimension_numbers<[2], [1], [1], [2], [0, 0, 0, 1, 1, 2], [0], [0]>} : vector<1x8x8xf32>, vector<1x8x8xf32>, vector<1x8x8xf32> -> vector<1x8x8xf32>
    "tpu.trace_stop"() : () -> ()
    %812 = vector.extract_strided_slice %758 {offsets = [0, 0, 24], sizes = [1, 8, 8], strides = [1, 1, 1]} : vector<1x8x32xf32> to vector<1x8x8xf32>
    %813 = vector.extract_strided_slice %759 {offsets = [0, 0, 24], sizes = [1, 8, 8], strides = [1, 1, 1]} : vector<1x8x32xf32> to vector<1x8x8xf32>
    "tpu.trace_start"() <{level = 10 : i32, message = "bqd,bkd->bqk"}> : () -> ()
    %cst_313 = arith.constant dense<0.000000e+00> : vector<1x8x8xf32>
    %814 = tpu.matmul %812, %813, %cst_313 {dimension_numbers = #tpu.dot_dimension_numbers<[2], [2], [1], [1], [0, 0, 0, 1, 1, 1], [0], [0]>} : vector<1x8x8xf32>, vector<1x8x8xf32>, vector<1x8x8xf32> -> vector<1x8x8xf32>
    "tpu.trace_stop"() : () -> ()
    %815 = vector.broadcast %0 : vector<1x1x8xf32> to vector<1x8x8xf32>
    %816 = arith.addf %814, %815 : vector<1x8x8xf32>
    %cst_314 = arith.constant dense<0xFF800000> : vector<1x8xf32>
    %817 = vector.multi_reduction <maximumf>, %816, %cst_314 [2] : vector<1x8x8xf32> to vector<1x8xf32>
    %818 = vector.shape_cast %817 : vector<1x8xf32> to vector<1x8x1xf32>
    %819 = vector.broadcast %818 : vector<1x8x1xf32> to vector<1x8x8xf32>
    %820 = arith.subf %816, %819 : vector<1x8x8xf32>
    %821 = math.exp %820 : vector<1x8x8xf32>
    %cst_315 = arith.constant dense<0.000000e+00> : vector<1x8xf32>
    %822 = vector.multi_reduction <add>, %821, %cst_315 [2] : vector<1x8x8xf32> to vector<1x8xf32>
    %823 = vector.shape_cast %822 : vector<1x8xf32> to vector<1x8x1xf32>
    %824 = tpu.reciprocal %823 : vector<1x8x1xf32> -> vector<1x8x1xf32>
    %825 = vector.broadcast %824 : vector<1x8x1xf32> to vector<1x8x8xf32>
    %826 = arith.mulf %821, %825 : vector<1x8x8xf32>
    %827 = vector.extract_strided_slice %760 {offsets = [0, 0, 24], sizes = [1, 8, 8], strides = [1, 1, 1]} : vector<1x8x32xf32> to vector<1x8x8xf32>
    "tpu.trace_start"() <{level = 10 : i32, message = "bqk,bkd->bqd"}> : () -> ()
    %cst_316 = arith.constant dense<0.000000e+00> : vector<1x8x8xf32>
    %828 = tpu.matmul %826, %827, %cst_316 {dimension_numbers = #tpu.dot_dimension_numbers<[2], [1], [1], [2], [0, 0, 0, 1, 1, 2], [0], [0]>} : vector<1x8x8xf32>, vector<1x8x8xf32>, vector<1x8x8xf32> -> vector<1x8x8xf32>
    "tpu.trace_stop"() : () -> ()
    %829 = tpu.concatenate %777, %794, %811, %828 in 2 : vector<1x8x8xf32>, vector<1x8x8xf32>, vector<1x8x8xf32>, vector<1x8x8xf32> -> vector<1x8x32xf32>
    %830 = vector.shape_cast %829 : vector<1x8x32xf32> to vector<8x32xf32>
    %cst_317 = arith.constant dense<0.000000e+00> : vector<8x32xf32>
    %831 = tpu.matmul %830, %744, %cst_317 {dimension_numbers = #tpu.dot_dimension_numbers<[1], [0], [0], [1], [0, 0, 1, 1], [], []>} : vector<8x32xf32>, vector<32x32xf32>, vector<8x32xf32> -> vector<8x32xf32>
    %832 = vector.broadcast %748 : vector<1x32xf32> to vector<8x32xf32>
    %833 = arith.addf %831, %832 : vector<8x32xf32>
    %834 = arith.addf %736, %833 : vector<8x32xf32>
    %c43 = arith.constant 43 : index
    %c0_318 = arith.constant 0 : index
    %835 = vector.load %arg7[%c43, %c0_318] : memref<48x32xf32, #tpu.memory_space<vmem>>, vector<1x32xf32>
    %c44 = arith.constant 44 : index
    %c0_319 = arith.constant 0 : index
    %836 = vector.load %arg7[%c44, %c0_319] : memref<48x32xf32, #tpu.memory_space<vmem>>, vector<1x32xf32>
    %cst_320 = arith.constant dense<0.000000e+00> : vector<8xf32>
    %837 = vector.multi_reduction <add>, %834, %cst_320 [1] : vector<8x32xf32> to vector<8xf32>
    %838 = vector.shape_cast %837 : vector<8xf32> to vector<8x1xf32>
    %cst_321 = arith.constant 3.200000e+01 : f32
    %839 = vector.broadcast %cst_321 : f32 to vector<8x1xf32>
    %840 = arith.divf %838, %839 : vector<8x1xf32>
    %841 = vector.broadcast %840 : vector<8x1xf32> to vector<8x32xf32>
    %842 = arith.subf %834, %841 : vector<8x32xf32>
    %843 = arith.mulf %842, %842 : vector<8x32xf32>
    %cst_322 = arith.constant dense<0.000000e+00> : vector<8xf32>
    %844 = vector.multi_reduction <add>, %843, %cst_322 [1] : vector<8x32xf32> to vector<8xf32>
    %845 = vector.shape_cast %844 : vector<8xf32> to vector<8x1xf32>
    %cst_323 = arith.constant 3.200000e+01 : f32
    %846 = vector.broadcast %cst_323 : f32 to vector<8x1xf32>
    %847 = arith.divf %845, %846 : vector<8x1xf32>
    %848 = vector.broadcast %840 : vector<8x1xf32> to vector<8x32xf32>
    %849 = arith.subf %834, %848 : vector<8x32xf32>
    %cst_324 = arith.constant 9.99999974E-6 : f32
    %850 = vector.broadcast %cst_324 : f32 to vector<8x1xf32>
    %851 = arith.addf %847, %850 : vector<8x1xf32>
    %852 = math.rsqrt %851 : vector<8x1xf32>
    %853 = vector.broadcast %852 : vector<8x1xf32> to vector<8x32xf32>
    %854 = arith.mulf %849, %853 : vector<8x32xf32>
    %855 = vector.broadcast %835 : vector<1x32xf32> to vector<8x32xf32>
    %856 = arith.mulf %854, %855 : vector<8x32xf32>
    %857 = vector.broadcast %836 : vector<1x32xf32> to vector<8x32xf32>
    %858 = arith.addf %856, %857 : vector<8x32xf32>
    %c3_325 = arith.constant 3 : index
    %c0_326 = arith.constant 0 : index
    %c0_327 = arith.constant 0 : index
    %859 = vector.load %arg5[%c3_325, %c0_326, %c0_327] : memref<4x32x128xf32, #tpu.memory_space<vmem>>, vector<1x32x128xf32>
    %860 = vector.shape_cast %859 : vector<1x32x128xf32> to vector<32x128xf32>
    %c3_328 = arith.constant 3 : index
    %c0_329 = arith.constant 0 : index
    %861 = vector.load %arg8[%c3_328, %c0_329] : memref<4x128xf32, #tpu.memory_space<vmem>>, vector<1x128xf32>
    %c3_330 = arith.constant 3 : index
    %c0_331 = arith.constant 0 : index
    %c0_332 = arith.constant 0 : index
    %862 = vector.load %arg6[%c3_330, %c0_331, %c0_332] : memref<4x128x32xf32, #tpu.memory_space<vmem>>, vector<1x128x32xf32>
    %863 = vector.shape_cast %862 : vector<1x128x32xf32> to vector<128x32xf32>
    %c45 = arith.constant 45 : index
    %c0_333 = arith.constant 0 : index
    %864 = vector.load %arg7[%c45, %c0_333] : memref<48x32xf32, #tpu.memory_space<vmem>>, vector<1x32xf32>
    %cst_334 = arith.constant dense<0.000000e+00> : vector<8x128xf32>
    %865 = tpu.matmul %858, %860, %cst_334 {dimension_numbers = #tpu.dot_dimension_numbers<[1], [0], [0], [1], [0, 0, 1, 1], [], []>} : vector<8x32xf32>, vector<32x128xf32>, vector<8x128xf32> -> vector<8x128xf32>
    %866 = vector.broadcast %861 : vector<1x128xf32> to vector<8x128xf32>
    %867 = arith.addf %865, %866 : vector<8x128xf32>
    %cst_335 = arith.constant 0.000000e+00 : f32
    %868 = vector.broadcast %cst_335 : f32 to vector<8x128xf32>
    %869 = arith.maximumf %867, %868 : vector<8x128xf32>
    %cst_336 = arith.constant dense<0.000000e+00> : vector<8x32xf32>
    %870 = tpu.matmul %869, %863, %cst_336 {dimension_numbers = #tpu.dot_dimension_numbers<[1], [0], [0], [1], [0, 0, 1, 1], [], []>} : vector<8x128xf32>, vector<128x32xf32>, vector<8x32xf32> -> vector<8x32xf32>
    %871 = vector.broadcast %864 : vector<1x32xf32> to vector<8x32xf32>
    %872 = arith.addf %870, %871 : vector<8x32xf32>
    %cst_337 = arith.constant 0.000000e+00 : f32
    %873 = vector.broadcast %cst_337 : f32 to vector<8x32xf32>
    %874 = arith.maximumf %872, %873 : vector<8x32xf32>
    %875 = arith.addf %858, %874 : vector<8x32xf32>
    %c46 = arith.constant 46 : index
    %c0_338 = arith.constant 0 : index
    %876 = vector.load %arg7[%c46, %c0_338] : memref<48x32xf32, #tpu.memory_space<vmem>>, vector<1x32xf32>
    %c47 = arith.constant 47 : index
    %c0_339 = arith.constant 0 : index
    %877 = vector.load %arg7[%c47, %c0_339] : memref<48x32xf32, #tpu.memory_space<vmem>>, vector<1x32xf32>
    %cst_340 = arith.constant dense<0.000000e+00> : vector<8xf32>
    %878 = vector.multi_reduction <add>, %875, %cst_340 [1] : vector<8x32xf32> to vector<8xf32>
    %879 = vector.shape_cast %878 : vector<8xf32> to vector<8x1xf32>
    %cst_341 = arith.constant 3.200000e+01 : f32
    %880 = vector.broadcast %cst_341 : f32 to vector<8x1xf32>
    %881 = arith.divf %879, %880 : vector<8x1xf32>
    %882 = vector.broadcast %881 : vector<8x1xf32> to vector<8x32xf32>
    %883 = arith.subf %875, %882 : vector<8x32xf32>
    %884 = arith.mulf %883, %883 : vector<8x32xf32>
    %cst_342 = arith.constant dense<0.000000e+00> : vector<8xf32>
    %885 = vector.multi_reduction <add>, %884, %cst_342 [1] : vector<8x32xf32> to vector<8xf32>
    %886 = vector.shape_cast %885 : vector<8xf32> to vector<8x1xf32>
    %cst_343 = arith.constant 3.200000e+01 : f32
    %887 = vector.broadcast %cst_343 : f32 to vector<8x1xf32>
    %888 = arith.divf %886, %887 : vector<8x1xf32>
    %889 = vector.broadcast %881 : vector<8x1xf32> to vector<8x32xf32>
    %890 = arith.subf %875, %889 : vector<8x32xf32>
    %cst_344 = arith.constant 9.99999974E-6 : f32
    %891 = vector.broadcast %cst_344 : f32 to vector<8x1xf32>
    %892 = arith.addf %888, %891 : vector<8x1xf32>
    %893 = math.rsqrt %892 : vector<8x1xf32>
    %894 = vector.broadcast %893 : vector<8x1xf32> to vector<8x32xf32>
    %895 = arith.mulf %890, %894 : vector<8x32xf32>
    %896 = vector.broadcast %876 : vector<1x32xf32> to vector<8x32xf32>
    %897 = arith.mulf %895, %896 : vector<8x32xf32>
    %898 = vector.broadcast %877 : vector<1x32xf32> to vector<8x32xf32>
    %899 = arith.addf %897, %898 : vector<8x32xf32>
    %900 = vector.shape_cast %899 : vector<8x32xf32> to vector<1x8x32xf32>
    %c0_345 = arith.constant 0 : index
    %c0_346 = arith.constant 0 : index
    %c0_347 = arith.constant 0 : index
    %901 = vector.load %arg9[%c0_345, %c0_346, %c0_347] : memref<1x8x32xf32, #tpu.memory_space<vmem>>, vector<1x8x32xf32>
    tpu.vector_store %arg9[%c0_345, %c0_346, %c0_347], %900 {strides = array<i32>} : memref<1x8x32xf32, #tpu.memory_space<vmem>>, vector<1x8x32xf32>,
    return
  }
  func.func @transform_0(%arg0: i32) -> (i32, i32, i32) {
    %c0_i32 = arith.constant 0 : i32
    %c0_i32_0 = arith.constant 0 : i32
    %c0_i32_1 = arith.constant 0 : i32
    return %arg0, %c0_i32, %c0_i32_0 : i32, i32, i32
  }
  func.func @transform_1(%arg0: i32) -> (i32, i32, i32) {
    %c0_i32 = arith.constant 0 : i32
    %c0_i32_0 = arith.constant 0 : i32
    %c0_i32_1 = arith.constant 0 : i32
    return %arg0, %c0_i32, %c0_i32_0 : i32, i32, i32
  }
  func.func @transform_2(%arg0: i32) -> (i32, i32) {
    %c0_i32 = arith.constant 0 : i32
    %c0_i32_0 = arith.constant 0 : i32
    %c0_i32_1 = arith.constant 0 : i32
    return %c0_i32, %c0_i32_0 : i32, i32
  }
  func.func @transform_3(%arg0: i32) -> (i32, i32, i32) {
    %c0_i32 = arith.constant 0 : i32
    %c0_i32_0 = arith.constant 0 : i32
    %c0_i32_1 = arith.constant 0 : i32
    %c0_i32_2 = arith.constant 0 : i32
    return %c0_i32, %c0_i32_0, %c0_i32_1 : i32, i32, i32
  }
  func.func @transform_4(%arg0: i32) -> (i32, i32, i32) {
    %c0_i32 = arith.constant 0 : i32
    %c0_i32_0 = arith.constant 0 : i32
    %c0_i32_1 = arith.constant 0 : i32
    %c0_i32_2 = arith.constant 0 : i32
    return %c0_i32, %c0_i32_0, %c0_i32_1 : i32, i32, i32
  }
  func.func @transform_5(%arg0: i32) -> (i32, i32, i32) {
    %c0_i32 = arith.constant 0 : i32
    %c0_i32_0 = arith.constant 0 : i32
    %c0_i32_1 = arith.constant 0 : i32
    %c0_i32_2 = arith.constant 0 : i32
    return %c0_i32, %c0_i32_0, %c0_i32_1 : i32, i32, i32
  }
  func.func @transform_6(%arg0: i32) -> (i32, i32) {
    %c0_i32 = arith.constant 0 : i32
    %c0_i32_0 = arith.constant 0 : i32
    %c0_i32_1 = arith.constant 0 : i32
    return %c0_i32, %c0_i32_0 : i32, i32
  }
  func.func @transform_7(%arg0: i32) -> (i32, i32) {
    %c0_i32 = arith.constant 0 : i32
    %c0_i32_0 = arith.constant 0 : i32
    %c0_i32_1 = arith.constant 0 : i32
    return %c0_i32, %c0_i32_0 : i32, i32
  }
  func.func @transform_8(%arg0: i32) -> (i32, i32, i32) {
    %c0_i32 = arith.constant 0 : i32
    %c0_i32_0 = arith.constant 0 : i32
    %c0_i32_1 = arith.constant 0 : i32
    return %arg0, %c0_i32, %c0_i32_0 : i32, i32, i32
  }
}

</mosaic_0001>

<llo_original>
// kernel: tpu_custom_call.1
$region0: #{tpu_custom_call.1}
  #allocation0 [shape = 'u32[]', space=smem, size = 0x4, offset = 0x4, fixed_abs, tag = 'smem constant byte address 0x4 - core index']
  #allocation1 [shape = 'u32[144,128]{1,0:T(1,128)}', space=vmem, size = 0x12000, scoped, tag = 'internal scratch']
  %s0 = inlined_call_operand.vmem [shape: f32[2,8,32], index: 0, kind: input, shape index: {}]
  %s1 = inlined_call_operand.vmem [shape: f32[2,1,8], index: 1, kind: input, shape index: {}]
  %s2 = inlined_call_operand.vmem [shape: f32[8,32], index: 2, kind: input, shape index: {}]
  %s3 = inlined_call_operand.hbm [shape: f32[24,32,32], index: 3, kind: input, shape index: {}]
  %s4 = inlined_call_operand.vmem [shape: f32[4,32,128], index: 4, kind: input, shape index: {}]
  %s5 = inlined_call_operand.vmem [shape: f32[4,128,32], index: 5, kind: input, shape index: {}]
  %s6 = inlined_call_operand.vmem [shape: f32[48,32], index: 6, kind: input, shape index: {}]
  %s7 = inlined_call_operand.vmem [shape: f32[4,128], index: 7, kind: input, shape index: {}]
  %s8 = inlined_call_operand.hbm [shape: f32[2,8,32], index: 8, kind: output, shape index: {}]
  %s9 = sld [smem:[#allocation0]]
  $region69: #{tpu_custom_call.1} parent=0
    _
  %s11 = ssub.s32 1, %s9
  %s12 = scalar_select 0, %s11, %s9
  $region1: #{tpu_custom_call.1} parent=0
    #allocation2 [shape = 'u8[393216]{0}', space=vmem, size = 0x60000, scoped, tag = 'input window, operand 3, single buffered']
    #allocation3 [shape = 's32[2]{0}', space=sflag, size = 0x8, scoped, tag = 'scoped memory for tpu_custom_call.1']
    #allocation4 [shape = 's32[2]{0}', space=sflag, size = 0x8, scoped, tag = 'scoped memory for tpu_custom_call.1']
    #allocation5 [shape = 'u8[8192]{0}', space=vmem, size = 0x2000, scoped, tag = 'output window, operand 0']
    %13 = vsyncpa [#allocation3], 0
    %14 = vsyncpa [#allocation4], 0
    %s15 = scalar_lea.sflag [#allocation4], 1
    %16 = vsyncpa %s15, 0
    loop: start=0, step=1, limit=4
    $region2: #{tpu_custom_call.1} parent=1 // loop_pre_header
      _
    $region3: #{tpu_custom_call.1} parent=1 // loop_header
      %s18 = sphi 0, %s22
      %p19 = scmp.ge.s32.totalorder %s18, 4
      %s28 = sphi 0, %s30
      %s31 = sphi 0, %s28
      %s32 = sphi 0, %s31
      %s48 = sphi 0, %s32
      %s54 = sphi 0, %s56
      %s57 = sphi 0, %s54
      %s58 = sphi 0, %s57
      %s74 = sphi 0, %s58
      %s78 = sphi 0, %s78
      %s80 = sphi 0, %s78
      %s81 = sphi 0, %s80
      %s95 = sphi 0, %s81
      %s99 = sphi 0, %s99
      %s101 = sphi 0, %s99
      %s102 = sphi 0, %s101
      %s116 = sphi 0, %s102
      %s120 = sphi 0, %s120
      %s122 = sphi 0, %s120
      %s123 = sphi 0, %s122
      %s137 = sphi 0, %s123
      %s141 = sphi 0, %s141
      %s143 = sphi 0, %s141
      %s144 = sphi 0, %s143
      %s158 = sphi 0, %s144
      %s162 = sphi 0, %s162
      %s164 = sphi 0, %s162
      %s165 = sphi 0, %s164
      %s179 = sphi 0, %s165
      %s183 = sphi 0, %s183
      %s185 = sphi 0, %s183
      %s186 = sphi 0, %s185
      %s200 = sphi 0, %s186
      %s206 = sphi 0, %s208
      %s209 = sphi 0, %s206
      %s210 = sphi 0, %s209
      %s226 = sphi 0, %s210
    $region4: #{tpu_custom_call.1} parent=1 // loop_header_branch
      %21 = sbr.rel (%p19) target = $region8
    $region5: #{tpu_custom_call.1} parent=1 // loop_body
      %s23 = ssub.s32 %s18, 1
      %s24 = ssub.s32 %s18, 2
      %s25 = sadd.s32 %s18, 1
      %s26 = ssub.s32 %s18, %s25
      %p27 = scmp.eq.s32.totalorder %s26, 0
      %s29 = sadd.s32 %s28, 1
      %s30 = scalar_select %p27, %s28, %s29
      %p33 = pneg %p27
      %p34 = scmp.eq.s32.totalorder %s18, 1
      %p35 = por %p33, %p34
      %p36 = scmp.ne.s32.totalorder %s28, %s31
      %p37 = scmp.eq.s32.totalorder %s18, 0
      %p38 = por %p36, %p37
      %p39 = scmp.ne.s32.totalorder %s28, %s31
      %p40 = scmp.eq.s32.totalorder %s23, 1
      %p41 = por %p39, %p40
      %p42 = scmp.ne.s32.totalorder %s31, %s32
      %p43 = scmp.eq.s32.totalorder %s23, 0
      %p44 = por %p42, %p43
      %p45 = scmp.ne.s32.totalorder %s31, %s32
      %p46 = scmp.eq.s32.totalorder %s24, 1
      %p47 = por %p45, %p46
      %p49 = scmp.ne.s32.totalorder %s32, %s48
      %p50 = scmp.eq.s32.totalorder %s24, 0
      %p51 = por %p49, %p50
      %s52 = ssub.s32 %s18, %s25
      %p53 = scmp.eq.s32.totalorder %s52, 0
      %s55 = sadd.s32 %s54, 1
      %s56 = scalar_select %p53, %s54, %s55
      %p59 = pneg %p53
      %p60 = scmp.eq.s32.totalorder %s18, 1
      %p61 = por %p59, %p60
      %p62 = scmp.ne.s32.totalorder %s54, %s57
      %p63 = scmp.eq.s32.totalorder %s18, 0
      %p64 = por %p62, %p63
      %p65 = scmp.ne.s32.totalorder %s54, %s57
      %p66 = scmp.eq.s32.totalorder %s23, 1
      %p67 = por %p65, %p66
      %p68 = scmp.ne.s32.totalorder %s57, %s58
      %p69 = scmp.eq.s32.totalorder %s23, 0
      %p70 = por %p68, %p69
      %p71 = scmp.ne.s32.totalorder %s57, %s58
      %p72 = scmp.eq.s32.totalorder %s24, 1
      %p73 = por %p71, %p72
      %p75 = scmp.ne.s32.totalorder %s58, %s74
      %p76 = scmp.eq.s32.totalorder %s24, 0
      %p77 = por %p75, %p76
      %s79 = sadd.s32 %s78, 1
      %p82 = scmp.eq.s32.totalorder %s18, 1
      %p83 = scmp.ne.s32.totalorder %s78, %s80
      %p84 = scmp.eq.s32.totalorder %s18, 0
      %p85 = por %p83, %p84
      %p86 = scmp.ne.s32.totalorder %s78, %s80
      %p87 = scmp.eq.s32.totalorder %s23, 1
      %p88 = por %p86, %p87
      %p89 = scmp.ne.s32.totalorder %s80, %s81
      %p90 = scmp.eq.s32.totalorder %s23, 0
      %p91 = por %p89, %p90
      %p92 = scmp.ne.s32.totalorder %s80, %s81
      %p93 = scmp.eq.s32.totalorder %s24, 1
      %p94 = por %p92, %p93
      %p96 = scmp.ne.s32.totalorder %s81, %s95
      %p97 = scmp.eq.s32.totalorder %s24, 0
      %p98 = por %p96, %p97
      %s100 = sadd.s32 %s99, 1
      %p103 = scmp.eq.s32.totalorder %s18, 1
      %p104 = scmp.ne.s32.totalorder %s99, %s101
      %p105 = scmp.eq.s32.totalorder %s18, 0
      %p106 = por %p104, %p105
      %p107 = scmp.ne.s32.totalorder %s99, %s101
      %p108 = scmp.eq.s32.totalorder %s23, 1
      %p109 = por %p107, %p108
      %p110 = scmp.ne.s32.totalorder %s101, %s102
      %p111 = scmp.eq.s32.totalorder %s23, 0
      %p112 = por %p110, %p111
      %p113 = scmp.ne.s32.totalorder %s101, %s102
      %p114 = scmp.eq.s32.totalorder %s24, 1
      %p115 = por %p113, %p114
      %p117 = scmp.ne.s32.totalorder %s102, %s116
      %p118 = scmp.eq.s32.totalorder %s24, 0
      %p119 = por %p117, %p118
      %s121 = sadd.s32 %s120, 1
      %p124 = scmp.eq.s32.totalorder %s18, 1
      %p125 = scmp.ne.s32.totalorder %s120, %s122
      %p126 = scmp.eq.s32.totalorder %s18, 0
      %p127 = por %p125, %p126
      %p128 = scmp.ne.s32.totalorder %s120, %s122
      %p129 = scmp.eq.s32.totalorder %s23, 1
      %p130 = por %p128, %p129
      %p131 = scmp.ne.s32.totalorder %s122, %s123
      %p132 = scmp.eq.s32.totalorder %s23, 0
      %p133 = por %p131, %p132
      %p134 = scmp.ne.s32.totalorder %s122, %s123
      %p135 = scmp.eq.s32.totalorder %s24, 1
      %p136 = por %p134, %p135
      %p138 = scmp.ne.s32.totalorder %s123, %s137
      %p139 = scmp.eq.s32.totalorder %s24, 0
      %p140 = por %p138, %p139
      %s142 = sadd.s32 %s141, 1
      %p145 = scmp.eq.s32.totalorder %s18, 1
      %p146 = scmp.ne.s32.totalorder %s141, %s143
      %p147 = scmp.eq.s32.totalorder %s18, 0
      %p148 = por %p146, %p147
      %p149 = scmp.ne.s32.totalorder %s141, %s143
      %p150 = scmp.eq.s32.totalorder %s23, 1
      %p151 = por %p149, %p150
      %p152 = scmp.ne.s32.totalorder %s143, %s144
      %p153 = scmp.eq.s32.totalorder %s23, 0
      %p154 = por %p152, %p153
      %p155 = scmp.ne.s32.totalorder %s143, %s144
      %p156 = scmp.eq.s32.totalorder %s24, 1
      %p157 = por %p155, %p156
      %p159 = scmp.ne.s32.totalorder %s144, %s158
      %p160 = scmp.eq.s32.totalorder %s24, 0
      %p161 = por %p159, %p160
      %s163 = sadd.s32 %s162, 1
      %p166 = scmp.eq.s32.totalorder %s18, 1
      %p167 = scmp.ne.s32.totalorder %s162, %s164
      %p168 = scmp.eq.s32.totalorder %s18, 0
      %p169 = por %p167, %p168
      %p170 = scmp.ne.s32.totalorder %s162, %s164
      %p171 = scmp.eq.s32.totalorder %s23, 1
      %p172 = por %p170, %p171
      %p173 = scmp.ne.s32.totalorder %s164, %s165
      %p174 = scmp.eq.s32.totalorder %s23, 0
      %p175 = por %p173, %p174
      %p176 = scmp.ne.s32.totalorder %s164, %s165
      %p177 = scmp.eq.s32.totalorder %s24, 1
      %p178 = por %p176, %p177
      %p180 = scmp.ne.s32.totalorder %s165, %s179
      %p181 = scmp.eq.s32.totalorder %s24, 0
      %p182 = por %p180, %p181
      %s184 = sadd.s32 %s183, 1
      %p187 = scmp.eq.s32.totalorder %s18, 1
      %p188 = scmp.ne.s32.totalorder %s183, %s185
      %p189 = scmp.eq.s32.totalorder %s18, 0
      %p190 = por %p188, %p189
      %p191 = scmp.ne.s32.totalorder %s183, %s185
      %p192 = scmp.eq.s32.totalorder %s23, 1
      %p193 = por %p191, %p192
      %p194 = scmp.ne.s32.totalorder %s185, %s186
      %p195 = scmp.eq.s32.totalorder %s23, 0
      %p196 = por %p194, %p195
      %p197 = scmp.ne.s32.totalorder %s185, %s186
      %p198 = scmp.eq.s32.totalorder %s24, 1
      %p199 = por %p197, %p198
      %p201 = scmp.ne.s32.totalorder %s186, %s200
      %p202 = scmp.eq.s32.totalorder %s24, 0
      %p203 = por %p201, %p202
      %s204 = ssub.s32 %s18, %s25
      %p205 = scmp.eq.s32.totalorder %s204, 0
      %s207 = sadd.s32 %s206, 1
      %s208 = scalar_select %p205, %s206, %s207
      %p211 = pneg %p205
      %p212 = scmp.eq.s32.totalorder %s18, 1
      %p213 = por %p211, %p212
      %p214 = scmp.ne.s32.totalorder %s206, %s209
      %p215 = scmp.eq.s32.totalorder %s18, 0
      %p216 = por %p214, %p215
      %p217 = scmp.ne.s32.totalorder %s206, %s209
      %p218 = scmp.eq.s32.totalorder %s23, 1
      %p219 = por %p217, %p218
      %p220 = scmp.ne.s32.totalorder %s209, %s210
      %p221 = scmp.eq.s32.totalorder %s23, 0
      %p222 = por %p220, %p221
      %p223 = scmp.ne.s32.totalorder %s209, %s210
      %p224 = scmp.eq.s32.totalorder %s24, 1
      %p225 = por %p223, %p224
      %p227 = scmp.ne.s32.totalorder %s210, %s226
      %p228 = scmp.eq.s32.totalorder %s24, 0
      %p229 = por %p227, %p228
      %p230 = scmp.le.s32.totalorder 1, %s18
      %p231 = scmp.lt.s32.totalorder %s18, 3
      %p232 = pnand %p230, %p231
      %p233 = pneg %p232
      // Predicated region
      $region9: #{tpu_custom_call.1} parent=5 // pred_check
        _
      $region10: #{tpu_custom_call.1} parent=5 // pred_check_branch
        %235 = sbr.rel (%p232) target = $region12
      $region11: #{tpu_custom_call.1} parent=5 // pred_region
        %s236 = ssub.s32 %s18, 1
        // Predicated region
        $region13: #{tpu_custom_call.1} parent=11 // pred_check
          %p237 = pneg %p91
        $region14: #{tpu_custom_call.1} parent=11 // pred_check_branch
          %239 = sbr.rel (%p237) target = $region16
        $region15: #{tpu_custom_call.1} parent=11 // pred_region
          _
        $region16: #{tpu_custom_call.1} parent=11 // pred_fallthru
          _
        // Predicated region
        $region17: #{tpu_custom_call.1} parent=11 // pred_check
          %p240 = pneg %p112
        $region18: #{tpu_custom_call.1} parent=11 // pred_check_branch
          %242 = sbr.rel (%p240) target = $region20
        $region19: #{tpu_custom_call.1} parent=11 // pred_region
          %s244 = ssub.s32 12288, 12288
          %245 = vsyncadd [#allocation3], %s244
          %s246 = sshll.u32 [#allocation2], 4
          %s247 = int_to_ptr.vmem [resolvable:$true] %s246
          %252 = dma.hbm_to_vmem [thread:$0]  %s3, 12288, %s247, [#allocation3], 128, 128, 8
        $region20: #{tpu_custom_call.1} parent=11 // pred_fallthru
          _
        // Predicated region
        $region21: #{tpu_custom_call.1} parent=11 // pred_check
          %p253 = pneg %p133
        $region22: #{tpu_custom_call.1} parent=11 // pred_check_branch
          %255 = sbr.rel (%p253) target = $region24
        $region23: #{tpu_custom_call.1} parent=11 // pred_region
          _
        $region24: #{tpu_custom_call.1} parent=11 // pred_fallthru
          _
        // Predicated region
        $region25: #{tpu_custom_call.1} parent=11 // pred_check
          %p256 = pneg %p154
        $region26: #{tpu_custom_call.1} parent=11 // pred_check_branch
          %258 = sbr.rel (%p256) target = $region28
        $region27: #{tpu_custom_call.1} parent=11 // pred_region
          _
        $region28: #{tpu_custom_call.1} parent=11 // pred_fallthru
          _
        // Predicated region
        $region29: #{tpu_custom_call.1} parent=11 // pred_check
          %p259 = pneg %p175
        $region30: #{tpu_custom_call.1} parent=11 // pred_check_branch
          %261 = sbr.rel (%p259) target = $region32
        $region31: #{tpu_custom_call.1} parent=11 // pred_region
          _
        $region32: #{tpu_custom_call.1} parent=11 // pred_fallthru
          _
        // Predicated region
        $region33: #{tpu_custom_call.1} parent=11 // pred_check
          %p262 = pneg %p196
        $region34: #{tpu_custom_call.1} parent=11 // pred_check_branch
          %264 = sbr.rel (%p262) target = $region36
        $region35: #{tpu_custom_call.1} parent=11 // pred_region
          _
        $region36: #{tpu_custom_call.1} parent=11 // pred_fallthru
          _
      $region12: #{tpu_custom_call.1} parent=5 // pred_fallthru
        _
      %p265 = scmp.lt.s32.totalorder %s18, 2
      // Predicated region
      $region37: #{tpu_custom_call.1} parent=5 // pred_check
        %p266 = pneg %p265
      $region38: #{tpu_custom_call.1} parent=5 // pred_check_branch
        %268 = sbr.rel (%p266) target = $region40
      $region39: #{tpu_custom_call.1} parent=5 // pred_region
        // Predicated region
        $region41: #{tpu_custom_call.1} parent=39 // pred_check
          %p269 = pneg %p38
        $region42: #{tpu_custom_call.1} parent=39 // pred_check_branch
          %271 = sbr.rel (%p269) target = $region44
        $region43: #{tpu_custom_call.1} parent=39 // pred_region
          %p272 = scmp.lt.s32.totalorder %s18, 1
          %s273 = scalar_select %p272, %s18, 1
          %s274 = smul.addr %s273, 8
          %s275 = scalar_lea.vmem %s0, %s274
        $region44: #{tpu_custom_call.1} parent=39 // pred_fallthru
          _
        // Predicated region
        $region45: #{tpu_custom_call.1} parent=39 // pred_check
          %p276 = pneg %p64
        $region46: #{tpu_custom_call.1} parent=39 // pred_check_branch
          %278 = sbr.rel (%p276) target = $region48
        $region47: #{tpu_custom_call.1} parent=39 // pred_region
          %p279 = scmp.lt.s32.totalorder %s18, 1
          %s280 = scalar_select %p279, %s18, 1
          %s281 = scalar_lea.vmem %s1, %s280
        $region48: #{tpu_custom_call.1} parent=39 // pred_fallthru
          _
      $region40: #{tpu_custom_call.1} parent=5 // pred_fallthru
        _
      %p282 = scmp.le.s32.totalorder 1, %s18
      %p283 = scmp.lt.s32.totalorder %s18, 3
      %p284 = pnand %p282, %p283
      %p285 = pneg %p284
      // Predicated region
      $region49: #{tpu_custom_call.1} parent=5 // pred_check
        _
      $region50: #{tpu_custom_call.1} parent=5 // pred_check_branch
        %287 = sbr.rel (%p284) target = $region52
      $region51: #{tpu_custom_call.1} parent=5 // pred_region
        %s288 = ssub.s32 %s18, 1
        // Predicated region
        $region53: #{tpu_custom_call.1} parent=51 // pred_check
          %p289 = pneg %p112
        $region54: #{tpu_custom_call.1} parent=51 // pred_check_branch
          %291 = sbr.rel (%p289) target = $region56
        $region55: #{tpu_custom_call.1} parent=51 // pred_region
          %292 = dma.done [#allocation3], 12288
        $region56: #{tpu_custom_call.1} parent=51 // pred_fallthru
          _
        %p293 = scmp.lt.s32.totalorder %s23, 1
        %s294 = scalar_select %p293, %s23, 1
        %s295 = smul.addr %s294, 8
        %s296 = scalar_lea.vmem %s0, %s295
        %p297 = pneg %p44
        %p298 = pneg %p41
        %p299 = scmp.lt.s32.totalorder %s23, 1
        %s300 = scalar_select %p299, %s23, 1
        %s301 = scalar_lea.vmem %s1, %s300
        %p302 = pneg %p70
        %p303 = pneg %p67
        %p304 = pneg %p91
        %p305 = pneg %p88
        %p306 = pneg %p112
        %p307 = pneg %p109
        %p308 = pneg %p133
        %p309 = pneg %p130
        %p310 = pneg %p154
        %p311 = pneg %p151
        %p312 = pneg %p175
        %p313 = pneg %p172
        %p314 = pneg %p196
        %p315 = pneg %p193
        %p316 = pneg %p222
        %p317 = pneg %p219
        %s318 = sand.u32 %s209, 1
        %s319 = scalar_lea.sflag [#allocation4], %s318
        %s320 = sand.u32 %s209, 1
        %s321 = smul.addr %s320, 8
        %s322 = scalar_lea.vmem [#allocation5], %s321
        %p323 = scmp.lt.s32.totalorder %s23, 1
        %s324 = scalar_select %p323, %s23, 1
        %s325 = smul.addr %s324, 8
        %s326 = scalar_lea.vmem %s0, %s325
        %p327 = scmp.lt.s32.totalorder %s23, 1
        %s328 = scalar_select %p327, %s23, 1
        %s329 = scalar_lea.vmem %s1, %s328
        %v330 = vld [vmem:[%s329] sm:$0x1]
        %v331 = vld [vmem:[%s326] sm:$0xff]
        %v332 = vld [vmem:[#allocation2] sm:$0xff]
        %v333 = vld [vmem:[#allocation2 + $0x8] sm:$0xff]
        %v334 = vld [vmem:[#allocation2 + $0x10] sm:$0xff]
        %v335 = vld [vmem:[#allocation2 + $0x18] sm:$0xff]
        %s336 = scalar_lea.vmem [#allocation2], 32
        %v337 = vld [vmem:[%s336] sm:$0xff]
        %v338 = vld [vmem:[%s336 + $0x8] sm:$0xff]
        %v339 = vld [vmem:[%s336 + $0x10] sm:$0xff]
        %v340 = vld [vmem:[%s336 + $0x18] sm:$0xff]
        %s341 = scalar_lea.vmem [#allocation2], 64
        %v342 = vld [vmem:[%s341] sm:$0xff]
        %v343 = vld [vmem:[%s341 + $0x8] sm:$0xff]
        %v344 = vld [vmem:[%s341 + $0x10] sm:$0xff]
        %v345 = vld [vmem:[%s341 + $0x18] sm:$0xff]
        %s346 = scalar_lea.vmem [#allocation2], 96
        %v347 = vld [vmem:[%s346] sm:$0xff]
        %v348 = vld [vmem:[%s346 + $0x8] sm:$0xff]
        %v349 = vld [vmem:[%s346 + $0x10] sm:$0xff]
        %v350 = vld [vmem:[%s346 + $0x18] sm:$0xff]
        %v351 = vld [vmem:[%s6] sm:$0x1]
        %v352 = vld [vmem:[%s6 + $0x1] sm:$0x1]
        %v353 = vld [vmem:[%s6 + $0x2] sm:$0x1]
        %v354 = vld [vmem:[%s6 + $0x3] sm:$0x1]
        %v355 = vlaneseq
        %v356 = vshrl.u32 %v355, 7
        %v357 = vsub.s32 0, %v356
        %v358 = vrot.slane %v351, %v357
        %vm359 = vcmask 261120
        %v361 = vsel %vm359, %v331, 0
        %363 = vmatprep.subr.mxu0 0.0
        %364 = vmatpush1.msra.mxu0 0.0
        %365 = vmatprep.subr.mxu0 0.0
        %366 = vmatpush1.msra.mxu0 0.0
        %367 = vmatprep.subr.mxu0 0.0
        %368 = vmatpush1.msra.mxu0 0.0
        %369 = vmatprep.subr.mxu0 0.0
        %370 = vmatpush1.msra.mxu0 0.0
        %371 = vmatprep.subr.mxu0 0.0
        %372 = vmatpush1.msra.mxu0 0.0
        %373 = vmatprep.subr.mxu0 0.0
        %374 = vmatpush1.msra.mxu0 0.0
        %375 = vmatprep.subr.mxu0 0.0
        %376 = vmatpush1.msra.mxu0 0.0
        %377 = vmatprep.subr.mxu0 0.0
        %378 = vmatpush1.msra.mxu0 0.0
        %379 = vmatprep.subr.mxu0 0.0
        %380 = vmatpush1.msra.mxu0 0.0
        %381 = vmatprep.subr.mxu0 0.0
        %382 = vmatpush1.msra.mxu0 0.0
        %383 = vmatprep.subr.mxu0 0.0
        %384 = vmatpush1.msra.mxu0 0.0
        %385 = vmatprep.subr.mxu0 0.0
        %386 = vmatpush1.msra.mxu0 0.0
        %387 = vmatprep.subr.mxu0 0.0
        %388 = vmatpush1.msra.mxu0 %v335
        %389 = vmatprep.subr.mxu0 0.0
        %390 = vmatpush1.msra.mxu0 %v334
        %391 = vmatprep.subr.mxu0 0.0
        %392 = vmatpush1.msra.mxu0 %v333
        %393 = vmatprep.subr.mxu0 0.0
        %394 = vmatpush1.msra.mxu0 %v332
        %395 = vmatprep.subr.mxu0 0.0
        %396 = vmatpush2.msra.mxu0 0.0
        %397 = vmatprep.subr.mxu0 0.0
        %398 = vmatpush2.msra.mxu0 0.0
        %399 = vmatprep.subr.mxu0 0.0
        %400 = vmatpush2.msra.mxu0 0.0
        %401 = vmatprep.subr.mxu0 0.0
        %402 = vmatpush2.msra.mxu0 0.0
        %403 = vmatprep.subr.mxu0 0.0
        %404 = vmatpush2.msra.mxu0 0.0
        %405 = vmatprep.subr.mxu0 0.0
        %406 = vmatpush2.msra.mxu0 0.0
        %407 = vmatprep.subr.mxu0 0.0
        %408 = vmatpush2.msra.mxu0 0.0
        %409 = vmatprep.subr.mxu0 0.0
        %410 = vmatpush2.msra.mxu0 0.0
        %411 = vmatprep.subr.mxu0 0.0
        %412 = vmatpush2.msra.mxu0 0.0
        %413 = vmatprep.subr.mxu0 0.0
        %414 = vmatpush2.msra.mxu0 0.0
        %415 = vmatprep.subr.mxu0 0.0
        %416 = vmatpush2.msra.mxu0 0.0
        %417 = vmatprep.subr.mxu0 0.0
        %418 = vmatpush2.msra.mxu0 0.0
        %419 = vmatprep.subr.mxu0 0.0
        %420 = vmatpush2.msra.mxu0 0.0
        %421 = vmatprep.subr.mxu0 0.0
        %422 = vmatpush2.msra.mxu0 0.0
        %423 = vmatprep.subr.mxu0 0.0
        %424 = vmatpush2.msra.mxu0 0.0
        %425 = vmatprep.subr.mxu0 0.0
        %426 = vmatpush2.msra.mxu0 0.0
        %427 = vmatprep.mubr.f32.mxu0 0.0
        %428 = vmatmul.mubr.f32.gmra.mxu0 %v361
        %v429 = vpop.f32.mrf.mxu0
        %v430 = vadd.f32 %v358, %v429
        %v431 = vpop.f32.mrf.mxu0
        %432 = vdwg.mxu0
        %v433 = vlaneseq
        %v434 = vshrl.u32 %v433, 7
        %v435 = vsub.s32 0, %v434
        %v436 = vrot.slane %v352, %v435
        %437 = vmatprep.subr.mxu0 0.0
        %438 = vmatpush1.msra.mxu0 0.0
        %439 = vmatprep.subr.mxu0 0.0
        %440 = vmatpush1.msra.mxu0 0.0
        %441 = vmatprep.subr.mxu0 0.0
        %442 = vmatpush1.msra.mxu0 0.0
        %443 = vmatprep.subr.mxu0 0.0
        %444 = vmatpush1.msra.mxu0 0.0
        %445 = vmatprep.subr.mxu0 0.0
        %446 = vmatpush1.msra.mxu0 0.0
        %447 = vmatprep.subr.mxu0 0.0
        %448 = vmatpush1.msra.mxu0 0.0
        %449 = vmatprep.subr.mxu0 0.0
        %450 = vmatpush1.msra.mxu0 0.0
        %451 = vmatprep.subr.mxu0 0.0
        %452 = vmatpush1.msra.mxu0 0.0
        %453 = vmatprep.subr.mxu0 0.0
        %454 = vmatpush1.msra.mxu0 0.0
        %455 = vmatprep.subr.mxu0 0.0
        %456 = vmatpush1.msra.mxu0 0.0
        %457 = vmatprep.subr.mxu0 0.0
        %458 = vmatpush1.msra.mxu0 0.0
        %459 = vmatprep.subr.mxu0 0.0
        %460 = vmatpush1.msra.mxu0 0.0
        %461 = vmatprep.subr.mxu0 0.0
        %462 = vmatpush1.msra.mxu0 %v340
        %463 = vmatprep.subr.mxu0 0.0
        %464 = vmatpush1.msra.mxu0 %v339
        %465 = vmatprep.subr.mxu0 0.0
        %466 = vmatpush1.msra.mxu0 %v338
        %467 = vmatprep.subr.mxu0 0.0
        %468 = vmatpush1.msra.mxu0 %v337
        %469 = vmatprep.subr.mxu0 0.0
        %470 = vmatpush2.msra.mxu0 0.0
        %471 = vmatprep.subr.mxu0 0.0
        %472 = vmatpush2.msra.mxu0 0.0
        %473 = vmatprep.subr.mxu0 0.0
        %474 = vmatpush2.msra.mxu0 0.0
        %475 = vmatprep.subr.mxu0 0.0
        %476 = vmatpush2.msra.mxu0 0.0
        %477 = vmatprep.subr.mxu0 0.0
        %478 = vmatpush2.msra.mxu0 0.0
        %479 = vmatprep.subr.mxu0 0.0
        %480 = vmatpush2.msra.mxu0 0.0
        %481 = vmatprep.subr.mxu0 0.0
        %482 = vmatpush2.msra.mxu0 0.0
        %483 = vmatprep.subr.mxu0 0.0
        %484 = vmatpush2.msra.mxu0 0.0
        %485 = vmatprep.subr.mxu0 0.0
        %486 = vmatpush2.msra.mxu0 0.0
        %487 = vmatprep.subr.mxu0 0.0
        %488 = vmatpush2.msra.mxu0 0.0
        %489 = vmatprep.subr.mxu0 0.0
        %490 = vmatpush2.msra.mxu0 0.0
        %491 = vmatprep.subr.mxu0 0.0
        %492 = vmatpush2.msra.mxu0 0.0
        %493 = vmatprep.subr.mxu0 0.0
        %494 = vmatpush2.msra.mxu0 0.0
        %495 = vmatprep.subr.mxu0 0.0
        %496 = vmatpush2.msra.mxu0 0.0
        %497 = vmatprep.subr.mxu0 0.0
        %498 = vmatpush2.msra.mxu0 0.0
        %499 = vmatprep.subr.mxu0 0.0
        %500 = vmatpush2.msra.mxu0 0.0
        %501 = vmatprep.mubr.f32.mxu0 0.0
        %502 = vmatmul.mubr.f32.gmra.mxu0 %v361
        %v503 = vpop.f32.mrf.mxu0
        %v504 = vadd.f32 %v436, %v503
        %v505 = vpop.f32.mrf.mxu0
        %506 = vdwg.mxu0
        %v507 = vlaneseq
        %v508 = vshrl.u32 %v507, 7
        %v509 = vsub.s32 0, %v508
        %v510 = vrot.slane %v353, %v509
        %511 = vmatprep.subr.mxu0 0.0
        %512 = vmatpush1.msra.mxu0 0.0
        %513 = vmatprep.subr.mxu0 0.0
        %514 = vmatpush1.msra.mxu0 0.0
        %515 = vmatprep.subr.mxu0 0.0
        %516 = vmatpush1.msra.mxu0 0.0
        %517 = vmatprep.subr.mxu0 0.0
        %518 = vmatpush1.msra.mxu0 0.0
        %519 = vmatprep.subr.mxu0 0.0
        %520 = vmatpush1.msra.mxu0 0.0
        %521 = vmatprep.subr.mxu0 0.0
        %522 = vmatpush1.msra.mxu0 0.0
        %523 = vmatprep.subr.mxu0 0.0
        %524 = vmatpush1.msra.mxu0 0.0
        %525 = vmatprep.subr.mxu0 0.0
        %526 = vmatpush1.msra.mxu0 0.0
        %527 = vmatprep.subr.mxu0 0.0
        %528 = vmatpush1.msra.mxu0 0.0
        %529 = vmatprep.subr.mxu0 0.0
        %530 = vmatpush1.msra.mxu0 0.0
        %531 = vmatprep.subr.mxu0 0.0
        %532 = vmatpush1.msra.mxu0 0.0
        %533 = vmatprep.subr.mxu0 0.0
        %534 = vmatpush1.msra.mxu0 0.0
        %535 = vmatprep.subr.mxu0 0.0
        %536 = vmatpush1.msra.mxu0 %v345
        %537 = vmatprep.subr.mxu0 0.0
        %538 = vmatpush1.msra.mxu0 %v344
        %539 = vmatprep.subr.mxu0 0.0
        %540 = vmatpush1.msra.mxu0 %v343
        %541 = vmatprep.subr.mxu0 0.0
        %542 = vmatpush1.msra.mxu0 %v342
        %543 = vmatprep.subr.mxu0 0.0
        %544 = vmatpush2.msra.mxu0 0.0
        %545 = vmatprep.subr.mxu0 0.0
        %546 = vmatpush2.msra.mxu0 0.0
        %547 = vmatprep.subr.mxu0 0.0
        %548 = vmatpush2.msra.mxu0 0.0
        %549 = vmatprep.subr.mxu0 0.0
        %550 = vmatpush2.msra.mxu0 0.0
        %551 = vmatprep.subr.mxu0 0.0
        %552 = vmatpush2.msra.mxu0 0.0
        %553 = vmatprep.subr.mxu0 0.0
        %554 = vmatpush2.msra.mxu0 0.0
        %555 = vmatprep.subr.mxu0 0.0
        %556 = vmatpush2.msra.mxu0 0.0
        %557 = vmatprep.subr.mxu0 0.0
        %558 = vmatpush2.msra.mxu0 0.0
        %559 = vmatprep.subr.mxu0 0.0
        %560 = vmatpush2.msra.mxu0 0.0
        %561 = vmatprep.subr.mxu0 0.0
        %562 = vmatpush2.msra.mxu0 0.0
        %563 = vmatprep.subr.mxu0 0.0
        %564 = vmatpush2.msra.mxu0 0.0
        %565 = vmatprep.subr.mxu0 0.0
        %566 = vmatpush2.msra.mxu0 0.0
        %567 = vmatprep.subr.mxu0 0.0
        %568 = vmatpush2.msra.mxu0 0.0
        %569 = vmatprep.subr.mxu0 0.0
        %570 = vmatpush2.msra.mxu0 0.0
        %571 = vmatprep.subr.mxu0 0.0
        %572 = vmatpush2.msra.mxu0 0.0
        %573 = vmatprep.subr.mxu0 0.0
        %574 = vmatpush2.msra.mxu0 0.0
        %575 = vmatprep.mubr.f32.mxu0 0.0
        %576 = vmatmul.mubr.f32.gmra.mxu0 %v361
        %v577 = vpop.f32.mrf.mxu0
        %v578 = vadd.f32 %v510, %v577
        %v579 = vpop.f32.mrf.mxu0
        %580 = vdwg.mxu0
        %v582 = vlaneseq
        %v583 = vshrl.u32 %v582, 7
        %v584 = vsub.s32 0, %v583
        %v585 = vrot.slane %v330, %v584
        %vm587 = vcmask 64512
        %v589 = vsel %vm587, %v430, 0
        %v592 = vsel %vm587, %v504, 0
        %594 = vmatprep.subr.mxu0 0.0
        %595 = vmatpush1.xpose.msra.mxu0 0.0
        %596 = vmatprep.subr.mxu0 0.0
        %597 = vmatpush1.xpose.msra.mxu0 0.0
        %598 = vmatprep.subr.mxu0 0.0
        %599 = vmatpush1.xpose.msra.mxu0 0.0
        %600 = vmatprep.subr.mxu0 0.0
        %601 = vmatpush1.xpose.msra.mxu0 0.0
        %602 = vmatprep.subr.mxu0 0.0
        %603 = vmatpush1.xpose.msra.mxu0 0.0
        %604 = vmatprep.subr.mxu0 0.0
        %605 = vmatpush1.xpose.msra.mxu0 0.0
        %606 = vmatprep.subr.mxu0 0.0
        %607 = vmatpush1.xpose.msra.mxu0 0.0
        %608 = vmatprep.subr.mxu0 0.0
        %609 = vmatpush1.xpose.msra.mxu0 0.0
        %610 = vmatprep.subr.mxu0 0.0
        %611 = vmatpush1.xpose.msra.mxu0 0.0
        %612 = vmatprep.subr.mxu0 0.0
        %613 = vmatpush1.xpose.msra.mxu0 0.0
        %614 = vmatprep.subr.mxu0 0.0
        %615 = vmatpush1.xpose.msra.mxu0 0.0
        %616 = vmatprep.subr.mxu0 0.0
        %617 = vmatpush1.xpose.msra.mxu0 0.0
        %618 = vmatprep.subr.mxu0 0.0
        %619 = vmatpush1.xpose.msra.mxu0 0.0
        %620 = vmatprep.subr.mxu0 0.0
        %621 = vmatpush1.xpose.msra.mxu0 0.0
        %622 = vmatprep.subr.mxu0 0.0
        %623 = vmatpush1.xpose.msra.mxu0 0.0
        %624 = vmatprep.subr.mxu0 0.0
        %625 = vmatpush1.xpose.msra.mxu0 %v592
        %626 = vmatprep.subr.mxu0 0.0
        %627 = vmatpush2.xpose.msra.mxu0 0.0
        %628 = vmatprep.subr.mxu0 0.0
        %629 = vmatpush2.xpose.msra.mxu0 0.0
        %630 = vmatprep.subr.mxu0 0.0
        %631 = vmatpush2.xpose.msra.mxu0 0.0
        %632 = vmatprep.subr.mxu0 0.0
        %633 = vmatpush2.xpose.msra.mxu0 0.0
        %634 = vmatprep.subr.mxu0 0.0
        %635 = vmatpush2.xpose.msra.mxu0 0.0
        %636 = vmatprep.subr.mxu0 0.0
        %637 = vmatpush2.xpose.msra.mxu0 0.0
        %638 = vmatprep.subr.mxu0 0.0
        %639 = vmatpush2.xpose.msra.mxu0 0.0
        %640 = vmatprep.subr.mxu0 0.0
        %641 = vmatpush2.xpose.msra.mxu0 0.0
        %642 = vmatprep.subr.mxu0 0.0
        %643 = vmatpush2.xpose.msra.mxu0 0.0
        %644 = vmatprep.subr.mxu0 0.0
        %645 = vmatpush2.xpose.msra.mxu0 0.0
        %646 = vmatprep.subr.mxu0 0.0
        %647 = vmatpush2.xpose.msra.mxu0 0.0
        %648 = vmatprep.subr.mxu0 0.0
        %649 = vmatpush2.xpose.msra.mxu0 0.0
        %650 = vmatprep.subr.mxu0 0.0
        %651 = vmatpush2.xpose.msra.mxu0 0.0
        %652 = vmatprep.subr.mxu0 0.0
        %653 = vmatpush2.xpose.msra.mxu0 0.0
        %654 = vmatprep.subr.mxu0 0.0
        %655 = vmatpush2.xpose.msra.mxu0 0.0
        %656 = vmatprep.subr.mxu0 0.0
        %657 = vmatpush2.xpose.msra.mxu0 0.0
        %658 = vmatprep.mubr.f32.mxu0 0.0
        %659 = vmatmul.mubr.f32.gmra.mxu0 %v589
        %v660 = vpop.f32.mrf.mxu0
        %v661 = vadd.f32 %v585, %v660
        %v662 = vpop.f32.mrf.mxu0
        %663 = vdwg.mxu0
        %v664 = vsel %vm587, %v661, -inf
        %665 = vmax.xlane.f32.xlu0 %v664
        %v666 = vpop.xlane.xlu0 %665
        %v667 = vsub.f32 %v661, %v666
        %v668 = vmul.f32 %v667, 1.442695
        %v669 = vpow.pop %v668
        %v670 = vsel %vm587, %v669, 0.0
        %671 = vadd.xlane.f32.xlu0 %v670
        %v672 = vpop.xlane.xlu0 %671
        %v673 = vrcp.pop %v672
        %v674 = vmul.f32 %v669, %v673
        %v676 = vsel %vm587, %v674, 0
        %678 = vmatprep.subr.mxu0 0.0
        %679 = vmatpush1.msra.mxu0 0.0
        %680 = vmatprep.subr.mxu0 0.0
        %681 = vmatpush1.msra.mxu0 0.0
        %682 = vmatprep.subr.mxu0 0.0
        %683 = vmatpush1.msra.mxu0 0.0
        %684 = vmatprep.subr.mxu0 0.0
        %685 = vmatpush1.msra.mxu0 0.0
        %686 = vmatprep.subr.mxu0 0.0
        %687 = vmatpush1.msra.mxu0 0.0
        %688 = vmatprep.subr.mxu0 0.0
        %689 = vmatpush1.msra.mxu0 0.0
        %690 = vmatprep.subr.mxu0 0.0
        %691 = vmatpush1.msra.mxu0 0.0
        %692 = vmatprep.subr.mxu0 0.0
        %693 = vmatpush1.msra.mxu0 0.0
        %694 = vmatprep.subr.mxu0 0.0
        %695 = vmatpush1.msra.mxu0 0.0
        %696 = vmatprep.subr.mxu0 0.0
        %697 = vmatpush1.msra.mxu0 0.0
        %698 = vmatprep.subr.mxu0 0.0
        %699 = vmatpush1.msra.mxu0 0.0
        %700 = vmatprep.subr.mxu0 0.0
        %701 = vmatpush1.msra.mxu0 0.0
        %702 = vmatprep.subr.mxu0 0.0
        %703 = vmatpush1.msra.mxu0 0.0
        %704 = vmatprep.subr.mxu0 0.0
        %705 = vmatpush1.msra.mxu0 0.0
        %706 = vmatprep.subr.mxu0 0.0
        %707 = vmatpush1.msra.mxu0 0.0
        %708 = vmatprep.subr.mxu0 0.0
        %709 = vmatpush1.msra.mxu0 %v578
        %710 = vmatprep.subr.mxu0 0.0
        %711 = vmatpush2.msra.mxu0 0.0
        %712 = vmatprep.subr.mxu0 0.0
        %713 = vmatpush2.msra.mxu0 0.0
        %714 = vmatprep.subr.mxu0 0.0
        %715 = vmatpush2.msra.mxu0 0.0
        %716 = vmatprep.subr.mxu0 0.0
        %717 = vmatpush2.msra.mxu0 0.0
        %718 = vmatprep.subr.mxu0 0.0
        %719 = vmatpush2.msra.mxu0 0.0
        %720 = vmatprep.subr.mxu0 0.0
        %721 = vmatpush2.msra.mxu0 0.0
        %722 = vmatprep.subr.mxu0 0.0
        %723 = vmatpush2.msra.mxu0 0.0
        %724 = vmatprep.subr.mxu0 0.0
        %725 = vmatpush2.msra.mxu0 0.0
        %726 = vmatprep.subr.mxu0 0.0
        %727 = vmatpush2.msra.mxu0 0.0
        %728 = vmatprep.subr.mxu0 0.0
        %729 = vmatpush2.msra.mxu0 0.0
        %730 = vmatprep.subr.mxu0 0.0
        %731 = vmatpush2.msra.mxu0 0.0
        %732 = vmatprep.subr.mxu0 0.0
        %733 = vmatpush2.msra.mxu0 0.0
        %734 = vmatprep.subr.mxu0 0.0
        %735 = vmatpush2.msra.mxu0 0.0
        %736 = vmatprep.subr.mxu0 0.0
        %737 = vmatpush2.msra.mxu0 0.0
        %738 = vmatprep.subr.mxu0 0.0
        %739 = vmatpush2.msra.mxu0 0.0
        %740 = vmatprep.subr.mxu0 0.0
        %741 = vmatpush2.msra.mxu0 0.0
        %742 = vmatprep.mubr.f32.mxu0 0.0
        %743 = vmatmul.mubr.f32.gmra.mxu0 %v676
        %v744 = vpop.f32.mrf.mxu0
        %v745 = vadd.f32 0.0, %v744
        %v746 = vpop.f32.mrf.mxu0
        %747 = vdwg.mxu0
        %748 = vrot.lane.b32.xlu0 %v430, 120
        %v749 = vpop.permute.xlu0 %748
        %750 = vrot.lane.b32.xlu0 %v504, 120
        %v751 = vpop.permute.xlu0 %750
        %v752 = vsel %vm587, %v749, 0
        %v754 = vsel %vm587, %v751, 0
        %756 = vmatprep.subr.mxu0 0.0
        %757 = vmatpush1.xpose.msra.mxu0 0.0
        %758 = vmatprep.subr.mxu0 0.0
        %759 = vmatpush1.xpose.msra.mxu0 0.0
        %760 = vmatprep.subr.mxu0 0.0
        %761 = vmatpush1.xpose.msra.mxu0 0.0
        %762 = vmatprep.subr.mxu0 0.0
        %763 = vmatpush1.xpose.msra.mxu0 0.0
        %764 = vmatprep.subr.mxu0 0.0
        %765 = vmatpush1.xpose.msra.mxu0 0.0
        %766 = vmatprep.subr.mxu0 0.0
        %767 = vmatpush1.xpose.msra.mxu0 0.0
        %768 = vmatprep.subr.mxu0 0.0
        %769 = vmatpush1.xpose.msra.mxu0 0.0
        %770 = vmatprep.subr.mxu0 0.0
        %771 = vmatpush1.xpose.msra.mxu0 0.0
        %772 = vmatprep.subr.mxu0 0.0
        %773 = vmatpush1.xpose.msra.mxu0 0.0
        %774 = vmatprep.subr.mxu0 0.0
        %775 = vmatpush1.xpose.msra.mxu0 0.0
        %776 = vmatprep.subr.mxu0 0.0
        %777 = vmatpush1.xpose.msra.mxu0 0.0
        %778 = vmatprep.subr.mxu0 0.0
        %779 = vmatpush1.xpose.msra.mxu0 0.0
        %780 = vmatprep.subr.mxu0 0.0
        %781 = vmatpush1.xpose.msra.mxu0 0.0
        %782 = vmatprep.subr.mxu0 0.0
        %783 = vmatpush1.xpose.msra.mxu0 0.0
        %784 = vmatprep.subr.mxu0 0.0
        %785 = vmatpush1.xpose.msra.mxu0 0.0
        %786 = vmatprep.subr.mxu0 0.0
        %787 = vmatpush1.xpose.msra.mxu0 %v754
        %788 = vmatprep.subr.mxu0 0.0
        %789 = vmatpush2.xpose.msra.mxu0 0.0
        %790 = vmatprep.subr.mxu0 0.0
        %791 = vmatpush2.xpose.msra.mxu0 0.0
        %792 = vmatprep.subr.mxu0 0.0
        %793 = vmatpush2.xpose.msra.mxu0 0.0
        %794 = vmatprep.subr.mxu0 0.0
        %795 = vmatpush2.xpose.msra.mxu0 0.0
        %796 = vmatprep.subr.mxu0 0.0
        %797 = vmatpush2.xpose.msra.mxu0 0.0
        %798 = vmatprep.subr.mxu0 0.0
        %799 = vmatpush2.xpose.msra.mxu0 0.0
        %800 = vmatprep.subr.mxu0 0.0
        %801 = vmatpush2.xpose.msra.mxu0 0.0
        %802 = vmatprep.subr.mxu0 0.0
        %803 = vmatpush2.xpose.msra.mxu0 0.0
        %804 = vmatprep.subr.mxu0 0.0
        %805 = vmatpush2.xpose.msra.mxu0 0.0
        %806 = vmatprep.subr.mxu0 0.0
        %807 = vmatpush2.xpose.msra.mxu0 0.0
        %808 = vmatprep.subr.mxu0 0.0
        %809 = vmatpush2.xpose.msra.mxu0 0.0
        %810 = vmatprep.subr.mxu0 0.0
        %811 = vmatpush2.xpose.msra.mxu0 0.0
        %812 = vmatprep.subr.mxu0 0.0
        %813 = vmatpush2.xpose.msra.mxu0 0.0
        %814 = vmatprep.subr.mxu0 0.0
        %815 = vmatpush2.xpose.msra.mxu0 0.0
        %816 = vmatprep.subr.mxu0 0.0
        %817 = vmatpush2.xpose.msra.mxu0 0.0
        %818 = vmatprep.subr.mxu0 0.0
        %819 = vmatpush2.xpose.msra.mxu0 0.0
        %820 = vmatprep.mubr.f32.mxu0 0.0
        %821 = vmatmul.mubr.f32.gmra.mxu0 %v752
        %v822 = vpop.f32.mrf.mxu0
        %v823 = vadd.f32 %v585, %v822
        %v824 = vpop.f32.mrf.mxu0
        %825 = vdwg.mxu0
        %v826 = vsel %vm587, %v823, -inf
        %827 = vmax.xlane.f32.xlu0 %v826
        %v828 = vpop.xlane.xlu0 %827
        %v829 = vsub.f32 %v823, %v828
        %v830 = vmul.f32 %v829, 1.442695
        %v831 = vpow.pop %v830
        %v832 = vsel %vm587, %v831, 0.0
        %833 = vadd.xlane.f32.xlu0 %v832
        %v834 = vpop.xlane.xlu0 %833
        %v835 = vrcp.pop %v834
        %v836 = vmul.f32 %v831, %v835
        %838 = vrot.lane.b32.xlu0 %v578, 120
        %v839 = vpop.permute.xlu0 %838
        %v842 = vsel %vm587, %v836, 0
        %844 = vmatprep.subr.mxu0 0.0
        %845 = vmatpush1.msra.mxu0 0.0
        %846 = vmatprep.subr.mxu0 0.0
        %847 = vmatpush1.msra.mxu0 0.0
        %848 = vmatprep.subr.mxu0 0.0
        %849 = vmatpush1.msra.mxu0 0.0
        %850 = vmatprep.subr.mxu0 0.0
        %851 = vmatpush1.msra.mxu0 0.0
        %852 = vmatprep.subr.mxu0 0.0
        %853 = vmatpush1.msra.mxu0 0.0
        %854 = vmatprep.subr.mxu0 0.0
        %855 = vmatpush1.msra.mxu0 0.0
        %856 = vmatprep.subr.mxu0 0.0
        %857 = vmatpush1.msra.mxu0 0.0
        %858 = vmatprep.subr.mxu0 0.0
        %859 = vmatpush1.msra.mxu0 0.0
        %860 = vmatprep.subr.mxu0 0.0
        %861 = vmatpush1.msra.mxu0 0.0
        %862 = vmatprep.subr.mxu0 0.0
        %863 = vmatpush1.msra.mxu0 0.0
        %864 = vmatprep.subr.mxu0 0.0
        %865 = vmatpush1.msra.mxu0 0.0
        %866 = vmatprep.subr.mxu0 0.0
        %867 = vmatpush1.msra.mxu0 0.0
        %868 = vmatprep.subr.mxu0 0.0
        %869 = vmatpush1.msra.mxu0 0.0
        %870 = vmatprep.subr.mxu0 0.0
        %871 = vmatpush1.msra.mxu0 0.0
        %872 = vmatprep.subr.mxu0 0.0
        %873 = vmatpush1.msra.mxu0 0.0
        %874 = vmatprep.subr.mxu0 0.0
        %875 = vmatpush1.msra.mxu0 %v839
        %876 = vmatprep.subr.mxu0 0.0
        %877 = vmatpush2.msra.mxu0 0.0
        %878 = vmatprep.subr.mxu0 0.0
        %879 = vmatpush2.msra.mxu0 0.0
        %880 = vmatprep.subr.mxu0 0.0
        %881 = vmatpush2.msra.mxu0 0.0
        %882 = vmatprep.subr.mxu0 0.0
        %883 = vmatpush2.msra.mxu0 0.0
        %884 = vmatprep.subr.mxu0 0.0
        %885 = vmatpush2.msra.mxu0 0.0
        %886 = vmatprep.subr.mxu0 0.0
        %887 = vmatpush2.msra.mxu0 0.0
        %888 = vmatprep.subr.mxu0 0.0
        %889 = vmatpush2.msra.mxu0 0.0
        %890 = vmatprep.subr.mxu0 0.0
        %891 = vmatpush2.msra.mxu0 0.0
        %892 = vmatprep.subr.mxu0 0.0
        %893 = vmatpush2.msra.mxu0 0.0
        %894 = vmatprep.subr.mxu0 0.0
        %895 = vmatpush2.msra.mxu0 0.0
        %896 = vmatprep.subr.mxu0 0.0
        %897 = vmatpush2.msra.mxu0 0.0
        %898 = vmatprep.subr.mxu0 0.0
        %899 = vmatpush2.msra.mxu0 0.0
        %900 = vmatprep.subr.mxu0 0.0
        %901 = vmatpush2.msra.mxu0 0.0
        %902 = vmatprep.subr.mxu0 0.0
        %903 = vmatpush2.msra.mxu0 0.0
        %904 = vmatprep.subr.mxu0 0.0
        %905 = vmatpush2.msra.mxu0 0.0
        %906 = vmatprep.subr.mxu0 0.0
        %907 = vmatpush2.msra.mxu0 0.0
        %908 = vmatprep.mubr.f32.mxu0 0.0
        %909 = vmatmul.mubr.f32.gmra.mxu0 %v842
        %v910 = vpop.f32.mrf.mxu0
        %v911 = vadd.f32 0.0, %v910
        %v912 = vpop.f32.mrf.mxu0
        %913 = vdwg.mxu0
        %914 = vrot.lane.b32.xlu0 %v430, 112
        %v915 = vpop.permute.xlu0 %914
        %916 = vrot.lane.b32.xlu0 %v504, 112
        %v917 = vpop.permute.xlu0 %916
        %v918 = vsel %vm587, %v915, 0
        %v920 = vsel %vm587, %v917, 0
        %922 = vmatprep.subr.mxu0 0.0
        %923 = vmatpush1.xpose.msra.mxu0 0.0
        %924 = vmatprep.subr.mxu0 0.0
        %925 = vmatpush1.xpose.msra.mxu0 0.0
        %926 = vmatprep.subr.mxu0 0.0
        %927 = vmatpush1.xpose.msra.mxu0 0.0
        %928 = vmatprep.subr.mxu0 0.0
        %929 = vmatpush1.xpose.msra.mxu0 0.0
        %930 = vmatprep.subr.mxu0 0.0
        %931 = vmatpush1.xpose.msra.mxu0 0.0
        %932 = vmatprep.subr.mxu0 0.0
        %933 = vmatpush1.xpose.msra.mxu0 0.0
        %934 = vmatprep.subr.mxu0 0.0
        %935 = vmatpush1.xpose.msra.mxu0 0.0
        %936 = vmatprep.subr.mxu0 0.0
        %937 = vmatpush1.xpose.msra.mxu0 0.0
        %938 = vmatprep.subr.mxu0 0.0
        %939 = vmatpush1.xpose.msra.mxu0 0.0
        %940 = vmatprep.subr.mxu0 0.0
        %941 = vmatpush1.xpose.msra.mxu0 0.0
        %942 = vmatprep.subr.mxu0 0.0
        %943 = vmatpush1.xpose.msra.mxu0 0.0
        %944 = vmatprep.subr.mxu0 0.0
        %945 = vmatpush1.xpose.msra.mxu0 0.0
        %946 = vmatprep.subr.mxu0 0.0
        %947 = vmatpush1.xpose.msra.mxu0 0.0
        %948 = vmatprep.subr.mxu0 0.0
        %949 = vmatpush1.xpose.msra.mxu0 0.0
        %950 = vmatprep.subr.mxu0 0.0
        %951 = vmatpush1.xpose.msra.mxu0 0.0
        %952 = vmatprep.subr.mxu0 0.0
        %953 = vmatpush1.xpose.msra.mxu0 %v920
        %954 = vmatprep.subr.mxu0 0.0
        %955 = vmatpush2.xpose.msra.mxu0 0.0
        %956 = vmatprep.subr.mxu0 0.0
        %957 = vmatpush2.xpose.msra.mxu0 0.0
        %958 = vmatprep.subr.mxu0 0.0
        %959 = vmatpush2.xpose.msra.mxu0 0.0
        %960 = vmatprep.subr.mxu0 0.0
        %961 = vmatpush2.xpose.msra.mxu0 0.0
        %962 = vmatprep.subr.mxu0 0.0
        %963 = vmatpush2.xpose.msra.mxu0 0.0
        %964 = vmatprep.subr.mxu0 0.0
        %965 = vmatpush2.xpose.msra.mxu0 0.0
        %966 = vmatprep.subr.mxu0 0.0
        %967 = vmatpush2.xpose.msra.mxu0 0.0
        %968 = vmatprep.subr.mxu0 0.0
        %969 = vmatpush2.xpose.msra.mxu0 0.0
        %970 = vmatprep.subr.mxu0 0.0
        %971 = vmatpush2.xpose.msra.mxu0 0.0
        %972 = vmatprep.subr.mxu0 0.0
        %973 = vmatpush2.xpose.msra.mxu0 0.0
        %974 = vmatprep.subr.mxu0 0.0
        %975 = vmatpush2.xpose.msra.mxu0 0.0
        %976 = vmatprep.subr.mxu0 0.0
        %977 = vmatpush2.xpose.msra.mxu0 0.0
        %978 = vmatprep.subr.mxu0 0.0
        %979 = vmatpush2.xpose.msra.mxu0 0.0
        %980 = vmatprep.subr.mxu0 0.0
        %981 = vmatpush2.xpose.msra.mxu0 0.0
        %982 = vmatprep.subr.mxu0 0.0
        %983 = vmatpush2.xpose.msra.mxu0 0.0
        %984 = vmatprep.subr.mxu0 0.0
        %985 = vmatpush2.xpose.msra.mxu0 0.0
        %986 = vmatprep.mubr.f32.mxu0 0.0
        %987 = vmatmul.mubr.f32.gmra.mxu0 %v918
        %v988 = vpop.f32.mrf.mxu0
        %v989 = vadd.f32 %v585, %v988
        %v990 = vpop.f32.mrf.mxu0
        %991 = vdwg.mxu0
        %v992 = vsel %vm587, %v989, -inf
        %993 = vmax.xlane.f32.xlu0 %v992
        %v994 = vpop.xlane.xlu0 %993
        %v995 = vsub.f32 %v989, %v994
        %v996 = vmul.f32 %v995, 1.442695
        %v997 = vpow.pop %v996
        %v998 = vsel %vm587, %v997, 0.0
        %999 = vadd.xlane.f32.xlu0 %v998
        %v1000 = vpop.xlane.xlu0 %999
        %v1001 = vrcp.pop %v1000
        %v1002 = vmul.f32 %v997, %v1001
        %1003 = vrot.lane.b32.xlu0 %v578, 112
        %v1004 = vpop.permute.xlu0 %1003
        %v1007 = vsel %vm587, %v1002, 0
        %1009 = vmatprep.subr.mxu0 0.0
        %1010 = vmatpush1.msra.mxu0 0.0
        %1011 = vmatprep.subr.mxu0 0.0
        %1012 = vmatpush1.msra.mxu0 0.0
        %1013 = vmatprep.subr.mxu0 0.0
        %1014 = vmatpush1.msra.mxu0 0.0
        %1015 = vmatprep.subr.mxu0 0.0
        %1016 = vmatpush1.msra.mxu0 0.0
        %1017 = vmatprep.subr.mxu0 0.0
        %1018 = vmatpush1.msra.mxu0 0.0
        %1019 = vmatprep.subr.mxu0 0.0
        %1020 = vmatpush1.msra.mxu0 0.0
        %1021 = vmatprep.subr.mxu0 0.0
        %1022 = vmatpush1.msra.mxu0 0.0
        %1023 = vmatprep.subr.mxu0 0.0
        %1024 = vmatpush1.msra.mxu0 0.0
        %1025 = vmatprep.subr.mxu0 0.0
        %1026 = vmatpush1.msra.mxu0 0.0
        %1027 = vmatprep.subr.mxu0 0.0
        %1028 = vmatpush1.msra.mxu0 0.0
        %1029 = vmatprep.subr.mxu0 0.0
        %1030 = vmatpush1.msra.mxu0 0.0
        %1031 = vmatprep.subr.mxu0 0.0
        %1032 = vmatpush1.msra.mxu0 0.0
        %1033 = vmatprep.subr.mxu0 0.0
        %1034 = vmatpush1.msra.mxu0 0.0
        %1035 = vmatprep.subr.mxu0 0.0
        %1036 = vmatpush1.msra.mxu0 0.0
        %1037 = vmatprep.subr.mxu0 0.0
        %1038 = vmatpush1.msra.mxu0 0.0
        %1039 = vmatprep.subr.mxu0 0.0
        %1040 = vmatpush1.msra.mxu0 %v1004
        %1041 = vmatprep.subr.mxu0 0.0
        %1042 = vmatpush2.msra.mxu0 0.0
        %1043 = vmatprep.subr.mxu0 0.0
        %1044 = vmatpush2.msra.mxu0 0.0
        %1045 = vmatprep.subr.mxu0 0.0
        %1046 = vmatpush2.msra.mxu0 0.0
        %1047 = vmatprep.subr.mxu0 0.0
        %1048 = vmatpush2.msra.mxu0 0.0
        %1049 = vmatprep.subr.mxu0 0.0
        %1050 = vmatpush2.msra.mxu0 0.0
        %1051 = vmatprep.subr.mxu0 0.0
        %1052 = vmatpush2.msra.mxu0 0.0
        %1053 = vmatprep.subr.mxu0 0.0
        %1054 = vmatpush2.msra.mxu0 0.0
        %1055 = vmatprep.subr.mxu0 0.0
        %1056 = vmatpush2.msra.mxu0 0.0
        %1057 = vmatprep.subr.mxu0 0.0
        %1058 = vmatpush2.msra.mxu0 0.0
        %1059 = vmatprep.subr.mxu0 0.0
        %1060 = vmatpush2.msra.mxu0 0.0
        %1061 = vmatprep.subr.mxu0 0.0
        %1062 = vmatpush2.msra.mxu0 0.0
        %1063 = vmatprep.subr.mxu0 0.0
        %1064 = vmatpush2.msra.mxu0 0.0
        %1065 = vmatprep.subr.mxu0 0.0
        %1066 = vmatpush2.msra.mxu0 0.0
        %1067 = vmatprep.subr.mxu0 0.0
        %1068 = vmatpush2.msra.mxu0 0.0
        %1069 = vmatprep.subr.mxu0 0.0
        %1070 = vmatpush2.msra.mxu0 0.0
        %1071 = vmatprep.subr.mxu0 0.0
        %1072 = vmatpush2.msra.mxu0 0.0
        %1073 = vmatprep.mubr.f32.mxu0 0.0
        %1074 = vmatmul.mubr.f32.gmra.mxu0 %v1007
        %v1075 = vpop.f32.mrf.mxu0
        %v1076 = vadd.f32 0.0, %v1075
        %v1077 = vpop.f32.mrf.mxu0
        %1078 = vdwg.mxu0
        %1079 = vrot.lane.b32.xlu0 %v430, 104
        %v1080 = vpop.permute.xlu0 %1079
        %1081 = vrot.lane.b32.xlu0 %v504, 104
        %v1082 = vpop.permute.xlu0 %1081
        %v1083 = vsel %vm587, %v1080, 0
        %v1085 = vsel %vm587, %v1082, 0
        %1087 = vmatprep.subr.mxu0 0.0
        %1088 = vmatpush1.xpose.msra.mxu0 0.0
        %1089 = vmatprep.subr.mxu0 0.0
        %1090 = vmatpush1.xpose.msra.mxu0 0.0
        %1091 = vmatprep.subr.mxu0 0.0
        %1092 = vmatpush1.xpose.msra.mxu0 0.0
        %1093 = vmatprep.subr.mxu0 0.0
        %1094 = vmatpush1.xpose.msra.mxu0 0.0
        %1095 = vmatprep.subr.mxu0 0.0
        %1096 = vmatpush1.xpose.msra.mxu0 0.0
        %1097 = vmatprep.subr.mxu0 0.0
        %1098 = vmatpush1.xpose.msra.mxu0 0.0
        %1099 = vmatprep.subr.mxu0 0.0
        %1100 = vmatpush1.xpose.msra.mxu0 0.0
        %1101 = vmatprep.subr.mxu0 0.0
        %1102 = vmatpush1.xpose.msra.mxu0 0.0
        %1103 = vmatprep.subr.mxu0 0.0
        %1104 = vmatpush1.xpose.msra.mxu0 0.0
        %1105 = vmatprep.subr.mxu0 0.0
        %1106 = vmatpush1.xpose.msra.mxu0 0.0
        %1107 = vmatprep.subr.mxu0 0.0
        %1108 = vmatpush1.xpose.msra.mxu0 0.0
        %1109 = vmatprep.subr.mxu0 0.0
        %1110 = vmatpush1.xpose.msra.mxu0 0.0
        %1111 = vmatprep.subr.mxu0 0.0
        %1112 = vmatpush1.xpose.msra.mxu0 0.0
        %1113 = vmatprep.subr.mxu0 0.0
        %1114 = vmatpush1.xpose.msra.mxu0 0.0
        %1115 = vmatprep.subr.mxu0 0.0
        %1116 = vmatpush1.xpose.msra.mxu0 0.0
        %1117 = vmatprep.subr.mxu0 0.0
        %1118 = vmatpush1.xpose.msra.mxu0 %v1085
        %1119 = vmatprep.subr.mxu0 0.0
        %1120 = vmatpush2.xpose.msra.mxu0 0.0
        %1121 = vmatprep.subr.mxu0 0.0
        %1122 = vmatpush2.xpose.msra.mxu0 0.0
        %1123 = vmatprep.subr.mxu0 0.0
        %1124 = vmatpush2.xpose.msra.mxu0 0.0
        %1125 = vmatprep.subr.mxu0 0.0
        %1126 = vmatpush2.xpose.msra.mxu0 0.0
        %1127 = vmatprep.subr.mxu0 0.0
        %1128 = vmatpush2.xpose.msra.mxu0 0.0
        %1129 = vmatprep.subr.mxu0 0.0
        %1130 = vmatpush2.xpose.msra.mxu0 0.0
        %1131 = vmatprep.subr.mxu0 0.0
        %1132 = vmatpush2.xpose.msra.mxu0 0.0
        %1133 = vmatprep.subr.mxu0 0.0
        %1134 = vmatpush2.xpose.msra.mxu0 0.0
        %1135 = vmatprep.subr.mxu0 0.0
        %1136 = vmatpush2.xpose.msra.mxu0 0.0
        %1137 = vmatprep.subr.mxu0 0.0
        %1138 = vmatpush2.xpose.msra.mxu0 0.0
        %1139 = vmatprep.subr.mxu0 0.0
        %1140 = vmatpush2.xpose.msra.mxu0 0.0
        %1141 = vmatprep.subr.mxu0 0.0
        %1142 = vmatpush2.xpose.msra.mxu0 0.0
        %1143 = vmatprep.subr.mxu0 0.0
        %1144 = vmatpush2.xpose.msra.mxu0 0.0
        %1145 = vmatprep.subr.mxu0 0.0
        %1146 = vmatpush2.xpose.msra.mxu0 0.0
        %1147 = vmatprep.subr.mxu0 0.0
        %1148 = vmatpush2.xpose.msra.mxu0 0.0
        %1149 = vmatprep.subr.mxu0 0.0
        %1150 = vmatpush2.xpose.msra.mxu0 0.0
        %1151 = vmatprep.mubr.f32.mxu0 0.0
        %1152 = vmatmul.mubr.f32.gmra.mxu0 %v1083
        %v1153 = vpop.f32.mrf.mxu0
        %v1154 = vadd.f32 %v585, %v1153
        %v1155 = vpop.f32.mrf.mxu0
        %1156 = vdwg.mxu0
        %v1157 = vsel %vm587, %v1154, -inf
        %1158 = vmax.xlane.f32.xlu0 %v1157
        %v1159 = vpop.xlane.xlu0 %1158
        %v1160 = vsub.f32 %v1154, %v1159
        %v1161 = vmul.f32 %v1160, 1.442695
        %v1162 = vpow.pop %v1161
        %v1163 = vsel %vm587, %v1162, 0.0
        %1164 = vadd.xlane.f32.xlu0 %v1163
        %v1165 = vpop.xlane.xlu0 %1164
        %v1166 = vrcp.pop %v1165
        %v1167 = vmul.f32 %v1162, %v1166
        %1168 = vrot.lane.b32.xlu0 %v578, 104
        %v1169 = vpop.permute.xlu0 %1168
        %v1172 = vsel %vm587, %v1167, 0
        %1174 = vmatprep.subr.mxu0 0.0
        %1175 = vmatpush1.msra.mxu0 0.0
        %1176 = vmatprep.subr.mxu0 0.0
        %1177 = vmatpush1.msra.mxu0 0.0
        %1178 = vmatprep.subr.mxu0 0.0
        %1179 = vmatpush1.msra.mxu0 0.0
        %1180 = vmatprep.subr.mxu0 0.0
        %1181 = vmatpush1.msra.mxu0 0.0
        %1182 = vmatprep.subr.mxu0 0.0
        %1183 = vmatpush1.msra.mxu0 0.0
        %1184 = vmatprep.subr.mxu0 0.0
        %1185 = vmatpush1.msra.mxu0 0.0
        %1186 = vmatprep.subr.mxu0 0.0
        %1187 = vmatpush1.msra.mxu0 0.0
        %1188 = vmatprep.subr.mxu0 0.0
        %1189 = vmatpush1.msra.mxu0 0.0
        %1190 = vmatprep.subr.mxu0 0.0
        %1191 = vmatpush1.msra.mxu0 0.0
        %1192 = vmatprep.subr.mxu0 0.0
        %1193 = vmatpush1.msra.mxu0 0.0
        %1194 = vmatprep.subr.mxu0 0.0
        %1195 = vmatpush1.msra.mxu0 0.0
        %1196 = vmatprep.subr.mxu0 0.0
        %1197 = vmatpush1.msra.mxu0 0.0
        %1198 = vmatprep.subr.mxu0 0.0
        %1199 = vmatpush1.msra.mxu0 0.0
        %1200 = vmatprep.subr.mxu0 0.0
        %1201 = vmatpush1.msra.mxu0 0.0
        %1202 = vmatprep.subr.mxu0 0.0
        %1203 = vmatpush1.msra.mxu0 0.0
        %1204 = vmatprep.subr.mxu0 0.0
        %1205 = vmatpush1.msra.mxu0 %v1169
        %1206 = vmatprep.subr.mxu0 0.0
        %1207 = vmatpush2.msra.mxu0 0.0
        %1208 = vmatprep.subr.mxu0 0.0
        %1209 = vmatpush2.msra.mxu0 0.0
        %1210 = vmatprep.subr.mxu0 0.0
        %1211 = vmatpush2.msra.mxu0 0.0
        %1212 = vmatprep.subr.mxu0 0.0
        %1213 = vmatpush2.msra.mxu0 0.0
        %1214 = vmatprep.subr.mxu0 0.0
        %1215 = vmatpush2.msra.mxu0 0.0
        %1216 = vmatprep.subr.mxu0 0.0
        %1217 = vmatpush2.msra.mxu0 0.0
        %1218 = vmatprep.subr.mxu0 0.0
        %1219 = vmatpush2.msra.mxu0 0.0
        %1220 = vmatprep.subr.mxu0 0.0
        %1221 = vmatpush2.msra.mxu0 0.0
        %1222 = vmatprep.subr.mxu0 0.0
        %1223 = vmatpush2.msra.mxu0 0.0
        %1224 = vmatprep.subr.mxu0 0.0
        %1225 = vmatpush2.msra.mxu0 0.0
        %1226 = vmatprep.subr.mxu0 0.0
        %1227 = vmatpush2.msra.mxu0 0.0
        %1228 = vmatprep.subr.mxu0 0.0
        %1229 = vmatpush2.msra.mxu0 0.0
        %1230 = vmatprep.subr.mxu0 0.0
        %1231 = vmatpush2.msra.mxu0 0.0
        %1232 = vmatprep.subr.mxu0 0.0
        %1233 = vmatpush2.msra.mxu0 0.0
        %1234 = vmatprep.subr.mxu0 0.0
        %1235 = vmatpush2.msra.mxu0 0.0
        %1236 = vmatprep.subr.mxu0 0.0
        %1237 = vmatpush2.msra.mxu0 0.0
        %1238 = vmatprep.mubr.f32.mxu0 0.0
        %1239 = vmatmul.mubr.f32.gmra.mxu0 %v1172
        %v1240 = vpop.f32.mrf.mxu0
        %v1241 = vadd.f32 0.0, %v1240
        %v1242 = vpop.f32.mrf.mxu0
        %1243 = vdwg.mxu0
        %1245 = vrot.lane.b32.xlu0 %v911, 8
        %v1246 = vpop.permute.xlu0 %1245
        %1249 = vrot.lane.b32.xlu0 %v1076, 16
        %v1250 = vpop.permute.xlu0 %1249
        %1253 = vrot.lane.b32.xlu0 %v1241, 24
        %v1254 = vpop.permute.xlu0 %1253
        %v1256 = vsel %vm587, %v745, %v1246
        %vm1257 = vcmask 130048
        %v1258 = vsel %vm1257, %v1256, %v1250
        %vm1259 = vcmask 195584
        %v1260 = vsel %vm1259, %v1258, %v1254
        %v1261 = vlaneseq
        %v1262 = vshrl.u32 %v1261, 7
        %v1263 = vsub.s32 0, %v1262
        %v1264 = vrot.slane %v354, %v1263
        %v1266 = vsel %vm359, %v1260, 0
        %1268 = vmatprep.subr.mxu0 0.0
        %1269 = vmatpush1.msra.mxu0 0.0
        %1270 = vmatprep.subr.mxu0 0.0
        %1271 = vmatpush1.msra.mxu0 0.0
        %1272 = vmatprep.subr.mxu0 0.0
        %1273 = vmatpush1.msra.mxu0 0.0
        %1274 = vmatprep.subr.mxu0 0.0
        %1275 = vmatpush1.msra.mxu0 0.0
        %1276 = vmatprep.subr.mxu0 0.0
        %1277 = vmatpush1.msra.mxu0 0.0
        %1278 = vmatprep.subr.mxu0 0.0
        %1279 = vmatpush1.msra.mxu0 0.0
        %1280 = vmatprep.subr.mxu0 0.0
        %1281 = vmatpush1.msra.mxu0 0.0
        %1282 = vmatprep.subr.mxu0 0.0
        %1283 = vmatpush1.msra.mxu0 0.0
        %1284 = vmatprep.subr.mxu0 0.0
        %1285 = vmatpush1.msra.mxu0 0.0
        %1286 = vmatprep.subr.mxu0 0.0
        %1287 = vmatpush1.msra.mxu0 0.0
        %1288 = vmatprep.subr.mxu0 0.0
        %1289 = vmatpush1.msra.mxu0 0.0
        %1290 = vmatprep.subr.mxu0 0.0
        %1291 = vmatpush1.msra.mxu0 0.0
        %1292 = vmatprep.subr.mxu0 0.0
        %1293 = vmatpush1.msra.mxu0 %v350
        %1294 = vmatprep.subr.mxu0 0.0
        %1295 = vmatpush1.msra.mxu0 %v349
        %1296 = vmatprep.subr.mxu0 0.0
        %1297 = vmatpush1.msra.mxu0 %v348
        %1298 = vmatprep.subr.mxu0 0.0
        %1299 = vmatpush1.msra.mxu0 %v347
        %1300 = vmatprep.subr.mxu0 0.0
        %1301 = vmatpush2.msra.mxu0 0.0
        %1302 = vmatprep.subr.mxu0 0.0
        %1303 = vmatpush2.msra.mxu0 0.0
        %1304 = vmatprep.subr.mxu0 0.0
        %1305 = vmatpush2.msra.mxu0 0.0
        %1306 = vmatprep.subr.mxu0 0.0
        %1307 = vmatpush2.msra.mxu0 0.0
        %1308 = vmatprep.subr.mxu0 0.0
        %1309 = vmatpush2.msra.mxu0 0.0
        %1310 = vmatprep.subr.mxu0 0.0
        %1311 = vmatpush2.msra.mxu0 0.0
        %1312 = vmatprep.subr.mxu0 0.0
        %1313 = vmatpush2.msra.mxu0 0.0
        %1314 = vmatprep.subr.mxu0 0.0
        %1315 = vmatpush2.msra.mxu0 0.0
        %1316 = vmatprep.subr.mxu0 0.0
        %1317 = vmatpush2.msra.mxu0 0.0
        %1318 = vmatprep.subr.mxu0 0.0
        %1319 = vmatpush2.msra.mxu0 0.0
        %1320 = vmatprep.subr.mxu0 0.0
        %1321 = vmatpush2.msra.mxu0 0.0
        %1322 = vmatprep.subr.mxu0 0.0
        %1323 = vmatpush2.msra.mxu0 0.0
        %1324 = vmatprep.subr.mxu0 0.0
        %1325 = vmatpush2.msra.mxu0 0.0
        %1326 = vmatprep.subr.mxu0 0.0
        %1327 = vmatpush2.msra.mxu0 0.0
        %1328 = vmatprep.subr.mxu0 0.0
        %1329 = vmatpush2.msra.mxu0 0.0
        %1330 = vmatprep.subr.mxu0 0.0
        %1331 = vmatpush2.msra.mxu0 0.0
        %1332 = vmatprep.mubr.f32.mxu0 0.0
        %1333 = vmatmul.mubr.f32.gmra.mxu0 %v1266
        %v1334 = vpop.f32.mrf.mxu0
        %v1335 = vadd.f32 %v1264, %v1334
        %v1336 = vpop.f32.mrf.mxu0
        %1337 = vdwg.mxu0
        %v1338 = vadd.f32 %v331, %v1335
        %v1339 = vld [vmem:[%s6 + $0x4] sm:$0x1]
        %v1340 = vld [vmem:[%s6 + $0x5] sm:$0x1]
        %v1341 = vsel %vm359, %v1338, 0.0
        %1342 = vadd.xlane.f32.xlu0 %v1341
        %v1343 = vpop.xlane.xlu0 %1342
        %v1344 = vrcp.pop 32.0
        %v1345 = vmul.f32 %v1343, %v1344
        %v1346 = vsub.f32 %v1338, %v1345
        %v1347 = vmul.f32 %v1346, %v1346
        %v1348 = vsel %vm359, %v1347, 0.0
        %1349 = vadd.xlane.f32.xlu0 %v1348
        %v1350 = vpop.xlane.xlu0 %1349
        %v1351 = vmul.f32 %v1350, %v1344
        %v1352 = vadd.f32 %v1351, 1e-05
        %v1353 = vrsqrt.pop %v1352
        %v1354 = vmul.f32 %v1346, %v1353
        %v1355 = vlaneseq
        %v1356 = vshrl.u32 %v1355, 7
        %v1357 = vsub.s32 0, %v1356
        %v1358 = vrot.slane %v1339, %v1357
        %v1359 = vmul.f32 %v1354, %v1358
        %v1360 = vlaneseq
        %v1361 = vshrl.u32 %v1360, 7
        %v1362 = vsub.s32 0, %v1361
        %v1363 = vrot.slane %v1340, %v1362
        %v1364 = vadd.f32 %v1359, %v1363
        %v1365 = vld [vmem:[%s4] sm:$0xff]
        %v1366 = vld [vmem:[%s4 + $0x8] sm:$0xff]
        %v1367 = vld [vmem:[%s4 + $0x10] sm:$0xff]
        %v1368 = vld [vmem:[%s4 + $0x18] sm:$0xff]
        %v1369 = vld [vmem:[%s7] sm:$0x1]
        %v1370 = vld [vmem:[%s5] sm:$0xff]
        %v1371 = vld [vmem:[%s5 + $0x8] sm:$0xff]
        %v1372 = vld [vmem:[%s5 + $0x10] sm:$0xff]
        %v1373 = vld [vmem:[%s5 + $0x18] sm:$0xff]
        %v1374 = vld [vmem:[%s5 + $0x20] sm:$0xff]
        %v1375 = vld [vmem:[%s5 + $0x28] sm:$0xff]
        %v1376 = vld [vmem:[%s5 + $0x30] sm:$0xff]
        %v1377 = vld [vmem:[%s5 + $0x38] sm:$0xff]
        %v1378 = vld [vmem:[%s5 + $0x40] sm:$0xff]
        %v1379 = vld [vmem:[%s5 + $0x48] sm:$0xff]
        %v1380 = vld [vmem:[%s5 + $0x50] sm:$0xff]
        %v1381 = vld [vmem:[%s5 + $0x58] sm:$0xff]
        %v1382 = vld [vmem:[%s5 + $0x60] sm:$0xff]
        %v1383 = vld [vmem:[%s5 + $0x68] sm:$0xff]
        %v1384 = vld [vmem:[%s5 + $0x70] sm:$0xff]
        %v1385 = vld [vmem:[%s5 + $0x78] sm:$0xff]
        %v1386 = vld [vmem:[%s6 + $0x6] sm:$0x1]
        %v1387 = vlaneseq
        %v1388 = vshrl.u32 %v1387, 7
        %v1389 = vsub.s32 0, %v1388
        %v1390 = vrot.slane %v1369, %v1389
        %v1392 = vsel %vm359, %v1364, 0
        %1394 = vmatprep.subr.mxu0 0.0
        %1395 = vmatpush1.msra.mxu0 0.0
        %1396 = vmatprep.subr.mxu0 0.0
        %1397 = vmatpush1.msra.mxu0 0.0
        %1398 = vmatprep.subr.mxu0 0.0
        %1399 = vmatpush1.msra.mxu0 0.0
        %1400 = vmatprep.subr.mxu0 0.0
        %1401 = vmatpush1.msra.mxu0 0.0
        %1402 = vmatprep.subr.mxu0 0.0
        %1403 = vmatpush1.msra.mxu0 0.0
        %1404 = vmatprep.subr.mxu0 0.0
        %1405 = vmatpush1.msra.mxu0 0.0
        %1406 = vmatprep.subr.mxu0 0.0
        %1407 = vmatpush1.msra.mxu0 0.0
        %1408 = vmatprep.subr.mxu0 0.0
        %1409 = vmatpush1.msra.mxu0 0.0
        %1410 = vmatprep.subr.mxu0 0.0
        %1411 = vmatpush1.msra.mxu0 0.0
        %1412 = vmatprep.subr.mxu0 0.0
        %1413 = vmatpush1.msra.mxu0 0.0
        %1414 = vmatprep.subr.mxu0 0.0
        %1415 = vmatpush1.msra.mxu0 0.0
        %1416 = vmatprep.subr.mxu0 0.0
        %1417 = vmatpush1.msra.mxu0 0.0
        %1418 = vmatprep.subr.mxu0 0.0
        %1419 = vmatpush1.msra.mxu0 %v1368
        %1420 = vmatprep.subr.mxu0 0.0
        %1421 = vmatpush1.msra.mxu0 %v1367
        %1422 = vmatprep.subr.mxu0 0.0
        %1423 = vmatpush1.msra.mxu0 %v1366
        %1424 = vmatprep.subr.mxu0 0.0
        %1425 = vmatpush1.msra.mxu0 %v1365
        %1426 = vmatprep.subr.mxu0 0.0
        %1427 = vmatpush2.msra.mxu0 0.0
        %1428 = vmatprep.subr.mxu0 0.0
        %1429 = vmatpush2.msra.mxu0 0.0
        %1430 = vmatprep.subr.mxu0 0.0
        %1431 = vmatpush2.msra.mxu0 0.0
        %1432 = vmatprep.subr.mxu0 0.0
        %1433 = vmatpush2.msra.mxu0 0.0
        %1434 = vmatprep.subr.mxu0 0.0
        %1435 = vmatpush2.msra.mxu0 0.0
        %1436 = vmatprep.subr.mxu0 0.0
        %1437 = vmatpush2.msra.mxu0 0.0
        %1438 = vmatprep.subr.mxu0 0.0
        %1439 = vmatpush2.msra.mxu0 0.0
        %1440 = vmatprep.subr.mxu0 0.0
        %1441 = vmatpush2.msra.mxu0 0.0
        %1442 = vmatprep.subr.mxu0 0.0
        %1443 = vmatpush2.msra.mxu0 0.0
        %1444 = vmatprep.subr.mxu0 0.0
        %1445 = vmatpush2.msra.mxu0 0.0
        %1446 = vmatprep.subr.mxu0 0.0
        %1447 = vmatpush2.msra.mxu0 0.0
        %1448 = vmatprep.subr.mxu0 0.0
        %1449 = vmatpush2.msra.mxu0 0.0
        %1450 = vmatprep.subr.mxu0 0.0
        %1451 = vmatpush2.msra.mxu0 0.0
        %1452 = vmatprep.subr.mxu0 0.0
        %1453 = vmatpush2.msra.mxu0 0.0
        %1454 = vmatprep.subr.mxu0 0.0
        %1455 = vmatpush2.msra.mxu0 0.0
        %1456 = vmatprep.subr.mxu0 0.0
        %1457 = vmatpush2.msra.mxu0 0.0
        %1458 = vmatprep.mubr.f32.mxu0 0.0
        %1459 = vmatmul.mubr.f32.gmra.mxu0 %v1392
        %v1460 = vpop.f32.mrf.mxu0
        %v1461 = vadd.f32 %v1390, %v1460
        %v1462 = vpop.f32.mrf.mxu0
        %1463 = vdwg.mxu0
        %v1464 = vmax.f32 %v1461, 0.0
        %v1465 = vlaneseq
        %v1466 = vshrl.u32 %v1465, 7
        %v1467 = vsub.s32 0, %v1466
        %v1468 = vrot.slane %v1386, %v1467
        %1469 = vmatprep.subr.mxu0 0.0
        %1470 = vmatpush1.msra.mxu0 %v1385
        %1471 = vmatprep.subr.mxu0 0.0
        %1472 = vmatpush1.msra.mxu0 %v1384
        %1473 = vmatprep.subr.mxu0 0.0
        %1474 = vmatpush1.msra.mxu0 %v1383
        %1475 = vmatprep.subr.mxu0 0.0
        %1476 = vmatpush1.msra.mxu0 %v1382
        %1477 = vmatprep.subr.mxu0 0.0
        %1478 = vmatpush1.msra.mxu0 %v1381
        %1479 = vmatprep.subr.mxu0 0.0
        %1480 = vmatpush1.msra.mxu0 %v1380
        %1481 = vmatprep.subr.mxu0 0.0
        %1482 = vmatpush1.msra.mxu0 %v1379
        %1483 = vmatprep.subr.mxu0 0.0
        %1484 = vmatpush1.msra.mxu0 %v1378
        %1485 = vmatprep.subr.mxu0 0.0
        %1486 = vmatpush1.msra.mxu0 %v1377
        %1487 = vmatprep.subr.mxu0 0.0
        %1488 = vmatpush1.msra.mxu0 %v1376
        %1489 = vmatprep.subr.mxu0 0.0
        %1490 = vmatpush1.msra.mxu0 %v1375
        %1491 = vmatprep.subr.mxu0 0.0
        %1492 = vmatpush1.msra.mxu0 %v1374
        %1493 = vmatprep.subr.mxu0 0.0
        %1494 = vmatpush1.msra.mxu0 %v1373
        %1495 = vmatprep.subr.mxu0 0.0
        %1496 = vmatpush1.msra.mxu0 %v1372
        %1497 = vmatprep.subr.mxu0 0.0
        %1498 = vmatpush1.msra.mxu0 %v1371
        %1499 = vmatprep.subr.mxu0 0.0
        %1500 = vmatpush1.msra.mxu0 %v1370
        %1501 = vmatprep.subr.mxu0 0.0
        %1502 = vmatpush2.msra.mxu0 0.0
        %1503 = vmatprep.subr.mxu0 0.0
        %1504 = vmatpush2.msra.mxu0 0.0
        %1505 = vmatprep.subr.mxu0 0.0
        %1506 = vmatpush2.msra.mxu0 0.0
        %1507 = vmatprep.subr.mxu0 0.0
        %1508 = vmatpush2.msra.mxu0 0.0
        %1509 = vmatprep.subr.mxu0 0.0
        %1510 = vmatpush2.msra.mxu0 0.0
        %1511 = vmatprep.subr.mxu0 0.0
        %1512 = vmatpush2.msra.mxu0 0.0
        %1513 = vmatprep.subr.mxu0 0.0
        %1514 = vmatpush2.msra.mxu0 0.0
        %1515 = vmatprep.subr.mxu0 0.0
        %1516 = vmatpush2.msra.mxu0 0.0
        %1517 = vmatprep.subr.mxu0 0.0
        %1518 = vmatpush2.msra.mxu0 0.0
        %1519 = vmatprep.subr.mxu0 0.0
        %1520 = vmatpush2.msra.mxu0 0.0
        %1521 = vmatprep.subr.mxu0 0.0
        %1522 = vmatpush2.msra.mxu0 0.0
        %1523 = vmatprep.subr.mxu0 0.0
        %1524 = vmatpush2.msra.mxu0 0.0
        %1525 = vmatprep.subr.mxu0 0.0
        %1526 = vmatpush2.msra.mxu0 0.0
        %1527 = vmatprep.subr.mxu0 0.0
        %1528 = vmatpush2.msra.mxu0 0.0
        %1529 = vmatprep.subr.mxu0 0.0
        %1530 = vmatpush2.msra.mxu0 0.0
        %1531 = vmatprep.subr.mxu0 0.0
        %1532 = vmatpush2.msra.mxu0 0.0
        %1533 = vmatprep.mubr.f32.mxu0 0.0
        %1534 = vmatmul.mubr.f32.gmra.mxu0 %v1464
        %v1535 = vpop.f32.mrf.mxu0
        %v1536 = vadd.f32 %v1468, %v1535
        %v1537 = vpop.f32.mrf.mxu0
        %1538 = vdwg.mxu0
        %v1539 = vmax.f32 %v1536, 0.0
        %v1540 = vadd.f32 %v1364, %v1539
        %v1541 = vld [vmem:[%s6 + $0x7] sm:$0x1]
        %v1542 = vld [vmem:[%s6 + $0x8] sm:$0x1]
        %v1543 = vsel %vm359, %v1540, 0.0
        %1544 = vadd.xlane.f32.xlu0 %v1543
        %v1545 = vpop.xlane.xlu0 %1544
        %v1546 = vmul.f32 %v1545, %v1344
        %v1547 = vsub.f32 %v1540, %v1546
        %v1548 = vmul.f32 %v1547, %v1547
        %v1549 = vsel %vm359, %v1548, 0.0
        %1550 = vadd.xlane.f32.xlu0 %v1549
        %v1551 = vpop.xlane.xlu0 %1550
        %v1552 = vmul.f32 %v1551, %v1344
        %v1553 = vadd.f32 %v1552, 1e-05
        %v1554 = vrsqrt.pop %v1553
        %v1555 = vmul.f32 %v1547, %v1554
        %v1556 = vlaneseq
        %v1557 = vshrl.u32 %v1556, 7
        %v1558 = vsub.s32 0, %v1557
        %v1559 = vrot.slane %v1541, %v1558
        %v1560 = vmul.f32 %v1555, %v1559
        %v1561 = vlaneseq
        %v1562 = vshrl.u32 %v1561, 7
        %v1563 = vsub.s32 0, %v1562
        %v1564 = vrot.slane %v1542, %v1563
        %v1565 = vadd.f32 %v1560, %v1564
        %s1566 = scalar_lea.vmem [#allocation2], 128
        %v1567 = vld [vmem:[%s1566] sm:$0xff]
        %v1568 = vld [vmem:[%s1566 + $0x8] sm:$0xff]
        %v1569 = vld [vmem:[%s1566 + $0x10] sm:$0xff]
        %v1570 = vld [vmem:[%s1566 + $0x18] sm:$0xff]
        %s1571 = scalar_lea.vmem [#allocation2], 160
        %v1572 = vld [vmem:[%s1571] sm:$0xff]
        %v1573 = vld [vmem:[%s1571 + $0x8] sm:$0xff]
        %v1574 = vld [vmem:[%s1571 + $0x10] sm:$0xff]
        %v1575 = vld [vmem:[%s1571 + $0x18] sm:$0xff]
        %s1576 = scalar_lea.vmem [#allocation2], 192
        %v1577 = vld [vmem:[%s1576] sm:$0xff]
        %v1578 = vld [vmem:[%s1576 + $0x8] sm:$0xff]
        %v1579 = vld [vmem:[%s1576 + $0x10] sm:$0xff]
        %v1580 = vld [vmem:[%s1576 + $0x18] sm:$0xff]
        %s1581 = scalar_lea.vmem [#allocation2], 224
        %v1582 = vld [vmem:[%s1581] sm:$0xff]
        %v1583 = vld [vmem:[%s1581 + $0x8] sm:$0xff]
        %v1584 = vld [vmem:[%s1581 + $0x10] sm:$0xff]
        %v1585 = vld [vmem:[%s1581 + $0x18] sm:$0xff]
        %v1586 = vld [vmem:[%s6 + $0x9] sm:$0x1]
        %v1587 = vld [vmem:[%s6 + $0xa] sm:$0x1]
        %v1588 = vld [vmem:[%s6 + $0xb] sm:$0x1]
        %v1589 = vld [vmem:[%s6 + $0xc] sm:$0x1]
        %v1590 = vlaneseq
        %v1591 = vshrl.u32 %v1590, 7
        %v1592 = vsub.s32 0, %v1591
        %v1593 = vrot.slane %v1586, %v1592
        %v1595 = vsel %vm359, %v1565, 0
        %1597 = vmatprep.subr.mxu0 0.0
        %1598 = vmatpush1.msra.mxu0 0.0
        %1599 = vmatprep.subr.mxu0 0.0
        %1600 = vmatpush1.msra.mxu0 0.0
        %1601 = vmatprep.subr.mxu0 0.0
        %1602 = vmatpush1.msra.mxu0 0.0
        %1603 = vmatprep.subr.mxu0 0.0
        %1604 = vmatpush1.msra.mxu0 0.0
        %1605 = vmatprep.subr.mxu0 0.0
        %1606 = vmatpush1.msra.mxu0 0.0
        %1607 = vmatprep.subr.mxu0 0.0
        %1608 = vmatpush1.msra.mxu0 0.0
        %1609 = vmatprep.subr.mxu0 0.0
        %1610 = vmatpush1.msra.mxu0 0.0
        %1611 = vmatprep.subr.mxu0 0.0
        %1612 = vmatpush1.msra.mxu0 0.0
        %1613 = vmatprep.subr.mxu0 0.0
        %1614 = vmatpush1.msra.mxu0 0.0
        %1615 = vmatprep.subr.mxu0 0.0
        %1616 = vmatpush1.msra.mxu0 0.0
        %1617 = vmatprep.subr.mxu0 0.0
        %1618 = vmatpush1.msra.mxu0 0.0
        %1619 = vmatprep.subr.mxu0 0.0
        %1620 = vmatpush1.msra.mxu0 0.0
        %1621 = vmatprep.subr.mxu0 0.0
        %1622 = vmatpush1.msra.mxu0 %v1570
        %1623 = vmatprep.subr.mxu0 0.0
        %1624 = vmatpush1.msra.mxu0 %v1569
        %1625 = vmatprep.subr.mxu0 0.0
        %1626 = vmatpush1.msra.mxu0 %v1568
        %1627 = vmatprep.subr.mxu0 0.0
        %1628 = vmatpush1.msra.mxu0 %v1567
        %1629 = vmatprep.subr.mxu0 0.0
        %1630 = vmatpush2.msra.mxu0 0.0
        %1631 = vmatprep.subr.mxu0 0.0
        %1632 = vmatpush2.msra.mxu0 0.0
        %1633 = vmatprep.subr.mxu0 0.0
        %1634 = vmatpush2.msra.mxu0 0.0
        %1635 = vmatprep.subr.mxu0 0.0
        %1636 = vmatpush2.msra.mxu0 0.0
        %1637 = vmatprep.subr.mxu0 0.0
        %1638 = vmatpush2.msra.mxu0 0.0
        %1639 = vmatprep.subr.mxu0 0.0
        %1640 = vmatpush2.msra.mxu0 0.0
        %1641 = vmatprep.subr.mxu0 0.0
        %1642 = vmatpush2.msra.mxu0 0.0
        %1643 = vmatprep.subr.mxu0 0.0
        %1644 = vmatpush2.msra.mxu0 0.0
        %1645 = vmatprep.subr.mxu0 0.0
        %1646 = vmatpush2.msra.mxu0 0.0
        %1647 = vmatprep.subr.mxu0 0.0
        %1648 = vmatpush2.msra.mxu0 0.0
        %1649 = vmatprep.subr.mxu0 0.0
        %1650 = vmatpush2.msra.mxu0 0.0
        %1651 = vmatprep.subr.mxu0 0.0
        %1652 = vmatpush2.msra.mxu0 0.0
        %1653 = vmatprep.subr.mxu0 0.0
        %1654 = vmatpush2.msra.mxu0 0.0
        %1655 = vmatprep.subr.mxu0 0.0
        %1656 = vmatpush2.msra.mxu0 0.0
        %1657 = vmatprep.subr.mxu0 0.0
        %1658 = vmatpush2.msra.mxu0 0.0
        %1659 = vmatprep.subr.mxu0 0.0
        %1660 = vmatpush2.msra.mxu0 0.0
        %1661 = vmatprep.mubr.f32.mxu0 0.0
        %1662 = vmatmul.mubr.f32.gmra.mxu0 %v1595
        %v1663 = vpop.f32.mrf.mxu0
        %v1664 = vadd.f32 %v1593, %v1663
        %v1665 = vpop.f32.mrf.mxu0
        %1666 = vdwg.mxu0
        %v1667 = vlaneseq
        %v1668 = vshrl.u32 %v1667, 7
        %v1669 = vsub.s32 0, %v1668
        %v1670 = vrot.slane %v1587, %v1669
        %1671 = vmatprep.subr.mxu0 0.0
        %1672 = vmatpush1.msra.mxu0 0.0
        %1673 = vmatprep.subr.mxu0 0.0
        %1674 = vmatpush1.msra.mxu0 0.0
        %1675 = vmatprep.subr.mxu0 0.0
        %1676 = vmatpush1.msra.mxu0 0.0
        %1677 = vmatprep.subr.mxu0 0.0
        %1678 = vmatpush1.msra.mxu0 0.0
        %1679 = vmatprep.subr.mxu0 0.0
        %1680 = vmatpush1.msra.mxu0 0.0
        %1681 = vmatprep.subr.mxu0 0.0
        %1682 = vmatpush1.msra.mxu0 0.0
        %1683 = vmatprep.subr.mxu0 0.0
        %1684 = vmatpush1.msra.mxu0 0.0
        %1685 = vmatprep.subr.mxu0 0.0
        %1686 = vmatpush1.msra.mxu0 0.0
        %1687 = vmatprep.subr.mxu0 0.0
        %1688 = vmatpush1.msra.mxu0 0.0
        %1689 = vmatprep.subr.mxu0 0.0
        %1690 = vmatpush1.msra.mxu0 0.0
        %1691 = vmatprep.subr.mxu0 0.0
        %1692 = vmatpush1.msra.mxu0 0.0
        %1693 = vmatprep.subr.mxu0 0.0
        %1694 = vmatpush1.msra.mxu0 0.0
        %1695 = vmatprep.subr.mxu0 0.0
        %1696 = vmatpush1.msra.mxu0 %v1575
        %1697 = vmatprep.subr.mxu0 0.0
        %1698 = vmatpush1.msra.mxu0 %v1574
        %1699 = vmatprep.subr.mxu0 0.0
        %1700 = vmatpush1.msra.mxu0 %v1573
        %1701 = vmatprep.subr.mxu0 0.0
        %1702 = vmatpush1.msra.mxu0 %v1572
        %1703 = vmatprep.subr.mxu0 0.0
        %1704 = vmatpush2.msra.mxu0 0.0
        %1705 = vmatprep.subr.mxu0 0.0
        %1706 = vmatpush2.msra.mxu0 0.0
        %1707 = vmatprep.subr.mxu0 0.0
        %1708 = vmatpush2.msra.mxu0 0.0
        %1709 = vmatprep.subr.mxu0 0.0
        %1710 = vmatpush2.msra.mxu0 0.0
        %1711 = vmatprep.subr.mxu0 0.0
        %1712 = vmatpush2.msra.mxu0 0.0
        %1713 = vmatprep.subr.mxu0 0.0
        %1714 = vmatpush2.msra.mxu0 0.0
        %1715 = vmatprep.subr.mxu0 0.0
        %1716 = vmatpush2.msra.mxu0 0.0
        %1717 = vmatprep.subr.mxu0 0.0
        %1718 = vmatpush2.msra.mxu0 0.0
        %1719 = vmatprep.subr.mxu0 0.0
        %1720 = vmatpush2.msra.mxu0 0.0
        %1721 = vmatprep.subr.mxu0 0.0
        %1722 = vmatpush2.msra.mxu0 0.0
        %1723 = vmatprep.subr.mxu0 0.0
        %1724 = vmatpush2.msra.mxu0 0.0
        %1725 = vmatprep.subr.mxu0 0.0
        %1726 = vmatpush2.msra.mxu0 0.0
        %1727 = vmatprep.subr.mxu0 0.0
        %1728 = vmatpush2.msra.mxu0 0.0
        %1729 = vmatprep.subr.mxu0 0.0
        %1730 = vmatpush2.msra.mxu0 0.0
        %1731 = vmatprep.subr.mxu0 0.0
        %1732 = vmatpush2.msra.mxu0 0.0
        %1733 = vmatprep.subr.mxu0 0.0
        %1734 = vmatpush2.msra.mxu0 0.0
        %1735 = vmatprep.mubr.f32.mxu0 0.0
        %1736 = vmatmul.mubr.f32.gmra.mxu0 %v1595
        %v1737 = vpop.f32.mrf.mxu0
        %v1738 = vadd.f32 %v1670, %v1737
        %v1739 = vpop.f32.mrf.mxu0
        %1740 = vdwg.mxu0
        %v1741 = vlaneseq
        %v1742 = vshrl.u32 %v1741, 7
        %v1743 = vsub.s32 0, %v1742
        %v1744 = vrot.slane %v1588, %v1743
        %1745 = vmatprep.subr.mxu0 0.0
        %1746 = vmatpush1.msra.mxu0 0.0
        %1747 = vmatprep.subr.mxu0 0.0
        %1748 = vmatpush1.msra.mxu0 0.0
        %1749 = vmatprep.subr.mxu0 0.0
        %1750 = vmatpush1.msra.mxu0 0.0
        %1751 = vmatprep.subr.mxu0 0.0
        %1752 = vmatpush1.msra.mxu0 0.0
        %1753 = vmatprep.subr.mxu0 0.0
        %1754 = vmatpush1.msra.mxu0 0.0
        %1755 = vmatprep.subr.mxu0 0.0
        %1756 = vmatpush1.msra.mxu0 0.0
        %1757 = vmatprep.subr.mxu0 0.0
        %1758 = vmatpush1.msra.mxu0 0.0
        %1759 = vmatprep.subr.mxu0 0.0
        %1760 = vmatpush1.msra.mxu0 0.0
        %1761 = vmatprep.subr.mxu0 0.0
        %1762 = vmatpush1.msra.mxu0 0.0
        %1763 = vmatprep.subr.mxu0 0.0
        %1764 = vmatpush1.msra.mxu0 0.0
        %1765 = vmatprep.subr.mxu0 0.0
        %1766 = vmatpush1.msra.mxu0 0.0
        %1767 = vmatprep.subr.mxu0 0.0
        %1768 = vmatpush1.msra.mxu0 0.0
        %1769 = vmatprep.subr.mxu0 0.0
        %1770 = vmatpush1.msra.mxu0 %v1580
        %1771 = vmatprep.subr.mxu0 0.0
        %1772 = vmatpush1.msra.mxu0 %v1579
        %1773 = vmatprep.subr.mxu0 0.0
        %1774 = vmatpush1.msra.mxu0 %v1578
        %1775 = vmatprep.subr.mxu0 0.0
        %1776 = vmatpush1.msra.mxu0 %v1577
        %1777 = vmatprep.subr.mxu0 0.0
        %1778 = vmatpush2.msra.mxu0 0.0
        %1779 = vmatprep.subr.mxu0 0.0
        %1780 = vmatpush2.msra.mxu0 0.0
        %1781 = vmatprep.subr.mxu0 0.0
        %1782 = vmatpush2.msra.mxu0 0.0
        %1783 = vmatprep.subr.mxu0 0.0
        %1784 = vmatpush2.msra.mxu0 0.0
        %1785 = vmatprep.subr.mxu0 0.0
        %1786 = vmatpush2.msra.mxu0 0.0
        %1787 = vmatprep.subr.mxu0 0.0
        %1788 = vmatpush2.msra.mxu0 0.0
        %1789 = vmatprep.subr.mxu0 0.0
        %1790 = vmatpush2.msra.mxu0 0.0
        %1791 = vmatprep.subr.mxu0 0.0
        %1792 = vmatpush2.msra.mxu0 0.0
        %1793 = vmatprep.subr.mxu0 0.0
        %1794 = vmatpush2.msra.mxu0 0.0
        %1795 = vmatprep.subr.mxu0 0.0
        %1796 = vmatpush2.msra.mxu0 0.0
        %1797 = vmatprep.subr.mxu0 0.0
        %1798 = vmatpush2.msra.mxu0 0.0
        %1799 = vmatprep.subr.mxu0 0.0
        %1800 = vmatpush2.msra.mxu0 0.0
        %1801 = vmatprep.subr.mxu0 0.0
        %1802 = vmatpush2.msra.mxu0 0.0
        %1803 = vmatprep.subr.mxu0 0.0
        %1804 = vmatpush2.msra.mxu0 0.0
        %1805 = vmatprep.subr.mxu0 0.0
        %1806 = vmatpush2.msra.mxu0 0.0
        %1807 = vmatprep.subr.mxu0 0.0
        %1808 = vmatpush2.msra.mxu0 0.0
        %1809 = vmatprep.mubr.f32.mxu0 0.0
        %1810 = vmatmul.mubr.f32.gmra.mxu0 %v1595
        %v1811 = vpop.f32.mrf.mxu0
        %v1812 = vadd.f32 %v1744, %v1811
        %v1813 = vpop.f32.mrf.mxu0
        %1814 = vdwg.mxu0
        %v1816 = vsel %vm587, %v1664, 0
        %v1819 = vsel %vm587, %v1738, 0
        %1821 = vmatprep.subr.mxu0 0.0
        %1822 = vmatpush1.xpose.msra.mxu0 0.0
        %1823 = vmatprep.subr.mxu0 0.0
        %1824 = vmatpush1.xpose.msra.mxu0 0.0
        %1825 = vmatprep.subr.mxu0 0.0
        %1826 = vmatpush1.xpose.msra.mxu0 0.0
        %1827 = vmatprep.subr.mxu0 0.0
        %1828 = vmatpush1.xpose.msra.mxu0 0.0
        %1829 = vmatprep.subr.mxu0 0.0
        %1830 = vmatpush1.xpose.msra.mxu0 0.0
        %1831 = vmatprep.subr.mxu0 0.0
        %1832 = vmatpush1.xpose.msra.mxu0 0.0
        %1833 = vmatprep.subr.mxu0 0.0
        %1834 = vmatpush1.xpose.msra.mxu0 0.0
        %1835 = vmatprep.subr.mxu0 0.0
        %1836 = vmatpush1.xpose.msra.mxu0 0.0
        %1837 = vmatprep.subr.mxu0 0.0
        %1838 = vmatpush1.xpose.msra.mxu0 0.0
        %1839 = vmatprep.subr.mxu0 0.0
        %1840 = vmatpush1.xpose.msra.mxu0 0.0
        %1841 = vmatprep.subr.mxu0 0.0
        %1842 = vmatpush1.xpose.msra.mxu0 0.0
        %1843 = vmatprep.subr.mxu0 0.0
        %1844 = vmatpush1.xpose.msra.mxu0 0.0
        %1845 = vmatprep.subr.mxu0 0.0
        %1846 = vmatpush1.xpose.msra.mxu0 0.0
        %1847 = vmatprep.subr.mxu0 0.0
        %1848 = vmatpush1.xpose.msra.mxu0 0.0
        %1849 = vmatprep.subr.mxu0 0.0
        %1850 = vmatpush1.xpose.msra.mxu0 0.0
        %1851 = vmatprep.subr.mxu0 0.0
        %1852 = vmatpush1.xpose.msra.mxu0 %v1819
        %1853 = vmatprep.subr.mxu0 0.0
        %1854 = vmatpush2.xpose.msra.mxu0 0.0
        %1855 = vmatprep.subr.mxu0 0.0
        %1856 = vmatpush2.xpose.msra.mxu0 0.0
        %1857 = vmatprep.subr.mxu0 0.0
        %1858 = vmatpush2.xpose.msra.mxu0 0.0
        %1859 = vmatprep.subr.mxu0 0.0
        %1860 = vmatpush2.xpose.msra.mxu0 0.0
        %1861 = vmatprep.subr.mxu0 0.0
        %1862 = vmatpush2.xpose.msra.mxu0 0.0
        %1863 = vmatprep.subr.mxu0 0.0
        %1864 = vmatpush2.xpose.msra.mxu0 0.0
        %1865 = vmatprep.subr.mxu0 0.0
        %1866 = vmatpush2.xpose.msra.mxu0 0.0
        %1867 = vmatprep.subr.mxu0 0.0
        %1868 = vmatpush2.xpose.msra.mxu0 0.0
        %1869 = vmatprep.subr.mxu0 0.0
        %1870 = vmatpush2.xpose.msra.mxu0 0.0
        %1871 = vmatprep.subr.mxu0 0.0
        %1872 = vmatpush2.xpose.msra.mxu0 0.0
        %1873 = vmatprep.subr.mxu0 0.0
        %1874 = vmatpush2.xpose.msra.mxu0 0.0
        %1875 = vmatprep.subr.mxu0 0.0
        %1876 = vmatpush2.xpose.msra.mxu0 0.0
        %1877 = vmatprep.subr.mxu0 0.0
        %1878 = vmatpush2.xpose.msra.mxu0 0.0
        %1879 = vmatprep.subr.mxu0 0.0
        %1880 = vmatpush2.xpose.msra.mxu0 0.0
        %1881 = vmatprep.subr.mxu0 0.0
        %1882 = vmatpush2.xpose.msra.mxu0 0.0
        %1883 = vmatprep.subr.mxu0 0.0
        %1884 = vmatpush2.xpose.msra.mxu0 0.0
        %1885 = vmatprep.mubr.f32.mxu0 0.0
        %1886 = vmatmul.mubr.f32.gmra.mxu0 %v1816
        %v1887 = vpop.f32.mrf.mxu0
        %v1888 = vadd.f32 %v585, %v1887
        %v1889 = vpop.f32.mrf.mxu0
        %1890 = vdwg.mxu0
        %v1891 = vsel %vm587, %v1888, -inf
        %1892 = vmax.xlane.f32.xlu0 %v1891
        %v1893 = vpop.xlane.xlu0 %1892
        %v1894 = vsub.f32 %v1888, %v1893
        %v1895 = vmul.f32 %v1894, 1.442695
        %v1896 = vpow.pop %v1895
        %v1897 = vsel %vm587, %v1896, 0.0
        %1898 = vadd.xlane.f32.xlu0 %v1897
        %v1899 = vpop.xlane.xlu0 %1898
        %v1900 = vrcp.pop %v1899
        %v1901 = vmul.f32 %v1896, %v1900
        %v1903 = vsel %vm587, %v1901, 0
        %1905 = vmatprep.subr.mxu0 0.0
        %1906 = vmatpush1.msra.mxu0 0.0
        %1907 = vmatprep.subr.mxu0 0.0
        %1908 = vmatpush1.msra.mxu0 0.0
        %1909 = vmatprep.subr.mxu0 0.0
        %1910 = vmatpush1.msra.mxu0 0.0
        %1911 = vmatprep.subr.mxu0 0.0
        %1912 = vmatpush1.msra.mxu0 0.0
        %1913 = vmatprep.subr.mxu0 0.0
        %1914 = vmatpush1.msra.mxu0 0.0
        %1915 = vmatprep.subr.mxu0 0.0
        %1916 = vmatpush1.msra.mxu0 0.0
        %1917 = vmatprep.subr.mxu0 0.0
        %1918 = vmatpush1.msra.mxu0 0.0
        %1919 = vmatprep.subr.mxu0 0.0
        %1920 = vmatpush1.msra.mxu0 0.0
        %1921 = vmatprep.subr.mxu0 0.0
        %1922 = vmatpush1.msra.mxu0 0.0
        %1923 = vmatprep.subr.mxu0 0.0
        %1924 = vmatpush1.msra.mxu0 0.0
        %1925 = vmatprep.subr.mxu0 0.0
        %1926 = vmatpush1.msra.mxu0 0.0
        %1927 = vmatprep.subr.mxu0 0.0
        %1928 = vmatpush1.msra.mxu0 0.0
        %1929 = vmatprep.subr.mxu0 0.0
        %1930 = vmatpush1.msra.mxu0 0.0
        %1931 = vmatprep.subr.mxu0 0.0
        %1932 = vmatpush1.msra.mxu0 0.0
        %1933 = vmatprep.subr.mxu0 0.0
        %1934 = vmatpush1.msra.mxu0 0.0
        %1935 = vmatprep.subr.mxu0 0.0
        %1936 = vmatpush1.msra.mxu0 %v1812
        %1937 = vmatprep.subr.mxu0 0.0
        %1938 = vmatpush2.msra.mxu0 0.0
        %1939 = vmatprep.subr.mxu0 0.0
        %1940 = vmatpush2.msra.mxu0 0.0
        %1941 = vmatprep.subr.mxu0 0.0
        %1942 = vmatpush2.msra.mxu0 0.0
        %1943 = vmatprep.subr.mxu0 0.0
        %1944 = vmatpush2.msra.mxu0 0.0
        %1945 = vmatprep.subr.mxu0 0.0
        %1946 = vmatpush2.msra.mxu0 0.0
        %1947 = vmatprep.subr.mxu0 0.0
        %1948 = vmatpush2.msra.mxu0 0.0
        %1949 = vmatprep.subr.mxu0 0.0
        %1950 = vmatpush2.msra.mxu0 0.0
        %1951 = vmatprep.subr.mxu0 0.0
        %1952 = vmatpush2.msra.mxu0 0.0
        %1953 = vmatprep.subr.mxu0 0.0
        %1954 = vmatpush2.msra.mxu0 0.0
        %1955 = vmatprep.subr.mxu0 0.0
        %1956 = vmatpush2.msra.mxu0 0.0
        %1957 = vmatprep.subr.mxu0 0.0
        %1958 = vmatpush2.msra.mxu0 0.0
        %1959 = vmatprep.subr.mxu0 0.0
        %1960 = vmatpush2.msra.mxu0 0.0
        %1961 = vmatprep.subr.mxu0 0.0
        %1962 = vmatpush2.msra.mxu0 0.0
        %1963 = vmatprep.subr.mxu0 0.0
        %1964 = vmatpush2.msra.mxu0 0.0
        %1965 = vmatprep.subr.mxu0 0.0
        %1966 = vmatpush2.msra.mxu0 0.0
        %1967 = vmatprep.subr.mxu0 0.0
        %1968 = vmatpush2.msra.mxu0 0.0
        %1969 = vmatprep.mubr.f32.mxu0 0.0
        %1970 = vmatmul.mubr.f32.gmra.mxu0 %v1903
        %v1971 = vpop.f32.mrf.mxu0
        %v1972 = vadd.f32 0.0, %v1971
        %v1973 = vpop.f32.mrf.mxu0
        %1974 = vdwg.mxu0
        %1975 = vrot.lane.b32.xlu0 %v1664, 120
        %v1976 = vpop.permute.xlu0 %1975
        %1977 = vrot.lane.b32.xlu0 %v1738, 120
        %v1978 = vpop.permute.xlu0 %1977
        %v1979 = vsel %vm587, %v1976, 0
        %v1981 = vsel %vm587, %v1978, 0
        %1983 = vmatprep.subr.mxu0 0.0
        %1984 = vmatpush1.xpose.msra.mxu0 0.0
        %1985 = vmatprep.subr.mxu0 0.0
        %1986 = vmatpush1.xpose.msra.mxu0 0.0
        %1987 = vmatprep.subr.mxu0 0.0
        %1988 = vmatpush1.xpose.msra.mxu0 0.0
        %1989 = vmatprep.subr.mxu0 0.0
        %1990 = vmatpush1.xpose.msra.mxu0 0.0
        %1991 = vmatprep.subr.mxu0 0.0
        %1992 = vmatpush1.xpose.msra.mxu0 0.0
        %1993 = vmatprep.subr.mxu0 0.0
        %1994 = vmatpush1.xpose.msra.mxu0 0.0
        %1995 = vmatprep.subr.mxu0 0.0
        %1996 = vmatpush1.xpose.msra.mxu0 0.0
        %1997 = vmatprep.subr.mxu0 0.0
        %1998 = vmatpush1.xpose.msra.mxu0 0.0
        %1999 = vmatprep.subr.mxu0 0.0
        %2000 = vmatpush1.xpose.msra.mxu0 0.0
        %2001 = vmatprep.subr.mxu0 0.0
        %2002 = vmatpush1.xpose.msra.mxu0 0.0
        %2003 = vmatprep.subr.mxu0 0.0
        %2004 = vmatpush1.xpose.msra.mxu0 0.0
        %2005 = vmatprep.subr.mxu0 0.0
        %2006 = vmatpush1.xpose.msra.mxu0 0.0
        %2007 = vmatprep.subr.mxu0 0.0
        %2008 = vmatpush1.xpose.msra.mxu0 0.0
        %2009 = vmatprep.subr.mxu0 0.0
        %2010 = vmatpush1.xpose.msra.mxu0 0.0
        %2011 = vmatprep.subr.mxu0 0.0
        %2012 = vmatpush1.xpose.msra.mxu0 0.0
        %2013 = vmatprep.subr.mxu0 0.0
        %2014 = vmatpush1.xpose.msra.mxu0 %v1981
        %2015 = vmatprep.subr.mxu0 0.0
        %2016 = vmatpush2.xpose.msra.mxu0 0.0
        %2017 = vmatprep.subr.mxu0 0.0
        %2018 = vmatpush2.xpose.msra.mxu0 0.0
        %2019 = vmatprep.subr.mxu0 0.0
        %2020 = vmatpush2.xpose.msra.mxu0 0.0
        %2021 = vmatprep.subr.mxu0 0.0
        %2022 = vmatpush2.xpose.msra.mxu0 0.0
        %2023 = vmatprep.subr.mxu0 0.0
        %2024 = vmatpush2.xpose.msra.mxu0 0.0
        %2025 = vmatprep.subr.mxu0 0.0
        %2026 = vmatpush2.xpose.msra.mxu0 0.0
        %2027 = vmatprep.subr.mxu0 0.0
        %2028 = vmatpush2.xpose.msra.mxu0 0.0
        %2029 = vmatprep.subr.mxu0 0.0
        %2030 = vmatpush2.xpose.msra.mxu0 0.0
        %2031 = vmatprep.subr.mxu0 0.0
        %2032 = vmatpush2.xpose.msra.mxu0 0.0
        %2033 = vmatprep.subr.mxu0 0.0
        %2034 = vmatpush2.xpose.msra.mxu0 0.0
        %2035 = vmatprep.subr.mxu0 0.0
        %2036 = vmatpush2.xpose.msra.mxu0 0.0
        %2037 = vmatprep.subr.mxu0 0.0
        %2038 = vmatpush2.xpose.msra.mxu0 0.0
        %2039 = vmatprep.subr.mxu0 0.0
        %2040 = vmatpush2.xpose.msra.mxu0 0.0
        %2041 = vmatprep.subr.mxu0 0.0
        %2042 = vmatpush2.xpose.msra.mxu0 0.0
        %2043 = vmatprep.subr.mxu0 0.0
        %2044 = vmatpush2.xpose.msra.mxu0 0.0
        %2045 = vmatprep.subr.mxu0 0.0
        %2046 = vmatpush2.xpose.msra.mxu0 0.0
        %2047 = vmatprep.mubr.f32.mxu0 0.0
        %2048 = vmatmul.mubr.f32.gmra.mxu0 %v1979
        %v2049 = vpop.f32.mrf.mxu0
        %v2050 = vadd.f32 %v585, %v2049
        %v2051 = vpop.f32.mrf.mxu0
        %2052 = vdwg.mxu0
        %v2053 = vsel %vm587, %v2050, -inf
        %2054 = vmax.xlane.f32.xlu0 %v2053
        %v2055 = vpop.xlane.xlu0 %2054
        %v2056 = vsub.f32 %v2050, %v2055
        %v2057 = vmul.f32 %v2056, 1.442695
        %v2058 = vpow.pop %v2057
        %v2059 = vsel %vm587, %v2058, 0.0
        %2060 = vadd.xlane.f32.xlu0 %v2059
        %v2061 = vpop.xlane.xlu0 %2060
        %v2062 = vrcp.pop %v2061
        %v2063 = vmul.f32 %v2058, %v2062
        %2065 = vrot.lane.b32.xlu0 %v1812, 120
        %v2066 = vpop.permute.xlu0 %2065
        %v2069 = vsel %vm587, %v2063, 0
        %2071 = vmatprep.subr.mxu0 0.0
        %2072 = vmatpush1.msra.mxu0 0.0
        %2073 = vmatprep.subr.mxu0 0.0
        %2074 = vmatpush1.msra.mxu0 0.0
        %2075 = vmatprep.subr.mxu0 0.0
        %2076 = vmatpush1.msra.mxu0 0.0
        %2077 = vmatprep.subr.mxu0 0.0
        %2078 = vmatpush1.msra.mxu0 0.0
        %2079 = vmatprep.subr.mxu0 0.0
        %2080 = vmatpush1.msra.mxu0 0.0
        %2081 = vmatprep.subr.mxu0 0.0
        %2082 = vmatpush1.msra.mxu0 0.0
        %2083 = vmatprep.subr.mxu0 0.0
        %2084 = vmatpush1.msra.mxu0 0.0
        %2085 = vmatprep.subr.mxu0 0.0
        %2086 = vmatpush1.msra.mxu0 0.0
        %2087 = vmatprep.subr.mxu0 0.0
        %2088 = vmatpush1.msra.mxu0 0.0
        %2089 = vmatprep.subr.mxu0 0.0
        %2090 = vmatpush1.msra.mxu0 0.0
        %2091 = vmatprep.subr.mxu0 0.0
        %2092 = vmatpush1.msra.mxu0 0.0
        %2093 = vmatprep.subr.mxu0 0.0
        %2094 = vmatpush1.msra.mxu0 0.0
        %2095 = vmatprep.subr.mxu0 0.0
        %2096 = vmatpush1.msra.mxu0 0.0
        %2097 = vmatprep.subr.mxu0 0.0
        %2098 = vmatpush1.msra.mxu0 0.0
        %2099 = vmatprep.subr.mxu0 0.0
        %2100 = vmatpush1.msra.mxu0 0.0
        %2101 = vmatprep.subr.mxu0 0.0
        %2102 = vmatpush1.msra.mxu0 %v2066
        %2103 = vmatprep.subr.mxu0 0.0
        %2104 = vmatpush2.msra.mxu0 0.0
        %2105 = vmatprep.subr.mxu0 0.0
        %2106 = vmatpush2.msra.mxu0 0.0
        %2107 = vmatprep.subr.mxu0 0.0
        %2108 = vmatpush2.msra.mxu0 0.0
        %2109 = vmatprep.subr.mxu0 0.0
        %2110 = vmatpush2.msra.mxu0 0.0
        %2111 = vmatprep.subr.mxu0 0.0
        %2112 = vmatpush2.msra.mxu0 0.0
        %2113 = vmatprep.subr.mxu0 0.0
        %2114 = vmatpush2.msra.mxu0 0.0
        %2115 = vmatprep.subr.mxu0 0.0
        %2116 = vmatpush2.msra.mxu0 0.0
        %2117 = vmatprep.subr.mxu0 0.0
        %2118 = vmatpush2.msra.mxu0 0.0
        %2119 = vmatprep.subr.mxu0 0.0
        %2120 = vmatpush2.msra.mxu0 0.0
        %2121 = vmatprep.subr.mxu0 0.0
        %2122 = vmatpush2.msra.mxu0 0.0
        %2123 = vmatprep.subr.mxu0 0.0
        %2124 = vmatpush2.msra.mxu0 0.0
        %2125 = vmatprep.subr.mxu0 0.0
        %2126 = vmatpush2.msra.mxu0 0.0
        %2127 = vmatprep.subr.mxu0 0.0
        %2128 = vmatpush2.msra.mxu0 0.0
        %2129 = vmatprep.subr.mxu0 0.0
        %2130 = vmatpush2.msra.mxu0 0.0
        %2131 = vmatprep.subr.mxu0 0.0
        %2132 = vmatpush2.msra.mxu0 0.0
        %2133 = vmatprep.subr.mxu0 0.0
        %2134 = vmatpush2.msra.mxu0 0.0
        %2135 = vmatprep.mubr.f32.mxu0 0.0
        %2136 = vmatmul.mubr.f32.gmra.mxu0 %v2069
        %v2137 = vpop.f32.mrf.mxu0
        %v2138 = vadd.f32 0.0, %v2137
        %v2139 = vpop.f32.mrf.mxu0
        %2140 = vdwg.mxu0
        %2141 = vrot.lane.b32.xlu0 %v1664, 112
        %v2142 = vpop.permute.xlu0 %2141
        %2143 = vrot.lane.b32.xlu0 %v1738, 112
        %v2144 = vpop.permute.xlu0 %2143
        %v2145 = vsel %vm587, %v2142, 0
        %v2147 = vsel %vm587, %v2144, 0
        %2149 = vmatprep.subr.mxu0 0.0
        %2150 = vmatpush1.xpose.msra.mxu0 0.0
        %2151 = vmatprep.subr.mxu0 0.0
        %2152 = vmatpush1.xpose.msra.mxu0 0.0
        %2153 = vmatprep.subr.mxu0 0.0
        %2154 = vmatpush1.xpose.msra.mxu0 0.0
        %2155 = vmatprep.subr.mxu0 0.0
        %2156 = vmatpush1.xpose.msra.mxu0 0.0
        %2157 = vmatprep.subr.mxu0 0.0
        %2158 = vmatpush1.xpose.msra.mxu0 0.0
        %2159 = vmatprep.subr.mxu0 0.0
        %2160 = vmatpush1.xpose.msra.mxu0 0.0
        %2161 = vmatprep.subr.mxu0 0.0
        %2162 = vmatpush1.xpose.msra.mxu0 0.0
        %2163 = vmatprep.subr.mxu0 0.0
        %2164 = vmatpush1.xpose.msra.mxu0 0.0
        %2165 = vmatprep.subr.mxu0 0.0
        %2166 = vmatpush1.xpose.msra.mxu0 0.0
        %2167 = vmatprep.subr.mxu0 0.0
        %2168 = vmatpush1.xpose.msra.mxu0 0.0
        %2169 = vmatprep.subr.mxu0 0.0
        %2170 = vmatpush1.xpose.msra.mxu0 0.0
        %2171 = vmatprep.subr.mxu0 0.0
        %2172 = vmatpush1.xpose.msra.mxu0 0.0
        %2173 = vmatprep.subr.mxu0 0.0
        %2174 = vmatpush1.xpose.msra.mxu0 0.0
        %2175 = vmatprep.subr.mxu0 0.0
        %2176 = vmatpush1.xpose.msra.mxu0 0.0
        %2177 = vmatprep.subr.mxu0 0.0
        %2178 = vmatpush1.xpose.msra.mxu0 0.0
        %2179 = vmatprep.subr.mxu0 0.0
        %2180 = vmatpush1.xpose.msra.mxu0 %v2147
        %2181 = vmatprep.subr.mxu0 0.0
        %2182 = vmatpush2.xpose.msra.mxu0 0.0
        %2183 = vmatprep.subr.mxu0 0.0
        %2184 = vmatpush2.xpose.msra.mxu0 0.0
        %2185 = vmatprep.subr.mxu0 0.0
        %2186 = vmatpush2.xpose.msra.mxu0 0.0
        %2187 = vmatprep.subr.mxu0 0.0
        %2188 = vmatpush2.xpose.msra.mxu0 0.0
        %2189 = vmatprep.subr.mxu0 0.0
        %2190 = vmatpush2.xpose.msra.mxu0 0.0
        %2191 = vmatprep.subr.mxu0 0.0
        %2192 = vmatpush2.xpose.msra.mxu0 0.0
        %2193 = vmatprep.subr.mxu0 0.0
        %2194 = vmatpush2.xpose.msra.mxu0 0.0
        %2195 = vmatprep.subr.mxu0 0.0
        %2196 = vmatpush2.xpose.msra.mxu0 0.0
        %2197 = vmatprep.subr.mxu0 0.0
        %2198 = vmatpush2.xpose.msra.mxu0 0.0
        %2199 = vmatprep.subr.mxu0 0.0
        %2200 = vmatpush2.xpose.msra.mxu0 0.0
        %2201 = vmatprep.subr.mxu0 0.0
        %2202 = vmatpush2.xpose.msra.mxu0 0.0
        %2203 = vmatprep.subr.mxu0 0.0
        %2204 = vmatpush2.xpose.msra.mxu0 0.0
        %2205 = vmatprep.subr.mxu0 0.0
        %2206 = vmatpush2.xpose.msra.mxu0 0.0
        %2207 = vmatprep.subr.mxu0 0.0
        %2208 = vmatpush2.xpose.msra.mxu0 0.0
        %2209 = vmatprep.subr.mxu0 0.0
        %2210 = vmatpush2.xpose.msra.mxu0 0.0
        %2211 = vmatprep.subr.mxu0 0.0
        %2212 = vmatpush2.xpose.msra.mxu0 0.0
        %2213 = vmatprep.mubr.f32.mxu0 0.0
        %2214 = vmatmul.mubr.f32.gmra.mxu0 %v2145
        %v2215 = vpop.f32.mrf.mxu0
        %v2216 = vadd.f32 %v585, %v2215
        %v2217 = vpop.f32.mrf.mxu0
        %2218 = vdwg.mxu0
        %v2219 = vsel %vm587, %v2216, -inf
        %2220 = vmax.xlane.f32.xlu0 %v2219
        %v2221 = vpop.xlane.xlu0 %2220
        %v2222 = vsub.f32 %v2216, %v2221
        %v2223 = vmul.f32 %v2222, 1.442695
        %v2224 = vpow.pop %v2223
        %v2225 = vsel %vm587, %v2224, 0.0
        %2226 = vadd.xlane.f32.xlu0 %v2225
        %v2227 = vpop.xlane.xlu0 %2226
        %v2228 = vrcp.pop %v2227
        %v2229 = vmul.f32 %v2224, %v2228
        %2230 = vrot.lane.b32.xlu0 %v1812, 112
        %v2231 = vpop.permute.xlu0 %2230
        %v2234 = vsel %vm587, %v2229, 0
        %2236 = vmatprep.subr.mxu0 0.0
        %2237 = vmatpush1.msra.mxu0 0.0
        %2238 = vmatprep.subr.mxu0 0.0
        %2239 = vmatpush1.msra.mxu0 0.0
        %2240 = vmatprep.subr.mxu0 0.0
        %2241 = vmatpush1.msra.mxu0 0.0
        %2242 = vmatprep.subr.mxu0 0.0
        %2243 = vmatpush1.msra.mxu0 0.0
        %2244 = vmatprep.subr.mxu0 0.0
        %2245 = vmatpush1.msra.mxu0 0.0
        %2246 = vmatprep.subr.mxu0 0.0
        %2247 = vmatpush1.msra.mxu0 0.0
        %2248 = vmatprep.subr.mxu0 0.0
        %2249 = vmatpush1.msra.mxu0 0.0
        %2250 = vmatprep.subr.mxu0 0.0
        %2251 = vmatpush1.msra.mxu0 0.0
        %2252 = vmatprep.subr.mxu0 0.0
        %2253 = vmatpush1.msra.mxu0 0.0
        %2254 = vmatprep.subr.mxu0 0.0
        %2255 = vmatpush1.msra.mxu0 0.0
        %2256 = vmatprep.subr.mxu0 0.0
        %2257 = vmatpush1.msra.mxu0 0.0
        %2258 = vmatprep.subr.mxu0 0.0
        %2259 = vmatpush1.msra.mxu0 0.0
        %2260 = vmatprep.subr.mxu0 0.0
        %2261 = vmatpush1.msra.mxu0 0.0
        %2262 = vmatprep.subr.mxu0 0.0
        %2263 = vmatpush1.msra.mxu0 0.0
        %2264 = vmatprep.subr.mxu0 0.0
        %2265 = vmatpush1.msra.mxu0 0.0
        %2266 = vmatprep.subr.mxu0 0.0
        %2267 = vmatpush1.msra.mxu0 %v2231
        %2268 = vmatprep.subr.mxu0 0.0
        %2269 = vmatpush2.msra.mxu0 0.0
        %2270 = vmatprep.subr.mxu0 0.0
        %2271 = vmatpush2.msra.mxu0 0.0
        %2272 = vmatprep.subr.mxu0 0.0
        %2273 = vmatpush2.msra.mxu0 0.0
        %2274 = vmatprep.subr.mxu0 0.0
        %2275 = vmatpush2.msra.mxu0 0.0
        %2276 = vmatprep.subr.mxu0 0.0
        %2277 = vmatpush2.msra.mxu0 0.0
        %2278 = vmatprep.subr.mxu0 0.0
        %2279 = vmatpush2.msra.mxu0 0.0
        %2280 = vmatprep.subr.mxu0 0.0
        %2281 = vmatpush2.msra.mxu0 0.0
        %2282 = vmatprep.subr.mxu0 0.0
        %2283 = vmatpush2.msra.mxu0 0.0
        %2284 = vmatprep.subr.mxu0 0.0
        %2285 = vmatpush2.msra.mxu0 0.0
        %2286 = vmatprep.subr.mxu0 0.0
        %2287 = vmatpush2.msra.mxu0 0.0
        %2288 = vmatprep.subr.mxu0 0.0
        %2289 = vmatpush2.msra.mxu0 0.0
        %2290 = vmatprep.subr.mxu0 0.0
        %2291 = vmatpush2.msra.mxu0 0.0
        %2292 = vmatprep.subr.mxu0 0.0
        %2293 = vmatpush2.msra.mxu0 0.0
        %2294 = vmatprep.subr.mxu0 0.0
        %2295 = vmatpush2.msra.mxu0 0.0
        %2296 = vmatprep.subr.mxu0 0.0
        %2297 = vmatpush2.msra.mxu0 0.0
        %2298 = vmatprep.subr.mxu0 0.0
        %2299 = vmatpush2.msra.mxu0 0.0
        %2300 = vmatprep.mubr.f32.mxu0 0.0
        %2301 = vmatmul.mubr.f32.gmra.mxu0 %v2234
        %v2302 = vpop.f32.mrf.mxu0
        %v2303 = vadd.f32 0.0, %v2302
        %v2304 = vpop.f32.mrf.mxu0
        %2305 = vdwg.mxu0
        %2306 = vrot.lane.b32.xlu0 %v1664, 104
        %v2307 = vpop.permute.xlu0 %2306
        %2308 = vrot.lane.b32.xlu0 %v1738, 104
        %v2309 = vpop.permute.xlu0 %2308
        %v2310 = vsel %vm587, %v2307, 0
        %v2312 = vsel %vm587, %v2309, 0
        %2314 = vmatprep.subr.mxu0 0.0
        %2315 = vmatpush1.xpose.msra.mxu0 0.0
        %2316 = vmatprep.subr.mxu0 0.0
        %2317 = vmatpush1.xpose.msra.mxu0 0.0
        %2318 = vmatprep.subr.mxu0 0.0
        %2319 = vmatpush1.xpose.msra.mxu0 0.0
        %2320 = vmatprep.subr.mxu0 0.0
        %2321 = vmatpush1.xpose.msra.mxu0 0.0
        %2322 = vmatprep.subr.mxu0 0.0
        %2323 = vmatpush1.xpose.msra.mxu0 0.0
        %2324 = vmatprep.subr.mxu0 0.0
        %2325 = vmatpush1.xpose.msra.mxu0 0.0
        %2326 = vmatprep.subr.mxu0 0.0
        %2327 = vmatpush1.xpose.msra.mxu0 0.0
        %2328 = vmatprep.subr.mxu0 0.0
        %2329 = vmatpush1.xpose.msra.mxu0 0.0
        %2330 = vmatprep.subr.mxu0 0.0
        %2331 = vmatpush1.xpose.msra.mxu0 0.0
        %2332 = vmatprep.subr.mxu0 0.0
        %2333 = vmatpush1.xpose.msra.mxu0 0.0
        %2334 = vmatprep.subr.mxu0 0.0
        %2335 = vmatpush1.xpose.msra.mxu0 0.0
        %2336 = vmatprep.subr.mxu0 0.0
        %2337 = vmatpush1.xpose.msra.mxu0 0.0
        %2338 = vmatprep.subr.mxu0 0.0
        %2339 = vmatpush1.xpose.msra.mxu0 0.0
        %2340 = vmatprep.subr.mxu0 0.0
        %2341 = vmatpush1.xpose.msra.mxu0 0.0
        %2342 = vmatprep.subr.mxu0 0.0
        %2343 = vmatpush1.xpose.msra.mxu0 0.0
        %2344 = vmatprep.subr.mxu0 0.0
        %2345 = vmatpush1.xpose.msra.mxu0 %v2312
        %2346 = vmatprep.subr.mxu0 0.0
        %2347 = vmatpush2.xpose.msra.mxu0 0.0
        %2348 = vmatprep.subr.mxu0 0.0
        %2349 = vmatpush2.xpose.msra.mxu0 0.0
        %2350 = vmatprep.subr.mxu0 0.0
        %2351 = vmatpush2.xpose.msra.mxu0 0.0
        %2352 = vmatprep.subr.mxu0 0.0
        %2353 = vmatpush2.xpose.msra.mxu0 0.0
        %2354 = vmatprep.subr.mxu0 0.0
        %2355 = vmatpush2.xpose.msra.mxu0 0.0
        %2356 = vmatprep.subr.mxu0 0.0
        %2357 = vmatpush2.xpose.msra.mxu0 0.0
        %2358 = vmatprep.subr.mxu0 0.0
        %2359 = vmatpush2.xpose.msra.mxu0 0.0
        %2360 = vmatprep.subr.mxu0 0.0
        %2361 = vmatpush2.xpose.msra.mxu0 0.0
        %2362 = vmatprep.subr.mxu0 0.0
        %2363 = vmatpush2.xpose.msra.mxu0 0.0
        %2364 = vmatprep.subr.mxu0 0.0
        %2365 = vmatpush2.xpose.msra.mxu0 0.0
        %2366 = vmatprep.subr.mxu0 0.0
        %2367 = vmatpush2.xpose.msra.mxu0 0.0
        %2368 = vmatprep.subr.mxu0 0.0
        %2369 = vmatpush2.xpose.msra.mxu0 0.0
        %2370 = vmatprep.subr.mxu0 0.0
        %2371 = vmatpush2.xpose.msra.mxu0 0.0
        %2372 = vmatprep.subr.mxu0 0.0
        %2373 = vmatpush2.xpose.msra.mxu0 0.0
        %2374 = vmatprep.subr.mxu0 0.0
        %2375 = vmatpush2.xpose.msra.mxu0 0.0
        %2376 = vmatprep.subr.mxu0 0.0
        %2377 = vmatpush2.xpose.msra.mxu0 0.0
        %2378 = vmatprep.mubr.f32.mxu0 0.0
        %2379 = vmatmul.mubr.f32.gmra.mxu0 %v2310
        %v2380 = vpop.f32.mrf.mxu0
        %v2381 = vadd.f32 %v585, %v2380
        %v2382 = vpop.f32.mrf.mxu0
        %2383 = vdwg.mxu0
        %v2384 = vsel %vm587, %v2381, -inf
        %2385 = vmax.xlane.f32.xlu0 %v2384
        %v2386 = vpop.xlane.xlu0 %2385
        %v2387 = vsub.f32 %v2381, %v2386
        %v2388 = vmul.f32 %v2387, 1.442695
        %v2389 = vpow.pop %v2388
        %v2390 = vsel %vm587, %v2389, 0.0
        %2391 = vadd.xlane.f32.xlu0 %v2390
        %v2392 = vpop.xlane.xlu0 %2391
        %v2393 = vrcp.pop %v2392
        %v2394 = vmul.f32 %v2389, %v2393
        %2395 = vrot.lane.b32.xlu0 %v1812, 104
        %v2396 = vpop.permute.xlu0 %2395
        %v2399 = vsel %vm587, %v2394, 0
        %2401 = vmatprep.subr.mxu0 0.0
        %2402 = vmatpush1.msra.mxu0 0.0
        %2403 = vmatprep.subr.mxu0 0.0
        %2404 = vmatpush1.msra.mxu0 0.0
        %2405 = vmatprep.subr.mxu0 0.0
        %2406 = vmatpush1.msra.mxu0 0.0
        %2407 = vmatprep.subr.mxu0 0.0
        %2408 = vmatpush1.msra.mxu0 0.0
        %2409 = vmatprep.subr.mxu0 0.0
        %2410 = vmatpush1.msra.mxu0 0.0
        %2411 = vmatprep.subr.mxu0 0.0
        %2412 = vmatpush1.msra.mxu0 0.0
        %2413 = vmatprep.subr.mxu0 0.0
        %2414 = vmatpush1.msra.mxu0 0.0
        %2415 = vmatprep.subr.mxu0 0.0
        %2416 = vmatpush1.msra.mxu0 0.0
        %2417 = vmatprep.subr.mxu0 0.0
        %2418 = vmatpush1.msra.mxu0 0.0
        %2419 = vmatprep.subr.mxu0 0.0
        %2420 = vmatpush1.msra.mxu0 0.0
        %2421 = vmatprep.subr.mxu0 0.0
        %2422 = vmatpush1.msra.mxu0 0.0
        %2423 = vmatprep.subr.mxu0 0.0
        %2424 = vmatpush1.msra.mxu0 0.0
        %2425 = vmatprep.subr.mxu0 0.0
        %2426 = vmatpush1.msra.mxu0 0.0
        %2427 = vmatprep.subr.mxu0 0.0
        %2428 = vmatpush1.msra.mxu0 0.0
        %2429 = vmatprep.subr.mxu0 0.0
        %2430 = vmatpush1.msra.mxu0 0.0
        %2431 = vmatprep.subr.mxu0 0.0
        %2432 = vmatpush1.msra.mxu0 %v2396
        %2433 = vmatprep.subr.mxu0 0.0
        %2434 = vmatpush2.msra.mxu0 0.0
        %2435 = vmatprep.subr.mxu0 0.0
        %2436 = vmatpush2.msra.mxu0 0.0
        %2437 = vmatprep.subr.mxu0 0.0
        %2438 = vmatpush2.msra.mxu0 0.0
        %2439 = vmatprep.subr.mxu0 0.0
        %2440 = vmatpush2.msra.mxu0 0.0
        %2441 = vmatprep.subr.mxu0 0.0
        %2442 = vmatpush2.msra.mxu0 0.0
        %2443 = vmatprep.subr.mxu0 0.0
        %2444 = vmatpush2.msra.mxu0 0.0
        %2445 = vmatprep.subr.mxu0 0.0
        %2446 = vmatpush2.msra.mxu0 0.0
        %2447 = vmatprep.subr.mxu0 0.0
        %2448 = vmatpush2.msra.mxu0 0.0
        %2449 = vmatprep.subr.mxu0 0.0
        %2450 = vmatpush2.msra.mxu0 0.0
        %2451 = vmatprep.subr.mxu0 0.0
        %2452 = vmatpush2.msra.mxu0 0.0
        %2453 = vmatprep.subr.mxu0 0.0
        %2454 = vmatpush2.msra.mxu0 0.0
        %2455 = vmatprep.subr.mxu0 0.0
        %2456 = vmatpush2.msra.mxu0 0.0
        %2457 = vmatprep.subr.mxu0 0.0
        %2458 = vmatpush2.msra.mxu0 0.0
        %2459 = vmatprep.subr.mxu0 0.0
        %2460 = vmatpush2.msra.mxu0 0.0
        %2461 = vmatprep.subr.mxu0 0.0
        %2462 = vmatpush2.msra.mxu0 0.0
        %2463 = vmatprep.subr.mxu0 0.0
        %2464 = vmatpush2.msra.mxu0 0.0
        %2465 = vmatprep.mubr.f32.mxu0 0.0
        %2466 = vmatmul.mubr.f32.gmra.mxu0 %v2399
        %v2467 = vpop.f32.mrf.mxu0
        %v2468 = vadd.f32 0.0, %v2467
        %v2469 = vpop.f32.mrf.mxu0
        %2470 = vdwg.mxu0
        %2472 = vrot.lane.b32.xlu0 %v2138, 8
        %v2473 = vpop.permute.xlu0 %2472
        %2476 = vrot.lane.b32.xlu0 %v2303, 16
        %v2477 = vpop.permute.xlu0 %2476
        %2480 = vrot.lane.b32.xlu0 %v2468, 24
        %v2481 = vpop.permute.xlu0 %2480
        %v2483 = vsel %vm587, %v1972, %v2473
        %v2484 = vsel %vm1257, %v2483, %v2477
        %v2485 = vsel %vm1259, %v2484, %v2481
        %v2486 = vlaneseq
        %v2487 = vshrl.u32 %v2486, 7
        %v2488 = vsub.s32 0, %v2487
        %v2489 = vrot.slane %v1589, %v2488
        %v2491 = vsel %vm359, %v2485, 0
        %2493 = vmatprep.subr.mxu0 0.0
        %2494 = vmatpush1.msra.mxu0 0.0
        %2495 = vmatprep.subr.mxu0 0.0
        %2496 = vmatpush1.msra.mxu0 0.0
        %2497 = vmatprep.subr.mxu0 0.0
        %2498 = vmatpush1.msra.mxu0 0.0
        %2499 = vmatprep.subr.mxu0 0.0
        %2500 = vmatpush1.msra.mxu0 0.0
        %2501 = vmatprep.subr.mxu0 0.0
        %2502 = vmatpush1.msra.mxu0 0.0
        %2503 = vmatprep.subr.mxu0 0.0
        %2504 = vmatpush1.msra.mxu0 0.0
        %2505 = vmatprep.subr.mxu0 0.0
        %2506 = vmatpush1.msra.mxu0 0.0
        %2507 = vmatprep.subr.mxu0 0.0
        %2508 = vmatpush1.msra.mxu0 0.0
        %2509 = vmatprep.subr.mxu0 0.0
        %2510 = vmatpush1.msra.mxu0 0.0
        %2511 = vmatprep.subr.mxu0 0.0
        %2512 = vmatpush1.msra.mxu0 0.0
        %2513 = vmatprep.subr.mxu0 0.0
        %2514 = vmatpush1.msra.mxu0 0.0
        %2515 = vmatprep.subr.mxu0 0.0
        %2516 = vmatpush1.msra.mxu0 0.0
        %2517 = vmatprep.subr.mxu0 0.0
        %2518 = vmatpush1.msra.mxu0 %v1585
        %2519 = vmatprep.subr.mxu0 0.0
        %2520 = vmatpush1.msra.mxu0 %v1584
        %2521 = vmatprep.subr.mxu0 0.0
        %2522 = vmatpush1.msra.mxu0 %v1583
        %2523 = vmatprep.subr.mxu0 0.0
        %2524 = vmatpush1.msra.mxu0 %v1582
        %2525 = vmatprep.subr.mxu0 0.0
        %2526 = vmatpush2.msra.mxu0 0.0
        %2527 = vmatprep.subr.mxu0 0.0
        %2528 = vmatpush2.msra.mxu0 0.0
        %2529 = vmatprep.subr.mxu0 0.0
        %2530 = vmatpush2.msra.mxu0 0.0
        %2531 = vmatprep.subr.mxu0 0.0
        %2532 = vmatpush2.msra.mxu0 0.0
        %2533 = vmatprep.subr.mxu0 0.0
        %2534 = vmatpush2.msra.mxu0 0.0
        %2535 = vmatprep.subr.mxu0 0.0
        %2536 = vmatpush2.msra.mxu0 0.0
        %2537 = vmatprep.subr.mxu0 0.0
        %2538 = vmatpush2.msra.mxu0 0.0
        %2539 = vmatprep.subr.mxu0 0.0
        %2540 = vmatpush2.msra.mxu0 0.0
        %2541 = vmatprep.subr.mxu0 0.0
        %2542 = vmatpush2.msra.mxu0 0.0
        %2543 = vmatprep.subr.mxu0 0.0
        %2544 = vmatpush2.msra.mxu0 0.0
        %2545 = vmatprep.subr.mxu0 0.0
        %2546 = vmatpush2.msra.mxu0 0.0
        %2547 = vmatprep.subr.mxu0 0.0
        %2548 = vmatpush2.msra.mxu0 0.0
        %2549 = vmatprep.subr.mxu0 0.0
        %2550 = vmatpush2.msra.mxu0 0.0
        %2551 = vmatprep.subr.mxu0 0.0
        %2552 = vmatpush2.msra.mxu0 0.0
        %2553 = vmatprep.subr.mxu0 0.0
        %2554 = vmatpush2.msra.mxu0 0.0
        %2555 = vmatprep.subr.mxu0 0.0
        %2556 = vmatpush2.msra.mxu0 0.0
        %2557 = vmatprep.mubr.f32.mxu0 0.0
        %2558 = vmatmul.mubr.f32.gmra.mxu0 %v2491
        %v2559 = vpop.f32.mrf.mxu0
        %v2560 = vadd.f32 %v2489, %v2559
        %v2561 = vpop.f32.mrf.mxu0
        %2562 = vdwg.mxu0
        %v2563 = vadd.f32 %v1565, %v2560
        %v2564 = vld [vmem:[%s6 + $0xd] sm:$0x1]
        %v2565 = vld [vmem:[%s6 + $0xe] sm:$0x1]
        %v2566 = vsel %vm359, %v2563, 0.0
        %2567 = vadd.xlane.f32.xlu0 %v2566
        %v2568 = vpop.xlane.xlu0 %2567
        %v2569 = vmul.f32 %v2568, %v1344
        %v2570 = vsub.f32 %v2563, %v2569
        %v2571 = vmul.f32 %v2570, %v2570
        %v2572 = vsel %vm359, %v2571, 0.0
        %2573 = vadd.xlane.f32.xlu0 %v2572
        %v2574 = vpop.xlane.xlu0 %2573
        %v2575 = vmul.f32 %v2574, %v1344
        %v2576 = vadd.f32 %v2575, 1e-05
        %v2577 = vrsqrt.pop %v2576
        %v2578 = vmul.f32 %v2570, %v2577
        %v2579 = vlaneseq
        %v2580 = vshrl.u32 %v2579, 7
        %v2581 = vsub.s32 0, %v2580
        %v2582 = vrot.slane %v2564, %v2581
        %v2583 = vmul.f32 %v2578, %v2582
        %v2584 = vlaneseq
        %v2585 = vshrl.u32 %v2584, 7
        %v2586 = vsub.s32 0, %v2585
        %v2587 = vrot.slane %v2565, %v2586
        %v2588 = vadd.f32 %v2583, %v2587
        %s2589 = scalar_lea.vmem %s4, 32
        %v2590 = vld [vmem:[%s2589] sm:$0xff]
        %v2591 = vld [vmem:[%s2589 + $0x8] sm:$0xff]
        %v2592 = vld [vmem:[%s2589 + $0x10] sm:$0xff]
        %v2593 = vld [vmem:[%s2589 + $0x18] sm:$0xff]
        %v2594 = vld [vmem:[%s7 + $0x1] sm:$0x1]
        %s2595 = scalar_lea.vmem %s5, 128
        %v2596 = vld [vmem:[%s2595] sm:$0xff]
        %v2597 = vld [vmem:[%s2595 + $0x8] sm:$0xff]
        %v2598 = vld [vmem:[%s2595 + $0x10] sm:$0xff]
        %v2599 = vld [vmem:[%s2595 + $0x18] sm:$0xff]
        %v2600 = vld [vmem:[%s2595 + $0x20] sm:$0xff]
        %v2601 = vld [vmem:[%s2595 + $0x28] sm:$0xff]
        %v2602 = vld [vmem:[%s2595 + $0x30] sm:$0xff]
        %v2603 = vld [vmem:[%s2595 + $0x38] sm:$0xff]
        %v2604 = vld [vmem:[%s2595 + $0x40] sm:$0xff]
        %v2605 = vld [vmem:[%s2595 + $0x48] sm:$0xff]
        %v2606 = vld [vmem:[%s2595 + $0x50] sm:$0xff]
        %v2607 = vld [vmem:[%s2595 + $0x58] sm:$0xff]
        %v2608 = vld [vmem:[%s2595 + $0x60] sm:$0xff]
        %v2609 = vld [vmem:[%s2595 + $0x68] sm:$0xff]
        %v2610 = vld [vmem:[%s2595 + $0x70] sm:$0xff]
        %v2611 = vld [vmem:[%s2595 + $0x78] sm:$0xff]
        %v2612 = vld [vmem:[%s6 + $0xf] sm:$0x1]
        %v2613 = vlaneseq
        %v2614 = vshrl.u32 %v2613, 7
        %v2615 = vsub.s32 0, %v2614
        %v2616 = vrot.slane %v2594, %v2615
        %v2618 = vsel %vm359, %v2588, 0
        %2620 = vmatprep.subr.mxu0 0.0
        %2621 = vmatpush1.msra.mxu0 0.0
        %2622 = vmatprep.subr.mxu0 0.0
        %2623 = vmatpush1.msra.mxu0 0.0
        %2624 = vmatprep.subr.mxu0 0.0
        %2625 = vmatpush1.msra.mxu0 0.0
        %2626 = vmatprep.subr.mxu0 0.0
        %2627 = vmatpush1.msra.mxu0 0.0
        %2628 = vmatprep.subr.mxu0 0.0
        %2629 = vmatpush1.msra.mxu0 0.0
        %2630 = vmatprep.subr.mxu0 0.0
        %2631 = vmatpush1.msra.mxu0 0.0
        %2632 = vmatprep.subr.mxu0 0.0
        %2633 = vmatpush1.msra.mxu0 0.0
        %2634 = vmatprep.subr.mxu0 0.0
        %2635 = vmatpush1.msra.mxu0 0.0
        %2636 = vmatprep.subr.mxu0 0.0
        %2637 = vmatpush1.msra.mxu0 0.0
        %2638 = vmatprep.subr.mxu0 0.0
        %2639 = vmatpush1.msra.mxu0 0.0
        %2640 = vmatprep.subr.mxu0 0.0
        %2641 = vmatpush1.msra.mxu0 0.0
        %2642 = vmatprep.subr.mxu0 0.0
        %2643 = vmatpush1.msra.mxu0 0.0
        %2644 = vmatprep.subr.mxu0 0.0
        %2645 = vmatpush1.msra.mxu0 %v2593
        %2646 = vmatprep.subr.mxu0 0.0
        %2647 = vmatpush1.msra.mxu0 %v2592
        %2648 = vmatprep.subr.mxu0 0.0
        %2649 = vmatpush1.msra.mxu0 %v2591
        %2650 = vmatprep.subr.mxu0 0.0
        %2651 = vmatpush1.msra.mxu0 %v2590
        %2652 = vmatprep.subr.mxu0 0.0
        %2653 = vmatpush2.msra.mxu0 0.0
        %2654 = vmatprep.subr.mxu0 0.0
        %2655 = vmatpush2.msra.mxu0 0.0
        %2656 = vmatprep.subr.mxu0 0.0
        %2657 = vmatpush2.msra.mxu0 0.0
        %2658 = vmatprep.subr.mxu0 0.0
        %2659 = vmatpush2.msra.mxu0 0.0
        %2660 = vmatprep.subr.mxu0 0.0
        %2661 = vmatpush2.msra.mxu0 0.0
        %2662 = vmatprep.subr.mxu0 0.0
        %2663 = vmatpush2.msra.mxu0 0.0
        %2664 = vmatprep.subr.mxu0 0.0
        %2665 = vmatpush2.msra.mxu0 0.0
        %2666 = vmatprep.subr.mxu0 0.0
        %2667 = vmatpush2.msra.mxu0 0.0
        %2668 = vmatprep.subr.mxu0 0.0
        %2669 = vmatpush2.msra.mxu0 0.0
        %2670 = vmatprep.subr.mxu0 0.0
        %2671 = vmatpush2.msra.mxu0 0.0
        %2672 = vmatprep.subr.mxu0 0.0
        %2673 = vmatpush2.msra.mxu0 0.0
        %2674 = vmatprep.subr.mxu0 0.0
        %2675 = vmatpush2.msra.mxu0 0.0
        %2676 = vmatprep.subr.mxu0 0.0
        %2677 = vmatpush2.msra.mxu0 0.0
        %2678 = vmatprep.subr.mxu0 0.0
        %2679 = vmatpush2.msra.mxu0 0.0
        %2680 = vmatprep.subr.mxu0 0.0
        %2681 = vmatpush2.msra.mxu0 0.0
        %2682 = vmatprep.subr.mxu0 0.0
        %2683 = vmatpush2.msra.mxu0 0.0
        %2684 = vmatprep.mubr.f32.mxu0 0.0
        %2685 = vmatmul.mubr.f32.gmra.mxu0 %v2618
        %v2686 = vpop.f32.mrf.mxu0
        %v2687 = vadd.f32 %v2616, %v2686
        %v2688 = vpop.f32.mrf.mxu0
        %2689 = vdwg.mxu0
        %v2690 = vmax.f32 %v2687, 0.0
        %v2691 = vlaneseq
        %v2692 = vshrl.u32 %v2691, 7
        %v2693 = vsub.s32 0, %v2692
        %v2694 = vrot.slane %v2612, %v2693
        %2695 = vmatprep.subr.mxu0 0.0
        %2696 = vmatpush1.msra.mxu0 %v2611
        %2697 = vmatprep.subr.mxu0 0.0
        %2698 = vmatpush1.msra.mxu0 %v2610
        %2699 = vmatprep.subr.mxu0 0.0
        %2700 = vmatpush1.msra.mxu0 %v2609
        %2701 = vmatprep.subr.mxu0 0.0
        %2702 = vmatpush1.msra.mxu0 %v2608
        %2703 = vmatprep.subr.mxu0 0.0
        %2704 = vmatpush1.msra.mxu0 %v2607
        %2705 = vmatprep.subr.mxu0 0.0
        %2706 = vmatpush1.msra.mxu0 %v2606
        %2707 = vmatprep.subr.mxu0 0.0
        %2708 = vmatpush1.msra.mxu0 %v2605
        %2709 = vmatprep.subr.mxu0 0.0
        %2710 = vmatpush1.msra.mxu0 %v2604
        %2711 = vmatprep.subr.mxu0 0.0
        %2712 = vmatpush1.msra.mxu0 %v2603
        %2713 = vmatprep.subr.mxu0 0.0
        %2714 = vmatpush1.msra.mxu0 %v2602
        %2715 = vmatprep.subr.mxu0 0.0
        %2716 = vmatpush1.msra.mxu0 %v2601
        %2717 = vmatprep.subr.mxu0 0.0
        %2718 = vmatpush1.msra.mxu0 %v2600
        %2719 = vmatprep.subr.mxu0 0.0
        %2720 = vmatpush1.msra.mxu0 %v2599
        %2721 = vmatprep.subr.mxu0 0.0
        %2722 = vmatpush1.msra.mxu0 %v2598
        %2723 = vmatprep.subr.mxu0 0.0
        %2724 = vmatpush1.msra.mxu0 %v2597
        %2725 = vmatprep.subr.mxu0 0.0
        %2726 = vmatpush1.msra.mxu0 %v2596
        %2727 = vmatprep.subr.mxu0 0.0
        %2728 = vmatpush2.msra.mxu0 0.0
        %2729 = vmatprep.subr.mxu0 0.0
        %2730 = vmatpush2.msra.mxu0 0.0
        %2731 = vmatprep.subr.mxu0 0.0
        %2732 = vmatpush2.msra.mxu0 0.0
        %2733 = vmatprep.subr.mxu0 0.0
        %2734 = vmatpush2.msra.mxu0 0.0
        %2735 = vmatprep.subr.mxu0 0.0
        %2736 = vmatpush2.msra.mxu0 0.0
        %2737 = vmatprep.subr.mxu0 0.0
        %2738 = vmatpush2.msra.mxu0 0.0
        %2739 = vmatprep.subr.mxu0 0.0
        %2740 = vmatpush2.msra.mxu0 0.0
        %2741 = vmatprep.subr.mxu0 0.0
        %2742 = vmatpush2.msra.mxu0 0.0
        %2743 = vmatprep.subr.mxu0 0.0
        %2744 = vmatpush2.msra.mxu0 0.0
        %2745 = vmatprep.subr.mxu0 0.0
        %2746 = vmatpush2.msra.mxu0 0.0
        %2747 = vmatprep.subr.mxu0 0.0
        %2748 = vmatpush2.msra.mxu0 0.0
        %2749 = vmatprep.subr.mxu0 0.0
        %2750 = vmatpush2.msra.mxu0 0.0
        %2751 = vmatprep.subr.mxu0 0.0
        %2752 = vmatpush2.msra.mxu0 0.0
        %2753 = vmatprep.subr.mxu0 0.0
        %2754 = vmatpush2.msra.mxu0 0.0
        %2755 = vmatprep.subr.mxu0 0.0
        %2756 = vmatpush2.msra.mxu0 0.0
        %2757 = vmatprep.subr.mxu0 0.0
        %2758 = vmatpush2.msra.mxu0 0.0
        %2759 = vmatprep.mubr.f32.mxu0 0.0
        %2760 = vmatmul.mubr.f32.gmra.mxu0 %v2690
        %v2761 = vpop.f32.mrf.mxu0
        %v2762 = vadd.f32 %v2694, %v2761
        %v2763 = vpop.f32.mrf.mxu0
        %2764 = vdwg.mxu0
        %v2765 = vmax.f32 %v2762, 0.0
        %v2766 = vadd.f32 %v2588, %v2765
        %v2767 = vld [vmem:[%s6 + $0x10] sm:$0x1]
        %v2768 = vld [vmem:[%s6 + $0x11] sm:$0x1]
        %v2769 = vsel %vm359, %v2766, 0.0
        %2770 = vadd.xlane.f32.xlu0 %v2769
        %v2771 = vpop.xlane.xlu0 %2770
        %v2772 = vmul.f32 %v2771, %v1344
        %v2773 = vsub.f32 %v2766, %v2772
        %v2774 = vmul.f32 %v2773, %v2773
        %v2775 = vsel %vm359, %v2774, 0.0
        %2776 = vadd.xlane.f32.xlu0 %v2775
        %v2777 = vpop.xlane.xlu0 %2776
        %v2778 = vmul.f32 %v2777, %v1344
        %v2779 = vadd.f32 %v2778, 1e-05
        %v2780 = vrsqrt.pop %v2779
        %v2781 = vmul.f32 %v2773, %v2780
        %v2782 = vlaneseq
        %v2783 = vshrl.u32 %v2782, 7
        %v2784 = vsub.s32 0, %v2783
        %v2785 = vrot.slane %v2767, %v2784
        %v2786 = vmul.f32 %v2781, %v2785
        %v2787 = vlaneseq
        %v2788 = vshrl.u32 %v2787, 7
        %v2789 = vsub.s32 0, %v2788
        %v2790 = vrot.slane %v2768, %v2789
        %v2791 = vadd.f32 %v2786, %v2790
        %v2792 = vld [vmem:[%s2] sm:$0xff]
        %s2793 = scalar_lea.vmem [#allocation2], 256
        %v2794 = vld [vmem:[%s2793] sm:$0xff]
        %v2795 = vld [vmem:[%s2793 + $0x8] sm:$0xff]
        %v2796 = vld [vmem:[%s2793 + $0x10] sm:$0xff]
        %v2797 = vld [vmem:[%s2793 + $0x18] sm:$0xff]
        %s2798 = scalar_lea.vmem [#allocation2], 288
        %v2799 = vld [vmem:[%s2798] sm:$0xff]
        %v2800 = vld [vmem:[%s2798 + $0x8] sm:$0xff]
        %v2801 = vld [vmem:[%s2798 + $0x10] sm:$0xff]
        %v2802 = vld [vmem:[%s2798 + $0x18] sm:$0xff]
        %s2803 = scalar_lea.vmem [#allocation2], 320
        %v2804 = vld [vmem:[%s2803] sm:$0xff]
        %v2805 = vld [vmem:[%s2803 + $0x8] sm:$0xff]
        %v2806 = vld [vmem:[%s2803 + $0x10] sm:$0xff]
        %v2807 = vld [vmem:[%s2803 + $0x18] sm:$0xff]
        %s2808 = scalar_lea.vmem [#allocation2], 352
        %v2809 = vld [vmem:[%s2808] sm:$0xff]
        %v2810 = vld [vmem:[%s2808 + $0x8] sm:$0xff]
        %v2811 = vld [vmem:[%s2808 + $0x10] sm:$0xff]
        %v2812 = vld [vmem:[%s2808 + $0x18] sm:$0xff]
        %v2813 = vld [vmem:[%s6 + $0x12] sm:$0x1]
        %v2814 = vld [vmem:[%s6 + $0x13] sm:$0x1]
        %v2815 = vld [vmem:[%s6 + $0x14] sm:$0x1]
        %v2816 = vld [vmem:[%s6 + $0x15] sm:$0x1]
        %v2817 = vlaneseq
        %v2818 = vshrl.u32 %v2817, 7
        %v2819 = vsub.s32 0, %v2818
        %v2820 = vrot.slane %v2813, %v2819
        %v2822 = vsel %vm359, %v2792, 0
        %2824 = vmatprep.subr.mxu0 0.0
        %2825 = vmatpush1.msra.mxu0 0.0
        %2826 = vmatprep.subr.mxu0 0.0
        %2827 = vmatpush1.msra.mxu0 0.0
        %2828 = vmatprep.subr.mxu0 0.0
        %2829 = vmatpush1.msra.mxu0 0.0
        %2830 = vmatprep.subr.mxu0 0.0
        %2831 = vmatpush1.msra.mxu0 0.0
        %2832 = vmatprep.subr.mxu0 0.0
        %2833 = vmatpush1.msra.mxu0 0.0
        %2834 = vmatprep.subr.mxu0 0.0
        %2835 = vmatpush1.msra.mxu0 0.0
        %2836 = vmatprep.subr.mxu0 0.0
        %2837 = vmatpush1.msra.mxu0 0.0
        %2838 = vmatprep.subr.mxu0 0.0
        %2839 = vmatpush1.msra.mxu0 0.0
        %2840 = vmatprep.subr.mxu0 0.0
        %2841 = vmatpush1.msra.mxu0 0.0
        %2842 = vmatprep.subr.mxu0 0.0
        %2843 = vmatpush1.msra.mxu0 0.0
        %2844 = vmatprep.subr.mxu0 0.0
        %2845 = vmatpush1.msra.mxu0 0.0
        %2846 = vmatprep.subr.mxu0 0.0
        %2847 = vmatpush1.msra.mxu0 0.0
        %2848 = vmatprep.subr.mxu0 0.0
        %2849 = vmatpush1.msra.mxu0 %v2797
        %2850 = vmatprep.subr.mxu0 0.0
        %2851 = vmatpush1.msra.mxu0 %v2796
        %2852 = vmatprep.subr.mxu0 0.0
        %2853 = vmatpush1.msra.mxu0 %v2795
        %2854 = vmatprep.subr.mxu0 0.0
        %2855 = vmatpush1.msra.mxu0 %v2794
        %2856 = vmatprep.subr.mxu0 0.0
        %2857 = vmatpush2.msra.mxu0 0.0
        %2858 = vmatprep.subr.mxu0 0.0
        %2859 = vmatpush2.msra.mxu0 0.0
        %2860 = vmatprep.subr.mxu0 0.0
        %2861 = vmatpush2.msra.mxu0 0.0
        %2862 = vmatprep.subr.mxu0 0.0
        %2863 = vmatpush2.msra.mxu0 0.0
        %2864 = vmatprep.subr.mxu0 0.0
        %2865 = vmatpush2.msra.mxu0 0.0
        %2866 = vmatprep.subr.mxu0 0.0
        %2867 = vmatpush2.msra.mxu0 0.0
        %2868 = vmatprep.subr.mxu0 0.0
        %2869 = vmatpush2.msra.mxu0 0.0
        %2870 = vmatprep.subr.mxu0 0.0
        %2871 = vmatpush2.msra.mxu0 0.0
        %2872 = vmatprep.subr.mxu0 0.0
        %2873 = vmatpush2.msra.mxu0 0.0
        %2874 = vmatprep.subr.mxu0 0.0
        %2875 = vmatpush2.msra.mxu0 0.0
        %2876 = vmatprep.subr.mxu0 0.0
        %2877 = vmatpush2.msra.mxu0 0.0
        %2878 = vmatprep.subr.mxu0 0.0
        %2879 = vmatpush2.msra.mxu0 0.0
        %2880 = vmatprep.subr.mxu0 0.0
        %2881 = vmatpush2.msra.mxu0 0.0
        %2882 = vmatprep.subr.mxu0 0.0
        %2883 = vmatpush2.msra.mxu0 0.0
        %2884 = vmatprep.subr.mxu0 0.0
        %2885 = vmatpush2.msra.mxu0 0.0
        %2886 = vmatprep.subr.mxu0 0.0
        %2887 = vmatpush2.msra.mxu0 0.0
        %2888 = vmatprep.mubr.f32.mxu0 0.0
        %2889 = vmatmul.mubr.f32.gmra.mxu0 %v2822
        %v2890 = vpop.f32.mrf.mxu0
        %v2891 = vadd.f32 %v2820, %v2890
        %v2892 = vpop.f32.mrf.mxu0
        %2893 = vdwg.mxu0
        %v2894 = vlaneseq
        %v2895 = vshrl.u32 %v2894, 7
        %v2896 = vsub.s32 0, %v2895
        %v2897 = vrot.slane %v2814, %v2896
        %2898 = vmatprep.subr.mxu0 0.0
        %2899 = vmatpush1.msra.mxu0 0.0
        %2900 = vmatprep.subr.mxu0 0.0
        %2901 = vmatpush1.msra.mxu0 0.0
        %2902 = vmatprep.subr.mxu0 0.0
        %2903 = vmatpush1.msra.mxu0 0.0
        %2904 = vmatprep.subr.mxu0 0.0
        %2905 = vmatpush1.msra.mxu0 0.0
        %2906 = vmatprep.subr.mxu0 0.0
        %2907 = vmatpush1.msra.mxu0 0.0
        %2908 = vmatprep.subr.mxu0 0.0
        %2909 = vmatpush1.msra.mxu0 0.0
        %2910 = vmatprep.subr.mxu0 0.0
        %2911 = vmatpush1.msra.mxu0 0.0
        %2912 = vmatprep.subr.mxu0 0.0
        %2913 = vmatpush1.msra.mxu0 0.0
        %2914 = vmatprep.subr.mxu0 0.0
        %2915 = vmatpush1.msra.mxu0 0.0
        %2916 = vmatprep.subr.mxu0 0.0
        %2917 = vmatpush1.msra.mxu0 0.0
        %2918 = vmatprep.subr.mxu0 0.0
        %2919 = vmatpush1.msra.mxu0 0.0
        %2920 = vmatprep.subr.mxu0 0.0
        %2921 = vmatpush1.msra.mxu0 0.0
        %2922 = vmatprep.subr.mxu0 0.0
        %2923 = vmatpush1.msra.mxu0 %v2802
        %2924 = vmatprep.subr.mxu0 0.0
        %2925 = vmatpush1.msra.mxu0 %v2801
        %2926 = vmatprep.subr.mxu0 0.0
        %2927 = vmatpush1.msra.mxu0 %v2800
        %2928 = vmatprep.subr.mxu0 0.0
        %2929 = vmatpush1.msra.mxu0 %v2799
        %2930 = vmatprep.subr.mxu0 0.0
        %2931 = vmatpush2.msra.mxu0 0.0
        %2932 = vmatprep.subr.mxu0 0.0
        %2933 = vmatpush2.msra.mxu0 0.0
        %2934 = vmatprep.subr.mxu0 0.0
        %2935 = vmatpush2.msra.mxu0 0.0
        %2936 = vmatprep.subr.mxu0 0.0
        %2937 = vmatpush2.msra.mxu0 0.0
        %2938 = vmatprep.subr.mxu0 0.0
        %2939 = vmatpush2.msra.mxu0 0.0
        %2940 = vmatprep.subr.mxu0 0.0
        %2941 = vmatpush2.msra.mxu0 0.0
        %2942 = vmatprep.subr.mxu0 0.0
        %2943 = vmatpush2.msra.mxu0 0.0
        %2944 = vmatprep.subr.mxu0 0.0
        %2945 = vmatpush2.msra.mxu0 0.0
        %2946 = vmatprep.subr.mxu0 0.0
        %2947 = vmatpush2.msra.mxu0 0.0
        %2948 = vmatprep.subr.mxu0 0.0
        %2949 = vmatpush2.msra.mxu0 0.0
        %2950 = vmatprep.subr.mxu0 0.0
        %2951 = vmatpush2.msra.mxu0 0.0
        %2952 = vmatprep.subr.mxu0 0.0
        %2953 = vmatpush2.msra.mxu0 0.0
        %2954 = vmatprep.subr.mxu0 0.0
        %2955 = vmatpush2.msra.mxu0 0.0
        %2956 = vmatprep.subr.mxu0 0.0
        %2957 = vmatpush2.msra.mxu0 0.0
        %2958 = vmatprep.subr.mxu0 0.0
        %2959 = vmatpush2.msra.mxu0 0.0
        %2960 = vmatprep.subr.mxu0 0.0
        %2961 = vmatpush2.msra.mxu0 0.0
        %2962 = vmatprep.mubr.f32.mxu0 0.0
        %2963 = vmatmul.mubr.f32.gmra.mxu0 %v2822
        %v2964 = vpop.f32.mrf.mxu0
        %v2965 = vadd.f32 %v2897, %v2964
        %v2966 = vpop.f32.mrf.mxu0
        %2967 = vdwg.mxu0
        %v2968 = vlaneseq
        %v2969 = vshrl.u32 %v2968, 7
        %v2970 = vsub.s32 0, %v2969
        %v2971 = vrot.slane %v2815, %v2970
        %2972 = vmatprep.subr.mxu0 0.0
        %2973 = vmatpush1.msra.mxu0 0.0
        %2974 = vmatprep.subr.mxu0 0.0
        %2975 = vmatpush1.msra.mxu0 0.0
        %2976 = vmatprep.subr.mxu0 0.0
        %2977 = vmatpush1.msra.mxu0 0.0
        %2978 = vmatprep.subr.mxu0 0.0
        %2979 = vmatpush1.msra.mxu0 0.0
        %2980 = vmatprep.subr.mxu0 0.0
        %2981 = vmatpush1.msra.mxu0 0.0
        %2982 = vmatprep.subr.mxu0 0.0
        %2983 = vmatpush1.msra.mxu0 0.0
        %2984 = vmatprep.subr.mxu0 0.0
        %2985 = vmatpush1.msra.mxu0 0.0
        %2986 = vmatprep.subr.mxu0 0.0
        %2987 = vmatpush1.msra.mxu0 0.0
        %2988 = vmatprep.subr.mxu0 0.0
        %2989 = vmatpush1.msra.mxu0 0.0
        %2990 = vmatprep.subr.mxu0 0.0
        %2991 = vmatpush1.msra.mxu0 0.0
        %2992 = vmatprep.subr.mxu0 0.0
        %2993 = vmatpush1.msra.mxu0 0.0
        %2994 = vmatprep.subr.mxu0 0.0
        %2995 = vmatpush1.msra.mxu0 0.0
        %2996 = vmatprep.subr.mxu0 0.0
        %2997 = vmatpush1.msra.mxu0 %v2807
        %2998 = vmatprep.subr.mxu0 0.0
        %2999 = vmatpush1.msra.mxu0 %v2806
        %3000 = vmatprep.subr.mxu0 0.0
        %3001 = vmatpush1.msra.mxu0 %v2805
        %3002 = vmatprep.subr.mxu0 0.0
        %3003 = vmatpush1.msra.mxu0 %v2804
        %3004 = vmatprep.subr.mxu0 0.0
        %3005 = vmatpush2.msra.mxu0 0.0
        %3006 = vmatprep.subr.mxu0 0.0
        %3007 = vmatpush2.msra.mxu0 0.0
        %3008 = vmatprep.subr.mxu0 0.0
        %3009 = vmatpush2.msra.mxu0 0.0
        %3010 = vmatprep.subr.mxu0 0.0
        %3011 = vmatpush2.msra.mxu0 0.0
        %3012 = vmatprep.subr.mxu0 0.0
        %3013 = vmatpush2.msra.mxu0 0.0
        %3014 = vmatprep.subr.mxu0 0.0
        %3015 = vmatpush2.msra.mxu0 0.0
        %3016 = vmatprep.subr.mxu0 0.0
        %3017 = vmatpush2.msra.mxu0 0.0
        %3018 = vmatprep.subr.mxu0 0.0
        %3019 = vmatpush2.msra.mxu0 0.0
        %3020 = vmatprep.subr.mxu0 0.0
        %3021 = vmatpush2.msra.mxu0 0.0
        %3022 = vmatprep.subr.mxu0 0.0
        %3023 = vmatpush2.msra.mxu0 0.0
        %3024 = vmatprep.subr.mxu0 0.0
        %3025 = vmatpush2.msra.mxu0 0.0
        %3026 = vmatprep.subr.mxu0 0.0
        %3027 = vmatpush2.msra.mxu0 0.0
        %3028 = vmatprep.subr.mxu0 0.0
        %3029 = vmatpush2.msra.mxu0 0.0
        %3030 = vmatprep.subr.mxu0 0.0
        %3031 = vmatpush2.msra.mxu0 0.0
        %3032 = vmatprep.subr.mxu0 0.0
        %3033 = vmatpush2.msra.mxu0 0.0
        %3034 = vmatprep.subr.mxu0 0.0
        %3035 = vmatpush2.msra.mxu0 0.0
        %3036 = vmatprep.mubr.f32.mxu0 0.0
        %3037 = vmatmul.mubr.f32.gmra.mxu0 %v2822
        %v3038 = vpop.f32.mrf.mxu0
        %v3039 = vadd.f32 %v2971, %v3038
        %v3040 = vpop.f32.mrf.mxu0
        %3041 = vdwg.mxu0
        %v3043 = vsel %vm587, %v2891, 0
        %v3046 = vsel %vm587, %v2965, 0
        %3048 = vmatprep.subr.mxu0 0.0
        %3049 = vmatpush1.xpose.msra.mxu0 0.0
        %3050 = vmatprep.subr.mxu0 0.0
        %3051 = vmatpush1.xpose.msra.mxu0 0.0
        %3052 = vmatprep.subr.mxu0 0.0
        %3053 = vmatpush1.xpose.msra.mxu0 0.0
        %3054 = vmatprep.subr.mxu0 0.0
        %3055 = vmatpush1.xpose.msra.mxu0 0.0
        %3056 = vmatprep.subr.mxu0 0.0
        %3057 = vmatpush1.xpose.msra.mxu0 0.0
        %3058 = vmatprep.subr.mxu0 0.0
        %3059 = vmatpush1.xpose.msra.mxu0 0.0
        %3060 = vmatprep.subr.mxu0 0.0
        %3061 = vmatpush1.xpose.msra.mxu0 0.0
        %3062 = vmatprep.subr.mxu0 0.0
        %3063 = vmatpush1.xpose.msra.mxu0 0.0
        %3064 = vmatprep.subr.mxu0 0.0
        %3065 = vmatpush1.xpose.msra.mxu0 0.0
        %3066 = vmatprep.subr.mxu0 0.0
        %3067 = vmatpush1.xpose.msra.mxu0 0.0
        %3068 = vmatprep.subr.mxu0 0.0
        %3069 = vmatpush1.xpose.msra.mxu0 0.0
        %3070 = vmatprep.subr.mxu0 0.0
        %3071 = vmatpush1.xpose.msra.mxu0 0.0
        %3072 = vmatprep.subr.mxu0 0.0
        %3073 = vmatpush1.xpose.msra.mxu0 0.0
        %3074 = vmatprep.subr.mxu0 0.0
        %3075 = vmatpush1.xpose.msra.mxu0 0.0
        %3076 = vmatprep.subr.mxu0 0.0
        %3077 = vmatpush1.xpose.msra.mxu0 0.0
        %3078 = vmatprep.subr.mxu0 0.0
        %3079 = vmatpush1.xpose.msra.mxu0 %v3046
        %3080 = vmatprep.subr.mxu0 0.0
        %3081 = vmatpush2.xpose.msra.mxu0 0.0
        %3082 = vmatprep.subr.mxu0 0.0
        %3083 = vmatpush2.xpose.msra.mxu0 0.0
        %3084 = vmatprep.subr.mxu0 0.0
        %3085 = vmatpush2.xpose.msra.mxu0 0.0
        %3086 = vmatprep.subr.mxu0 0.0
        %3087 = vmatpush2.xpose.msra.mxu0 0.0
        %3088 = vmatprep.subr.mxu0 0.0
        %3089 = vmatpush2.xpose.msra.mxu0 0.0
        %3090 = vmatprep.subr.mxu0 0.0
        %3091 = vmatpush2.xpose.msra.mxu0 0.0
        %3092 = vmatprep.subr.mxu0 0.0
        %3093 = vmatpush2.xpose.msra.mxu0 0.0
        %3094 = vmatprep.subr.mxu0 0.0
        %3095 = vmatpush2.xpose.msra.mxu0 0.0
        %3096 = vmatprep.subr.mxu0 0.0
        %3097 = vmatpush2.xpose.msra.mxu0 0.0
        %3098 = vmatprep.subr.mxu0 0.0
        %3099 = vmatpush2.xpose.msra.mxu0 0.0
        %3100 = vmatprep.subr.mxu0 0.0
        %3101 = vmatpush2.xpose.msra.mxu0 0.0
        %3102 = vmatprep.subr.mxu0 0.0
        %3103 = vmatpush2.xpose.msra.mxu0 0.0
        %3104 = vmatprep.subr.mxu0 0.0
        %3105 = vmatpush2.xpose.msra.mxu0 0.0
        %3106 = vmatprep.subr.mxu0 0.0
        %3107 = vmatpush2.xpose.msra.mxu0 0.0
        %3108 = vmatprep.subr.mxu0 0.0
        %3109 = vmatpush2.xpose.msra.mxu0 0.0
        %3110 = vmatprep.subr.mxu0 0.0
        %3111 = vmatpush2.xpose.msra.mxu0 0.0
        %3112 = vmatprep.mubr.f32.mxu0 0.0
        %3113 = vmatmul.mubr.f32.gmra.mxu0 %v3043
        %v3114 = vpop.f32.mrf.mxu0
        %v3115 = vadd.f32 %v585, %v3114
        %v3116 = vpop.f32.mrf.mxu0
        %3117 = vdwg.mxu0
        %v3118 = vsel %vm587, %v3115, -inf
        %3119 = vmax.xlane.f32.xlu0 %v3118
        %v3120 = vpop.xlane.xlu0 %3119
        %v3121 = vsub.f32 %v3115, %v3120
        %v3122 = vmul.f32 %v3121, 1.442695
        %v3123 = vpow.pop %v3122
        %v3124 = vsel %vm587, %v3123, 0.0
        %3125 = vadd.xlane.f32.xlu0 %v3124
        %v3126 = vpop.xlane.xlu0 %3125
        %v3127 = vrcp.pop %v3126
        %v3128 = vmul.f32 %v3123, %v3127
        %v3130 = vsel %vm587, %v3128, 0
        %3132 = vmatprep.subr.mxu0 0.0
        %3133 = vmatpush1.msra.mxu0 0.0
        %3134 = vmatprep.subr.mxu0 0.0
        %3135 = vmatpush1.msra.mxu0 0.0
        %3136 = vmatprep.subr.mxu0 0.0
        %3137 = vmatpush1.msra.mxu0 0.0
        %3138 = vmatprep.subr.mxu0 0.0
        %3139 = vmatpush1.msra.mxu0 0.0
        %3140 = vmatprep.subr.mxu0 0.0
        %3141 = vmatpush1.msra.mxu0 0.0
        %3142 = vmatprep.subr.mxu0 0.0
        %3143 = vmatpush1.msra.mxu0 0.0
        %3144 = vmatprep.subr.mxu0 0.0
        %3145 = vmatpush1.msra.mxu0 0.0
        %3146 = vmatprep.subr.mxu0 0.0
        %3147 = vmatpush1.msra.mxu0 0.0
        %3148 = vmatprep.subr.mxu0 0.0
        %3149 = vmatpush1.msra.mxu0 0.0
        %3150 = vmatprep.subr.mxu0 0.0
        %3151 = vmatpush1.msra.mxu0 0.0
        %3152 = vmatprep.subr.mxu0 0.0
        %3153 = vmatpush1.msra.mxu0 0.0
        %3154 = vmatprep.subr.mxu0 0.0
        %3155 = vmatpush1.msra.mxu0 0.0
        %3156 = vmatprep.subr.mxu0 0.0
        %3157 = vmatpush1.msra.mxu0 0.0
        %3158 = vmatprep.subr.mxu0 0.0
        %3159 = vmatpush1.msra.mxu0 0.0
        %3160 = vmatprep.subr.mxu0 0.0
        %3161 = vmatpush1.msra.mxu0 0.0
        %3162 = vmatprep.subr.mxu0 0.0
        %3163 = vmatpush1.msra.mxu0 %v3039
        %3164 = vmatprep.subr.mxu0 0.0
        %3165 = vmatpush2.msra.mxu0 0.0
        %3166 = vmatprep.subr.mxu0 0.0
        %3167 = vmatpush2.msra.mxu0 0.0
        %3168 = vmatprep.subr.mxu0 0.0
        %3169 = vmatpush2.msra.mxu0 0.0
        %3170 = vmatprep.subr.mxu0 0.0
        %3171 = vmatpush2.msra.mxu0 0.0
        %3172 = vmatprep.subr.mxu0 0.0
        %3173 = vmatpush2.msra.mxu0 0.0
        %3174 = vmatprep.subr.mxu0 0.0
        %3175 = vmatpush2.msra.mxu0 0.0
        %3176 = vmatprep.subr.mxu0 0.0
        %3177 = vmatpush2.msra.mxu0 0.0
        %3178 = vmatprep.subr.mxu0 0.0
        %3179 = vmatpush2.msra.mxu0 0.0
        %3180 = vmatprep.subr.mxu0 0.0
        %3181 = vmatpush2.msra.mxu0 0.0
        %3182 = vmatprep.subr.mxu0 0.0
        %3183 = vmatpush2.msra.mxu0 0.0
        %3184 = vmatprep.subr.mxu0 0.0
        %3185 = vmatpush2.msra.mxu0 0.0
        %3186 = vmatprep.subr.mxu0 0.0
        %3187 = vmatpush2.msra.mxu0 0.0
        %3188 = vmatprep.subr.mxu0 0.0
        %3189 = vmatpush2.msra.mxu0 0.0
        %3190 = vmatprep.subr.mxu0 0.0
        %3191 = vmatpush2.msra.mxu0 0.0
        %3192 = vmatprep.subr.mxu0 0.0
        %3193 = vmatpush2.msra.mxu0 0.0
        %3194 = vmatprep.subr.mxu0 0.0
        %3195 = vmatpush2.msra.mxu0 0.0
        %3196 = vmatprep.mubr.f32.mxu0 0.0
        %3197 = vmatmul.mubr.f32.gmra.mxu0 %v3130
        %v3198 = vpop.f32.mrf.mxu0
        %v3199 = vadd.f32 0.0, %v3198
        %v3200 = vpop.f32.mrf.mxu0
        %3201 = vdwg.mxu0
        %3202 = vrot.lane.b32.xlu0 %v2891, 120
        %v3203 = vpop.permute.xlu0 %3202
        %3204 = vrot.lane.b32.xlu0 %v2965, 120
        %v3205 = vpop.permute.xlu0 %3204
        %v3206 = vsel %vm587, %v3203, 0
        %v3208 = vsel %vm587, %v3205, 0
        %3210 = vmatprep.subr.mxu0 0.0
        %3211 = vmatpush1.xpose.msra.mxu0 0.0
        %3212 = vmatprep.subr.mxu0 0.0
        %3213 = vmatpush1.xpose.msra.mxu0 0.0
        %3214 = vmatprep.subr.mxu0 0.0
        %3215 = vmatpush1.xpose.msra.mxu0 0.0
        %3216 = vmatprep.subr.mxu0 0.0
        %3217 = vmatpush1.xpose.msra.mxu0 0.0
        %3218 = vmatprep.subr.mxu0 0.0
        %3219 = vmatpush1.xpose.msra.mxu0 0.0
        %3220 = vmatprep.subr.mxu0 0.0
        %3221 = vmatpush1.xpose.msra.mxu0 0.0
        %3222 = vmatprep.subr.mxu0 0.0
        %3223 = vmatpush1.xpose.msra.mxu0 0.0
        %3224 = vmatprep.subr.mxu0 0.0
        %3225 = vmatpush1.xpose.msra.mxu0 0.0
        %3226 = vmatprep.subr.mxu0 0.0
        %3227 = vmatpush1.xpose.msra.mxu0 0.0
        %3228 = vmatprep.subr.mxu0 0.0
        %3229 = vmatpush1.xpose.msra.mxu0 0.0
        %3230 = vmatprep.subr.mxu0 0.0
        %3231 = vmatpush1.xpose.msra.mxu0 0.0
        %3232 = vmatprep.subr.mxu0 0.0
        %3233 = vmatpush1.xpose.msra.mxu0 0.0
        %3234 = vmatprep.subr.mxu0 0.0
        %3235 = vmatpush1.xpose.msra.mxu0 0.0
        %3236 = vmatprep.subr.mxu0 0.0
        %3237 = vmatpush1.xpose.msra.mxu0 0.0
        %3238 = vmatprep.subr.mxu0 0.0
        %3239 = vmatpush1.xpose.msra.mxu0 0.0
        %3240 = vmatprep.subr.mxu0 0.0
        %3241 = vmatpush1.xpose.msra.mxu0 %v3208
        %3242 = vmatprep.subr.mxu0 0.0
        %3243 = vmatpush2.xpose.msra.mxu0 0.0
        %3244 = vmatprep.subr.mxu0 0.0
        %3245 = vmatpush2.xpose.msra.mxu0 0.0
        %3246 = vmatprep.subr.mxu0 0.0
        %3247 = vmatpush2.xpose.msra.mxu0 0.0
        %3248 = vmatprep.subr.mxu0 0.0
        %3249 = vmatpush2.xpose.msra.mxu0 0.0
        %3250 = vmatprep.subr.mxu0 0.0
        %3251 = vmatpush2.xpose.msra.mxu0 0.0
        %3252 = vmatprep.subr.mxu0 0.0
        %3253 = vmatpush2.xpose.msra.mxu0 0.0
        %3254 = vmatprep.subr.mxu0 0.0
        %3255 = vmatpush2.xpose.msra.mxu0 0.0
        %3256 = vmatprep.subr.mxu0 0.0
        %3257 = vmatpush2.xpose.msra.mxu0 0.0
        %3258 = vmatprep.subr.mxu0 0.0
        %3259 = vmatpush2.xpose.msra.mxu0 0.0
        %3260 = vmatprep.subr.mxu0 0.0
        %3261 = vmatpush2.xpose.msra.mxu0 0.0
        %3262 = vmatprep.subr.mxu0 0.0
        %3263 = vmatpush2.xpose.msra.mxu0 0.0
        %3264 = vmatprep.subr.mxu0 0.0
        %3265 = vmatpush2.xpose.msra.mxu0 0.0
        %3266 = vmatprep.subr.mxu0 0.0
        %3267 = vmatpush2.xpose.msra.mxu0 0.0
        %3268 = vmatprep.subr.mxu0 0.0
        %3269 = vmatpush2.xpose.msra.mxu0 0.0
        %3270 = vmatprep.subr.mxu0 0.0
        %3271 = vmatpush2.xpose.msra.mxu0 0.0
        %3272 = vmatprep.subr.mxu0 0.0
        %3273 = vmatpush2.xpose.msra.mxu0 0.0
        %3274 = vmatprep.mubr.f32.mxu0 0.0
        %3275 = vmatmul.mubr.f32.gmra.mxu0 %v3206
        %v3276 = vpop.f32.mrf.mxu0
        %v3277 = vadd.f32 %v585, %v3276
        %v3278 = vpop.f32.mrf.mxu0
        %3279 = vdwg.mxu0
        %v3280 = vsel %vm587, %v3277, -inf
        %3281 = vmax.xlane.f32.xlu0 %v3280
        %v3282 = vpop.xlane.xlu0 %3281
        %v3283 = vsub.f32 %v3277, %v3282
        %v3284 = vmul.f32 %v3283, 1.442695
        %v3285 = vpow.pop %v3284
        %v3286 = vsel %vm587, %v3285, 0.0
        %3287 = vadd.xlane.f32.xlu0 %v3286
        %v3288 = vpop.xlane.xlu0 %3287
        %v3289 = vrcp.pop %v3288
        %v3290 = vmul.f32 %v3285, %v3289
        %3292 = vrot.lane.b32.xlu0 %v3039, 120
        %v3293 = vpop.permute.xlu0 %3292
        %v3296 = vsel %vm587, %v3290, 0
        %3298 = vmatprep.subr.mxu0 0.0
        %3299 = vmatpush1.msra.mxu0 0.0
        %3300 = vmatprep.subr.mxu0 0.0
        %3301 = vmatpush1.msra.mxu0 0.0
        %3302 = vmatprep.subr.mxu0 0.0
        %3303 = vmatpush1.msra.mxu0 0.0
        %3304 = vmatprep.subr.mxu0 0.0
        %3305 = vmatpush1.msra.mxu0 0.0
        %3306 = vmatprep.subr.mxu0 0.0
        %3307 = vmatpush1.msra.mxu0 0.0
        %3308 = vmatprep.subr.mxu0 0.0
        %3309 = vmatpush1.msra.mxu0 0.0
        %3310 = vmatprep.subr.mxu0 0.0
        %3311 = vmatpush1.msra.mxu0 0.0
        %3312 = vmatprep.subr.mxu0 0.0
        %3313 = vmatpush1.msra.mxu0 0.0
        %3314 = vmatprep.subr.mxu0 0.0
        %3315 = vmatpush1.msra.mxu0 0.0
        %3316 = vmatprep.subr.mxu0 0.0
        %3317 = vmatpush1.msra.mxu0 0.0
        %3318 = vmatprep.subr.mxu0 0.0
        %3319 = vmatpush1.msra.mxu0 0.0
        %3320 = vmatprep.subr.mxu0 0.0
        %3321 = vmatpush1.msra.mxu0 0.0
        %3322 = vmatprep.subr.mxu0 0.0
        %3323 = vmatpush1.msra.mxu0 0.0
        %3324 = vmatprep.subr.mxu0 0.0
        %3325 = vmatpush1.msra.mxu0 0.0
        %3326 = vmatprep.subr.mxu0 0.0
        %3327 = vmatpush1.msra.mxu0 0.0
        %3328 = vmatprep.subr.mxu0 0.0
        %3329 = vmatpush1.msra.mxu0 %v3293
        %3330 = vmatprep.subr.mxu0 0.0
        %3331 = vmatpush2.msra.mxu0 0.0
        %3332 = vmatprep.subr.mxu0 0.0
        %3333 = vmatpush2.msra.mxu0 0.0
        %3334 = vmatprep.subr.mxu0 0.0
        %3335 = vmatpush2.msra.mxu0 0.0
        %3336 = vmatprep.subr.mxu0 0.0
        %3337 = vmatpush2.msra.mxu0 0.0
        %3338 = vmatprep.subr.mxu0 0.0
        %3339 = vmatpush2.msra.mxu0 0.0
        %3340 = vmatprep.subr.mxu0 0.0
        %3341 = vmatpush2.msra.mxu0 0.0
        %3342 = vmatprep.subr.mxu0 0.0
        %3343 = vmatpush2.msra.mxu0 0.0
        %3344 = vmatprep.subr.mxu0 0.0
        %3345 = vmatpush2.msra.mxu0 0.0
        %3346 = vmatprep.subr.mxu0 0.0
        %3347 = vmatpush2.msra.mxu0 0.0
        %3348 = vmatprep.subr.mxu0 0.0
        %3349 = vmatpush2.msra.mxu0 0.0
        %3350 = vmatprep.subr.mxu0 0.0
        %3351 = vmatpush2.msra.mxu0 0.0
        %3352 = vmatprep.subr.mxu0 0.0
        %3353 = vmatpush2.msra.mxu0 0.0
        %3354 = vmatprep.subr.mxu0 0.0
        %3355 = vmatpush2.msra.mxu0 0.0
        %3356 = vmatprep.subr.mxu0 0.0
        %3357 = vmatpush2.msra.mxu0 0.0
        %3358 = vmatprep.subr.mxu0 0.0
        %3359 = vmatpush2.msra.mxu0 0.0
        %3360 = vmatprep.subr.mxu0 0.0
        %3361 = vmatpush2.msra.mxu0 0.0
        %3362 = vmatprep.mubr.f32.mxu0 0.0
        %3363 = vmatmul.mubr.f32.gmra.mxu0 %v3296
        %v3364 = vpop.f32.mrf.mxu0
        %v3365 = vadd.f32 0.0, %v3364
        %v3366 = vpop.f32.mrf.mxu0
        %3367 = vdwg.mxu0
        %3368 = vrot.lane.b32.xlu0 %v2891, 112
        %v3369 = vpop.permute.xlu0 %3368
        %3370 = vrot.lane.b32.xlu0 %v2965, 112
        %v3371 = vpop.permute.xlu0 %3370
        %v3372 = vsel %vm587, %v3369, 0
        %v3374 = vsel %vm587, %v3371, 0
        %3376 = vmatprep.subr.mxu0 0.0
        %3377 = vmatpush1.xpose.msra.mxu0 0.0
        %3378 = vmatprep.subr.mxu0 0.0
        %3379 = vmatpush1.xpose.msra.mxu0 0.0
        %3380 = vmatprep.subr.mxu0 0.0
        %3381 = vmatpush1.xpose.msra.mxu0 0.0
        %3382 = vmatprep.subr.mxu0 0.0
        %3383 = vmatpush1.xpose.msra.mxu0 0.0
        %3384 = vmatprep.subr.mxu0 0.0
        %3385 = vmatpush1.xpose.msra.mxu0 0.0
        %3386 = vmatprep.subr.mxu0 0.0
        %3387 = vmatpush1.xpose.msra.mxu0 0.0
        %3388 = vmatprep.subr.mxu0 0.0
        %3389 = vmatpush1.xpose.msra.mxu0 0.0
        %3390 = vmatprep.subr.mxu0 0.0
        %3391 = vmatpush1.xpose.msra.mxu0 0.0
        %3392 = vmatprep.subr.mxu0 0.0
        %3393 = vmatpush1.xpose.msra.mxu0 0.0
        %3394 = vmatprep.subr.mxu0 0.0
        %3395 = vmatpush1.xpose.msra.mxu0 0.0
        %3396 = vmatprep.subr.mxu0 0.0
        %3397 = vmatpush1.xpose.msra.mxu0 0.0
        %3398 = vmatprep.subr.mxu0 0.0
        %3399 = vmatpush1.xpose.msra.mxu0 0.0
        %3400 = vmatprep.subr.mxu0 0.0
        %3401 = vmatpush1.xpose.msra.mxu0 0.0
        %3402 = vmatprep.subr.mxu0 0.0
        %3403 = vmatpush1.xpose.msra.mxu0 0.0
        %3404 = vmatprep.subr.mxu0 0.0
        %3405 = vmatpush1.xpose.msra.mxu0 0.0
        %3406 = vmatprep.subr.mxu0 0.0
        %3407 = vmatpush1.xpose.msra.mxu0 %v3374
        %3408 = vmatprep.subr.mxu0 0.0
        %3409 = vmatpush2.xpose.msra.mxu0 0.0
        %3410 = vmatprep.subr.mxu0 0.0
        %3411 = vmatpush2.xpose.msra.mxu0 0.0
        %3412 = vmatprep.subr.mxu0 0.0
        %3413 = vmatpush2.xpose.msra.mxu0 0.0
        %3414 = vmatprep.subr.mxu0 0.0
        %3415 = vmatpush2.xpose.msra.mxu0 0.0
        %3416 = vmatprep.subr.mxu0 0.0
        %3417 = vmatpush2.xpose.msra.mxu0 0.0
        %3418 = vmatprep.subr.mxu0 0.0
        %3419 = vmatpush2.xpose.msra.mxu0 0.0
        %3420 = vmatprep.subr.mxu0 0.0
        %3421 = vmatpush2.xpose.msra.mxu0 0.0
        %3422 = vmatprep.subr.mxu0 0.0
        %3423 = vmatpush2.xpose.msra.mxu0 0.0
        %3424 = vmatprep.subr.mxu0 0.0
        %3425 = vmatpush2.xpose.msra.mxu0 0.0
        %3426 = vmatprep.subr.mxu0 0.0
        %3427 = vmatpush2.xpose.msra.mxu0 0.0
        %3428 = vmatprep.subr.mxu0 0.0
        %3429 = vmatpush2.xpose.msra.mxu0 0.0
        %3430 = vmatprep.subr.mxu0 0.0
        %3431 = vmatpush2.xpose.msra.mxu0 0.0
        %3432 = vmatprep.subr.mxu0 0.0
        %3433 = vmatpush2.xpose.msra.mxu0 0.0
        %3434 = vmatprep.subr.mxu0 0.0
        %3435 = vmatpush2.xpose.msra.mxu0 0.0
        %3436 = vmatprep.subr.mxu0 0.0
        %3437 = vmatpush2.xpose.msra.mxu0 0.0
        %3438 = vmatprep.subr.mxu0 0.0
        %3439 = vmatpush2.xpose.msra.mxu0 0.0
        %3440 = vmatprep.mubr.f32.mxu0 0.0
        %3441 = vmatmul.mubr.f32.gmra.mxu0 %v3372
        %v3442 = vpop.f32.mrf.mxu0
        %v3443 = vadd.f32 %v585, %v3442
        %v3444 = vpop.f32.mrf.mxu0
        %3445 = vdwg.mxu0
        %v3446 = vsel %vm587, %v3443, -inf
        %3447 = vmax.xlane.f32.xlu0 %v3446
        %v3448 = vpop.xlane.xlu0 %3447
        %v3449 = vsub.f32 %v3443, %v3448
        %v3450 = vmul.f32 %v3449, 1.442695
        %v3451 = vpow.pop %v3450
        %v3452 = vsel %vm587, %v3451, 0.0
        %3453 = vadd.xlane.f32.xlu0 %v3452
        %v3454 = vpop.xlane.xlu0 %3453
        %v3455 = vrcp.pop %v3454
        %v3456 = vmul.f32 %v3451, %v3455
        %3457 = vrot.lane.b32.xlu0 %v3039, 112
        %v3458 = vpop.permute.xlu0 %3457
        %v3461 = vsel %vm587, %v3456, 0
        %3463 = vmatprep.subr.mxu0 0.0
        %3464 = vmatpush1.msra.mxu0 0.0
        %3465 = vmatprep.subr.mxu0 0.0
        %3466 = vmatpush1.msra.mxu0 0.0
        %3467 = vmatprep.subr.mxu0 0.0
        %3468 = vmatpush1.msra.mxu0 0.0
        %3469 = vmatprep.subr.mxu0 0.0
        %3470 = vmatpush1.msra.mxu0 0.0
        %3471 = vmatprep.subr.mxu0 0.0
        %3472 = vmatpush1.msra.mxu0 0.0
        %3473 = vmatprep.subr.mxu0 0.0
        %3474 = vmatpush1.msra.mxu0 0.0
        %3475 = vmatprep.subr.mxu0 0.0
        %3476 = vmatpush1.msra.mxu0 0.0
        %3477 = vmatprep.subr.mxu0 0.0
        %3478 = vmatpush1.msra.mxu0 0.0
        %3479 = vmatprep.subr.mxu0 0.0
        %3480 = vmatpush1.msra.mxu0 0.0
        %3481 = vmatprep.subr.mxu0 0.0
        %3482 = vmatpush1.msra.mxu0 0.0
        %3483 = vmatprep.subr.mxu0 0.0
        %3484 = vmatpush1.msra.mxu0 0.0
        %3485 = vmatprep.subr.mxu0 0.0
        %3486 = vmatpush1.msra.mxu0 0.0
        %3487 = vmatprep.subr.mxu0 0.0
        %3488 = vmatpush1.msra.mxu0 0.0
        %3489 = vmatprep.subr.mxu0 0.0
        %3490 = vmatpush1.msra.mxu0 0.0
        %3491 = vmatprep.subr.mxu0 0.0
        %3492 = vmatpush1.msra.mxu0 0.0
        %3493 = vmatprep.subr.mxu0 0.0
        %3494 = vmatpush1.msra.mxu0 %v3458
        %3495 = vmatprep.subr.mxu0 0.0
        %3496 = vmatpush2.msra.mxu0 0.0
        %3497 = vmatprep.subr.mxu0 0.0
        %3498 = vmatpush2.msra.mxu0 0.0
        %3499 = vmatprep.subr.mxu0 0.0
        %3500 = vmatpush2.msra.mxu0 0.0
        %3501 = vmatprep.subr.mxu0 0.0
        %3502 = vmatpush2.msra.mxu0 0.0
        %3503 = vmatprep.subr.mxu0 0.0
        %3504 = vmatpush2.msra.mxu0 0.0
        %3505 = vmatprep.subr.mxu0 0.0
        %3506 = vmatpush2.msra.mxu0 0.0
        %3507 = vmatprep.subr.mxu0 0.0
        %3508 = vmatpush2.msra.mxu0 0.0
        %3509 = vmatprep.subr.mxu0 0.0
        %3510 = vmatpush2.msra.mxu0 0.0
        %3511 = vmatprep.subr.mxu0 0.0
        %3512 = vmatpush2.msra.mxu0 0.0
        %3513 = vmatprep.subr.mxu0 0.0
        %3514 = vmatpush2.msra.mxu0 0.0
        %3515 = vmatprep.subr.mxu0 0.0
        %3516 = vmatpush2.msra.mxu0 0.0
        %3517 = vmatprep.subr.mxu0 0.0
        %3518 = vmatpush2.msra.mxu0 0.0
        %3519 = vmatprep.subr.mxu0 0.0
        %3520 = vmatpush2.msra.mxu0 0.0
        %3521 = vmatprep.subr.mxu0 0.0
        %3522 = vmatpush2.msra.mxu0 0.0
        %3523 = vmatprep.subr.mxu0 0.0
        %3524 = vmatpush2.msra.mxu0 0.0
        %3525 = vmatprep.subr.mxu0 0.0
        %3526 = vmatpush2.msra.mxu0 0.0
        %3527 = vmatprep.mubr.f32.mxu0 0.0
        %3528 = vmatmul.mubr.f32.gmra.mxu0 %v3461
        %v3529 = vpop.f32.mrf.mxu0
        %v3530 = vadd.f32 0.0, %v3529
        %v3531 = vpop.f32.mrf.mxu0
        %3532 = vdwg.mxu0
        %3533 = vrot.lane.b32.xlu0 %v2891, 104
        %v3534 = vpop.permute.xlu0 %3533
        %3535 = vrot.lane.b32.xlu0 %v2965, 104
        %v3536 = vpop.permute.xlu0 %3535
        %v3537 = vsel %vm587, %v3534, 0
        %v3539 = vsel %vm587, %v3536, 0
        %3541 = vmatprep.subr.mxu0 0.0
        %3542 = vmatpush1.xpose.msra.mxu0 0.0
        %3543 = vmatprep.subr.mxu0 0.0
        %3544 = vmatpush1.xpose.msra.mxu0 0.0
        %3545 = vmatprep.subr.mxu0 0.0
        %3546 = vmatpush1.xpose.msra.mxu0 0.0
        %3547 = vmatprep.subr.mxu0 0.0
        %3548 = vmatpush1.xpose.msra.mxu0 0.0
        %3549 = vmatprep.subr.mxu0 0.0
        %3550 = vmatpush1.xpose.msra.mxu0 0.0
        %3551 = vmatprep.subr.mxu0 0.0
        %3552 = vmatpush1.xpose.msra.mxu0 0.0
        %3553 = vmatprep.subr.mxu0 0.0
        %3554 = vmatpush1.xpose.msra.mxu0 0.0
        %3555 = vmatprep.subr.mxu0 0.0
        %3556 = vmatpush1.xpose.msra.mxu0 0.0
        %3557 = vmatprep.subr.mxu0 0.0
        %3558 = vmatpush1.xpose.msra.mxu0 0.0
        %3559 = vmatprep.subr.mxu0 0.0
        %3560 = vmatpush1.xpose.msra.mxu0 0.0
        %3561 = vmatprep.subr.mxu0 0.0
        %3562 = vmatpush1.xpose.msra.mxu0 0.0
        %3563 = vmatprep.subr.mxu0 0.0
        %3564 = vmatpush1.xpose.msra.mxu0 0.0
        %3565 = vmatprep.subr.mxu0 0.0
        %3566 = vmatpush1.xpose.msra.mxu0 0.0
        %3567 = vmatprep.subr.mxu0 0.0
        %3568 = vmatpush1.xpose.msra.mxu0 0.0
        %3569 = vmatprep.subr.mxu0 0.0
        %3570 = vmatpush1.xpose.msra.mxu0 0.0
        %3571 = vmatprep.subr.mxu0 0.0
        %3572 = vmatpush1.xpose.msra.mxu0 %v3539
        %3573 = vmatprep.subr.mxu0 0.0
        %3574 = vmatpush2.xpose.msra.mxu0 0.0
        %3575 = vmatprep.subr.mxu0 0.0
        %3576 = vmatpush2.xpose.msra.mxu0 0.0
        %3577 = vmatprep.subr.mxu0 0.0
        %3578 = vmatpush2.xpose.msra.mxu0 0.0
        %3579 = vmatprep.subr.mxu0 0.0
        %3580 = vmatpush2.xpose.msra.mxu0 0.0
        %3581 = vmatprep.subr.mxu0 0.0
        %3582 = vmatpush2.xpose.msra.mxu0 0.0
        %3583 = vmatprep.subr.mxu0 0.0
        %3584 = vmatpush2.xpose.msra.mxu0 0.0
        %3585 = vmatprep.subr.mxu0 0.0
        %3586 = vmatpush2.xpose.msra.mxu0 0.0
        %3587 = vmatprep.subr.mxu0 0.0
        %3588 = vmatpush2.xpose.msra.mxu0 0.0
        %3589 = vmatprep.subr.mxu0 0.0
        %3590 = vmatpush2.xpose.msra.mxu0 0.0
        %3591 = vmatprep.subr.mxu0 0.0
        %3592 = vmatpush2.xpose.msra.mxu0 0.0
        %3593 = vmatprep.subr.mxu0 0.0
        %3594 = vmatpush2.xpose.msra.mxu0 0.0
        %3595 = vmatprep.subr.mxu0 0.0
        %3596 = vmatpush2.xpose.msra.mxu0 0.0
        %3597 = vmatprep.subr.mxu0 0.0
        %3598 = vmatpush2.xpose.msra.mxu0 0.0
        %3599 = vmatprep.subr.mxu0 0.0
        %3600 = vmatpush2.xpose.msra.mxu0 0.0
        %3601 = vmatprep.subr.mxu0 0.0
        %3602 = vmatpush2.xpose.msra.mxu0 0.0
        %3603 = vmatprep.subr.mxu0 0.0
        %3604 = vmatpush2.xpose.msra.mxu0 0.0
        %3605 = vmatprep.mubr.f32.mxu0 0.0
        %3606 = vmatmul.mubr.f32.gmra.mxu0 %v3537
        %v3607 = vpop.f32.mrf.mxu0
        %v3608 = vadd.f32 %v585, %v3607
        %v3609 = vpop.f32.mrf.mxu0
        %3610 = vdwg.mxu0
        %v3611 = vsel %vm587, %v3608, -inf
        %3612 = vmax.xlane.f32.xlu0 %v3611
        %v3613 = vpop.xlane.xlu0 %3612
        %v3614 = vsub.f32 %v3608, %v3613
        %v3615 = vmul.f32 %v3614, 1.442695
        %v3616 = vpow.pop %v3615
        %v3617 = vsel %vm587, %v3616, 0.0
        %3618 = vadd.xlane.f32.xlu0 %v3617
        %v3619 = vpop.xlane.xlu0 %3618
        %v3620 = vrcp.pop %v3619
        %v3621 = vmul.f32 %v3616, %v3620
        %3622 = vrot.lane.b32.xlu0 %v3039, 104
        %v3623 = vpop.permute.xlu0 %3622
        %v3626 = vsel %vm587, %v3621, 0
        %3628 = vmatprep.subr.mxu0 0.0
        %3629 = vmatpush1.msra.mxu0 0.0
        %3630 = vmatprep.subr.mxu0 0.0
        %3631 = vmatpush1.msra.mxu0 0.0
        %3632 = vmatprep.subr.mxu0 0.0
        %3633 = vmatpush1.msra.mxu0 0.0
        %3634 = vmatprep.subr.mxu0 0.0
        %3635 = vmatpush1.msra.mxu0 0.0
        %3636 = vmatprep.subr.mxu0 0.0
        %3637 = vmatpush1.msra.mxu0 0.0
        %3638 = vmatprep.subr.mxu0 0.0
        %3639 = vmatpush1.msra.mxu0 0.0
        %3640 = vmatprep.subr.mxu0 0.0
        %3641 = vmatpush1.msra.mxu0 0.0
        %3642 = vmatprep.subr.mxu0 0.0
        %3643 = vmatpush1.msra.mxu0 0.0
        %3644 = vmatprep.subr.mxu0 0.0
        %3645 = vmatpush1.msra.mxu0 0.0
        %3646 = vmatprep.subr.mxu0 0.0
        %3647 = vmatpush1.msra.mxu0 0.0
        %3648 = vmatprep.subr.mxu0 0.0
        %3649 = vmatpush1.msra.mxu0 0.0
        %3650 = vmatprep.subr.mxu0 0.0
        %3651 = vmatpush1.msra.mxu0 0.0
        %3652 = vmatprep.subr.mxu0 0.0
        %3653 = vmatpush1.msra.mxu0 0.0
        %3654 = vmatprep.subr.mxu0 0.0
        %3655 = vmatpush1.msra.mxu0 0.0
        %3656 = vmatprep.subr.mxu0 0.0
        %3657 = vmatpush1.msra.mxu0 0.0
        %3658 = vmatprep.subr.mxu0 0.0
        %3659 = vmatpush1.msra.mxu0 %v3623
        %3660 = vmatprep.subr.mxu0 0.0
        %3661 = vmatpush2.msra.mxu0 0.0
        %3662 = vmatprep.subr.mxu0 0.0
        %3663 = vmatpush2.msra.mxu0 0.0
        %3664 = vmatprep.subr.mxu0 0.0
        %3665 = vmatpush2.msra.mxu0 0.0
        %3666 = vmatprep.subr.mxu0 0.0
        %3667 = vmatpush2.msra.mxu0 0.0
        %3668 = vmatprep.subr.mxu0 0.0
        %3669 = vmatpush2.msra.mxu0 0.0
        %3670 = vmatprep.subr.mxu0 0.0
        %3671 = vmatpush2.msra.mxu0 0.0
        %3672 = vmatprep.subr.mxu0 0.0
        %3673 = vmatpush2.msra.mxu0 0.0
        %3674 = vmatprep.subr.mxu0 0.0
        %3675 = vmatpush2.msra.mxu0 0.0
        %3676 = vmatprep.subr.mxu0 0.0
        %3677 = vmatpush2.msra.mxu0 0.0
        %3678 = vmatprep.subr.mxu0 0.0
        %3679 = vmatpush2.msra.mxu0 0.0
        %3680 = vmatprep.subr.mxu0 0.0
        %3681 = vmatpush2.msra.mxu0 0.0
        %3682 = vmatprep.subr.mxu0 0.0
        %3683 = vmatpush2.msra.mxu0 0.0
        %3684 = vmatprep.subr.mxu0 0.0
        %3685 = vmatpush2.msra.mxu0 0.0
        %3686 = vmatprep.subr.mxu0 0.0
        %3687 = vmatpush2.msra.mxu0 0.0
        %3688 = vmatprep.subr.mxu0 0.0
        %3689 = vmatpush2.msra.mxu0 0.0
        %3690 = vmatprep.subr.mxu0 0.0
        %3691 = vmatpush2.msra.mxu0 0.0
        %3692 = vmatprep.mubr.f32.mxu0 0.0
        %3693 = vmatmul.mubr.f32.gmra.mxu0 %v3626
        %v3694 = vpop.f32.mrf.mxu0
        %v3695 = vadd.f32 0.0, %v3694
        %v3696 = vpop.f32.mrf.mxu0
        %3697 = vdwg.mxu0
        %3699 = vrot.lane.b32.xlu0 %v3365, 8
        %v3700 = vpop.permute.xlu0 %3699
        %3703 = vrot.lane.b32.xlu0 %v3530, 16
        %v3704 = vpop.permute.xlu0 %3703
        %3707 = vrot.lane.b32.xlu0 %v3695, 24
        %v3708 = vpop.permute.xlu0 %3707
        %v3710 = vsel %vm587, %v3199, %v3700
        %v3711 = vsel %vm1257, %v3710, %v3704
        %v3712 = vsel %vm1259, %v3711, %v3708
        %v3713 = vlaneseq
        %v3714 = vshrl.u32 %v3713, 7
        %v3715 = vsub.s32 0, %v3714
        %v3716 = vrot.slane %v2816, %v3715
        %v3718 = vsel %vm359, %v3712, 0
        %3720 = vmatprep.subr.mxu0 0.0
        %3721 = vmatpush1.msra.mxu0 0.0
        %3722 = vmatprep.subr.mxu0 0.0
        %3723 = vmatpush1.msra.mxu0 0.0
        %3724 = vmatprep.subr.mxu0 0.0
        %3725 = vmatpush1.msra.mxu0 0.0
        %3726 = vmatprep.subr.mxu0 0.0
        %3727 = vmatpush1.msra.mxu0 0.0
        %3728 = vmatprep.subr.mxu0 0.0
        %3729 = vmatpush1.msra.mxu0 0.0
        %3730 = vmatprep.subr.mxu0 0.0
        %3731 = vmatpush1.msra.mxu0 0.0
        %3732 = vmatprep.subr.mxu0 0.0
        %3733 = vmatpush1.msra.mxu0 0.0
        %3734 = vmatprep.subr.mxu0 0.0
        %3735 = vmatpush1.msra.mxu0 0.0
        %3736 = vmatprep.subr.mxu0 0.0
        %3737 = vmatpush1.msra.mxu0 0.0
        %3738 = vmatprep.subr.mxu0 0.0
        %3739 = vmatpush1.msra.mxu0 0.0
        %3740 = vmatprep.subr.mxu0 0.0
        %3741 = vmatpush1.msra.mxu0 0.0
        %3742 = vmatprep.subr.mxu0 0.0
        %3743 = vmatpush1.msra.mxu0 0.0
        %3744 = vmatprep.subr.mxu0 0.0
        %3745 = vmatpush1.msra.mxu0 %v2812
        %3746 = vmatprep.subr.mxu0 0.0
        %3747 = vmatpush1.msra.mxu0 %v2811
        %3748 = vmatprep.subr.mxu0 0.0
        %3749 = vmatpush1.msra.mxu0 %v2810
        %3750 = vmatprep.subr.mxu0 0.0
        %3751 = vmatpush1.msra.mxu0 %v2809
        %3752 = vmatprep.subr.mxu0 0.0
        %3753 = vmatpush2.msra.mxu0 0.0
        %3754 = vmatprep.subr.mxu0 0.0
        %3755 = vmatpush2.msra.mxu0 0.0
        %3756 = vmatprep.subr.mxu0 0.0
        %3757 = vmatpush2.msra.mxu0 0.0
        %3758 = vmatprep.subr.mxu0 0.0
        %3759 = vmatpush2.msra.mxu0 0.0
        %3760 = vmatprep.subr.mxu0 0.0
        %3761 = vmatpush2.msra.mxu0 0.0
        %3762 = vmatprep.subr.mxu0 0.0
        %3763 = vmatpush2.msra.mxu0 0.0
        %3764 = vmatprep.subr.mxu0 0.0
        %3765 = vmatpush2.msra.mxu0 0.0
        %3766 = vmatprep.subr.mxu0 0.0
        %3767 = vmatpush2.msra.mxu0 0.0
        %3768 = vmatprep.subr.mxu0 0.0
        %3769 = vmatpush2.msra.mxu0 0.0
        %3770 = vmatprep.subr.mxu0 0.0
        %3771 = vmatpush2.msra.mxu0 0.0
        %3772 = vmatprep.subr.mxu0 0.0
        %3773 = vmatpush2.msra.mxu0 0.0
        %3774 = vmatprep.subr.mxu0 0.0
        %3775 = vmatpush2.msra.mxu0 0.0
        %3776 = vmatprep.subr.mxu0 0.0
        %3777 = vmatpush2.msra.mxu0 0.0
        %3778 = vmatprep.subr.mxu0 0.0
        %3779 = vmatpush2.msra.mxu0 0.0
        %3780 = vmatprep.subr.mxu0 0.0
        %3781 = vmatpush2.msra.mxu0 0.0
        %3782 = vmatprep.subr.mxu0 0.0
        %3783 = vmatpush2.msra.mxu0 0.0
        %3784 = vmatprep.mubr.f32.mxu0 0.0
        %3785 = vmatmul.mubr.f32.gmra.mxu0 %v3718
        %v3786 = vpop.f32.mrf.mxu0
        %v3787 = vadd.f32 %v3716, %v3786
        %v3788 = vpop.f32.mrf.mxu0
        %3789 = vdwg.mxu0
        %v3790 = vadd.f32 %v2792, %v3787
        %v3791 = vld [vmem:[%s6 + $0x16] sm:$0x1]
        %v3792 = vld [vmem:[%s6 + $0x17] sm:$0x1]
        %v3793 = vsel %vm359, %v3790, 0.0
        %3794 = vadd.xlane.f32.xlu0 %v3793
        %v3795 = vpop.xlane.xlu0 %3794
        %v3796 = vmul.f32 %v3795, %v1344
        %v3797 = vsub.f32 %v3790, %v3796
        %v3798 = vmul.f32 %v3797, %v3797
        %v3799 = vsel %vm359, %v3798, 0.0
        %3800 = vadd.xlane.f32.xlu0 %v3799
        %v3801 = vpop.xlane.xlu0 %3800
        %v3802 = vmul.f32 %v3801, %v1344
        %v3803 = vadd.f32 %v3802, 1e-05
        %v3804 = vrsqrt.pop %v3803
        %v3805 = vmul.f32 %v3797, %v3804
        %v3806 = vlaneseq
        %v3807 = vshrl.u32 %v3806, 7
        %v3808 = vsub.s32 0, %v3807
        %v3809 = vrot.slane %v3791, %v3808
        %v3810 = vmul.f32 %v3805, %v3809
        %v3811 = vlaneseq
        %v3812 = vshrl.u32 %v3811, 7
        %v3813 = vsub.s32 0, %v3812
        %v3814 = vrot.slane %v3792, %v3813
        %v3815 = vadd.f32 %v3810, %v3814
        %s3816 = scalar_lea.vmem [#allocation2], 384
        %v3817 = vld [vmem:[%s3816] sm:$0xff]
        %v3818 = vld [vmem:[%s3816 + $0x8] sm:$0xff]
        %v3819 = vld [vmem:[%s3816 + $0x10] sm:$0xff]
        %v3820 = vld [vmem:[%s3816 + $0x18] sm:$0xff]
        %s3821 = scalar_lea.vmem [#allocation2], 416
        %v3822 = vld [vmem:[%s3821] sm:$0xff]
        %v3823 = vld [vmem:[%s3821 + $0x8] sm:$0xff]
        %v3824 = vld [vmem:[%s3821 + $0x10] sm:$0xff]
        %v3825 = vld [vmem:[%s3821 + $0x18] sm:$0xff]
        %s3826 = scalar_lea.vmem [#allocation2], 448
        %v3827 = vld [vmem:[%s3826] sm:$0xff]
        %v3828 = vld [vmem:[%s3826 + $0x8] sm:$0xff]
        %v3829 = vld [vmem:[%s3826 + $0x10] sm:$0xff]
        %v3830 = vld [vmem:[%s3826 + $0x18] sm:$0xff]
        %s3831 = scalar_lea.vmem [#allocation2], 480
        %v3832 = vld [vmem:[%s3831] sm:$0xff]
        %v3833 = vld [vmem:[%s3831 + $0x8] sm:$0xff]
        %v3834 = vld [vmem:[%s3831 + $0x10] sm:$0xff]
        %v3835 = vld [vmem:[%s3831 + $0x18] sm:$0xff]
        %v3836 = vld [vmem:[%s6 + $0x18] sm:$0x1]
        %v3837 = vld [vmem:[%s6 + $0x19] sm:$0x1]
        %v3838 = vld [vmem:[%s6 + $0x1a] sm:$0x1]
        %v3839 = vld [vmem:[%s6 + $0x1b] sm:$0x1]
        %v3840 = vlaneseq
        %v3841 = vshrl.u32 %v3840, 7
        %v3842 = vsub.s32 0, %v3841
        %v3843 = vrot.slane %v3836, %v3842
        %v3845 = vsel %vm359, %v3815, 0
        %3847 = vmatprep.subr.mxu0 0.0
        %3848 = vmatpush1.msra.mxu0 0.0
        %3849 = vmatprep.subr.mxu0 0.0
        %3850 = vmatpush1.msra.mxu0 0.0
        %3851 = vmatprep.subr.mxu0 0.0
        %3852 = vmatpush1.msra.mxu0 0.0
        %3853 = vmatprep.subr.mxu0 0.0
        %3854 = vmatpush1.msra.mxu0 0.0
        %3855 = vmatprep.subr.mxu0 0.0
        %3856 = vmatpush1.msra.mxu0 0.0
        %3857 = vmatprep.subr.mxu0 0.0
        %3858 = vmatpush1.msra.mxu0 0.0
        %3859 = vmatprep.subr.mxu0 0.0
        %3860 = vmatpush1.msra.mxu0 0.0
        %3861 = vmatprep.subr.mxu0 0.0
        %3862 = vmatpush1.msra.mxu0 0.0
        %3863 = vmatprep.subr.mxu0 0.0
        %3864 = vmatpush1.msra.mxu0 0.0
        %3865 = vmatprep.subr.mxu0 0.0
        %3866 = vmatpush1.msra.mxu0 0.0
        %3867 = vmatprep.subr.mxu0 0.0
        %3868 = vmatpush1.msra.mxu0 0.0
        %3869 = vmatprep.subr.mxu0 0.0
        %3870 = vmatpush1.msra.mxu0 0.0
        %3871 = vmatprep.subr.mxu0 0.0
        %3872 = vmatpush1.msra.mxu0 %v3820
        %3873 = vmatprep.subr.mxu0 0.0
        %3874 = vmatpush1.msra.mxu0 %v3819
        %3875 = vmatprep.subr.mxu0 0.0
        %3876 = vmatpush1.msra.mxu0 %v3818
        %3877 = vmatprep.subr.mxu0 0.0
        %3878 = vmatpush1.msra.mxu0 %v3817
        %3879 = vmatprep.subr.mxu0 0.0
        %3880 = vmatpush2.msra.mxu0 0.0
        %3881 = vmatprep.subr.mxu0 0.0
        %3882 = vmatpush2.msra.mxu0 0.0
        %3883 = vmatprep.subr.mxu0 0.0
        %3884 = vmatpush2.msra.mxu0 0.0
        %3885 = vmatprep.subr.mxu0 0.0
        %3886 = vmatpush2.msra.mxu0 0.0
        %3887 = vmatprep.subr.mxu0 0.0
        %3888 = vmatpush2.msra.mxu0 0.0
        %3889 = vmatprep.subr.mxu0 0.0
        %3890 = vmatpush2.msra.mxu0 0.0
        %3891 = vmatprep.subr.mxu0 0.0
        %3892 = vmatpush2.msra.mxu0 0.0
        %3893 = vmatprep.subr.mxu0 0.0
        %3894 = vmatpush2.msra.mxu0 0.0
        %3895 = vmatprep.subr.mxu0 0.0
        %3896 = vmatpush2.msra.mxu0 0.0
        %3897 = vmatprep.subr.mxu0 0.0
        %3898 = vmatpush2.msra.mxu0 0.0
        %3899 = vmatprep.subr.mxu0 0.0
        %3900 = vmatpush2.msra.mxu0 0.0
        %3901 = vmatprep.subr.mxu0 0.0
        %3902 = vmatpush2.msra.mxu0 0.0
        %3903 = vmatprep.subr.mxu0 0.0
        %3904 = vmatpush2.msra.mxu0 0.0
        %3905 = vmatprep.subr.mxu0 0.0
        %3906 = vmatpush2.msra.mxu0 0.0
        %3907 = vmatprep.subr.mxu0 0.0
        %3908 = vmatpush2.msra.mxu0 0.0
        %3909 = vmatprep.subr.mxu0 0.0
        %3910 = vmatpush2.msra.mxu0 0.0
        %3911 = vmatprep.mubr.f32.mxu0 0.0
        %3912 = vmatmul.mubr.f32.gmra.mxu0 %v3845
        %v3913 = vpop.f32.mrf.mxu0
        %v3914 = vadd.f32 %v3843, %v3913
        %v3915 = vpop.f32.mrf.mxu0
        %3916 = vdwg.mxu0
        %v3917 = vlaneseq
        %v3918 = vshrl.u32 %v3917, 7
        %v3919 = vsub.s32 0, %v3918
        %v3920 = vrot.slane %v3837, %v3919
        %v3922 = vsel %vm359, %v2791, 0
        %3924 = vmatprep.subr.mxu0 0.0
        %3925 = vmatpush1.msra.mxu0 0.0
        %3926 = vmatprep.subr.mxu0 0.0
        %3927 = vmatpush1.msra.mxu0 0.0
        %3928 = vmatprep.subr.mxu0 0.0
        %3929 = vmatpush1.msra.mxu0 0.0
        %3930 = vmatprep.subr.mxu0 0.0
        %3931 = vmatpush1.msra.mxu0 0.0
        %3932 = vmatprep.subr.mxu0 0.0
        %3933 = vmatpush1.msra.mxu0 0.0
        %3934 = vmatprep.subr.mxu0 0.0
        %3935 = vmatpush1.msra.mxu0 0.0
        %3936 = vmatprep.subr.mxu0 0.0
        %3937 = vmatpush1.msra.mxu0 0.0
        %3938 = vmatprep.subr.mxu0 0.0
        %3939 = vmatpush1.msra.mxu0 0.0
        %3940 = vmatprep.subr.mxu0 0.0
        %3941 = vmatpush1.msra.mxu0 0.0
        %3942 = vmatprep.subr.mxu0 0.0
        %3943 = vmatpush1.msra.mxu0 0.0
        %3944 = vmatprep.subr.mxu0 0.0
        %3945 = vmatpush1.msra.mxu0 0.0
        %3946 = vmatprep.subr.mxu0 0.0
        %3947 = vmatpush1.msra.mxu0 0.0
        %3948 = vmatprep.subr.mxu0 0.0
        %3949 = vmatpush1.msra.mxu0 %v3825
        %3950 = vmatprep.subr.mxu0 0.0
        %3951 = vmatpush1.msra.mxu0 %v3824
        %3952 = vmatprep.subr.mxu0 0.0
        %3953 = vmatpush1.msra.mxu0 %v3823
        %3954 = vmatprep.subr.mxu0 0.0
        %3955 = vmatpush1.msra.mxu0 %v3822
        %3956 = vmatprep.subr.mxu0 0.0
        %3957 = vmatpush2.msra.mxu0 0.0
        %3958 = vmatprep.subr.mxu0 0.0
        %3959 = vmatpush2.msra.mxu0 0.0
        %3960 = vmatprep.subr.mxu0 0.0
        %3961 = vmatpush2.msra.mxu0 0.0
        %3962 = vmatprep.subr.mxu0 0.0
        %3963 = vmatpush2.msra.mxu0 0.0
        %3964 = vmatprep.subr.mxu0 0.0
        %3965 = vmatpush2.msra.mxu0 0.0
        %3966 = vmatprep.subr.mxu0 0.0
        %3967 = vmatpush2.msra.mxu0 0.0
        %3968 = vmatprep.subr.mxu0 0.0
        %3969 = vmatpush2.msra.mxu0 0.0
        %3970 = vmatprep.subr.mxu0 0.0
        %3971 = vmatpush2.msra.mxu0 0.0
        %3972 = vmatprep.subr.mxu0 0.0
        %3973 = vmatpush2.msra.mxu0 0.0
        %3974 = vmatprep.subr.mxu0 0.0
        %3975 = vmatpush2.msra.mxu0 0.0
        %3976 = vmatprep.subr.mxu0 0.0
        %3977 = vmatpush2.msra.mxu0 0.0
        %3978 = vmatprep.subr.mxu0 0.0
        %3979 = vmatpush2.msra.mxu0 0.0
        %3980 = vmatprep.subr.mxu0 0.0
        %3981 = vmatpush2.msra.mxu0 0.0
        %3982 = vmatprep.subr.mxu0 0.0
        %3983 = vmatpush2.msra.mxu0 0.0
        %3984 = vmatprep.subr.mxu0 0.0
        %3985 = vmatpush2.msra.mxu0 0.0
        %3986 = vmatprep.subr.mxu0 0.0
        %3987 = vmatpush2.msra.mxu0 0.0
        %3988 = vmatprep.mubr.f32.mxu0 0.0
        %3989 = vmatmul.mubr.f32.gmra.mxu0 %v3922
        %v3990 = vpop.f32.mrf.mxu0
        %v3991 = vadd.f32 %v3920, %v3990
        %v3992 = vpop.f32.mrf.mxu0
        %3993 = vdwg.mxu0
        %v3994 = vlaneseq
        %v3995 = vshrl.u32 %v3994, 7
        %v3996 = vsub.s32 0, %v3995
        %v3997 = vrot.slane %v3838, %v3996
        %3998 = vmatprep.subr.mxu0 0.0
        %3999 = vmatpush1.msra.mxu0 0.0
        %4000 = vmatprep.subr.mxu0 0.0
        %4001 = vmatpush1.msra.mxu0 0.0
        %4002 = vmatprep.subr.mxu0 0.0
        %4003 = vmatpush1.msra.mxu0 0.0
        %4004 = vmatprep.subr.mxu0 0.0
        %4005 = vmatpush1.msra.mxu0 0.0
        %4006 = vmatprep.subr.mxu0 0.0
        %4007 = vmatpush1.msra.mxu0 0.0
        %4008 = vmatprep.subr.mxu0 0.0
        %4009 = vmatpush1.msra.mxu0 0.0
        %4010 = vmatprep.subr.mxu0 0.0
        %4011 = vmatpush1.msra.mxu0 0.0
        %4012 = vmatprep.subr.mxu0 0.0
        %4013 = vmatpush1.msra.mxu0 0.0
        %4014 = vmatprep.subr.mxu0 0.0
        %4015 = vmatpush1.msra.mxu0 0.0
        %4016 = vmatprep.subr.mxu0 0.0
        %4017 = vmatpush1.msra.mxu0 0.0
        %4018 = vmatprep.subr.mxu0 0.0
        %4019 = vmatpush1.msra.mxu0 0.0
        %4020 = vmatprep.subr.mxu0 0.0
        %4021 = vmatpush1.msra.mxu0 0.0
        %4022 = vmatprep.subr.mxu0 0.0
        %4023 = vmatpush1.msra.mxu0 %v3830
        %4024 = vmatprep.subr.mxu0 0.0
        %4025 = vmatpush1.msra.mxu0 %v3829
        %4026 = vmatprep.subr.mxu0 0.0
        %4027 = vmatpush1.msra.mxu0 %v3828
        %4028 = vmatprep.subr.mxu0 0.0
        %4029 = vmatpush1.msra.mxu0 %v3827
        %4030 = vmatprep.subr.mxu0 0.0
        %4031 = vmatpush2.msra.mxu0 0.0
        %4032 = vmatprep.subr.mxu0 0.0
        %4033 = vmatpush2.msra.mxu0 0.0
        %4034 = vmatprep.subr.mxu0 0.0
        %4035 = vmatpush2.msra.mxu0 0.0
        %4036 = vmatprep.subr.mxu0 0.0
        %4037 = vmatpush2.msra.mxu0 0.0
        %4038 = vmatprep.subr.mxu0 0.0
        %4039 = vmatpush2.msra.mxu0 0.0
        %4040 = vmatprep.subr.mxu0 0.0
        %4041 = vmatpush2.msra.mxu0 0.0
        %4042 = vmatprep.subr.mxu0 0.0
        %4043 = vmatpush2.msra.mxu0 0.0
        %4044 = vmatprep.subr.mxu0 0.0
        %4045 = vmatpush2.msra.mxu0 0.0
        %4046 = vmatprep.subr.mxu0 0.0
        %4047 = vmatpush2.msra.mxu0 0.0
        %4048 = vmatprep.subr.mxu0 0.0
        %4049 = vmatpush2.msra.mxu0 0.0
        %4050 = vmatprep.subr.mxu0 0.0
        %4051 = vmatpush2.msra.mxu0 0.0
        %4052 = vmatprep.subr.mxu0 0.0
        %4053 = vmatpush2.msra.mxu0 0.0
        %4054 = vmatprep.subr.mxu0 0.0
        %4055 = vmatpush2.msra.mxu0 0.0
        %4056 = vmatprep.subr.mxu0 0.0
        %4057 = vmatpush2.msra.mxu0 0.0
        %4058 = vmatprep.subr.mxu0 0.0
        %4059 = vmatpush2.msra.mxu0 0.0
        %4060 = vmatprep.subr.mxu0 0.0
        %4061 = vmatpush2.msra.mxu0 0.0
        %4062 = vmatprep.mubr.f32.mxu0 0.0
        %4063 = vmatmul.mubr.f32.gmra.mxu0 %v3922
        %v4064 = vpop.f32.mrf.mxu0
        %v4065 = vadd.f32 %v3997, %v4064
        %v4066 = vpop.f32.mrf.mxu0
        %4067 = vdwg.mxu0
        %v4069 = vsel %vm587, %v3914, 0
        %v4072 = vsel %vm587, %v3991, 0
        %4074 = vmatprep.subr.mxu0 0.0
        %4075 = vmatpush1.xpose.msra.mxu0 0.0
        %4076 = vmatprep.subr.mxu0 0.0
        %4077 = vmatpush1.xpose.msra.mxu0 0.0
        %4078 = vmatprep.subr.mxu0 0.0
        %4079 = vmatpush1.xpose.msra.mxu0 0.0
        %4080 = vmatprep.subr.mxu0 0.0
        %4081 = vmatpush1.xpose.msra.mxu0 0.0
        %4082 = vmatprep.subr.mxu0 0.0
        %4083 = vmatpush1.xpose.msra.mxu0 0.0
        %4084 = vmatprep.subr.mxu0 0.0
        %4085 = vmatpush1.xpose.msra.mxu0 0.0
        %4086 = vmatprep.subr.mxu0 0.0
        %4087 = vmatpush1.xpose.msra.mxu0 0.0
        %4088 = vmatprep.subr.mxu0 0.0
        %4089 = vmatpush1.xpose.msra.mxu0 0.0
        %4090 = vmatprep.subr.mxu0 0.0
        %4091 = vmatpush1.xpose.msra.mxu0 0.0
        %4092 = vmatprep.subr.mxu0 0.0
        %4093 = vmatpush1.xpose.msra.mxu0 0.0
        %4094 = vmatprep.subr.mxu0 0.0
        %4095 = vmatpush1.xpose.msra.mxu0 0.0
        %4096 = vmatprep.subr.mxu0 0.0
        %4097 = vmatpush1.xpose.msra.mxu0 0.0
        %4098 = vmatprep.subr.mxu0 0.0
        %4099 = vmatpush1.xpose.msra.mxu0 0.0
        %4100 = vmatprep.subr.mxu0 0.0
        %4101 = vmatpush1.xpose.msra.mxu0 0.0
        %4102 = vmatprep.subr.mxu0 0.0
        %4103 = vmatpush1.xpose.msra.mxu0 0.0
        %4104 = vmatprep.subr.mxu0 0.0
        %4105 = vmatpush1.xpose.msra.mxu0 %v4072
        %4106 = vmatprep.subr.mxu0 0.0
        %4107 = vmatpush2.xpose.msra.mxu0 0.0
        %4108 = vmatprep.subr.mxu0 0.0
        %4109 = vmatpush2.xpose.msra.mxu0 0.0
        %4110 = vmatprep.subr.mxu0 0.0
        %4111 = vmatpush2.xpose.msra.mxu0 0.0
        %4112 = vmatprep.subr.mxu0 0.0
        %4113 = vmatpush2.xpose.msra.mxu0 0.0
        %4114 = vmatprep.subr.mxu0 0.0
        %4115 = vmatpush2.xpose.msra.mxu0 0.0
        %4116 = vmatprep.subr.mxu0 0.0
        %4117 = vmatpush2.xpose.msra.mxu0 0.0
        %4118 = vmatprep.subr.mxu0 0.0
        %4119 = vmatpush2.xpose.msra.mxu0 0.0
        %4120 = vmatprep.subr.mxu0 0.0
        %4121 = vmatpush2.xpose.msra.mxu0 0.0
        %4122 = vmatprep.subr.mxu0 0.0
        %4123 = vmatpush2.xpose.msra.mxu0 0.0
        %4124 = vmatprep.subr.mxu0 0.0
        %4125 = vmatpush2.xpose.msra.mxu0 0.0
        %4126 = vmatprep.subr.mxu0 0.0
        %4127 = vmatpush2.xpose.msra.mxu0 0.0
        %4128 = vmatprep.subr.mxu0 0.0
        %4129 = vmatpush2.xpose.msra.mxu0 0.0
        %4130 = vmatprep.subr.mxu0 0.0
        %4131 = vmatpush2.xpose.msra.mxu0 0.0
        %4132 = vmatprep.subr.mxu0 0.0
        %4133 = vmatpush2.xpose.msra.mxu0 0.0
        %4134 = vmatprep.subr.mxu0 0.0
        %4135 = vmatpush2.xpose.msra.mxu0 0.0
        %4136 = vmatprep.subr.mxu0 0.0
        %4137 = vmatpush2.xpose.msra.mxu0 0.0
        %4138 = vmatprep.mubr.f32.mxu0 0.0
        %4139 = vmatmul.mubr.f32.gmra.mxu0 %v4069
        %v4140 = vpop.f32.mrf.mxu0
        %v4141 = vadd.f32 %v585, %v4140
        %v4142 = vpop.f32.mrf.mxu0
        %4143 = vdwg.mxu0
        %v4144 = vsel %vm587, %v4141, -inf
        %4145 = vmax.xlane.f32.xlu0 %v4144
        %v4146 = vpop.xlane.xlu0 %4145
        %v4147 = vsub.f32 %v4141, %v4146
        %v4148 = vmul.f32 %v4147, 1.442695
        %v4149 = vpow.pop %v4148
        %v4150 = vsel %vm587, %v4149, 0.0
        %4151 = vadd.xlane.f32.xlu0 %v4150
        %v4152 = vpop.xlane.xlu0 %4151
        %v4153 = vrcp.pop %v4152
        %v4154 = vmul.f32 %v4149, %v4153
        %v4156 = vsel %vm587, %v4154, 0
        %4158 = vmatprep.subr.mxu0 0.0
        %4159 = vmatpush1.msra.mxu0 0.0
        %4160 = vmatprep.subr.mxu0 0.0
        %4161 = vmatpush1.msra.mxu0 0.0
        %4162 = vmatprep.subr.mxu0 0.0
        %4163 = vmatpush1.msra.mxu0 0.0
        %4164 = vmatprep.subr.mxu0 0.0
        %4165 = vmatpush1.msra.mxu0 0.0
        %4166 = vmatprep.subr.mxu0 0.0
        %4167 = vmatpush1.msra.mxu0 0.0
        %4168 = vmatprep.subr.mxu0 0.0
        %4169 = vmatpush1.msra.mxu0 0.0
        %4170 = vmatprep.subr.mxu0 0.0
        %4171 = vmatpush1.msra.mxu0 0.0
        %4172 = vmatprep.subr.mxu0 0.0
        %4173 = vmatpush1.msra.mxu0 0.0
        %4174 = vmatprep.subr.mxu0 0.0
        %4175 = vmatpush1.msra.mxu0 0.0
        %4176 = vmatprep.subr.mxu0 0.0
        %4177 = vmatpush1.msra.mxu0 0.0
        %4178 = vmatprep.subr.mxu0 0.0
        %4179 = vmatpush1.msra.mxu0 0.0
        %4180 = vmatprep.subr.mxu0 0.0
        %4181 = vmatpush1.msra.mxu0 0.0
        %4182 = vmatprep.subr.mxu0 0.0
        %4183 = vmatpush1.msra.mxu0 0.0
        %4184 = vmatprep.subr.mxu0 0.0
        %4185 = vmatpush1.msra.mxu0 0.0
        %4186 = vmatprep.subr.mxu0 0.0
        %4187 = vmatpush1.msra.mxu0 0.0
        %4188 = vmatprep.subr.mxu0 0.0
        %4189 = vmatpush1.msra.mxu0 %v4065
        %4190 = vmatprep.subr.mxu0 0.0
        %4191 = vmatpush2.msra.mxu0 0.0
        %4192 = vmatprep.subr.mxu0 0.0
        %4193 = vmatpush2.msra.mxu0 0.0
        %4194 = vmatprep.subr.mxu0 0.0
        %4195 = vmatpush2.msra.mxu0 0.0
        %4196 = vmatprep.subr.mxu0 0.0
        %4197 = vmatpush2.msra.mxu0 0.0
        %4198 = vmatprep.subr.mxu0 0.0
        %4199 = vmatpush2.msra.mxu0 0.0
        %4200 = vmatprep.subr.mxu0 0.0
        %4201 = vmatpush2.msra.mxu0 0.0
        %4202 = vmatprep.subr.mxu0 0.0
        %4203 = vmatpush2.msra.mxu0 0.0
        %4204 = vmatprep.subr.mxu0 0.0
        %4205 = vmatpush2.msra.mxu0 0.0
        %4206 = vmatprep.subr.mxu0 0.0
        %4207 = vmatpush2.msra.mxu0 0.0
        %4208 = vmatprep.subr.mxu0 0.0
        %4209 = vmatpush2.msra.mxu0 0.0
        %4210 = vmatprep.subr.mxu0 0.0
        %4211 = vmatpush2.msra.mxu0 0.0
        %4212 = vmatprep.subr.mxu0 0.0
        %4213 = vmatpush2.msra.mxu0 0.0
        %4214 = vmatprep.subr.mxu0 0.0
        %4215 = vmatpush2.msra.mxu0 0.0
        %4216 = vmatprep.subr.mxu0 0.0
        %4217 = vmatpush2.msra.mxu0 0.0
        %4218 = vmatprep.subr.mxu0 0.0
        %4219 = vmatpush2.msra.mxu0 0.0
        %4220 = vmatprep.subr.mxu0 0.0
        %4221 = vmatpush2.msra.mxu0 0.0
        %4222 = vmatprep.mubr.f32.mxu0 0.0
        %4223 = vmatmul.mubr.f32.gmra.mxu0 %v4156
        %v4224 = vpop.f32.mrf.mxu0
        %v4225 = vadd.f32 0.0, %v4224
        %v4226 = vpop.f32.mrf.mxu0
        %4227 = vdwg.mxu0
        %4228 = vrot.lane.b32.xlu0 %v3914, 120
        %v4229 = vpop.permute.xlu0 %4228
        %4230 = vrot.lane.b32.xlu0 %v3991, 120
        %v4231 = vpop.permute.xlu0 %4230
        %v4232 = vsel %vm587, %v4229, 0
        %v4234 = vsel %vm587, %v4231, 0
        %4236 = vmatprep.subr.mxu0 0.0
        %4237 = vmatpush1.xpose.msra.mxu0 0.0
        %4238 = vmatprep.subr.mxu0 0.0
        %4239 = vmatpush1.xpose.msra.mxu0 0.0
        %4240 = vmatprep.subr.mxu0 0.0
        %4241 = vmatpush1.xpose.msra.mxu0 0.0
        %4242 = vmatprep.subr.mxu0 0.0
        %4243 = vmatpush1.xpose.msra.mxu0 0.0
        %4244 = vmatprep.subr.mxu0 0.0
        %4245 = vmatpush1.xpose.msra.mxu0 0.0
        %4246 = vmatprep.subr.mxu0 0.0
        %4247 = vmatpush1.xpose.msra.mxu0 0.0
        %4248 = vmatprep.subr.mxu0 0.0
        %4249 = vmatpush1.xpose.msra.mxu0 0.0
        %4250 = vmatprep.subr.mxu0 0.0
        %4251 = vmatpush1.xpose.msra.mxu0 0.0
        %4252 = vmatprep.subr.mxu0 0.0
        %4253 = vmatpush1.xpose.msra.mxu0 0.0
        %4254 = vmatprep.subr.mxu0 0.0
        %4255 = vmatpush1.xpose.msra.mxu0 0.0
        %4256 = vmatprep.subr.mxu0 0.0
        %4257 = vmatpush1.xpose.msra.mxu0 0.0
        %4258 = vmatprep.subr.mxu0 0.0
        %4259 = vmatpush1.xpose.msra.mxu0 0.0
        %4260 = vmatprep.subr.mxu0 0.0
        %4261 = vmatpush1.xpose.msra.mxu0 0.0
        %4262 = vmatprep.subr.mxu0 0.0
        %4263 = vmatpush1.xpose.msra.mxu0 0.0
        %4264 = vmatprep.subr.mxu0 0.0
        %4265 = vmatpush1.xpose.msra.mxu0 0.0
        %4266 = vmatprep.subr.mxu0 0.0
        %4267 = vmatpush1.xpose.msra.mxu0 %v4234
        %4268 = vmatprep.subr.mxu0 0.0
        %4269 = vmatpush2.xpose.msra.mxu0 0.0
        %4270 = vmatprep.subr.mxu0 0.0
        %4271 = vmatpush2.xpose.msra.mxu0 0.0
        %4272 = vmatprep.subr.mxu0 0.0
        %4273 = vmatpush2.xpose.msra.mxu0 0.0
        %4274 = vmatprep.subr.mxu0 0.0
        %4275 = vmatpush2.xpose.msra.mxu0 0.0
        %4276 = vmatprep.subr.mxu0 0.0
        %4277 = vmatpush2.xpose.msra.mxu0 0.0
        %4278 = vmatprep.subr.mxu0 0.0
        %4279 = vmatpush2.xpose.msra.mxu0 0.0
        %4280 = vmatprep.subr.mxu0 0.0
        %4281 = vmatpush2.xpose.msra.mxu0 0.0
        %4282 = vmatprep.subr.mxu0 0.0
        %4283 = vmatpush2.xpose.msra.mxu0 0.0
        %4284 = vmatprep.subr.mxu0 0.0
        %4285 = vmatpush2.xpose.msra.mxu0 0.0
        %4286 = vmatprep.subr.mxu0 0.0
        %4287 = vmatpush2.xpose.msra.mxu0 0.0
        %4288 = vmatprep.subr.mxu0 0.0
        %4289 = vmatpush2.xpose.msra.mxu0 0.0
        %4290 = vmatprep.subr.mxu0 0.0
        %4291 = vmatpush2.xpose.msra.mxu0 0.0
        %4292 = vmatprep.subr.mxu0 0.0
        %4293 = vmatpush2.xpose.msra.mxu0 0.0
        %4294 = vmatprep.subr.mxu0 0.0
        %4295 = vmatpush2.xpose.msra.mxu0 0.0
        %4296 = vmatprep.subr.mxu0 0.0
        %4297 = vmatpush2.xpose.msra.mxu0 0.0
        %4298 = vmatprep.subr.mxu0 0.0
        %4299 = vmatpush2.xpose.msra.mxu0 0.0
        %4300 = vmatprep.mubr.f32.mxu0 0.0
        %4301 = vmatmul.mubr.f32.gmra.mxu0 %v4232
        %v4302 = vpop.f32.mrf.mxu0
        %v4303 = vadd.f32 %v585, %v4302
        %v4304 = vpop.f32.mrf.mxu0
        %4305 = vdwg.mxu0
        %v4306 = vsel %vm587, %v4303, -inf
        %4307 = vmax.xlane.f32.xlu0 %v4306
        %v4308 = vpop.xlane.xlu0 %4307
        %v4309 = vsub.f32 %v4303, %v4308
        %v4310 = vmul.f32 %v4309, 1.442695
        %v4311 = vpow.pop %v4310
        %v4312 = vsel %vm587, %v4311, 0.0
        %4313 = vadd.xlane.f32.xlu0 %v4312
        %v4314 = vpop.xlane.xlu0 %4313
        %v4315 = vrcp.pop %v4314
        %v4316 = vmul.f32 %v4311, %v4315
        %4318 = vrot.lane.b32.xlu0 %v4065, 120
        %v4319 = vpop.permute.xlu0 %4318
        %v4322 = vsel %vm587, %v4316, 0
        %4324 = vmatprep.subr.mxu0 0.0
        %4325 = vmatpush1.msra.mxu0 0.0
        %4326 = vmatprep.subr.mxu0 0.0
        %4327 = vmatpush1.msra.mxu0 0.0
        %4328 = vmatprep.subr.mxu0 0.0
        %4329 = vmatpush1.msra.mxu0 0.0
        %4330 = vmatprep.subr.mxu0 0.0
        %4331 = vmatpush1.msra.mxu0 0.0
        %4332 = vmatprep.subr.mxu0 0.0
        %4333 = vmatpush1.msra.mxu0 0.0
        %4334 = vmatprep.subr.mxu0 0.0
        %4335 = vmatpush1.msra.mxu0 0.0
        %4336 = vmatprep.subr.mxu0 0.0
        %4337 = vmatpush1.msra.mxu0 0.0
        %4338 = vmatprep.subr.mxu0 0.0
        %4339 = vmatpush1.msra.mxu0 0.0
        %4340 = vmatprep.subr.mxu0 0.0
        %4341 = vmatpush1.msra.mxu0 0.0
        %4342 = vmatprep.subr.mxu0 0.0
        %4343 = vmatpush1.msra.mxu0 0.0
        %4344 = vmatprep.subr.mxu0 0.0
        %4345 = vmatpush1.msra.mxu0 0.0
        %4346 = vmatprep.subr.mxu0 0.0
        %4347 = vmatpush1.msra.mxu0 0.0
        %4348 = vmatprep.subr.mxu0 0.0
        %4349 = vmatpush1.msra.mxu0 0.0
        %4350 = vmatprep.subr.mxu0 0.0
        %4351 = vmatpush1.msra.mxu0 0.0
        %4352 = vmatprep.subr.mxu0 0.0
        %4353 = vmatpush1.msra.mxu0 0.0
        %4354 = vmatprep.subr.mxu0 0.0
        %4355 = vmatpush1.msra.mxu0 %v4319
        %4356 = vmatprep.subr.mxu0 0.0
        %4357 = vmatpush2.msra.mxu0 0.0
        %4358 = vmatprep.subr.mxu0 0.0
        %4359 = vmatpush2.msra.mxu0 0.0
        %4360 = vmatprep.subr.mxu0 0.0
        %4361 = vmatpush2.msra.mxu0 0.0
        %4362 = vmatprep.subr.mxu0 0.0
        %4363 = vmatpush2.msra.mxu0 0.0
        %4364 = vmatprep.subr.mxu0 0.0
        %4365 = vmatpush2.msra.mxu0 0.0
        %4366 = vmatprep.subr.mxu0 0.0
        %4367 = vmatpush2.msra.mxu0 0.0
        %4368 = vmatprep.subr.mxu0 0.0
        %4369 = vmatpush2.msra.mxu0 0.0
        %4370 = vmatprep.subr.mxu0 0.0
        %4371 = vmatpush2.msra.mxu0 0.0
        %4372 = vmatprep.subr.mxu0 0.0
        %4373 = vmatpush2.msra.mxu0 0.0
        %4374 = vmatprep.subr.mxu0 0.0
        %4375 = vmatpush2.msra.mxu0 0.0
        %4376 = vmatprep.subr.mxu0 0.0
        %4377 = vmatpush2.msra.mxu0 0.0
        %4378 = vmatprep.subr.mxu0 0.0
        %4379 = vmatpush2.msra.mxu0 0.0
        %4380 = vmatprep.subr.mxu0 0.0
        %4381 = vmatpush2.msra.mxu0 0.0
        %4382 = vmatprep.subr.mxu0 0.0
        %4383 = vmatpush2.msra.mxu0 0.0
        %4384 = vmatprep.subr.mxu0 0.0
        %4385 = vmatpush2.msra.mxu0 0.0
        %4386 = vmatprep.subr.mxu0 0.0
        %4387 = vmatpush2.msra.mxu0 0.0
        %4388 = vmatprep.mubr.f32.mxu0 0.0
        %4389 = vmatmul.mubr.f32.gmra.mxu0 %v4322
        %v4390 = vpop.f32.mrf.mxu0
        %v4391 = vadd.f32 0.0, %v4390
        %v4392 = vpop.f32.mrf.mxu0
        %4393 = vdwg.mxu0
        %4394 = vrot.lane.b32.xlu0 %v3914, 112
        %v4395 = vpop.permute.xlu0 %4394
        %4396 = vrot.lane.b32.xlu0 %v3991, 112
        %v4397 = vpop.permute.xlu0 %4396
        %v4398 = vsel %vm587, %v4395, 0
        %v4400 = vsel %vm587, %v4397, 0
        %4402 = vmatprep.subr.mxu0 0.0
        %4403 = vmatpush1.xpose.msra.mxu0 0.0
        %4404 = vmatprep.subr.mxu0 0.0
        %4405 = vmatpush1.xpose.msra.mxu0 0.0
        %4406 = vmatprep.subr.mxu0 0.0
        %4407 = vmatpush1.xpose.msra.mxu0 0.0
        %4408 = vmatprep.subr.mxu0 0.0
        %4409 = vmatpush1.xpose.msra.mxu0 0.0
        %4410 = vmatprep.subr.mxu0 0.0
        %4411 = vmatpush1.xpose.msra.mxu0 0.0
        %4412 = vmatprep.subr.mxu0 0.0
        %4413 = vmatpush1.xpose.msra.mxu0 0.0
        %4414 = vmatprep.subr.mxu0 0.0
        %4415 = vmatpush1.xpose.msra.mxu0 0.0
        %4416 = vmatprep.subr.mxu0 0.0
        %4417 = vmatpush1.xpose.msra.mxu0 0.0
        %4418 = vmatprep.subr.mxu0 0.0
        %4419 = vmatpush1.xpose.msra.mxu0 0.0
        %4420 = vmatprep.subr.mxu0 0.0
        %4421 = vmatpush1.xpose.msra.mxu0 0.0
        %4422 = vmatprep.subr.mxu0 0.0
        %4423 = vmatpush1.xpose.msra.mxu0 0.0
        %4424 = vmatprep.subr.mxu0 0.0
        %4425 = vmatpush1.xpose.msra.mxu0 0.0
        %4426 = vmatprep.subr.mxu0 0.0
        %4427 = vmatpush1.xpose.msra.mxu0 0.0
        %4428 = vmatprep.subr.mxu0 0.0
        %4429 = vmatpush1.xpose.msra.mxu0 0.0
        %4430 = vmatprep.subr.mxu0 0.0
        %4431 = vmatpush1.xpose.msra.mxu0 0.0
        %4432 = vmatprep.subr.mxu0 0.0
        %4433 = vmatpush1.xpose.msra.mxu0 %v4400
        %4434 = vmatprep.subr.mxu0 0.0
        %4435 = vmatpush2.xpose.msra.mxu0 0.0
        %4436 = vmatprep.subr.mxu0 0.0
        %4437 = vmatpush2.xpose.msra.mxu0 0.0
        %4438 = vmatprep.subr.mxu0 0.0
        %4439 = vmatpush2.xpose.msra.mxu0 0.0
        %4440 = vmatprep.subr.mxu0 0.0
        %4441 = vmatpush2.xpose.msra.mxu0 0.0
        %4442 = vmatprep.subr.mxu0 0.0
        %4443 = vmatpush2.xpose.msra.mxu0 0.0
        %4444 = vmatprep.subr.mxu0 0.0
        %4445 = vmatpush2.xpose.msra.mxu0 0.0
        %4446 = vmatprep.subr.mxu0 0.0
        %4447 = vmatpush2.xpose.msra.mxu0 0.0
        %4448 = vmatprep.subr.mxu0 0.0
        %4449 = vmatpush2.xpose.msra.mxu0 0.0
        %4450 = vmatprep.subr.mxu0 0.0
        %4451 = vmatpush2.xpose.msra.mxu0 0.0
        %4452 = vmatprep.subr.mxu0 0.0
        %4453 = vmatpush2.xpose.msra.mxu0 0.0
        %4454 = vmatprep.subr.mxu0 0.0
        %4455 = vmatpush2.xpose.msra.mxu0 0.0
        %4456 = vmatprep.subr.mxu0 0.0
        %4457 = vmatpush2.xpose.msra.mxu0 0.0
        %4458 = vmatprep.subr.mxu0 0.0
        %4459 = vmatpush2.xpose.msra.mxu0 0.0
        %4460 = vmatprep.subr.mxu0 0.0
        %4461 = vmatpush2.xpose.msra.mxu0 0.0
        %4462 = vmatprep.subr.mxu0 0.0
        %4463 = vmatpush2.xpose.msra.mxu0 0.0
        %4464 = vmatprep.subr.mxu0 0.0
        %4465 = vmatpush2.xpose.msra.mxu0 0.0
        %4466 = vmatprep.mubr.f32.mxu0 0.0
        %4467 = vmatmul.mubr.f32.gmra.mxu0 %v4398
        %v4468 = vpop.f32.mrf.mxu0
        %v4469 = vadd.f32 %v585, %v4468
        %v4470 = vpop.f32.mrf.mxu0
        %4471 = vdwg.mxu0
        %v4472 = vsel %vm587, %v4469, -inf
        %4473 = vmax.xlane.f32.xlu0 %v4472
        %v4474 = vpop.xlane.xlu0 %4473
        %v4475 = vsub.f32 %v4469, %v4474
        %v4476 = vmul.f32 %v4475, 1.442695
        %v4477 = vpow.pop %v4476
        %v4478 = vsel %vm587, %v4477, 0.0
        %4479 = vadd.xlane.f32.xlu0 %v4478
        %v4480 = vpop.xlane.xlu0 %4479
        %v4481 = vrcp.pop %v4480
        %v4482 = vmul.f32 %v4477, %v4481
        %4483 = vrot.lane.b32.xlu0 %v4065, 112
        %v4484 = vpop.permute.xlu0 %4483
        %v4487 = vsel %vm587, %v4482, 0
        %4489 = vmatprep.subr.mxu0 0.0
        %4490 = vmatpush1.msra.mxu0 0.0
        %4491 = vmatprep.subr.mxu0 0.0
        %4492 = vmatpush1.msra.mxu0 0.0
        %4493 = vmatprep.subr.mxu0 0.0
        %4494 = vmatpush1.msra.mxu0 0.0
        %4495 = vmatprep.subr.mxu0 0.0
        %4496 = vmatpush1.msra.mxu0 0.0
        %4497 = vmatprep.subr.mxu0 0.0
        %4498 = vmatpush1.msra.mxu0 0.0
        %4499 = vmatprep.subr.mxu0 0.0
        %4500 = vmatpush1.msra.mxu0 0.0
        %4501 = vmatprep.subr.mxu0 0.0
        %4502 = vmatpush1.msra.mxu0 0.0
        %4503 = vmatprep.subr.mxu0 0.0
        %4504 = vmatpush1.msra.mxu0 0.0
        %4505 = vmatprep.subr.mxu0 0.0
        %4506 = vmatpush1.msra.mxu0 0.0
        %4507 = vmatprep.subr.mxu0 0.0
        %4508 = vmatpush1.msra.mxu0 0.0
        %4509 = vmatprep.subr.mxu0 0.0
        %4510 = vmatpush1.msra.mxu0 0.0
        %4511 = vmatprep.subr.mxu0 0.0
        %4512 = vmatpush1.msra.mxu0 0.0
        %4513 = vmatprep.subr.mxu0 0.0
        %4514 = vmatpush1.msra.mxu0 0.0
        %4515 = vmatprep.subr.mxu0 0.0
        %4516 = vmatpush1.msra.mxu0 0.0
        %4517 = vmatprep.subr.mxu0 0.0
        %4518 = vmatpush1.msra.mxu0 0.0
        %4519 = vmatprep.subr.mxu0 0.0
        %4520 = vmatpush1.msra.mxu0 %v4484
        %4521 = vmatprep.subr.mxu0 0.0
        %4522 = vmatpush2.msra.mxu0 0.0
        %4523 = vmatprep.subr.mxu0 0.0
        %4524 = vmatpush2.msra.mxu0 0.0
        %4525 = vmatprep.subr.mxu0 0.0
        %4526 = vmatpush2.msra.mxu0 0.0
        %4527 = vmatprep.subr.mxu0 0.0
        %4528 = vmatpush2.msra.mxu0 0.0
        %4529 = vmatprep.subr.mxu0 0.0
        %4530 = vmatpush2.msra.mxu0 0.0
        %4531 = vmatprep.subr.mxu0 0.0
        %4532 = vmatpush2.msra.mxu0 0.0
        %4533 = vmatprep.subr.mxu0 0.0
        %4534 = vmatpush2.msra.mxu0 0.0
        %4535 = vmatprep.subr.mxu0 0.0
        %4536 = vmatpush2.msra.mxu0 0.0
        %4537 = vmatprep.subr.mxu0 0.0
        %4538 = vmatpush2.msra.mxu0 0.0
        %4539 = vmatprep.subr.mxu0 0.0
        %4540 = vmatpush2.msra.mxu0 0.0
        %4541 = vmatprep.subr.mxu0 0.0
        %4542 = vmatpush2.msra.mxu0 0.0
        %4543 = vmatprep.subr.mxu0 0.0
        %4544 = vmatpush2.msra.mxu0 0.0
        %4545 = vmatprep.subr.mxu0 0.0
        %4546 = vmatpush2.msra.mxu0 0.0
        %4547 = vmatprep.subr.mxu0 0.0
        %4548 = vmatpush2.msra.mxu0 0.0
        %4549 = vmatprep.subr.mxu0 0.0
        %4550 = vmatpush2.msra.mxu0 0.0
        %4551 = vmatprep.subr.mxu0 0.0
        %4552 = vmatpush2.msra.mxu0 0.0
        %4553 = vmatprep.mubr.f32.mxu0 0.0
        %4554 = vmatmul.mubr.f32.gmra.mxu0 %v4487
        %v4555 = vpop.f32.mrf.mxu0
        %v4556 = vadd.f32 0.0, %v4555
        %v4557 = vpop.f32.mrf.mxu0
        %4558 = vdwg.mxu0
        %4559 = vrot.lane.b32.xlu0 %v3914, 104
        %v4560 = vpop.permute.xlu0 %4559
        %4561 = vrot.lane.b32.xlu0 %v3991, 104
        %v4562 = vpop.permute.xlu0 %4561
        %v4563 = vsel %vm587, %v4560, 0
        %v4565 = vsel %vm587, %v4562, 0
        %4567 = vmatprep.subr.mxu0 0.0
        %4568 = vmatpush1.xpose.msra.mxu0 0.0
        %4569 = vmatprep.subr.mxu0 0.0
        %4570 = vmatpush1.xpose.msra.mxu0 0.0
        %4571 = vmatprep.subr.mxu0 0.0
        %4572 = vmatpush1.xpose.msra.mxu0 0.0
        %4573 = vmatprep.subr.mxu0 0.0
        %4574 = vmatpush1.xpose.msra.mxu0 0.0
        %4575 = vmatprep.subr.mxu0 0.0
        %4576 = vmatpush1.xpose.msra.mxu0 0.0
        %4577 = vmatprep.subr.mxu0 0.0
        %4578 = vmatpush1.xpose.msra.mxu0 0.0
        %4579 = vmatprep.subr.mxu0 0.0
        %4580 = vmatpush1.xpose.msra.mxu0 0.0
        %4581 = vmatprep.subr.mxu0 0.0
        %4582 = vmatpush1.xpose.msra.mxu0 0.0
        %4583 = vmatprep.subr.mxu0 0.0
        %4584 = vmatpush1.xpose.msra.mxu0 0.0
        %4585 = vmatprep.subr.mxu0 0.0
        %4586 = vmatpush1.xpose.msra.mxu0 0.0
        %4587 = vmatprep.subr.mxu0 0.0
        %4588 = vmatpush1.xpose.msra.mxu0 0.0
        %4589 = vmatprep.subr.mxu0 0.0
        %4590 = vmatpush1.xpose.msra.mxu0 0.0
        %4591 = vmatprep.subr.mxu0 0.0
        %4592 = vmatpush1.xpose.msra.mxu0 0.0
        %4593 = vmatprep.subr.mxu0 0.0
        %4594 = vmatpush1.xpose.msra.mxu0 0.0
        %4595 = vmatprep.subr.mxu0 0.0
        %4596 = vmatpush1.xpose.msra.mxu0 0.0
        %4597 = vmatprep.subr.mxu0 0.0
        %4598 = vmatpush1.xpose.msra.mxu0 %v4565
        %4599 = vmatprep.subr.mxu0 0.0
        %4600 = vmatpush2.xpose.msra.mxu0 0.0
        %4601 = vmatprep.subr.mxu0 0.0
        %4602 = vmatpush2.xpose.msra.mxu0 0.0
        %4603 = vmatprep.subr.mxu0 0.0
        %4604 = vmatpush2.xpose.msra.mxu0 0.0
        %4605 = vmatprep.subr.mxu0 0.0
        %4606 = vmatpush2.xpose.msra.mxu0 0.0
        %4607 = vmatprep.subr.mxu0 0.0
        %4608 = vmatpush2.xpose.msra.mxu0 0.0
        %4609 = vmatprep.subr.mxu0 0.0
        %4610 = vmatpush2.xpose.msra.mxu0 0.0
        %4611 = vmatprep.subr.mxu0 0.0
        %4612 = vmatpush2.xpose.msra.mxu0 0.0
        %4613 = vmatprep.subr.mxu0 0.0
        %4614 = vmatpush2.xpose.msra.mxu0 0.0
        %4615 = vmatprep.subr.mxu0 0.0
        %4616 = vmatpush2.xpose.msra.mxu0 0.0
        %4617 = vmatprep.subr.mxu0 0.0
        %4618 = vmatpush2.xpose.msra.mxu0 0.0
        %4619 = vmatprep.subr.mxu0 0.0
        %4620 = vmatpush2.xpose.msra.mxu0 0.0
        %4621 = vmatprep.subr.mxu0 0.0
        %4622 = vmatpush2.xpose.msra.mxu0 0.0
        %4623 = vmatprep.subr.mxu0 0.0
        %4624 = vmatpush2.xpose.msra.mxu0 0.0
        %4625 = vmatprep.subr.mxu0 0.0
        %4626 = vmatpush2.xpose.msra.mxu0 0.0
        %4627 = vmatprep.subr.mxu0 0.0
        %4628 = vmatpush2.xpose.msra.mxu0 0.0
        %4629 = vmatprep.subr.mxu0 0.0
        %4630 = vmatpush2.xpose.msra.mxu0 0.0
        %4631 = vmatprep.mubr.f32.mxu0 0.0
        %4632 = vmatmul.mubr.f32.gmra.mxu0 %v4563
        %v4633 = vpop.f32.mrf.mxu0
        %v4634 = vadd.f32 %v585, %v4633
        %v4635 = vpop.f32.mrf.mxu0
        %4636 = vdwg.mxu0
        %v4637 = vsel %vm587, %v4634, -inf
        %4638 = vmax.xlane.f32.xlu0 %v4637
        %v4639 = vpop.xlane.xlu0 %4638
        %v4640 = vsub.f32 %v4634, %v4639
        %v4641 = vmul.f32 %v4640, 1.442695
        %v4642 = vpow.pop %v4641
        %v4643 = vsel %vm587, %v4642, 0.0
        %4644 = vadd.xlane.f32.xlu0 %v4643
        %v4645 = vpop.xlane.xlu0 %4644
        %v4646 = vrcp.pop %v4645
        %v4647 = vmul.f32 %v4642, %v4646
        %4648 = vrot.lane.b32.xlu0 %v4065, 104
        %v4649 = vpop.permute.xlu0 %4648
        %v4652 = vsel %vm587, %v4647, 0
        %4654 = vmatprep.subr.mxu0 0.0
        %4655 = vmatpush1.msra.mxu0 0.0
        %4656 = vmatprep.subr.mxu0 0.0
        %4657 = vmatpush1.msra.mxu0 0.0
        %4658 = vmatprep.subr.mxu0 0.0
        %4659 = vmatpush1.msra.mxu0 0.0
        %4660 = vmatprep.subr.mxu0 0.0
        %4661 = vmatpush1.msra.mxu0 0.0
        %4662 = vmatprep.subr.mxu0 0.0
        %4663 = vmatpush1.msra.mxu0 0.0
        %4664 = vmatprep.subr.mxu0 0.0
        %4665 = vmatpush1.msra.mxu0 0.0
        %4666 = vmatprep.subr.mxu0 0.0
        %4667 = vmatpush1.msra.mxu0 0.0
        %4668 = vmatprep.subr.mxu0 0.0
        %4669 = vmatpush1.msra.mxu0 0.0
        %4670 = vmatprep.subr.mxu0 0.0
        %4671 = vmatpush1.msra.mxu0 0.0
        %4672 = vmatprep.subr.mxu0 0.0
        %4673 = vmatpush1.msra.mxu0 0.0
        %4674 = vmatprep.subr.mxu0 0.0
        %4675 = vmatpush1.msra.mxu0 0.0
        %4676 = vmatprep.subr.mxu0 0.0
        %4677 = vmatpush1.msra.mxu0 0.0
        %4678 = vmatprep.subr.mxu0 0.0
        %4679 = vmatpush1.msra.mxu0 0.0
        %4680 = vmatprep.subr.mxu0 0.0
        %4681 = vmatpush1.msra.mxu0 0.0
        %4682 = vmatprep.subr.mxu0 0.0
        %4683 = vmatpush1.msra.mxu0 0.0
        %4684 = vmatprep.subr.mxu0 0.0
        %4685 = vmatpush1.msra.mxu0 %v4649
        %4686 = vmatprep.subr.mxu0 0.0
        %4687 = vmatpush2.msra.mxu0 0.0
        %4688 = vmatprep.subr.mxu0 0.0
        %4689 = vmatpush2.msra.mxu0 0.0
        %4690 = vmatprep.subr.mxu0 0.0
        %4691 = vmatpush2.msra.mxu0 0.0
        %4692 = vmatprep.subr.mxu0 0.0
        %4693 = vmatpush2.msra.mxu0 0.0
        %4694 = vmatprep.subr.mxu0 0.0
        %4695 = vmatpush2.msra.mxu0 0.0
        %4696 = vmatprep.subr.mxu0 0.0
        %4697 = vmatpush2.msra.mxu0 0.0
        %4698 = vmatprep.subr.mxu0 0.0
        %4699 = vmatpush2.msra.mxu0 0.0
        %4700 = vmatprep.subr.mxu0 0.0
        %4701 = vmatpush2.msra.mxu0 0.0
        %4702 = vmatprep.subr.mxu0 0.0
        %4703 = vmatpush2.msra.mxu0 0.0
        %4704 = vmatprep.subr.mxu0 0.0
        %4705 = vmatpush2.msra.mxu0 0.0
        %4706 = vmatprep.subr.mxu0 0.0
        %4707 = vmatpush2.msra.mxu0 0.0
        %4708 = vmatprep.subr.mxu0 0.0
        %4709 = vmatpush2.msra.mxu0 0.0
        %4710 = vmatprep.subr.mxu0 0.0
        %4711 = vmatpush2.msra.mxu0 0.0
        %4712 = vmatprep.subr.mxu0 0.0
        %4713 = vmatpush2.msra.mxu0 0.0
        %4714 = vmatprep.subr.mxu0 0.0
        %4715 = vmatpush2.msra.mxu0 0.0
        %4716 = vmatprep.subr.mxu0 0.0
        %4717 = vmatpush2.msra.mxu0 0.0
        %4718 = vmatprep.mubr.f32.mxu0 0.0
        %4719 = vmatmul.mubr.f32.gmra.mxu0 %v4652
        %v4720 = vpop.f32.mrf.mxu0
        %v4721 = vadd.f32 0.0, %v4720
        %v4722 = vpop.f32.mrf.mxu0
        %4723 = vdwg.mxu0
        %4725 = vrot.lane.b32.xlu0 %v4391, 8
        %v4726 = vpop.permute.xlu0 %4725
        %4729 = vrot.lane.b32.xlu0 %v4556, 16
        %v4730 = vpop.permute.xlu0 %4729
        %4733 = vrot.lane.b32.xlu0 %v4721, 24
        %v4734 = vpop.permute.xlu0 %4733
        %v4736 = vsel %vm587, %v4225, %v4726
        %v4737 = vsel %vm1257, %v4736, %v4730
        %v4738 = vsel %vm1259, %v4737, %v4734
        %v4739 = vlaneseq
        %v4740 = vshrl.u32 %v4739, 7
        %v4741 = vsub.s32 0, %v4740
        %v4742 = vrot.slane %v3839, %v4741
        %v4744 = vsel %vm359, %v4738, 0
        %4746 = vmatprep.subr.mxu0 0.0
        %4747 = vmatpush1.msra.mxu0 0.0
        %4748 = vmatprep.subr.mxu0 0.0
        %4749 = vmatpush1.msra.mxu0 0.0
        %4750 = vmatprep.subr.mxu0 0.0
        %4751 = vmatpush1.msra.mxu0 0.0
        %4752 = vmatprep.subr.mxu0 0.0
        %4753 = vmatpush1.msra.mxu0 0.0
        %4754 = vmatprep.subr.mxu0 0.0
        %4755 = vmatpush1.msra.mxu0 0.0
        %4756 = vmatprep.subr.mxu0 0.0
        %4757 = vmatpush1.msra.mxu0 0.0
        %4758 = vmatprep.subr.mxu0 0.0
        %4759 = vmatpush1.msra.mxu0 0.0
        %4760 = vmatprep.subr.mxu0 0.0
        %4761 = vmatpush1.msra.mxu0 0.0
        %4762 = vmatprep.subr.mxu0 0.0
        %4763 = vmatpush1.msra.mxu0 0.0
        %4764 = vmatprep.subr.mxu0 0.0
        %4765 = vmatpush1.msra.mxu0 0.0
        %4766 = vmatprep.subr.mxu0 0.0
        %4767 = vmatpush1.msra.mxu0 0.0
        %4768 = vmatprep.subr.mxu0 0.0
        %4769 = vmatpush1.msra.mxu0 0.0
        %4770 = vmatprep.subr.mxu0 0.0
        %4771 = vmatpush1.msra.mxu0 %v3835
        %4772 = vmatprep.subr.mxu0 0.0
        %4773 = vmatpush1.msra.mxu0 %v3834
        %4774 = vmatprep.subr.mxu0 0.0
        %4775 = vmatpush1.msra.mxu0 %v3833
        %4776 = vmatprep.subr.mxu0 0.0
        %4777 = vmatpush1.msra.mxu0 %v3832
        %4778 = vmatprep.subr.mxu0 0.0
        %4779 = vmatpush2.msra.mxu0 0.0
        %4780 = vmatprep.subr.mxu0 0.0
        %4781 = vmatpush2.msra.mxu0 0.0
        %4782 = vmatprep.subr.mxu0 0.0
        %4783 = vmatpush2.msra.mxu0 0.0
        %4784 = vmatprep.subr.mxu0 0.0
        %4785 = vmatpush2.msra.mxu0 0.0
        %4786 = vmatprep.subr.mxu0 0.0
        %4787 = vmatpush2.msra.mxu0 0.0
        %4788 = vmatprep.subr.mxu0 0.0
        %4789 = vmatpush2.msra.mxu0 0.0
        %4790 = vmatprep.subr.mxu0 0.0
        %4791 = vmatpush2.msra.mxu0 0.0
        %4792 = vmatprep.subr.mxu0 0.0
        %4793 = vmatpush2.msra.mxu0 0.0
        %4794 = vmatprep.subr.mxu0 0.0
        %4795 = vmatpush2.msra.mxu0 0.0
        %4796 = vmatprep.subr.mxu0 0.0
        %4797 = vmatpush2.msra.mxu0 0.0
        %4798 = vmatprep.subr.mxu0 0.0
        %4799 = vmatpush2.msra.mxu0 0.0
        %4800 = vmatprep.subr.mxu0 0.0
        %4801 = vmatpush2.msra.mxu0 0.0
        %4802 = vmatprep.subr.mxu0 0.0
        %4803 = vmatpush2.msra.mxu0 0.0
        %4804 = vmatprep.subr.mxu0 0.0
        %4805 = vmatpush2.msra.mxu0 0.0
        %4806 = vmatprep.subr.mxu0 0.0
        %4807 = vmatpush2.msra.mxu0 0.0
        %4808 = vmatprep.subr.mxu0 0.0
        %4809 = vmatpush2.msra.mxu0 0.0
        %4810 = vmatprep.mubr.f32.mxu0 0.0
        %4811 = vmatmul.mubr.f32.gmra.mxu0 %v4744
        %v4812 = vpop.f32.mrf.mxu0
        %v4813 = vadd.f32 %v4742, %v4812
        %v4814 = vpop.f32.mrf.mxu0
        %4815 = vdwg.mxu0
        %v4816 = vadd.f32 %v3815, %v4813
        %v4817 = vld [vmem:[%s6 + $0x1c] sm:$0x1]
        %v4818 = vld [vmem:[%s6 + $0x1d] sm:$0x1]
        %v4819 = vsel %vm359, %v4816, 0.0
        %4820 = vadd.xlane.f32.xlu0 %v4819
        %v4821 = vpop.xlane.xlu0 %4820
        %v4822 = vmul.f32 %v4821, %v1344
        %v4823 = vsub.f32 %v4816, %v4822
        %v4824 = vmul.f32 %v4823, %v4823
        %v4825 = vsel %vm359, %v4824, 0.0
        %4826 = vadd.xlane.f32.xlu0 %v4825
        %v4827 = vpop.xlane.xlu0 %4826
        %v4828 = vmul.f32 %v4827, %v1344
        %v4829 = vadd.f32 %v4828, 1e-05
        %v4830 = vrsqrt.pop %v4829
        %v4831 = vmul.f32 %v4823, %v4830
        %v4832 = vlaneseq
        %v4833 = vshrl.u32 %v4832, 7
        %v4834 = vsub.s32 0, %v4833
        %v4835 = vrot.slane %v4817, %v4834
        %v4836 = vmul.f32 %v4831, %v4835
        %v4837 = vlaneseq
        %v4838 = vshrl.u32 %v4837, 7
        %v4839 = vsub.s32 0, %v4838
        %v4840 = vrot.slane %v4818, %v4839
        %v4841 = vadd.f32 %v4836, %v4840
        %s4842 = scalar_lea.vmem %s4, 64
        %v4843 = vld [vmem:[%s4842] sm:$0xff]
        %v4844 = vld [vmem:[%s4842 + $0x8] sm:$0xff]
        %v4845 = vld [vmem:[%s4842 + $0x10] sm:$0xff]
        %v4846 = vld [vmem:[%s4842 + $0x18] sm:$0xff]
        %v4847 = vld [vmem:[%s7 + $0x2] sm:$0x1]
        %s4848 = scalar_lea.vmem %s5, 256
        %v4849 = vld [vmem:[%s4848] sm:$0xff]
        %v4850 = vld [vmem:[%s4848 + $0x8] sm:$0xff]
        %v4851 = vld [vmem:[%s4848 + $0x10] sm:$0xff]
        %v4852 = vld [vmem:[%s4848 + $0x18] sm:$0xff]
        %v4853 = vld [vmem:[%s4848 + $0x20] sm:$0xff]
        %v4854 = vld [vmem:[%s4848 + $0x28] sm:$0xff]
        %v4855 = vld [vmem:[%s4848 + $0x30] sm:$0xff]
        %v4856 = vld [vmem:[%s4848 + $0x38] sm:$0xff]
        %v4857 = vld [vmem:[%s4848 + $0x40] sm:$0xff]
        %v4858 = vld [vmem:[%s4848 + $0x48] sm:$0xff]
        %v4859 = vld [vmem:[%s4848 + $0x50] sm:$0xff]
        %v4860 = vld [vmem:[%s4848 + $0x58] sm:$0xff]
        %v4861 = vld [vmem:[%s4848 + $0x60] sm:$0xff]
        %v4862 = vld [vmem:[%s4848 + $0x68] sm:$0xff]
        %v4863 = vld [vmem:[%s4848 + $0x70] sm:$0xff]
        %v4864 = vld [vmem:[%s4848 + $0x78] sm:$0xff]
        %v4865 = vld [vmem:[%s6 + $0x1e] sm:$0x1]
        %v4866 = vlaneseq
        %v4867 = vshrl.u32 %v4866, 7
        %v4868 = vsub.s32 0, %v4867
        %v4869 = vrot.slane %v4847, %v4868
        %v4871 = vsel %vm359, %v4841, 0
        %4873 = vmatprep.subr.mxu0 0.0
        %4874 = vmatpush1.msra.mxu0 0.0
        %4875 = vmatprep.subr.mxu0 0.0
        %4876 = vmatpush1.msra.mxu0 0.0
        %4877 = vmatprep.subr.mxu0 0.0
        %4878 = vmatpush1.msra.mxu0 0.0
        %4879 = vmatprep.subr.mxu0 0.0
        %4880 = vmatpush1.msra.mxu0 0.0
        %4881 = vmatprep.subr.mxu0 0.0
        %4882 = vmatpush1.msra.mxu0 0.0
        %4883 = vmatprep.subr.mxu0 0.0
        %4884 = vmatpush1.msra.mxu0 0.0
        %4885 = vmatprep.subr.mxu0 0.0
        %4886 = vmatpush1.msra.mxu0 0.0
        %4887 = vmatprep.subr.mxu0 0.0
        %4888 = vmatpush1.msra.mxu0 0.0
        %4889 = vmatprep.subr.mxu0 0.0
        %4890 = vmatpush1.msra.mxu0 0.0
        %4891 = vmatprep.subr.mxu0 0.0
        %4892 = vmatpush1.msra.mxu0 0.0
        %4893 = vmatprep.subr.mxu0 0.0
        %4894 = vmatpush1.msra.mxu0 0.0
        %4895 = vmatprep.subr.mxu0 0.0
        %4896 = vmatpush1.msra.mxu0 0.0
        %4897 = vmatprep.subr.mxu0 0.0
        %4898 = vmatpush1.msra.mxu0 %v4846
        %4899 = vmatprep.subr.mxu0 0.0
        %4900 = vmatpush1.msra.mxu0 %v4845
        %4901 = vmatprep.subr.mxu0 0.0
        %4902 = vmatpush1.msra.mxu0 %v4844
        %4903 = vmatprep.subr.mxu0 0.0
        %4904 = vmatpush1.msra.mxu0 %v4843
        %4905 = vmatprep.subr.mxu0 0.0
        %4906 = vmatpush2.msra.mxu0 0.0
        %4907 = vmatprep.subr.mxu0 0.0
        %4908 = vmatpush2.msra.mxu0 0.0
        %4909 = vmatprep.subr.mxu0 0.0
        %4910 = vmatpush2.msra.mxu0 0.0
        %4911 = vmatprep.subr.mxu0 0.0
        %4912 = vmatpush2.msra.mxu0 0.0
        %4913 = vmatprep.subr.mxu0 0.0
        %4914 = vmatpush2.msra.mxu0 0.0
        %4915 = vmatprep.subr.mxu0 0.0
        %4916 = vmatpush2.msra.mxu0 0.0
        %4917 = vmatprep.subr.mxu0 0.0
        %4918 = vmatpush2.msra.mxu0 0.0
        %4919 = vmatprep.subr.mxu0 0.0
        %4920 = vmatpush2.msra.mxu0 0.0
        %4921 = vmatprep.subr.mxu0 0.0
        %4922 = vmatpush2.msra.mxu0 0.0
        %4923 = vmatprep.subr.mxu0 0.0
        %4924 = vmatpush2.msra.mxu0 0.0
        %4925 = vmatprep.subr.mxu0 0.0
        %4926 = vmatpush2.msra.mxu0 0.0
        %4927 = vmatprep.subr.mxu0 0.0
        %4928 = vmatpush2.msra.mxu0 0.0
        %4929 = vmatprep.subr.mxu0 0.0
        %4930 = vmatpush2.msra.mxu0 0.0
        %4931 = vmatprep.subr.mxu0 0.0
        %4932 = vmatpush2.msra.mxu0 0.0
        %4933 = vmatprep.subr.mxu0 0.0
        %4934 = vmatpush2.msra.mxu0 0.0
        %4935 = vmatprep.subr.mxu0 0.0
        %4936 = vmatpush2.msra.mxu0 0.0
        %4937 = vmatprep.mubr.f32.mxu0 0.0
        %4938 = vmatmul.mubr.f32.gmra.mxu0 %v4871
        %v4939 = vpop.f32.mrf.mxu0
        %v4940 = vadd.f32 %v4869, %v4939
        %v4941 = vpop.f32.mrf.mxu0
        %4942 = vdwg.mxu0
        %v4943 = vmax.f32 %v4940, 0.0
        %v4944 = vlaneseq
        %v4945 = vshrl.u32 %v4944, 7
        %v4946 = vsub.s32 0, %v4945
        %v4947 = vrot.slane %v4865, %v4946
        %4948 = vmatprep.subr.mxu0 0.0
        %4949 = vmatpush1.msra.mxu0 %v4864
        %4950 = vmatprep.subr.mxu0 0.0
        %4951 = vmatpush1.msra.mxu0 %v4863
        %4952 = vmatprep.subr.mxu0 0.0
        %4953 = vmatpush1.msra.mxu0 %v4862
        %4954 = vmatprep.subr.mxu0 0.0
        %4955 = vmatpush1.msra.mxu0 %v4861
        %4956 = vmatprep.subr.mxu0 0.0
        %4957 = vmatpush1.msra.mxu0 %v4860
        %4958 = vmatprep.subr.mxu0 0.0
        %4959 = vmatpush1.msra.mxu0 %v4859
        %4960 = vmatprep.subr.mxu0 0.0
        %4961 = vmatpush1.msra.mxu0 %v4858
        %4962 = vmatprep.subr.mxu0 0.0
        %4963 = vmatpush1.msra.mxu0 %v4857
        %4964 = vmatprep.subr.mxu0 0.0
        %4965 = vmatpush1.msra.mxu0 %v4856
        %4966 = vmatprep.subr.mxu0 0.0
        %4967 = vmatpush1.msra.mxu0 %v4855
        %4968 = vmatprep.subr.mxu0 0.0
        %4969 = vmatpush1.msra.mxu0 %v4854
        %4970 = vmatprep.subr.mxu0 0.0
        %4971 = vmatpush1.msra.mxu0 %v4853
        %4972 = vmatprep.subr.mxu0 0.0
        %4973 = vmatpush1.msra.mxu0 %v4852
        %4974 = vmatprep.subr.mxu0 0.0
        %4975 = vmatpush1.msra.mxu0 %v4851
        %4976 = vmatprep.subr.mxu0 0.0
        %4977 = vmatpush1.msra.mxu0 %v4850
        %4978 = vmatprep.subr.mxu0 0.0
        %4979 = vmatpush1.msra.mxu0 %v4849
        %4980 = vmatprep.subr.mxu0 0.0
        %4981 = vmatpush2.msra.mxu0 0.0
        %4982 = vmatprep.subr.mxu0 0.0
        %4983 = vmatpush2.msra.mxu0 0.0
        %4984 = vmatprep.subr.mxu0 0.0
        %4985 = vmatpush2.msra.mxu0 0.0
        %4986 = vmatprep.subr.mxu0 0.0
        %4987 = vmatpush2.msra.mxu0 0.0
        %4988 = vmatprep.subr.mxu0 0.0
        %4989 = vmatpush2.msra.mxu0 0.0
        %4990 = vmatprep.subr.mxu0 0.0
        %4991 = vmatpush2.msra.mxu0 0.0
        %4992 = vmatprep.subr.mxu0 0.0
        %4993 = vmatpush2.msra.mxu0 0.0
        %4994 = vmatprep.subr.mxu0 0.0
        %4995 = vmatpush2.msra.mxu0 0.0
        %4996 = vmatprep.subr.mxu0 0.0
        %4997 = vmatpush2.msra.mxu0 0.0
        %4998 = vmatprep.subr.mxu0 0.0
        %4999 = vmatpush2.msra.mxu0 0.0
        %5000 = vmatprep.subr.mxu0 0.0
        %5001 = vmatpush2.msra.mxu0 0.0
        %5002 = vmatprep.subr.mxu0 0.0
        %5003 = vmatpush2.msra.mxu0 0.0
        %5004 = vmatprep.subr.mxu0 0.0
        %5005 = vmatpush2.msra.mxu0 0.0
        %5006 = vmatprep.subr.mxu0 0.0
        %5007 = vmatpush2.msra.mxu0 0.0
        %5008 = vmatprep.subr.mxu0 0.0
        %5009 = vmatpush2.msra.mxu0 0.0
        %5010 = vmatprep.subr.mxu0 0.0
        %5011 = vmatpush2.msra.mxu0 0.0
        %5012 = vmatprep.mubr.f32.mxu0 0.0
        %5013 = vmatmul.mubr.f32.gmra.mxu0 %v4943
        %v5014 = vpop.f32.mrf.mxu0
        %v5015 = vadd.f32 %v4947, %v5014
        %v5016 = vpop.f32.mrf.mxu0
        %5017 = vdwg.mxu0
        %v5018 = vmax.f32 %v5015, 0.0
        %v5019 = vadd.f32 %v4841, %v5018
        %v5020 = vld [vmem:[%s6 + $0x1f] sm:$0x1]
        %v5021 = vld [vmem:[%s6 + $0x20] sm:$0x1]
        %v5022 = vsel %vm359, %v5019, 0.0
        %5023 = vadd.xlane.f32.xlu0 %v5022
        %v5024 = vpop.xlane.xlu0 %5023
        %v5025 = vmul.f32 %v5024, %v1344
        %v5026 = vsub.f32 %v5019, %v5025
        %v5027 = vmul.f32 %v5026, %v5026
        %v5028 = vsel %vm359, %v5027, 0.0
        %5029 = vadd.xlane.f32.xlu0 %v5028
        %v5030 = vpop.xlane.xlu0 %5029
        %v5031 = vmul.f32 %v5030, %v1344
        %v5032 = vadd.f32 %v5031, 1e-05
        %v5033 = vrsqrt.pop %v5032
        %v5034 = vmul.f32 %v5026, %v5033
        %v5035 = vlaneseq
        %v5036 = vshrl.u32 %v5035, 7
        %v5037 = vsub.s32 0, %v5036
        %v5038 = vrot.slane %v5020, %v5037
        %v5039 = vmul.f32 %v5034, %v5038
        %v5040 = vlaneseq
        %v5041 = vshrl.u32 %v5040, 7
        %v5042 = vsub.s32 0, %v5041
        %v5043 = vrot.slane %v5021, %v5042
        %v5044 = vadd.f32 %v5039, %v5043
        %s5045 = scalar_lea.vmem [#allocation2], 512
        %v5046 = vld [vmem:[%s5045] sm:$0xff]
        %v5047 = vld [vmem:[%s5045 + $0x8] sm:$0xff]
        %v5048 = vld [vmem:[%s5045 + $0x10] sm:$0xff]
        %v5049 = vld [vmem:[%s5045 + $0x18] sm:$0xff]
        %s5050 = scalar_lea.vmem [#allocation2], 544
        %v5051 = vld [vmem:[%s5050] sm:$0xff]
        %v5052 = vld [vmem:[%s5050 + $0x8] sm:$0xff]
        %v5053 = vld [vmem:[%s5050 + $0x10] sm:$0xff]
        %v5054 = vld [vmem:[%s5050 + $0x18] sm:$0xff]
        %s5055 = scalar_lea.vmem [#allocation2], 576
        %v5056 = vld [vmem:[%s5055] sm:$0xff]
        %v5057 = vld [vmem:[%s5055 + $0x8] sm:$0xff]
        %v5058 = vld [vmem:[%s5055 + $0x10] sm:$0xff]
        %v5059 = vld [vmem:[%s5055 + $0x18] sm:$0xff]
        %s5060 = scalar_lea.vmem [#allocation2], 608
        %v5061 = vld [vmem:[%s5060] sm:$0xff]
        %v5062 = vld [vmem:[%s5060 + $0x8] sm:$0xff]
        %v5063 = vld [vmem:[%s5060 + $0x10] sm:$0xff]
        %v5064 = vld [vmem:[%s5060 + $0x18] sm:$0xff]
        %v5065 = vld [vmem:[%s6 + $0x21] sm:$0x1]
        %v5066 = vld [vmem:[%s6 + $0x22] sm:$0x1]
        %v5067 = vld [vmem:[%s6 + $0x23] sm:$0x1]
        %v5068 = vld [vmem:[%s6 + $0x24] sm:$0x1]
        %v5069 = vlaneseq
        %v5070 = vshrl.u32 %v5069, 7
        %v5071 = vsub.s32 0, %v5070
        %v5072 = vrot.slane %v5065, %v5071
        %v5074 = vsel %vm359, %v5044, 0
        %5076 = vmatprep.subr.mxu0 0.0
        %5077 = vmatpush1.msra.mxu0 0.0
        %5078 = vmatprep.subr.mxu0 0.0
        %5079 = vmatpush1.msra.mxu0 0.0
        %5080 = vmatprep.subr.mxu0 0.0
        %5081 = vmatpush1.msra.mxu0 0.0
        %5082 = vmatprep.subr.mxu0 0.0
        %5083 = vmatpush1.msra.mxu0 0.0
        %5084 = vmatprep.subr.mxu0 0.0
        %5085 = vmatpush1.msra.mxu0 0.0
        %5086 = vmatprep.subr.mxu0 0.0
        %5087 = vmatpush1.msra.mxu0 0.0
        %5088 = vmatprep.subr.mxu0 0.0
        %5089 = vmatpush1.msra.mxu0 0.0
        %5090 = vmatprep.subr.mxu0 0.0
        %5091 = vmatpush1.msra.mxu0 0.0
        %5092 = vmatprep.subr.mxu0 0.0
        %5093 = vmatpush1.msra.mxu0 0.0
        %5094 = vmatprep.subr.mxu0 0.0
        %5095 = vmatpush1.msra.mxu0 0.0
        %5096 = vmatprep.subr.mxu0 0.0
        %5097 = vmatpush1.msra.mxu0 0.0
        %5098 = vmatprep.subr.mxu0 0.0
        %5099 = vmatpush1.msra.mxu0 0.0
        %5100 = vmatprep.subr.mxu0 0.0
        %5101 = vmatpush1.msra.mxu0 %v5049
        %5102 = vmatprep.subr.mxu0 0.0
        %5103 = vmatpush1.msra.mxu0 %v5048
        %5104 = vmatprep.subr.mxu0 0.0
        %5105 = vmatpush1.msra.mxu0 %v5047
        %5106 = vmatprep.subr.mxu0 0.0
        %5107 = vmatpush1.msra.mxu0 %v5046
        %5108 = vmatprep.subr.mxu0 0.0
        %5109 = vmatpush2.msra.mxu0 0.0
        %5110 = vmatprep.subr.mxu0 0.0
        %5111 = vmatpush2.msra.mxu0 0.0
        %5112 = vmatprep.subr.mxu0 0.0
        %5113 = vmatpush2.msra.mxu0 0.0
        %5114 = vmatprep.subr.mxu0 0.0
        %5115 = vmatpush2.msra.mxu0 0.0
        %5116 = vmatprep.subr.mxu0 0.0
        %5117 = vmatpush2.msra.mxu0 0.0
        %5118 = vmatprep.subr.mxu0 0.0
        %5119 = vmatpush2.msra.mxu0 0.0
        %5120 = vmatprep.subr.mxu0 0.0
        %5121 = vmatpush2.msra.mxu0 0.0
        %5122 = vmatprep.subr.mxu0 0.0
        %5123 = vmatpush2.msra.mxu0 0.0
        %5124 = vmatprep.subr.mxu0 0.0
        %5125 = vmatpush2.msra.mxu0 0.0
        %5126 = vmatprep.subr.mxu0 0.0
        %5127 = vmatpush2.msra.mxu0 0.0
        %5128 = vmatprep.subr.mxu0 0.0
        %5129 = vmatpush2.msra.mxu0 0.0
        %5130 = vmatprep.subr.mxu0 0.0
        %5131 = vmatpush2.msra.mxu0 0.0
        %5132 = vmatprep.subr.mxu0 0.0
        %5133 = vmatpush2.msra.mxu0 0.0
        %5134 = vmatprep.subr.mxu0 0.0
        %5135 = vmatpush2.msra.mxu0 0.0
        %5136 = vmatprep.subr.mxu0 0.0
        %5137 = vmatpush2.msra.mxu0 0.0
        %5138 = vmatprep.subr.mxu0 0.0
        %5139 = vmatpush2.msra.mxu0 0.0
        %5140 = vmatprep.mubr.f32.mxu0 0.0
        %5141 = vmatmul.mubr.f32.gmra.mxu0 %v5074
        %v5142 = vpop.f32.mrf.mxu0
        %v5143 = vadd.f32 %v5072, %v5142
        %v5144 = vpop.f32.mrf.mxu0
        %5145 = vdwg.mxu0
        %v5146 = vlaneseq
        %v5147 = vshrl.u32 %v5146, 7
        %v5148 = vsub.s32 0, %v5147
        %v5149 = vrot.slane %v5066, %v5148
        %5150 = vmatprep.subr.mxu0 0.0
        %5151 = vmatpush1.msra.mxu0 0.0
        %5152 = vmatprep.subr.mxu0 0.0
        %5153 = vmatpush1.msra.mxu0 0.0
        %5154 = vmatprep.subr.mxu0 0.0
        %5155 = vmatpush1.msra.mxu0 0.0
        %5156 = vmatprep.subr.mxu0 0.0
        %5157 = vmatpush1.msra.mxu0 0.0
        %5158 = vmatprep.subr.mxu0 0.0
        %5159 = vmatpush1.msra.mxu0 0.0
        %5160 = vmatprep.subr.mxu0 0.0
        %5161 = vmatpush1.msra.mxu0 0.0
        %5162 = vmatprep.subr.mxu0 0.0
        %5163 = vmatpush1.msra.mxu0 0.0
        %5164 = vmatprep.subr.mxu0 0.0
        %5165 = vmatpush1.msra.mxu0 0.0
        %5166 = vmatprep.subr.mxu0 0.0
        %5167 = vmatpush1.msra.mxu0 0.0
        %5168 = vmatprep.subr.mxu0 0.0
        %5169 = vmatpush1.msra.mxu0 0.0
        %5170 = vmatprep.subr.mxu0 0.0
        %5171 = vmatpush1.msra.mxu0 0.0
        %5172 = vmatprep.subr.mxu0 0.0
        %5173 = vmatpush1.msra.mxu0 0.0
        %5174 = vmatprep.subr.mxu0 0.0
        %5175 = vmatpush1.msra.mxu0 %v5054
        %5176 = vmatprep.subr.mxu0 0.0
        %5177 = vmatpush1.msra.mxu0 %v5053
        %5178 = vmatprep.subr.mxu0 0.0
        %5179 = vmatpush1.msra.mxu0 %v5052
        %5180 = vmatprep.subr.mxu0 0.0
        %5181 = vmatpush1.msra.mxu0 %v5051
        %5182 = vmatprep.subr.mxu0 0.0
        %5183 = vmatpush2.msra.mxu0 0.0
        %5184 = vmatprep.subr.mxu0 0.0
        %5185 = vmatpush2.msra.mxu0 0.0
        %5186 = vmatprep.subr.mxu0 0.0
        %5187 = vmatpush2.msra.mxu0 0.0
        %5188 = vmatprep.subr.mxu0 0.0
        %5189 = vmatpush2.msra.mxu0 0.0
        %5190 = vmatprep.subr.mxu0 0.0
        %5191 = vmatpush2.msra.mxu0 0.0
        %5192 = vmatprep.subr.mxu0 0.0
        %5193 = vmatpush2.msra.mxu0 0.0
        %5194 = vmatprep.subr.mxu0 0.0
        %5195 = vmatpush2.msra.mxu0 0.0
        %5196 = vmatprep.subr.mxu0 0.0
        %5197 = vmatpush2.msra.mxu0 0.0
        %5198 = vmatprep.subr.mxu0 0.0
        %5199 = vmatpush2.msra.mxu0 0.0
        %5200 = vmatprep.subr.mxu0 0.0
        %5201 = vmatpush2.msra.mxu0 0.0
        %5202 = vmatprep.subr.mxu0 0.0
        %5203 = vmatpush2.msra.mxu0 0.0
        %5204 = vmatprep.subr.mxu0 0.0
        %5205 = vmatpush2.msra.mxu0 0.0
        %5206 = vmatprep.subr.mxu0 0.0
        %5207 = vmatpush2.msra.mxu0 0.0
        %5208 = vmatprep.subr.mxu0 0.0
        %5209 = vmatpush2.msra.mxu0 0.0
        %5210 = vmatprep.subr.mxu0 0.0
        %5211 = vmatpush2.msra.mxu0 0.0
        %5212 = vmatprep.subr.mxu0 0.0
        %5213 = vmatpush2.msra.mxu0 0.0
        %5214 = vmatprep.mubr.f32.mxu0 0.0
        %5215 = vmatmul.mubr.f32.gmra.mxu0 %v5074
        %v5216 = vpop.f32.mrf.mxu0
        %v5217 = vadd.f32 %v5149, %v5216
        %v5218 = vpop.f32.mrf.mxu0
        %5219 = vdwg.mxu0
        %v5220 = vlaneseq
        %v5221 = vshrl.u32 %v5220, 7
        %v5222 = vsub.s32 0, %v5221
        %v5223 = vrot.slane %v5067, %v5222
        %5224 = vmatprep.subr.mxu0 0.0
        %5225 = vmatpush1.msra.mxu0 0.0
        %5226 = vmatprep.subr.mxu0 0.0
        %5227 = vmatpush1.msra.mxu0 0.0
        %5228 = vmatprep.subr.mxu0 0.0
        %5229 = vmatpush1.msra.mxu0 0.0
        %5230 = vmatprep.subr.mxu0 0.0
        %5231 = vmatpush1.msra.mxu0 0.0
        %5232 = vmatprep.subr.mxu0 0.0
        %5233 = vmatpush1.msra.mxu0 0.0
        %5234 = vmatprep.subr.mxu0 0.0
        %5235 = vmatpush1.msra.mxu0 0.0
        %5236 = vmatprep.subr.mxu0 0.0
        %5237 = vmatpush1.msra.mxu0 0.0
        %5238 = vmatprep.subr.mxu0 0.0
        %5239 = vmatpush1.msra.mxu0 0.0
        %5240 = vmatprep.subr.mxu0 0.0
        %5241 = vmatpush1.msra.mxu0 0.0
        %5242 = vmatprep.subr.mxu0 0.0
        %5243 = vmatpush1.msra.mxu0 0.0
        %5244 = vmatprep.subr.mxu0 0.0
        %5245 = vmatpush1.msra.mxu0 0.0
        %5246 = vmatprep.subr.mxu0 0.0
        %5247 = vmatpush1.msra.mxu0 0.0
        %5248 = vmatprep.subr.mxu0 0.0
        %5249 = vmatpush1.msra.mxu0 %v5059
        %5250 = vmatprep.subr.mxu0 0.0
        %5251 = vmatpush1.msra.mxu0 %v5058
        %5252 = vmatprep.subr.mxu0 0.0
        %5253 = vmatpush1.msra.mxu0 %v5057
        %5254 = vmatprep.subr.mxu0 0.0
        %5255 = vmatpush1.msra.mxu0 %v5056
        %5256 = vmatprep.subr.mxu0 0.0
        %5257 = vmatpush2.msra.mxu0 0.0
        %5258 = vmatprep.subr.mxu0 0.0
        %5259 = vmatpush2.msra.mxu0 0.0
        %5260 = vmatprep.subr.mxu0 0.0
        %5261 = vmatpush2.msra.mxu0 0.0
        %5262 = vmatprep.subr.mxu0 0.0
        %5263 = vmatpush2.msra.mxu0 0.0
        %5264 = vmatprep.subr.mxu0 0.0
        %5265 = vmatpush2.msra.mxu0 0.0
        %5266 = vmatprep.subr.mxu0 0.0
        %5267 = vmatpush2.msra.mxu0 0.0
        %5268 = vmatprep.subr.mxu0 0.0
        %5269 = vmatpush2.msra.mxu0 0.0
        %5270 = vmatprep.subr.mxu0 0.0
        %5271 = vmatpush2.msra.mxu0 0.0
        %5272 = vmatprep.subr.mxu0 0.0
        %5273 = vmatpush2.msra.mxu0 0.0
        %5274 = vmatprep.subr.mxu0 0.0
        %5275 = vmatpush2.msra.mxu0 0.0
        %5276 = vmatprep.subr.mxu0 0.0
        %5277 = vmatpush2.msra.mxu0 0.0
        %5278 = vmatprep.subr.mxu0 0.0
        %5279 = vmatpush2.msra.mxu0 0.0
        %5280 = vmatprep.subr.mxu0 0.0
        %5281 = vmatpush2.msra.mxu0 0.0
        %5282 = vmatprep.subr.mxu0 0.0
        %5283 = vmatpush2.msra.mxu0 0.0
        %5284 = vmatprep.subr.mxu0 0.0
        %5285 = vmatpush2.msra.mxu0 0.0
        %5286 = vmatprep.subr.mxu0 0.0
        %5287 = vmatpush2.msra.mxu0 0.0
        %5288 = vmatprep.mubr.f32.mxu0 0.0
        %5289 = vmatmul.mubr.f32.gmra.mxu0 %v5074
        %v5290 = vpop.f32.mrf.mxu0
        %v5291 = vadd.f32 %v5223, %v5290
        %v5292 = vpop.f32.mrf.mxu0
        %5293 = vdwg.mxu0
        %v5295 = vsel %vm587, %v5143, 0
        %v5298 = vsel %vm587, %v5217, 0
        %5300 = vmatprep.subr.mxu0 0.0
        %5301 = vmatpush1.xpose.msra.mxu0 0.0
        %5302 = vmatprep.subr.mxu0 0.0
        %5303 = vmatpush1.xpose.msra.mxu0 0.0
        %5304 = vmatprep.subr.mxu0 0.0
        %5305 = vmatpush1.xpose.msra.mxu0 0.0
        %5306 = vmatprep.subr.mxu0 0.0
        %5307 = vmatpush1.xpose.msra.mxu0 0.0
        %5308 = vmatprep.subr.mxu0 0.0
        %5309 = vmatpush1.xpose.msra.mxu0 0.0
        %5310 = vmatprep.subr.mxu0 0.0
        %5311 = vmatpush1.xpose.msra.mxu0 0.0
        %5312 = vmatprep.subr.mxu0 0.0
        %5313 = vmatpush1.xpose.msra.mxu0 0.0
        %5314 = vmatprep.subr.mxu0 0.0
        %5315 = vmatpush1.xpose.msra.mxu0 0.0
        %5316 = vmatprep.subr.mxu0 0.0
        %5317 = vmatpush1.xpose.msra.mxu0 0.0
        %5318 = vmatprep.subr.mxu0 0.0
        %5319 = vmatpush1.xpose.msra.mxu0 0.0
        %5320 = vmatprep.subr.mxu0 0.0
        %5321 = vmatpush1.xpose.msra.mxu0 0.0
        %5322 = vmatprep.subr.mxu0 0.0
        %5323 = vmatpush1.xpose.msra.mxu0 0.0
        %5324 = vmatprep.subr.mxu0 0.0
        %5325 = vmatpush1.xpose.msra.mxu0 0.0
        %5326 = vmatprep.subr.mxu0 0.0
        %5327 = vmatpush1.xpose.msra.mxu0 0.0
        %5328 = vmatprep.subr.mxu0 0.0
        %5329 = vmatpush1.xpose.msra.mxu0 0.0
        %5330 = vmatprep.subr.mxu0 0.0
        %5331 = vmatpush1.xpose.msra.mxu0 %v5298
        %5332 = vmatprep.subr.mxu0 0.0
        %5333 = vmatpush2.xpose.msra.mxu0 0.0
        %5334 = vmatprep.subr.mxu0 0.0
        %5335 = vmatpush2.xpose.msra.mxu0 0.0
        %5336 = vmatprep.subr.mxu0 0.0
        %5337 = vmatpush2.xpose.msra.mxu0 0.0
        %5338 = vmatprep.subr.mxu0 0.0
        %5339 = vmatpush2.xpose.msra.mxu0 0.0
        %5340 = vmatprep.subr.mxu0 0.0
        %5341 = vmatpush2.xpose.msra.mxu0 0.0
        %5342 = vmatprep.subr.mxu0 0.0
        %5343 = vmatpush2.xpose.msra.mxu0 0.0
        %5344 = vmatprep.subr.mxu0 0.0
        %5345 = vmatpush2.xpose.msra.mxu0 0.0
        %5346 = vmatprep.subr.mxu0 0.0
        %5347 = vmatpush2.xpose.msra.mxu0 0.0
        %5348 = vmatprep.subr.mxu0 0.0
        %5349 = vmatpush2.xpose.msra.mxu0 0.0
        %5350 = vmatprep.subr.mxu0 0.0
        %5351 = vmatpush2.xpose.msra.mxu0 0.0
        %5352 = vmatprep.subr.mxu0 0.0
        %5353 = vmatpush2.xpose.msra.mxu0 0.0
        %5354 = vmatprep.subr.mxu0 0.0
        %5355 = vmatpush2.xpose.msra.mxu0 0.0
        %5356 = vmatprep.subr.mxu0 0.0
        %5357 = vmatpush2.xpose.msra.mxu0 0.0
        %5358 = vmatprep.subr.mxu0 0.0
        %5359 = vmatpush2.xpose.msra.mxu0 0.0
        %5360 = vmatprep.subr.mxu0 0.0
        %5361 = vmatpush2.xpose.msra.mxu0 0.0
        %5362 = vmatprep.subr.mxu0 0.0
        %5363 = vmatpush2.xpose.msra.mxu0 0.0
        %5364 = vmatprep.mubr.f32.mxu0 0.0
        %5365 = vmatmul.mubr.f32.gmra.mxu0 %v5295
        %v5366 = vpop.f32.mrf.mxu0
        %v5367 = vadd.f32 %v585, %v5366
        %v5368 = vpop.f32.mrf.mxu0
        %5369 = vdwg.mxu0
        %v5370 = vsel %vm587, %v5367, -inf
        %5371 = vmax.xlane.f32.xlu0 %v5370
        %v5372 = vpop.xlane.xlu0 %5371
        %v5373 = vsub.f32 %v5367, %v5372
        %v5374 = vmul.f32 %v5373, 1.442695
        %v5375 = vpow.pop %v5374
        %v5376 = vsel %vm587, %v5375, 0.0
        %5377 = vadd.xlane.f32.xlu0 %v5376
        %v5378 = vpop.xlane.xlu0 %5377
        %v5379 = vrcp.pop %v5378
        %v5380 = vmul.f32 %v5375, %v5379
        %v5382 = vsel %vm587, %v5380, 0
        %5384 = vmatprep.subr.mxu0 0.0
        %5385 = vmatpush1.msra.mxu0 0.0
        %5386 = vmatprep.subr.mxu0 0.0
        %5387 = vmatpush1.msra.mxu0 0.0
        %5388 = vmatprep.subr.mxu0 0.0
        %5389 = vmatpush1.msra.mxu0 0.0
        %5390 = vmatprep.subr.mxu0 0.0
        %5391 = vmatpush1.msra.mxu0 0.0
        %5392 = vmatprep.subr.mxu0 0.0
        %5393 = vmatpush1.msra.mxu0 0.0
        %5394 = vmatprep.subr.mxu0 0.0
        %5395 = vmatpush1.msra.mxu0 0.0
        %5396 = vmatprep.subr.mxu0 0.0
        %5397 = vmatpush1.msra.mxu0 0.0
        %5398 = vmatprep.subr.mxu0 0.0
        %5399 = vmatpush1.msra.mxu0 0.0
        %5400 = vmatprep.subr.mxu0 0.0
        %5401 = vmatpush1.msra.mxu0 0.0
        %5402 = vmatprep.subr.mxu0 0.0
        %5403 = vmatpush1.msra.mxu0 0.0
        %5404 = vmatprep.subr.mxu0 0.0
        %5405 = vmatpush1.msra.mxu0 0.0
        %5406 = vmatprep.subr.mxu0 0.0
        %5407 = vmatpush1.msra.mxu0 0.0
        %5408 = vmatprep.subr.mxu0 0.0
        %5409 = vmatpush1.msra.mxu0 0.0
        %5410 = vmatprep.subr.mxu0 0.0
        %5411 = vmatpush1.msra.mxu0 0.0
        %5412 = vmatprep.subr.mxu0 0.0
        %5413 = vmatpush1.msra.mxu0 0.0
        %5414 = vmatprep.subr.mxu0 0.0
        %5415 = vmatpush1.msra.mxu0 %v5291
        %5416 = vmatprep.subr.mxu0 0.0
        %5417 = vmatpush2.msra.mxu0 0.0
        %5418 = vmatprep.subr.mxu0 0.0
        %5419 = vmatpush2.msra.mxu0 0.0
        %5420 = vmatprep.subr.mxu0 0.0
        %5421 = vmatpush2.msra.mxu0 0.0
        %5422 = vmatprep.subr.mxu0 0.0
        %5423 = vmatpush2.msra.mxu0 0.0
        %5424 = vmatprep.subr.mxu0 0.0
        %5425 = vmatpush2.msra.mxu0 0.0
        %5426 = vmatprep.subr.mxu0 0.0
        %5427 = vmatpush2.msra.mxu0 0.0
        %5428 = vmatprep.subr.mxu0 0.0
        %5429 = vmatpush2.msra.mxu0 0.0
        %5430 = vmatprep.subr.mxu0 0.0
        %5431 = vmatpush2.msra.mxu0 0.0
        %5432 = vmatprep.subr.mxu0 0.0
        %5433 = vmatpush2.msra.mxu0 0.0
        %5434 = vmatprep.subr.mxu0 0.0
        %5435 = vmatpush2.msra.mxu0 0.0
        %5436 = vmatprep.subr.mxu0 0.0
        %5437 = vmatpush2.msra.mxu0 0.0
        %5438 = vmatprep.subr.mxu0 0.0
        %5439 = vmatpush2.msra.mxu0 0.0
        %5440 = vmatprep.subr.mxu0 0.0
        %5441 = vmatpush2.msra.mxu0 0.0
        %5442 = vmatprep.subr.mxu0 0.0
        %5443 = vmatpush2.msra.mxu0 0.0
        %5444 = vmatprep.subr.mxu0 0.0
        %5445 = vmatpush2.msra.mxu0 0.0
        %5446 = vmatprep.subr.mxu0 0.0
        %5447 = vmatpush2.msra.mxu0 0.0
        %5448 = vmatprep.mubr.f32.mxu0 0.0
        %5449 = vmatmul.mubr.f32.gmra.mxu0 %v5382
        %v5450 = vpop.f32.mrf.mxu0
        %v5451 = vadd.f32 0.0, %v5450
        %v5452 = vpop.f32.mrf.mxu0
        %5453 = vdwg.mxu0
        %5454 = vrot.lane.b32.xlu0 %v5143, 120
        %v5455 = vpop.permute.xlu0 %5454
        %5456 = vrot.lane.b32.xlu0 %v5217, 120
        %v5457 = vpop.permute.xlu0 %5456
        %v5458 = vsel %vm587, %v5455, 0
        %v5460 = vsel %vm587, %v5457, 0
        %5462 = vmatprep.subr.mxu0 0.0
        %5463 = vmatpush1.xpose.msra.mxu0 0.0
        %5464 = vmatprep.subr.mxu0 0.0
        %5465 = vmatpush1.xpose.msra.mxu0 0.0
        %5466 = vmatprep.subr.mxu0 0.0
        %5467 = vmatpush1.xpose.msra.mxu0 0.0
        %5468 = vmatprep.subr.mxu0 0.0
        %5469 = vmatpush1.xpose.msra.mxu0 0.0
        %5470 = vmatprep.subr.mxu0 0.0
        %5471 = vmatpush1.xpose.msra.mxu0 0.0
        %5472 = vmatprep.subr.mxu0 0.0
        %5473 = vmatpush1.xpose.msra.mxu0 0.0
        %5474 = vmatprep.subr.mxu0 0.0
        %5475 = vmatpush1.xpose.msra.mxu0 0.0
        %5476 = vmatprep.subr.mxu0 0.0
        %5477 = vmatpush1.xpose.msra.mxu0 0.0
        %5478 = vmatprep.subr.mxu0 0.0
        %5479 = vmatpush1.xpose.msra.mxu0 0.0
        %5480 = vmatprep.subr.mxu0 0.0
        %5481 = vmatpush1.xpose.msra.mxu0 0.0
        %5482 = vmatprep.subr.mxu0 0.0
        %5483 = vmatpush1.xpose.msra.mxu0 0.0
        %5484 = vmatprep.subr.mxu0 0.0
        %5485 = vmatpush1.xpose.msra.mxu0 0.0
        %5486 = vmatprep.subr.mxu0 0.0
        %5487 = vmatpush1.xpose.msra.mxu0 0.0
        %5488 = vmatprep.subr.mxu0 0.0
        %5489 = vmatpush1.xpose.msra.mxu0 0.0
        %5490 = vmatprep.subr.mxu0 0.0
        %5491 = vmatpush1.xpose.msra.mxu0 0.0
        %5492 = vmatprep.subr.mxu0 0.0
        %5493 = vmatpush1.xpose.msra.mxu0 %v5460
        %5494 = vmatprep.subr.mxu0 0.0
        %5495 = vmatpush2.xpose.msra.mxu0 0.0
        %5496 = vmatprep.subr.mxu0 0.0
        %5497 = vmatpush2.xpose.msra.mxu0 0.0
        %5498 = vmatprep.subr.mxu0 0.0
        %5499 = vmatpush2.xpose.msra.mxu0 0.0
        %5500 = vmatprep.subr.mxu0 0.0
        %5501 = vmatpush2.xpose.msra.mxu0 0.0
        %5502 = vmatprep.subr.mxu0 0.0
        %5503 = vmatpush2.xpose.msra.mxu0 0.0
        %5504 = vmatprep.subr.mxu0 0.0
        %5505 = vmatpush2.xpose.msra.mxu0 0.0
        %5506 = vmatprep.subr.mxu0 0.0
        %5507 = vmatpush2.xpose.msra.mxu0 0.0
        %5508 = vmatprep.subr.mxu0 0.0
        %5509 = vmatpush2.xpose.msra.mxu0 0.0
        %5510 = vmatprep.subr.mxu0 0.0
        %5511 = vmatpush2.xpose.msra.mxu0 0.0
        %5512 = vmatprep.subr.mxu0 0.0
        %5513 = vmatpush2.xpose.msra.mxu0 0.0
        %5514 = vmatprep.subr.mxu0 0.0
        %5515 = vmatpush2.xpose.msra.mxu0 0.0
        %5516 = vmatprep.subr.mxu0 0.0
        %5517 = vmatpush2.xpose.msra.mxu0 0.0
        %5518 = vmatprep.subr.mxu0 0.0
        %5519 = vmatpush2.xpose.msra.mxu0 0.0
        %5520 = vmatprep.subr.mxu0 0.0
        %5521 = vmatpush2.xpose.msra.mxu0 0.0
        %5522 = vmatprep.subr.mxu0 0.0
        %5523 = vmatpush2.xpose.msra.mxu0 0.0
        %5524 = vmatprep.subr.mxu0 0.0
        %5525 = vmatpush2.xpose.msra.mxu0 0.0
        %5526 = vmatprep.mubr.f32.mxu0 0.0
        %5527 = vmatmul.mubr.f32.gmra.mxu0 %v5458
        %v5528 = vpop.f32.mrf.mxu0
        %v5529 = vadd.f32 %v585, %v5528
        %v5530 = vpop.f32.mrf.mxu0
        %5531 = vdwg.mxu0
        %v5532 = vsel %vm587, %v5529, -inf
        %5533 = vmax.xlane.f32.xlu0 %v5532
        %v5534 = vpop.xlane.xlu0 %5533
        %v5535 = vsub.f32 %v5529, %v5534
        %v5536 = vmul.f32 %v5535, 1.442695
        %v5537 = vpow.pop %v5536
        %v5538 = vsel %vm587, %v5537, 0.0
        %5539 = vadd.xlane.f32.xlu0 %v5538
        %v5540 = vpop.xlane.xlu0 %5539
        %v5541 = vrcp.pop %v5540
        %v5542 = vmul.f32 %v5537, %v5541
        %5544 = vrot.lane.b32.xlu0 %v5291, 120
        %v5545 = vpop.permute.xlu0 %5544
        %v5548 = vsel %vm587, %v5542, 0
        %5550 = vmatprep.subr.mxu0 0.0
        %5551 = vmatpush1.msra.mxu0 0.0
        %5552 = vmatprep.subr.mxu0 0.0
        %5553 = vmatpush1.msra.mxu0 0.0
        %5554 = vmatprep.subr.mxu0 0.0
        %5555 = vmatpush1.msra.mxu0 0.0
        %5556 = vmatprep.subr.mxu0 0.0
        %5557 = vmatpush1.msra.mxu0 0.0
        %5558 = vmatprep.subr.mxu0 0.0
        %5559 = vmatpush1.msra.mxu0 0.0
        %5560 = vmatprep.subr.mxu0 0.0
        %5561 = vmatpush1.msra.mxu0 0.0
        %5562 = vmatprep.subr.mxu0 0.0
        %5563 = vmatpush1.msra.mxu0 0.0
        %5564 = vmatprep.subr.mxu0 0.0
        %5565 = vmatpush1.msra.mxu0 0.0
        %5566 = vmatprep.subr.mxu0 0.0
        %5567 = vmatpush1.msra.mxu0 0.0
        %5568 = vmatprep.subr.mxu0 0.0
        %5569 = vmatpush1.msra.mxu0 0.0
        %5570 = vmatprep.subr.mxu0 0.0
        %5571 = vmatpush1.msra.mxu0 0.0
        %5572 = vmatprep.subr.mxu0 0.0
        %5573 = vmatpush1.msra.mxu0 0.0
        %5574 = vmatprep.subr.mxu0 0.0
        %5575 = vmatpush1.msra.mxu0 0.0
        %5576 = vmatprep.subr.mxu0 0.0
        %5577 = vmatpush1.msra.mxu0 0.0
        %5578 = vmatprep.subr.mxu0 0.0
        %5579 = vmatpush1.msra.mxu0 0.0
        %5580 = vmatprep.subr.mxu0 0.0
        %5581 = vmatpush1.msra.mxu0 %v5545
        %5582 = vmatprep.subr.mxu0 0.0
        %5583 = vmatpush2.msra.mxu0 0.0
        %5584 = vmatprep.subr.mxu0 0.0
        %5585 = vmatpush2.msra.mxu0 0.0
        %5586 = vmatprep.subr.mxu0 0.0
        %5587 = vmatpush2.msra.mxu0 0.0
        %5588 = vmatprep.subr.mxu0 0.0
        %5589 = vmatpush2.msra.mxu0 0.0
        %5590 = vmatprep.subr.mxu0 0.0
        %5591 = vmatpush2.msra.mxu0 0.0
        %5592 = vmatprep.subr.mxu0 0.0
        %5593 = vmatpush2.msra.mxu0 0.0
        %5594 = vmatprep.subr.mxu0 0.0
        %5595 = vmatpush2.msra.mxu0 0.0
        %5596 = vmatprep.subr.mxu0 0.0
        %5597 = vmatpush2.msra.mxu0 0.0
        %5598 = vmatprep.subr.mxu0 0.0
        %5599 = vmatpush2.msra.mxu0 0.0
        %5600 = vmatprep.subr.mxu0 0.0
        %5601 = vmatpush2.msra.mxu0 0.0
        %5602 = vmatprep.subr.mxu0 0.0
        %5603 = vmatpush2.msra.mxu0 0.0
        %5604 = vmatprep.subr.mxu0 0.0
        %5605 = vmatpush2.msra.mxu0 0.0
        %5606 = vmatprep.subr.mxu0 0.0
        %5607 = vmatpush2.msra.mxu0 0.0
        %5608 = vmatprep.subr.mxu0 0.0
        %5609 = vmatpush2.msra.mxu0 0.0
        %5610 = vmatprep.subr.mxu0 0.0
        %5611 = vmatpush2.msra.mxu0 0.0
        %5612 = vmatprep.subr.mxu0 0.0
        %5613 = vmatpush2.msra.mxu0 0.0
        %5614 = vmatprep.mubr.f32.mxu0 0.0
        %5615 = vmatmul.mubr.f32.gmra.mxu0 %v5548
        %v5616 = vpop.f32.mrf.mxu0
        %v5617 = vadd.f32 0.0, %v5616
        %v5618 = vpop.f32.mrf.mxu0
        %5619 = vdwg.mxu0
        %5620 = vrot.lane.b32.xlu0 %v5143, 112
        %v5621 = vpop.permute.xlu0 %5620
        %5622 = vrot.lane.b32.xlu0 %v5217, 112
        %v5623 = vpop.permute.xlu0 %5622
        %v5624 = vsel %vm587, %v5621, 0
        %v5626 = vsel %vm587, %v5623, 0
        %5628 = vmatprep.subr.mxu0 0.0
        %5629 = vmatpush1.xpose.msra.mxu0 0.0
        %5630 = vmatprep.subr.mxu0 0.0
        %5631 = vmatpush1.xpose.msra.mxu0 0.0
        %5632 = vmatprep.subr.mxu0 0.0
        %5633 = vmatpush1.xpose.msra.mxu0 0.0
        %5634 = vmatprep.subr.mxu0 0.0
        %5635 = vmatpush1.xpose.msra.mxu0 0.0
        %5636 = vmatprep.subr.mxu0 0.0
        %5637 = vmatpush1.xpose.msra.mxu0 0.0
        %5638 = vmatprep.subr.mxu0 0.0
        %5639 = vmatpush1.xpose.msra.mxu0 0.0
        %5640 = vmatprep.subr.mxu0 0.0
        %5641 = vmatpush1.xpose.msra.mxu0 0.0
        %5642 = vmatprep.subr.mxu0 0.0
        %5643 = vmatpush1.xpose.msra.mxu0 0.0
        %5644 = vmatprep.subr.mxu0 0.0
        %5645 = vmatpush1.xpose.msra.mxu0 0.0
        %5646 = vmatprep.subr.mxu0 0.0
        %5647 = vmatpush1.xpose.msra.mxu0 0.0
        %5648 = vmatprep.subr.mxu0 0.0
        %5649 = vmatpush1.xpose.msra.mxu0 0.0
        %5650 = vmatprep.subr.mxu0 0.0
        %5651 = vmatpush1.xpose.msra.mxu0 0.0
        %5652 = vmatprep.subr.mxu0 0.0
        %5653 = vmatpush1.xpose.msra.mxu0 0.0
        %5654 = vmatprep.subr.mxu0 0.0
        %5655 = vmatpush1.xpose.msra.mxu0 0.0
        %5656 = vmatprep.subr.mxu0 0.0
        %5657 = vmatpush1.xpose.msra.mxu0 0.0
        %5658 = vmatprep.subr.mxu0 0.0
        %5659 = vmatpush1.xpose.msra.mxu0 %v5626
        %5660 = vmatprep.subr.mxu0 0.0
        %5661 = vmatpush2.xpose.msra.mxu0 0.0
        %5662 = vmatprep.subr.mxu0 0.0
        %5663 = vmatpush2.xpose.msra.mxu0 0.0
        %5664 = vmatprep.subr.mxu0 0.0
        %5665 = vmatpush2.xpose.msra.mxu0 0.0
        %5666 = vmatprep.subr.mxu0 0.0
        %5667 = vmatpush2.xpose.msra.mxu0 0.0
        %5668 = vmatprep.subr.mxu0 0.0
        %5669 = vmatpush2.xpose.msra.mxu0 0.0
        %5670 = vmatprep.subr.mxu0 0.0
        %5671 = vmatpush2.xpose.msra.mxu0 0.0
        %5672 = vmatprep.subr.mxu0 0.0
        %5673 = vmatpush2.xpose.msra.mxu0 0.0
        %5674 = vmatprep.subr.mxu0 0.0
        %5675 = vmatpush2.xpose.msra.mxu0 0.0
        %5676 = vmatprep.subr.mxu0 0.0
        %5677 = vmatpush2.xpose.msra.mxu0 0.0
        %5678 = vmatprep.subr.mxu0 0.0
        %5679 = vmatpush2.xpose.msra.mxu0 0.0
        %5680 = vmatprep.subr.mxu0 0.0
        %5681 = vmatpush2.xpose.msra.mxu0 0.0
        %5682 = vmatprep.subr.mxu0 0.0
        %5683 = vmatpush2.xpose.msra.mxu0 0.0
        %5684 = vmatprep.subr.mxu0 0.0
        %5685 = vmatpush2.xpose.msra.mxu0 0.0
        %5686 = vmatprep.subr.mxu0 0.0
        %5687 = vmatpush2.xpose.msra.mxu0 0.0
        %5688 = vmatprep.subr.mxu0 0.0
        %5689 = vmatpush2.xpose.msra.mxu0 0.0
        %5690 = vmatprep.subr.mxu0 0.0
        %5691 = vmatpush2.xpose.msra.mxu0 0.0
        %5692 = vmatprep.mubr.f32.mxu0 0.0
        %5693 = vmatmul.mubr.f32.gmra.mxu0 %v5624
        %v5694 = vpop.f32.mrf.mxu0
        %v5695 = vadd.f32 %v585, %v5694
        %v5696 = vpop.f32.mrf.mxu0
        %5697 = vdwg.mxu0
        %v5698 = vsel %vm587, %v5695, -inf
        %5699 = vmax.xlane.f32.xlu0 %v5698
        %v5700 = vpop.xlane.xlu0 %5699
        %v5701 = vsub.f32 %v5695, %v5700
        %v5702 = vmul.f32 %v5701, 1.442695
        %v5703 = vpow.pop %v5702
        %v5704 = vsel %vm587, %v5703, 0.0
        %5705 = vadd.xlane.f32.xlu0 %v5704
        %v5706 = vpop.xlane.xlu0 %5705
        %v5707 = vrcp.pop %v5706
        %v5708 = vmul.f32 %v5703, %v5707
        %5709 = vrot.lane.b32.xlu0 %v5291, 112
        %v5710 = vpop.permute.xlu0 %5709
        %v5713 = vsel %vm587, %v5708, 0
        %5715 = vmatprep.subr.mxu0 0.0
        %5716 = vmatpush1.msra.mxu0 0.0
        %5717 = vmatprep.subr.mxu0 0.0
        %5718 = vmatpush1.msra.mxu0 0.0
        %5719 = vmatprep.subr.mxu0 0.0
        %5720 = vmatpush1.msra.mxu0 0.0
        %5721 = vmatprep.subr.mxu0 0.0
        %5722 = vmatpush1.msra.mxu0 0.0
        %5723 = vmatprep.subr.mxu0 0.0
        %5724 = vmatpush1.msra.mxu0 0.0
        %5725 = vmatprep.subr.mxu0 0.0
        %5726 = vmatpush1.msra.mxu0 0.0
        %5727 = vmatprep.subr.mxu0 0.0
        %5728 = vmatpush1.msra.mxu0 0.0
        %5729 = vmatprep.subr.mxu0 0.0
        %5730 = vmatpush1.msra.mxu0 0.0
        %5731 = vmatprep.subr.mxu0 0.0
        %5732 = vmatpush1.msra.mxu0 0.0
        %5733 = vmatprep.subr.mxu0 0.0
        %5734 = vmatpush1.msra.mxu0 0.0
        %5735 = vmatprep.subr.mxu0 0.0
        %5736 = vmatpush1.msra.mxu0 0.0
        %5737 = vmatprep.subr.mxu0 0.0
        %5738 = vmatpush1.msra.mxu0 0.0
        %5739 = vmatprep.subr.mxu0 0.0
        %5740 = vmatpush1.msra.mxu0 0.0
        %5741 = vmatprep.subr.mxu0 0.0
        %5742 = vmatpush1.msra.mxu0 0.0
        %5743 = vmatprep.subr.mxu0 0.0
        %5744 = vmatpush1.msra.mxu0 0.0
        %5745 = vmatprep.subr.mxu0 0.0
        %5746 = vmatpush1.msra.mxu0 %v5710
        %5747 = vmatprep.subr.mxu0 0.0
        %5748 = vmatpush2.msra.mxu0 0.0
        %5749 = vmatprep.subr.mxu0 0.0
        %5750 = vmatpush2.msra.mxu0 0.0
        %5751 = vmatprep.subr.mxu0 0.0
        %5752 = vmatpush2.msra.mxu0 0.0
        %5753 = vmatprep.subr.mxu0 0.0
        %5754 = vmatpush2.msra.mxu0 0.0
        %5755 = vmatprep.subr.mxu0 0.0
        %5756 = vmatpush2.msra.mxu0 0.0
        %5757 = vmatprep.subr.mxu0 0.0
        %5758 = vmatpush2.msra.mxu0 0.0
        %5759 = vmatprep.subr.mxu0 0.0
        %5760 = vmatpush2.msra.mxu0 0.0
        %5761 = vmatprep.subr.mxu0 0.0
        %5762 = vmatpush2.msra.mxu0 0.0
        %5763 = vmatprep.subr.mxu0 0.0
        %5764 = vmatpush2.msra.mxu0 0.0
        %5765 = vmatprep.subr.mxu0 0.0
        %5766 = vmatpush2.msra.mxu0 0.0
        %5767 = vmatprep.subr.mxu0 0.0
        %5768 = vmatpush2.msra.mxu0 0.0
        %5769 = vmatprep.subr.mxu0 0.0
        %5770 = vmatpush2.msra.mxu0 0.0
        %5771 = vmatprep.subr.mxu0 0.0
        %5772 = vmatpush2.msra.mxu0 0.0
        %5773 = vmatprep.subr.mxu0 0.0
        %5774 = vmatpush2.msra.mxu0 0.0
        %5775 = vmatprep.subr.mxu0 0.0
        %5776 = vmatpush2.msra.mxu0 0.0
        %5777 = vmatprep.subr.mxu0 0.0
        %5778 = vmatpush2.msra.mxu0 0.0
        %5779 = vmatprep.mubr.f32.mxu0 0.0
        %5780 = vmatmul.mubr.f32.gmra.mxu0 %v5713
        %v5781 = vpop.f32.mrf.mxu0
        %v5782 = vadd.f32 0.0, %v5781
        %v5783 = vpop.f32.mrf.mxu0
        %5784 = vdwg.mxu0
        %5785 = vrot.lane.b32.xlu0 %v5143, 104
        %v5786 = vpop.permute.xlu0 %5785
        %5787 = vrot.lane.b32.xlu0 %v5217, 104
        %v5788 = vpop.permute.xlu0 %5787
        %v5789 = vsel %vm587, %v5786, 0
        %v5791 = vsel %vm587, %v5788, 0
        %5793 = vmatprep.subr.mxu0 0.0
        %5794 = vmatpush1.xpose.msra.mxu0 0.0
        %5795 = vmatprep.subr.mxu0 0.0
        %5796 = vmatpush1.xpose.msra.mxu0 0.0
        %5797 = vmatprep.subr.mxu0 0.0
        %5798 = vmatpush1.xpose.msra.mxu0 0.0
        %5799 = vmatprep.subr.mxu0 0.0
        %5800 = vmatpush1.xpose.msra.mxu0 0.0
        %5801 = vmatprep.subr.mxu0 0.0
        %5802 = vmatpush1.xpose.msra.mxu0 0.0
        %5803 = vmatprep.subr.mxu0 0.0
        %5804 = vmatpush1.xpose.msra.mxu0 0.0
        %5805 = vmatprep.subr.mxu0 0.0
        %5806 = vmatpush1.xpose.msra.mxu0 0.0
        %5807 = vmatprep.subr.mxu0 0.0
        %5808 = vmatpush1.xpose.msra.mxu0 0.0
        %5809 = vmatprep.subr.mxu0 0.0
        %5810 = vmatpush1.xpose.msra.mxu0 0.0
        %5811 = vmatprep.subr.mxu0 0.0
        %5812 = vmatpush1.xpose.msra.mxu0 0.0
        %5813 = vmatprep.subr.mxu0 0.0
        %5814 = vmatpush1.xpose.msra.mxu0 0.0
        %5815 = vmatprep.subr.mxu0 0.0
        %5816 = vmatpush1.xpose.msra.mxu0 0.0
        %5817 = vmatprep.subr.mxu0 0.0
        %5818 = vmatpush1.xpose.msra.mxu0 0.0
        %5819 = vmatprep.subr.mxu0 0.0
        %5820 = vmatpush1.xpose.msra.mxu0 0.0
        %5821 = vmatprep.subr.mxu0 0.0
        %5822 = vmatpush1.xpose.msra.mxu0 0.0
        %5823 = vmatprep.subr.mxu0 0.0
        %5824 = vmatpush1.xpose.msra.mxu0 %v5791
        %5825 = vmatprep.subr.mxu0 0.0
        %5826 = vmatpush2.xpose.msra.mxu0 0.0
        %5827 = vmatprep.subr.mxu0 0.0
        %5828 = vmatpush2.xpose.msra.mxu0 0.0
        %5829 = vmatprep.subr.mxu0 0.0
        %5830 = vmatpush2.xpose.msra.mxu0 0.0
        %5831 = vmatprep.subr.mxu0 0.0
        %5832 = vmatpush2.xpose.msra.mxu0 0.0
        %5833 = vmatprep.subr.mxu0 0.0
        %5834 = vmatpush2.xpose.msra.mxu0 0.0
        %5835 = vmatprep.subr.mxu0 0.0
        %5836 = vmatpush2.xpose.msra.mxu0 0.0
        %5837 = vmatprep.subr.mxu0 0.0
        %5838 = vmatpush2.xpose.msra.mxu0 0.0
        %5839 = vmatprep.subr.mxu0 0.0
        %5840 = vmatpush2.xpose.msra.mxu0 0.0
        %5841 = vmatprep.subr.mxu0 0.0
        %5842 = vmatpush2.xpose.msra.mxu0 0.0
        %5843 = vmatprep.subr.mxu0 0.0
        %5844 = vmatpush2.xpose.msra.mxu0 0.0
        %5845 = vmatprep.subr.mxu0 0.0
        %5846 = vmatpush2.xpose.msra.mxu0 0.0
        %5847 = vmatprep.subr.mxu0 0.0
        %5848 = vmatpush2.xpose.msra.mxu0 0.0
        %5849 = vmatprep.subr.mxu0 0.0
        %5850 = vmatpush2.xpose.msra.mxu0 0.0
        %5851 = vmatprep.subr.mxu0 0.0
        %5852 = vmatpush2.xpose.msra.mxu0 0.0
        %5853 = vmatprep.subr.mxu0 0.0
        %5854 = vmatpush2.xpose.msra.mxu0 0.0
        %5855 = vmatprep.subr.mxu0 0.0
        %5856 = vmatpush2.xpose.msra.mxu0 0.0
        %5857 = vmatprep.mubr.f32.mxu0 0.0
        %5858 = vmatmul.mubr.f32.gmra.mxu0 %v5789
        %v5859 = vpop.f32.mrf.mxu0
        %v5860 = vadd.f32 %v585, %v5859
        %v5861 = vpop.f32.mrf.mxu0
        %5862 = vdwg.mxu0
        %v5863 = vsel %vm587, %v5860, -inf
        %5864 = vmax.xlane.f32.xlu0 %v5863
        %v5865 = vpop.xlane.xlu0 %5864
        %v5866 = vsub.f32 %v5860, %v5865
        %v5867 = vmul.f32 %v5866, 1.442695
        %v5868 = vpow.pop %v5867
        %v5869 = vsel %vm587, %v5868, 0.0
        %5870 = vadd.xlane.f32.xlu0 %v5869
        %v5871 = vpop.xlane.xlu0 %5870
        %v5872 = vrcp.pop %v5871
        %v5873 = vmul.f32 %v5868, %v5872
        %5874 = vrot.lane.b32.xlu0 %v5291, 104
        %v5875 = vpop.permute.xlu0 %5874
        %v5878 = vsel %vm587, %v5873, 0
        %5880 = vmatprep.subr.mxu0 0.0
        %5881 = vmatpush1.msra.mxu0 0.0
        %5882 = vmatprep.subr.mxu0 0.0
        %5883 = vmatpush1.msra.mxu0 0.0
        %5884 = vmatprep.subr.mxu0 0.0
        %5885 = vmatpush1.msra.mxu0 0.0
        %5886 = vmatprep.subr.mxu0 0.0
        %5887 = vmatpush1.msra.mxu0 0.0
        %5888 = vmatprep.subr.mxu0 0.0
        %5889 = vmatpush1.msra.mxu0 0.0
        %5890 = vmatprep.subr.mxu0 0.0
        %5891 = vmatpush1.msra.mxu0 0.0
        %5892 = vmatprep.subr.mxu0 0.0
        %5893 = vmatpush1.msra.mxu0 0.0
        %5894 = vmatprep.subr.mxu0 0.0
        %5895 = vmatpush1.msra.mxu0 0.0
        %5896 = vmatprep.subr.mxu0 0.0
        %5897 = vmatpush1.msra.mxu0 0.0
        %5898 = vmatprep.subr.mxu0 0.0
        %5899 = vmatpush1.msra.mxu0 0.0
        %5900 = vmatprep.subr.mxu0 0.0
        %5901 = vmatpush1.msra.mxu0 0.0
        %5902 = vmatprep.subr.mxu0 0.0
        %5903 = vmatpush1.msra.mxu0 0.0
        %5904 = vmatprep.subr.mxu0 0.0
        %5905 = vmatpush1.msra.mxu0 0.0
        %5906 = vmatprep.subr.mxu0 0.0
        %5907 = vmatpush1.msra.mxu0 0.0
        %5908 = vmatprep.subr.mxu0 0.0
        %5909 = vmatpush1.msra.mxu0 0.0
        %5910 = vmatprep.subr.mxu0 0.0
        %5911 = vmatpush1.msra.mxu0 %v5875
        %5912 = vmatprep.subr.mxu0 0.0
        %5913 = vmatpush2.msra.mxu0 0.0
        %5914 = vmatprep.subr.mxu0 0.0
        %5915 = vmatpush2.msra.mxu0 0.0
        %5916 = vmatprep.subr.mxu0 0.0
        %5917 = vmatpush2.msra.mxu0 0.0
        %5918 = vmatprep.subr.mxu0 0.0
        %5919 = vmatpush2.msra.mxu0 0.0
        %5920 = vmatprep.subr.mxu0 0.0
        %5921 = vmatpush2.msra.mxu0 0.0
        %5922 = vmatprep.subr.mxu0 0.0
        %5923 = vmatpush2.msra.mxu0 0.0
        %5924 = vmatprep.subr.mxu0 0.0
        %5925 = vmatpush2.msra.mxu0 0.0
        %5926 = vmatprep.subr.mxu0 0.0
        %5927 = vmatpush2.msra.mxu0 0.0
        %5928 = vmatprep.subr.mxu0 0.0
        %5929 = vmatpush2.msra.mxu0 0.0
        %5930 = vmatprep.subr.mxu0 0.0
        %5931 = vmatpush2.msra.mxu0 0.0
        %5932 = vmatprep.subr.mxu0 0.0
        %5933 = vmatpush2.msra.mxu0 0.0
        %5934 = vmatprep.subr.mxu0 0.0
        %5935 = vmatpush2.msra.mxu0 0.0
        %5936 = vmatprep.subr.mxu0 0.0
        %5937 = vmatpush2.msra.mxu0 0.0
        %5938 = vmatprep.subr.mxu0 0.0
        %5939 = vmatpush2.msra.mxu0 0.0
        %5940 = vmatprep.subr.mxu0 0.0
        %5941 = vmatpush2.msra.mxu0 0.0
        %5942 = vmatprep.subr.mxu0 0.0
        %5943 = vmatpush2.msra.mxu0 0.0
        %5944 = vmatprep.mubr.f32.mxu0 0.0
        %5945 = vmatmul.mubr.f32.gmra.mxu0 %v5878
        %v5946 = vpop.f32.mrf.mxu0
        %v5947 = vadd.f32 0.0, %v5946
        %v5948 = vpop.f32.mrf.mxu0
        %5949 = vdwg.mxu0
        %5951 = vrot.lane.b32.xlu0 %v5617, 8
        %v5952 = vpop.permute.xlu0 %5951
        %5955 = vrot.lane.b32.xlu0 %v5782, 16
        %v5956 = vpop.permute.xlu0 %5955
        %5959 = vrot.lane.b32.xlu0 %v5947, 24
        %v5960 = vpop.permute.xlu0 %5959
        %v5962 = vsel %vm587, %v5451, %v5952
        %v5963 = vsel %vm1257, %v5962, %v5956
        %v5964 = vsel %vm1259, %v5963, %v5960
        %v5965 = vlaneseq
        %v5966 = vshrl.u32 %v5965, 7
        %v5967 = vsub.s32 0, %v5966
        %v5968 = vrot.slane %v5068, %v5967
        %v5970 = vsel %vm359, %v5964, 0
        %5972 = vmatprep.subr.mxu0 0.0
        %5973 = vmatpush1.msra.mxu0 0.0
        %5974 = vmatprep.subr.mxu0 0.0
        %5975 = vmatpush1.msra.mxu0 0.0
        %5976 = vmatprep.subr.mxu0 0.0
        %5977 = vmatpush1.msra.mxu0 0.0
        %5978 = vmatprep.subr.mxu0 0.0
        %5979 = vmatpush1.msra.mxu0 0.0
        %5980 = vmatprep.subr.mxu0 0.0
        %5981 = vmatpush1.msra.mxu0 0.0
        %5982 = vmatprep.subr.mxu0 0.0
        %5983 = vmatpush1.msra.mxu0 0.0
        %5984 = vmatprep.subr.mxu0 0.0
        %5985 = vmatpush1.msra.mxu0 0.0
        %5986 = vmatprep.subr.mxu0 0.0
        %5987 = vmatpush1.msra.mxu0 0.0
        %5988 = vmatprep.subr.mxu0 0.0
        %5989 = vmatpush1.msra.mxu0 0.0
        %5990 = vmatprep.subr.mxu0 0.0
        %5991 = vmatpush1.msra.mxu0 0.0
        %5992 = vmatprep.subr.mxu0 0.0
        %5993 = vmatpush1.msra.mxu0 0.0
        %5994 = vmatprep.subr.mxu0 0.0
        %5995 = vmatpush1.msra.mxu0 0.0
        %5996 = vmatprep.subr.mxu0 0.0
        %5997 = vmatpush1.msra.mxu0 %v5064
        %5998 = vmatprep.subr.mxu0 0.0
        %5999 = vmatpush1.msra.mxu0 %v5063
        %6000 = vmatprep.subr.mxu0 0.0
        %6001 = vmatpush1.msra.mxu0 %v5062
        %6002 = vmatprep.subr.mxu0 0.0
        %6003 = vmatpush1.msra.mxu0 %v5061
        %6004 = vmatprep.subr.mxu0 0.0
        %6005 = vmatpush2.msra.mxu0 0.0
        %6006 = vmatprep.subr.mxu0 0.0
        %6007 = vmatpush2.msra.mxu0 0.0
        %6008 = vmatprep.subr.mxu0 0.0
        %6009 = vmatpush2.msra.mxu0 0.0
        %6010 = vmatprep.subr.mxu0 0.0
        %6011 = vmatpush2.msra.mxu0 0.0
        %6012 = vmatprep.subr.mxu0 0.0
        %6013 = vmatpush2.msra.mxu0 0.0
        %6014 = vmatprep.subr.mxu0 0.0
        %6015 = vmatpush2.msra.mxu0 0.0
        %6016 = vmatprep.subr.mxu0 0.0
        %6017 = vmatpush2.msra.mxu0 0.0
        %6018 = vmatprep.subr.mxu0 0.0
        %6019 = vmatpush2.msra.mxu0 0.0
        %6020 = vmatprep.subr.mxu0 0.0
        %6021 = vmatpush2.msra.mxu0 0.0
        %6022 = vmatprep.subr.mxu0 0.0
        %6023 = vmatpush2.msra.mxu0 0.0
        %6024 = vmatprep.subr.mxu0 0.0
        %6025 = vmatpush2.msra.mxu0 0.0
        %6026 = vmatprep.subr.mxu0 0.0
        %6027 = vmatpush2.msra.mxu0 0.0
        %6028 = vmatprep.subr.mxu0 0.0
        %6029 = vmatpush2.msra.mxu0 0.0
        %6030 = vmatprep.subr.mxu0 0.0
        %6031 = vmatpush2.msra.mxu0 0.0
        %6032 = vmatprep.subr.mxu0 0.0
        %6033 = vmatpush2.msra.mxu0 0.0
        %6034 = vmatprep.subr.mxu0 0.0
        %6035 = vmatpush2.msra.mxu0 0.0
        %6036 = vmatprep.mubr.f32.mxu0 0.0
        %6037 = vmatmul.mubr.f32.gmra.mxu0 %v5970
        %v6038 = vpop.f32.mrf.mxu0
        %v6039 = vadd.f32 %v5968, %v6038
        %v6040 = vpop.f32.mrf.mxu0
        %6041 = vdwg.mxu0
        %v6042 = vadd.f32 %v5044, %v6039
        %v6043 = vld [vmem:[%s6 + $0x25] sm:$0x1]
        %v6044 = vld [vmem:[%s6 + $0x26] sm:$0x1]
        %v6045 = vsel %vm359, %v6042, 0.0
        %6046 = vadd.xlane.f32.xlu0 %v6045
        %v6047 = vpop.xlane.xlu0 %6046
        %v6048 = vmul.f32 %v6047, %v1344
        %v6049 = vsub.f32 %v6042, %v6048
        %v6050 = vmul.f32 %v6049, %v6049
        %v6051 = vsel %vm359, %v6050, 0.0
        %6052 = vadd.xlane.f32.xlu0 %v6051
        %v6053 = vpop.xlane.xlu0 %6052
        %v6054 = vmul.f32 %v6053, %v1344
        %v6055 = vadd.f32 %v6054, 1e-05
        %v6056 = vrsqrt.pop %v6055
        %v6057 = vmul.f32 %v6049, %v6056
        %v6058 = vlaneseq
        %v6059 = vshrl.u32 %v6058, 7
        %v6060 = vsub.s32 0, %v6059
        %v6061 = vrot.slane %v6043, %v6060
        %v6062 = vmul.f32 %v6057, %v6061
        %v6063 = vlaneseq
        %v6064 = vshrl.u32 %v6063, 7
        %v6065 = vsub.s32 0, %v6064
        %v6066 = vrot.slane %v6044, %v6065
        %v6067 = vadd.f32 %v6062, %v6066
        %s6068 = scalar_lea.vmem [#allocation2], 640
        %v6069 = vld [vmem:[%s6068] sm:$0xff]
        %v6070 = vld [vmem:[%s6068 + $0x8] sm:$0xff]
        %v6071 = vld [vmem:[%s6068 + $0x10] sm:$0xff]
        %v6072 = vld [vmem:[%s6068 + $0x18] sm:$0xff]
        %s6073 = scalar_lea.vmem [#allocation2], 672
        %v6074 = vld [vmem:[%s6073] sm:$0xff]
        %v6075 = vld [vmem:[%s6073 + $0x8] sm:$0xff]
        %v6076 = vld [vmem:[%s6073 + $0x10] sm:$0xff]
        %v6077 = vld [vmem:[%s6073 + $0x18] sm:$0xff]
        %s6078 = scalar_lea.vmem [#allocation2], 704
        %v6079 = vld [vmem:[%s6078] sm:$0xff]
        %v6080 = vld [vmem:[%s6078 + $0x8] sm:$0xff]
        %v6081 = vld [vmem:[%s6078 + $0x10] sm:$0xff]
        %v6082 = vld [vmem:[%s6078 + $0x18] sm:$0xff]
        %s6083 = scalar_lea.vmem [#allocation2], 736
        %v6084 = vld [vmem:[%s6083] sm:$0xff]
        %v6085 = vld [vmem:[%s6083 + $0x8] sm:$0xff]
        %v6086 = vld [vmem:[%s6083 + $0x10] sm:$0xff]
        %v6087 = vld [vmem:[%s6083 + $0x18] sm:$0xff]
        %v6088 = vld [vmem:[%s6 + $0x27] sm:$0x1]
        %v6089 = vld [vmem:[%s6 + $0x28] sm:$0x1]
        %v6090 = vld [vmem:[%s6 + $0x29] sm:$0x1]
        %v6091 = vld [vmem:[%s6 + $0x2a] sm:$0x1]
        %v6092 = vlaneseq
        %v6093 = vshrl.u32 %v6092, 7
        %v6094 = vsub.s32 0, %v6093
        %v6095 = vrot.slane %v6088, %v6094
        %v6097 = vsel %vm359, %v6067, 0
        %6099 = vmatprep.subr.mxu0 0.0
        %6100 = vmatpush1.msra.mxu0 0.0
        %6101 = vmatprep.subr.mxu0 0.0
        %6102 = vmatpush1.msra.mxu0 0.0
        %6103 = vmatprep.subr.mxu0 0.0
        %6104 = vmatpush1.msra.mxu0 0.0
        %6105 = vmatprep.subr.mxu0 0.0
        %6106 = vmatpush1.msra.mxu0 0.0
        %6107 = vmatprep.subr.mxu0 0.0
        %6108 = vmatpush1.msra.mxu0 0.0
        %6109 = vmatprep.subr.mxu0 0.0
        %6110 = vmatpush1.msra.mxu0 0.0
        %6111 = vmatprep.subr.mxu0 0.0
        %6112 = vmatpush1.msra.mxu0 0.0
        %6113 = vmatprep.subr.mxu0 0.0
        %6114 = vmatpush1.msra.mxu0 0.0
        %6115 = vmatprep.subr.mxu0 0.0
        %6116 = vmatpush1.msra.mxu0 0.0
        %6117 = vmatprep.subr.mxu0 0.0
        %6118 = vmatpush1.msra.mxu0 0.0
        %6119 = vmatprep.subr.mxu0 0.0
        %6120 = vmatpush1.msra.mxu0 0.0
        %6121 = vmatprep.subr.mxu0 0.0
        %6122 = vmatpush1.msra.mxu0 0.0
        %6123 = vmatprep.subr.mxu0 0.0
        %6124 = vmatpush1.msra.mxu0 %v6072
        %6125 = vmatprep.subr.mxu0 0.0
        %6126 = vmatpush1.msra.mxu0 %v6071
        %6127 = vmatprep.subr.mxu0 0.0
        %6128 = vmatpush1.msra.mxu0 %v6070
        %6129 = vmatprep.subr.mxu0 0.0
        %6130 = vmatpush1.msra.mxu0 %v6069
        %6131 = vmatprep.subr.mxu0 0.0
        %6132 = vmatpush2.msra.mxu0 0.0
        %6133 = vmatprep.subr.mxu0 0.0
        %6134 = vmatpush2.msra.mxu0 0.0
        %6135 = vmatprep.subr.mxu0 0.0
        %6136 = vmatpush2.msra.mxu0 0.0
        %6137 = vmatprep.subr.mxu0 0.0
        %6138 = vmatpush2.msra.mxu0 0.0
        %6139 = vmatprep.subr.mxu0 0.0
        %6140 = vmatpush2.msra.mxu0 0.0
        %6141 = vmatprep.subr.mxu0 0.0
        %6142 = vmatpush2.msra.mxu0 0.0
        %6143 = vmatprep.subr.mxu0 0.0
        %6144 = vmatpush2.msra.mxu0 0.0
        %6145 = vmatprep.subr.mxu0 0.0
        %6146 = vmatpush2.msra.mxu0 0.0
        %6147 = vmatprep.subr.mxu0 0.0
        %6148 = vmatpush2.msra.mxu0 0.0
        %6149 = vmatprep.subr.mxu0 0.0
        %6150 = vmatpush2.msra.mxu0 0.0
        %6151 = vmatprep.subr.mxu0 0.0
        %6152 = vmatpush2.msra.mxu0 0.0
        %6153 = vmatprep.subr.mxu0 0.0
        %6154 = vmatpush2.msra.mxu0 0.0
        %6155 = vmatprep.subr.mxu0 0.0
        %6156 = vmatpush2.msra.mxu0 0.0
        %6157 = vmatprep.subr.mxu0 0.0
        %6158 = vmatpush2.msra.mxu0 0.0
        %6159 = vmatprep.subr.mxu0 0.0
        %6160 = vmatpush2.msra.mxu0 0.0
        %6161 = vmatprep.subr.mxu0 0.0
        %6162 = vmatpush2.msra.mxu0 0.0
        %6163 = vmatprep.mubr.f32.mxu0 0.0
        %6164 = vmatmul.mubr.f32.gmra.mxu0 %v6097
        %v6165 = vpop.f32.mrf.mxu0
        %v6166 = vadd.f32 %v6095, %v6165
        %v6167 = vpop.f32.mrf.mxu0
        %6168 = vdwg.mxu0
        %v6169 = vlaneseq
        %v6170 = vshrl.u32 %v6169, 7
        %v6171 = vsub.s32 0, %v6170
        %v6172 = vrot.slane %v6089, %v6171
        %6173 = vmatprep.subr.mxu0 0.0
        %6174 = vmatpush1.msra.mxu0 0.0
        %6175 = vmatprep.subr.mxu0 0.0
        %6176 = vmatpush1.msra.mxu0 0.0
        %6177 = vmatprep.subr.mxu0 0.0
        %6178 = vmatpush1.msra.mxu0 0.0
        %6179 = vmatprep.subr.mxu0 0.0
        %6180 = vmatpush1.msra.mxu0 0.0
        %6181 = vmatprep.subr.mxu0 0.0
        %6182 = vmatpush1.msra.mxu0 0.0
        %6183 = vmatprep.subr.mxu0 0.0
        %6184 = vmatpush1.msra.mxu0 0.0
        %6185 = vmatprep.subr.mxu0 0.0
        %6186 = vmatpush1.msra.mxu0 0.0
        %6187 = vmatprep.subr.mxu0 0.0
        %6188 = vmatpush1.msra.mxu0 0.0
        %6189 = vmatprep.subr.mxu0 0.0
        %6190 = vmatpush1.msra.mxu0 0.0
        %6191 = vmatprep.subr.mxu0 0.0
        %6192 = vmatpush1.msra.mxu0 0.0
        %6193 = vmatprep.subr.mxu0 0.0
        %6194 = vmatpush1.msra.mxu0 0.0
        %6195 = vmatprep.subr.mxu0 0.0
        %6196 = vmatpush1.msra.mxu0 0.0
        %6197 = vmatprep.subr.mxu0 0.0
        %6198 = vmatpush1.msra.mxu0 %v6077
        %6199 = vmatprep.subr.mxu0 0.0
        %6200 = vmatpush1.msra.mxu0 %v6076
        %6201 = vmatprep.subr.mxu0 0.0
        %6202 = vmatpush1.msra.mxu0 %v6075
        %6203 = vmatprep.subr.mxu0 0.0
        %6204 = vmatpush1.msra.mxu0 %v6074
        %6205 = vmatprep.subr.mxu0 0.0
        %6206 = vmatpush2.msra.mxu0 0.0
        %6207 = vmatprep.subr.mxu0 0.0
        %6208 = vmatpush2.msra.mxu0 0.0
        %6209 = vmatprep.subr.mxu0 0.0
        %6210 = vmatpush2.msra.mxu0 0.0
        %6211 = vmatprep.subr.mxu0 0.0
        %6212 = vmatpush2.msra.mxu0 0.0
        %6213 = vmatprep.subr.mxu0 0.0
        %6214 = vmatpush2.msra.mxu0 0.0
        %6215 = vmatprep.subr.mxu0 0.0
        %6216 = vmatpush2.msra.mxu0 0.0
        %6217 = vmatprep.subr.mxu0 0.0
        %6218 = vmatpush2.msra.mxu0 0.0
        %6219 = vmatprep.subr.mxu0 0.0
        %6220 = vmatpush2.msra.mxu0 0.0
        %6221 = vmatprep.subr.mxu0 0.0
        %6222 = vmatpush2.msra.mxu0 0.0
        %6223 = vmatprep.subr.mxu0 0.0
        %6224 = vmatpush2.msra.mxu0 0.0
        %6225 = vmatprep.subr.mxu0 0.0
        %6226 = vmatpush2.msra.mxu0 0.0
        %6227 = vmatprep.subr.mxu0 0.0
        %6228 = vmatpush2.msra.mxu0 0.0
        %6229 = vmatprep.subr.mxu0 0.0
        %6230 = vmatpush2.msra.mxu0 0.0
        %6231 = vmatprep.subr.mxu0 0.0
        %6232 = vmatpush2.msra.mxu0 0.0
        %6233 = vmatprep.subr.mxu0 0.0
        %6234 = vmatpush2.msra.mxu0 0.0
        %6235 = vmatprep.subr.mxu0 0.0
        %6236 = vmatpush2.msra.mxu0 0.0
        %6237 = vmatprep.mubr.f32.mxu0 0.0
        %6238 = vmatmul.mubr.f32.gmra.mxu0 %v3922
        %v6239 = vpop.f32.mrf.mxu0
        %v6240 = vadd.f32 %v6172, %v6239
        %v6241 = vpop.f32.mrf.mxu0
        %6242 = vdwg.mxu0
        %v6243 = vlaneseq
        %v6244 = vshrl.u32 %v6243, 7
        %v6245 = vsub.s32 0, %v6244
        %v6246 = vrot.slane %v6090, %v6245
        %6247 = vmatprep.subr.mxu0 0.0
        %6248 = vmatpush1.msra.mxu0 0.0
        %6249 = vmatprep.subr.mxu0 0.0
        %6250 = vmatpush1.msra.mxu0 0.0
        %6251 = vmatprep.subr.mxu0 0.0
        %6252 = vmatpush1.msra.mxu0 0.0
        %6253 = vmatprep.subr.mxu0 0.0
        %6254 = vmatpush1.msra.mxu0 0.0
        %6255 = vmatprep.subr.mxu0 0.0
        %6256 = vmatpush1.msra.mxu0 0.0
        %6257 = vmatprep.subr.mxu0 0.0
        %6258 = vmatpush1.msra.mxu0 0.0
        %6259 = vmatprep.subr.mxu0 0.0
        %6260 = vmatpush1.msra.mxu0 0.0
        %6261 = vmatprep.subr.mxu0 0.0
        %6262 = vmatpush1.msra.mxu0 0.0
        %6263 = vmatprep.subr.mxu0 0.0
        %6264 = vmatpush1.msra.mxu0 0.0
        %6265 = vmatprep.subr.mxu0 0.0
        %6266 = vmatpush1.msra.mxu0 0.0
        %6267 = vmatprep.subr.mxu0 0.0
        %6268 = vmatpush1.msra.mxu0 0.0
        %6269 = vmatprep.subr.mxu0 0.0
        %6270 = vmatpush1.msra.mxu0 0.0
        %6271 = vmatprep.subr.mxu0 0.0
        %6272 = vmatpush1.msra.mxu0 %v6082
        %6273 = vmatprep.subr.mxu0 0.0
        %6274 = vmatpush1.msra.mxu0 %v6081
        %6275 = vmatprep.subr.mxu0 0.0
        %6276 = vmatpush1.msra.mxu0 %v6080
        %6277 = vmatprep.subr.mxu0 0.0
        %6278 = vmatpush1.msra.mxu0 %v6079
        %6279 = vmatprep.subr.mxu0 0.0
        %6280 = vmatpush2.msra.mxu0 0.0
        %6281 = vmatprep.subr.mxu0 0.0
        %6282 = vmatpush2.msra.mxu0 0.0
        %6283 = vmatprep.subr.mxu0 0.0
        %6284 = vmatpush2.msra.mxu0 0.0
        %6285 = vmatprep.subr.mxu0 0.0
        %6286 = vmatpush2.msra.mxu0 0.0
        %6287 = vmatprep.subr.mxu0 0.0
        %6288 = vmatpush2.msra.mxu0 0.0
        %6289 = vmatprep.subr.mxu0 0.0
        %6290 = vmatpush2.msra.mxu0 0.0
        %6291 = vmatprep.subr.mxu0 0.0
        %6292 = vmatpush2.msra.mxu0 0.0
        %6293 = vmatprep.subr.mxu0 0.0
        %6294 = vmatpush2.msra.mxu0 0.0
        %6295 = vmatprep.subr.mxu0 0.0
        %6296 = vmatpush2.msra.mxu0 0.0
        %6297 = vmatprep.subr.mxu0 0.0
        %6298 = vmatpush2.msra.mxu0 0.0
        %6299 = vmatprep.subr.mxu0 0.0
        %6300 = vmatpush2.msra.mxu0 0.0
        %6301 = vmatprep.subr.mxu0 0.0
        %6302 = vmatpush2.msra.mxu0 0.0
        %6303 = vmatprep.subr.mxu0 0.0
        %6304 = vmatpush2.msra.mxu0 0.0
        %6305 = vmatprep.subr.mxu0 0.0
        %6306 = vmatpush2.msra.mxu0 0.0
        %6307 = vmatprep.subr.mxu0 0.0
        %6308 = vmatpush2.msra.mxu0 0.0
        %6309 = vmatprep.subr.mxu0 0.0
        %6310 = vmatpush2.msra.mxu0 0.0
        %6311 = vmatprep.mubr.f32.mxu0 0.0
        %6312 = vmatmul.mubr.f32.gmra.mxu0 %v3922
        %v6313 = vpop.f32.mrf.mxu0
        %v6314 = vadd.f32 %v6246, %v6313
        %v6315 = vpop.f32.mrf.mxu0
        %6316 = vdwg.mxu0
        %v6318 = vsel %vm587, %v6166, 0
        %v6321 = vsel %vm587, %v6240, 0
        %6323 = vmatprep.subr.mxu0 0.0
        %6324 = vmatpush1.xpose.msra.mxu0 0.0
        %6325 = vmatprep.subr.mxu0 0.0
        %6326 = vmatpush1.xpose.msra.mxu0 0.0
        %6327 = vmatprep.subr.mxu0 0.0
        %6328 = vmatpush1.xpose.msra.mxu0 0.0
        %6329 = vmatprep.subr.mxu0 0.0
        %6330 = vmatpush1.xpose.msra.mxu0 0.0
        %6331 = vmatprep.subr.mxu0 0.0
        %6332 = vmatpush1.xpose.msra.mxu0 0.0
        %6333 = vmatprep.subr.mxu0 0.0
        %6334 = vmatpush1.xpose.msra.mxu0 0.0
        %6335 = vmatprep.subr.mxu0 0.0
        %6336 = vmatpush1.xpose.msra.mxu0 0.0
        %6337 = vmatprep.subr.mxu0 0.0
        %6338 = vmatpush1.xpose.msra.mxu0 0.0
        %6339 = vmatprep.subr.mxu0 0.0
        %6340 = vmatpush1.xpose.msra.mxu0 0.0
        %6341 = vmatprep.subr.mxu0 0.0
        %6342 = vmatpush1.xpose.msra.mxu0 0.0
        %6343 = vmatprep.subr.mxu0 0.0
        %6344 = vmatpush1.xpose.msra.mxu0 0.0
        %6345 = vmatprep.subr.mxu0 0.0
        %6346 = vmatpush1.xpose.msra.mxu0 0.0
        %6347 = vmatprep.subr.mxu0 0.0
        %6348 = vmatpush1.xpose.msra.mxu0 0.0
        %6349 = vmatprep.subr.mxu0 0.0
        %6350 = vmatpush1.xpose.msra.mxu0 0.0
        %6351 = vmatprep.subr.mxu0 0.0
        %6352 = vmatpush1.xpose.msra.mxu0 0.0
        %6353 = vmatprep.subr.mxu0 0.0
        %6354 = vmatpush1.xpose.msra.mxu0 %v6321
        %6355 = vmatprep.subr.mxu0 0.0
        %6356 = vmatpush2.xpose.msra.mxu0 0.0
        %6357 = vmatprep.subr.mxu0 0.0
        %6358 = vmatpush2.xpose.msra.mxu0 0.0
        %6359 = vmatprep.subr.mxu0 0.0
        %6360 = vmatpush2.xpose.msra.mxu0 0.0
        %6361 = vmatprep.subr.mxu0 0.0
        %6362 = vmatpush2.xpose.msra.mxu0 0.0
        %6363 = vmatprep.subr.mxu0 0.0
        %6364 = vmatpush2.xpose.msra.mxu0 0.0
        %6365 = vmatprep.subr.mxu0 0.0
        %6366 = vmatpush2.xpose.msra.mxu0 0.0
        %6367 = vmatprep.subr.mxu0 0.0
        %6368 = vmatpush2.xpose.msra.mxu0 0.0
        %6369 = vmatprep.subr.mxu0 0.0
        %6370 = vmatpush2.xpose.msra.mxu0 0.0
        %6371 = vmatprep.subr.mxu0 0.0
        %6372 = vmatpush2.xpose.msra.mxu0 0.0
        %6373 = vmatprep.subr.mxu0 0.0
        %6374 = vmatpush2.xpose.msra.mxu0 0.0
        %6375 = vmatprep.subr.mxu0 0.0
        %6376 = vmatpush2.xpose.msra.mxu0 0.0
        %6377 = vmatprep.subr.mxu0 0.0
        %6378 = vmatpush2.xpose.msra.mxu0 0.0
        %6379 = vmatprep.subr.mxu0 0.0
        %6380 = vmatpush2.xpose.msra.mxu0 0.0
        %6381 = vmatprep.subr.mxu0 0.0
        %6382 = vmatpush2.xpose.msra.mxu0 0.0
        %6383 = vmatprep.subr.mxu0 0.0
        %6384 = vmatpush2.xpose.msra.mxu0 0.0
        %6385 = vmatprep.subr.mxu0 0.0
        %6386 = vmatpush2.xpose.msra.mxu0 0.0
        %6387 = vmatprep.mubr.f32.mxu0 0.0
        %6388 = vmatmul.mubr.f32.gmra.mxu0 %v6318
        %v6389 = vpop.f32.mrf.mxu0
        %v6390 = vadd.f32 %v585, %v6389
        %v6391 = vpop.f32.mrf.mxu0
        %6392 = vdwg.mxu0
        %v6393 = vsel %vm587, %v6390, -inf
        %6394 = vmax.xlane.f32.xlu0 %v6393
        %v6395 = vpop.xlane.xlu0 %6394
        %v6396 = vsub.f32 %v6390, %v6395
        %v6397 = vmul.f32 %v6396, 1.442695
        %v6398 = vpow.pop %v6397
        %v6399 = vsel %vm587, %v6398, 0.0
        %6400 = vadd.xlane.f32.xlu0 %v6399
        %v6401 = vpop.xlane.xlu0 %6400
        %v6402 = vrcp.pop %v6401
        %v6403 = vmul.f32 %v6398, %v6402
        %v6405 = vsel %vm587, %v6403, 0
        %6407 = vmatprep.subr.mxu0 0.0
        %6408 = vmatpush1.msra.mxu0 0.0
        %6409 = vmatprep.subr.mxu0 0.0
        %6410 = vmatpush1.msra.mxu0 0.0
        %6411 = vmatprep.subr.mxu0 0.0
        %6412 = vmatpush1.msra.mxu0 0.0
        %6413 = vmatprep.subr.mxu0 0.0
        %6414 = vmatpush1.msra.mxu0 0.0
        %6415 = vmatprep.subr.mxu0 0.0
        %6416 = vmatpush1.msra.mxu0 0.0
        %6417 = vmatprep.subr.mxu0 0.0
        %6418 = vmatpush1.msra.mxu0 0.0
        %6419 = vmatprep.subr.mxu0 0.0
        %6420 = vmatpush1.msra.mxu0 0.0
        %6421 = vmatprep.subr.mxu0 0.0
        %6422 = vmatpush1.msra.mxu0 0.0
        %6423 = vmatprep.subr.mxu0 0.0
        %6424 = vmatpush1.msra.mxu0 0.0
        %6425 = vmatprep.subr.mxu0 0.0
        %6426 = vmatpush1.msra.mxu0 0.0
        %6427 = vmatprep.subr.mxu0 0.0
        %6428 = vmatpush1.msra.mxu0 0.0
        %6429 = vmatprep.subr.mxu0 0.0
        %6430 = vmatpush1.msra.mxu0 0.0
        %6431 = vmatprep.subr.mxu0 0.0
        %6432 = vmatpush1.msra.mxu0 0.0
        %6433 = vmatprep.subr.mxu0 0.0
        %6434 = vmatpush1.msra.mxu0 0.0
        %6435 = vmatprep.subr.mxu0 0.0
        %6436 = vmatpush1.msra.mxu0 0.0
        %6437 = vmatprep.subr.mxu0 0.0
        %6438 = vmatpush1.msra.mxu0 %v6314
        %6439 = vmatprep.subr.mxu0 0.0
        %6440 = vmatpush2.msra.mxu0 0.0
        %6441 = vmatprep.subr.mxu0 0.0
        %6442 = vmatpush2.msra.mxu0 0.0
        %6443 = vmatprep.subr.mxu0 0.0
        %6444 = vmatpush2.msra.mxu0 0.0
        %6445 = vmatprep.subr.mxu0 0.0
        %6446 = vmatpush2.msra.mxu0 0.0
        %6447 = vmatprep.subr.mxu0 0.0
        %6448 = vmatpush2.msra.mxu0 0.0
        %6449 = vmatprep.subr.mxu0 0.0
        %6450 = vmatpush2.msra.mxu0 0.0
        %6451 = vmatprep.subr.mxu0 0.0
        %6452 = vmatpush2.msra.mxu0 0.0
        %6453 = vmatprep.subr.mxu0 0.0
        %6454 = vmatpush2.msra.mxu0 0.0
        %6455 = vmatprep.subr.mxu0 0.0
        %6456 = vmatpush2.msra.mxu0 0.0
        %6457 = vmatprep.subr.mxu0 0.0
        %6458 = vmatpush2.msra.mxu0 0.0
        %6459 = vmatprep.subr.mxu0 0.0
        %6460 = vmatpush2.msra.mxu0 0.0
        %6461 = vmatprep.subr.mxu0 0.0
        %6462 = vmatpush2.msra.mxu0 0.0
        %6463 = vmatprep.subr.mxu0 0.0
        %6464 = vmatpush2.msra.mxu0 0.0
        %6465 = vmatprep.subr.mxu0 0.0
        %6466 = vmatpush2.msra.mxu0 0.0
        %6467 = vmatprep.subr.mxu0 0.0
        %6468 = vmatpush2.msra.mxu0 0.0
        %6469 = vmatprep.subr.mxu0 0.0
        %6470 = vmatpush2.msra.mxu0 0.0
        %6471 = vmatprep.mubr.f32.mxu0 0.0
        %6472 = vmatmul.mubr.f32.gmra.mxu0 %v6405
        %v6473 = vpop.f32.mrf.mxu0
        %v6474 = vadd.f32 0.0, %v6473
        %v6475 = vpop.f32.mrf.mxu0
        %6476 = vdwg.mxu0
        %6477 = vrot.lane.b32.xlu0 %v6166, 120
        %v6478 = vpop.permute.xlu0 %6477
        %6479 = vrot.lane.b32.xlu0 %v6240, 120
        %v6480 = vpop.permute.xlu0 %6479
        %v6481 = vsel %vm587, %v6478, 0
        %v6483 = vsel %vm587, %v6480, 0
        %6485 = vmatprep.subr.mxu0 0.0
        %6486 = vmatpush1.xpose.msra.mxu0 0.0
        %6487 = vmatprep.subr.mxu0 0.0
        %6488 = vmatpush1.xpose.msra.mxu0 0.0
        %6489 = vmatprep.subr.mxu0 0.0
        %6490 = vmatpush1.xpose.msra.mxu0 0.0
        %6491 = vmatprep.subr.mxu0 0.0
        %6492 = vmatpush1.xpose.msra.mxu0 0.0
        %6493 = vmatprep.subr.mxu0 0.0
        %6494 = vmatpush1.xpose.msra.mxu0 0.0
        %6495 = vmatprep.subr.mxu0 0.0
        %6496 = vmatpush1.xpose.msra.mxu0 0.0
        %6497 = vmatprep.subr.mxu0 0.0
        %6498 = vmatpush1.xpose.msra.mxu0 0.0
        %6499 = vmatprep.subr.mxu0 0.0
        %6500 = vmatpush1.xpose.msra.mxu0 0.0
        %6501 = vmatprep.subr.mxu0 0.0
        %6502 = vmatpush1.xpose.msra.mxu0 0.0
        %6503 = vmatprep.subr.mxu0 0.0
        %6504 = vmatpush1.xpose.msra.mxu0 0.0
        %6505 = vmatprep.subr.mxu0 0.0
        %6506 = vmatpush1.xpose.msra.mxu0 0.0
        %6507 = vmatprep.subr.mxu0 0.0
        %6508 = vmatpush1.xpose.msra.mxu0 0.0
        %6509 = vmatprep.subr.mxu0 0.0
        %6510 = vmatpush1.xpose.msra.mxu0 0.0
        %6511 = vmatprep.subr.mxu0 0.0
        %6512 = vmatpush1.xpose.msra.mxu0 0.0
        %6513 = vmatprep.subr.mxu0 0.0
        %6514 = vmatpush1.xpose.msra.mxu0 0.0
        %6515 = vmatprep.subr.mxu0 0.0
        %6516 = vmatpush1.xpose.msra.mxu0 %v6483
        %6517 = vmatprep.subr.mxu0 0.0
        %6518 = vmatpush2.xpose.msra.mxu0 0.0
        %6519 = vmatprep.subr.mxu0 0.0
        %6520 = vmatpush2.xpose.msra.mxu0 0.0
        %6521 = vmatprep.subr.mxu0 0.0
        %6522 = vmatpush2.xpose.msra.mxu0 0.0
        %6523 = vmatprep.subr.mxu0 0.0
        %6524 = vmatpush2.xpose.msra.mxu0 0.0
        %6525 = vmatprep.subr.mxu0 0.0
        %6526 = vmatpush2.xpose.msra.mxu0 0.0
        %6527 = vmatprep.subr.mxu0 0.0
        %6528 = vmatpush2.xpose.msra.mxu0 0.0
        %6529 = vmatprep.subr.mxu0 0.0
        %6530 = vmatpush2.xpose.msra.mxu0 0.0
        %6531 = vmatprep.subr.mxu0 0.0
        %6532 = vmatpush2.xpose.msra.mxu0 0.0
        %6533 = vmatprep.subr.mxu0 0.0
        %6534 = vmatpush2.xpose.msra.mxu0 0.0
        %6535 = vmatprep.subr.mxu0 0.0
        %6536 = vmatpush2.xpose.msra.mxu0 0.0
        %6537 = vmatprep.subr.mxu0 0.0
        %6538 = vmatpush2.xpose.msra.mxu0 0.0
        %6539 = vmatprep.subr.mxu0 0.0
        %6540 = vmatpush2.xpose.msra.mxu0 0.0
        %6541 = vmatprep.subr.mxu0 0.0
        %6542 = vmatpush2.xpose.msra.mxu0 0.0
        %6543 = vmatprep.subr.mxu0 0.0
        %6544 = vmatpush2.xpose.msra.mxu0 0.0
        %6545 = vmatprep.subr.mxu0 0.0
        %6546 = vmatpush2.xpose.msra.mxu0 0.0
        %6547 = vmatprep.subr.mxu0 0.0
        %6548 = vmatpush2.xpose.msra.mxu0 0.0
        %6549 = vmatprep.mubr.f32.mxu0 0.0
        %6550 = vmatmul.mubr.f32.gmra.mxu0 %v6481
        %v6551 = vpop.f32.mrf.mxu0
        %v6552 = vadd.f32 %v585, %v6551
        %v6553 = vpop.f32.mrf.mxu0
        %6554 = vdwg.mxu0
        %v6555 = vsel %vm587, %v6552, -inf
        %6556 = vmax.xlane.f32.xlu0 %v6555
        %v6557 = vpop.xlane.xlu0 %6556
        %v6558 = vsub.f32 %v6552, %v6557
        %v6559 = vmul.f32 %v6558, 1.442695
        %v6560 = vpow.pop %v6559
        %v6561 = vsel %vm587, %v6560, 0.0
        %6562 = vadd.xlane.f32.xlu0 %v6561
        %v6563 = vpop.xlane.xlu0 %6562
        %v6564 = vrcp.pop %v6563
        %v6565 = vmul.f32 %v6560, %v6564
        %6567 = vrot.lane.b32.xlu0 %v6314, 120
        %v6568 = vpop.permute.xlu0 %6567
        %v6571 = vsel %vm587, %v6565, 0
        %6573 = vmatprep.subr.mxu0 0.0
        %6574 = vmatpush1.msra.mxu0 0.0
        %6575 = vmatprep.subr.mxu0 0.0
        %6576 = vmatpush1.msra.mxu0 0.0
        %6577 = vmatprep.subr.mxu0 0.0
        %6578 = vmatpush1.msra.mxu0 0.0
        %6579 = vmatprep.subr.mxu0 0.0
        %6580 = vmatpush1.msra.mxu0 0.0
        %6581 = vmatprep.subr.mxu0 0.0
        %6582 = vmatpush1.msra.mxu0 0.0
        %6583 = vmatprep.subr.mxu0 0.0
        %6584 = vmatpush1.msra.mxu0 0.0
        %6585 = vmatprep.subr.mxu0 0.0
        %6586 = vmatpush1.msra.mxu0 0.0
        %6587 = vmatprep.subr.mxu0 0.0
        %6588 = vmatpush1.msra.mxu0 0.0
        %6589 = vmatprep.subr.mxu0 0.0
        %6590 = vmatpush1.msra.mxu0 0.0
        %6591 = vmatprep.subr.mxu0 0.0
        %6592 = vmatpush1.msra.mxu0 0.0
        %6593 = vmatprep.subr.mxu0 0.0
        %6594 = vmatpush1.msra.mxu0 0.0
        %6595 = vmatprep.subr.mxu0 0.0
        %6596 = vmatpush1.msra.mxu0 0.0
        %6597 = vmatprep.subr.mxu0 0.0
        %6598 = vmatpush1.msra.mxu0 0.0
        %6599 = vmatprep.subr.mxu0 0.0
        %6600 = vmatpush1.msra.mxu0 0.0
        %6601 = vmatprep.subr.mxu0 0.0
        %6602 = vmatpush1.msra.mxu0 0.0
        %6603 = vmatprep.subr.mxu0 0.0
        %6604 = vmatpush1.msra.mxu0 %v6568
        %6605 = vmatprep.subr.mxu0 0.0
        %6606 = vmatpush2.msra.mxu0 0.0
        %6607 = vmatprep.subr.mxu0 0.0
        %6608 = vmatpush2.msra.mxu0 0.0
        %6609 = vmatprep.subr.mxu0 0.0
        %6610 = vmatpush2.msra.mxu0 0.0
        %6611 = vmatprep.subr.mxu0 0.0
        %6612 = vmatpush2.msra.mxu0 0.0
        %6613 = vmatprep.subr.mxu0 0.0
        %6614 = vmatpush2.msra.mxu0 0.0
        %6615 = vmatprep.subr.mxu0 0.0
        %6616 = vmatpush2.msra.mxu0 0.0
        %6617 = vmatprep.subr.mxu0 0.0
        %6618 = vmatpush2.msra.mxu0 0.0
        %6619 = vmatprep.subr.mxu0 0.0
        %6620 = vmatpush2.msra.mxu0 0.0
        %6621 = vmatprep.subr.mxu0 0.0
        %6622 = vmatpush2.msra.mxu0 0.0
        %6623 = vmatprep.subr.mxu0 0.0
        %6624 = vmatpush2.msra.mxu0 0.0
        %6625 = vmatprep.subr.mxu0 0.0
        %6626 = vmatpush2.msra.mxu0 0.0
        %6627 = vmatprep.subr.mxu0 0.0
        %6628 = vmatpush2.msra.mxu0 0.0
        %6629 = vmatprep.subr.mxu0 0.0
        %6630 = vmatpush2.msra.mxu0 0.0
        %6631 = vmatprep.subr.mxu0 0.0
        %6632 = vmatpush2.msra.mxu0 0.0
        %6633 = vmatprep.subr.mxu0 0.0
        %6634 = vmatpush2.msra.mxu0 0.0
        %6635 = vmatprep.subr.mxu0 0.0
        %6636 = vmatpush2.msra.mxu0 0.0
        %6637 = vmatprep.mubr.f32.mxu0 0.0
        %6638 = vmatmul.mubr.f32.gmra.mxu0 %v6571
        %v6639 = vpop.f32.mrf.mxu0
        %v6640 = vadd.f32 0.0, %v6639
        %v6641 = vpop.f32.mrf.mxu0
        %6642 = vdwg.mxu0
        %6643 = vrot.lane.b32.xlu0 %v6166, 112
        %v6644 = vpop.permute.xlu0 %6643
        %6645 = vrot.lane.b32.xlu0 %v6240, 112
        %v6646 = vpop.permute.xlu0 %6645
        %v6647 = vsel %vm587, %v6644, 0
        %v6649 = vsel %vm587, %v6646, 0
        %6651 = vmatprep.subr.mxu0 0.0
        %6652 = vmatpush1.xpose.msra.mxu0 0.0
        %6653 = vmatprep.subr.mxu0 0.0
        %6654 = vmatpush1.xpose.msra.mxu0 0.0
        %6655 = vmatprep.subr.mxu0 0.0
        %6656 = vmatpush1.xpose.msra.mxu0 0.0
        %6657 = vmatprep.subr.mxu0 0.0
        %6658 = vmatpush1.xpose.msra.mxu0 0.0
        %6659 = vmatprep.subr.mxu0 0.0
        %6660 = vmatpush1.xpose.msra.mxu0 0.0
        %6661 = vmatprep.subr.mxu0 0.0
        %6662 = vmatpush1.xpose.msra.mxu0 0.0
        %6663 = vmatprep.subr.mxu0 0.0
        %6664 = vmatpush1.xpose.msra.mxu0 0.0
        %6665 = vmatprep.subr.mxu0 0.0
        %6666 = vmatpush1.xpose.msra.mxu0 0.0
        %6667 = vmatprep.subr.mxu0 0.0
        %6668 = vmatpush1.xpose.msra.mxu0 0.0
        %6669 = vmatprep.subr.mxu0 0.0
        %6670 = vmatpush1.xpose.msra.mxu0 0.0
        %6671 = vmatprep.subr.mxu0 0.0
        %6672 = vmatpush1.xpose.msra.mxu0 0.0
        %6673 = vmatprep.subr.mxu0 0.0
        %6674 = vmatpush1.xpose.msra.mxu0 0.0
        %6675 = vmatprep.subr.mxu0 0.0
        %6676 = vmatpush1.xpose.msra.mxu0 0.0
        %6677 = vmatprep.subr.mxu0 0.0
        %6678 = vmatpush1.xpose.msra.mxu0 0.0
        %6679 = vmatprep.subr.mxu0 0.0
        %6680 = vmatpush1.xpose.msra.mxu0 0.0
        %6681 = vmatprep.subr.mxu0 0.0
        %6682 = vmatpush1.xpose.msra.mxu0 %v6649
        %6683 = vmatprep.subr.mxu0 0.0
        %6684 = vmatpush2.xpose.msra.mxu0 0.0
        %6685 = vmatprep.subr.mxu0 0.0
        %6686 = vmatpush2.xpose.msra.mxu0 0.0
        %6687 = vmatprep.subr.mxu0 0.0
        %6688 = vmatpush2.xpose.msra.mxu0 0.0
        %6689 = vmatprep.subr.mxu0 0.0
        %6690 = vmatpush2.xpose.msra.mxu0 0.0
        %6691 = vmatprep.subr.mxu0 0.0
        %6692 = vmatpush2.xpose.msra.mxu0 0.0
        %6693 = vmatprep.subr.mxu0 0.0
        %6694 = vmatpush2.xpose.msra.mxu0 0.0
        %6695 = vmatprep.subr.mxu0 0.0
        %6696 = vmatpush2.xpose.msra.mxu0 0.0
        %6697 = vmatprep.subr.mxu0 0.0
        %6698 = vmatpush2.xpose.msra.mxu0 0.0
        %6699 = vmatprep.subr.mxu0 0.0
        %6700 = vmatpush2.xpose.msra.mxu0 0.0
        %6701 = vmatprep.subr.mxu0 0.0
        %6702 = vmatpush2.xpose.msra.mxu0 0.0
        %6703 = vmatprep.subr.mxu0 0.0
        %6704 = vmatpush2.xpose.msra.mxu0 0.0
        %6705 = vmatprep.subr.mxu0 0.0
        %6706 = vmatpush2.xpose.msra.mxu0 0.0
        %6707 = vmatprep.subr.mxu0 0.0
        %6708 = vmatpush2.xpose.msra.mxu0 0.0
        %6709 = vmatprep.subr.mxu0 0.0
        %6710 = vmatpush2.xpose.msra.mxu0 0.0
        %6711 = vmatprep.subr.mxu0 0.0
        %6712 = vmatpush2.xpose.msra.mxu0 0.0
        %6713 = vmatprep.subr.mxu0 0.0
        %6714 = vmatpush2.xpose.msra.mxu0 0.0
        %6715 = vmatprep.mubr.f32.mxu0 0.0
        %6716 = vmatmul.mubr.f32.gmra.mxu0 %v6647
        %v6717 = vpop.f32.mrf.mxu0
        %v6718 = vadd.f32 %v585, %v6717
        %v6719 = vpop.f32.mrf.mxu0
        %6720 = vdwg.mxu0
        %v6721 = vsel %vm587, %v6718, -inf
        %6722 = vmax.xlane.f32.xlu0 %v6721
        %v6723 = vpop.xlane.xlu0 %6722
        %v6724 = vsub.f32 %v6718, %v6723
        %v6725 = vmul.f32 %v6724, 1.442695
        %v6726 = vpow.pop %v6725
        %v6727 = vsel %vm587, %v6726, 0.0
        %6728 = vadd.xlane.f32.xlu0 %v6727
        %v6729 = vpop.xlane.xlu0 %6728
        %v6730 = vrcp.pop %v6729
        %v6731 = vmul.f32 %v6726, %v6730
        %6732 = vrot.lane.b32.xlu0 %v6314, 112
        %v6733 = vpop.permute.xlu0 %6732
        %v6736 = vsel %vm587, %v6731, 0
        %6738 = vmatprep.subr.mxu0 0.0
        %6739 = vmatpush1.msra.mxu0 0.0
        %6740 = vmatprep.subr.mxu0 0.0
        %6741 = vmatpush1.msra.mxu0 0.0
        %6742 = vmatprep.subr.mxu0 0.0
        %6743 = vmatpush1.msra.mxu0 0.0
        %6744 = vmatprep.subr.mxu0 0.0
        %6745 = vmatpush1.msra.mxu0 0.0
        %6746 = vmatprep.subr.mxu0 0.0
        %6747 = vmatpush1.msra.mxu0 0.0
        %6748 = vmatprep.subr.mxu0 0.0
        %6749 = vmatpush1.msra.mxu0 0.0
        %6750 = vmatprep.subr.mxu0 0.0
        %6751 = vmatpush1.msra.mxu0 0.0
        %6752 = vmatprep.subr.mxu0 0.0
        %6753 = vmatpush1.msra.mxu0 0.0
        %6754 = vmatprep.subr.mxu0 0.0
        %6755 = vmatpush1.msra.mxu0 0.0
        %6756 = vmatprep.subr.mxu0 0.0
        %6757 = vmatpush1.msra.mxu0 0.0
        %6758 = vmatprep.subr.mxu0 0.0
        %6759 = vmatpush1.msra.mxu0 0.0
        %6760 = vmatprep.subr.mxu0 0.0
        %6761 = vmatpush1.msra.mxu0 0.0
        %6762 = vmatprep.subr.mxu0 0.0
        %6763 = vmatpush1.msra.mxu0 0.0
        %6764 = vmatprep.subr.mxu0 0.0
        %6765 = vmatpush1.msra.mxu0 0.0
        %6766 = vmatprep.subr.mxu0 0.0
        %6767 = vmatpush1.msra.mxu0 0.0
        %6768 = vmatprep.subr.mxu0 0.0
        %6769 = vmatpush1.msra.mxu0 %v6733
        %6770 = vmatprep.subr.mxu0 0.0
        %6771 = vmatpush2.msra.mxu0 0.0
        %6772 = vmatprep.subr.mxu0 0.0
        %6773 = vmatpush2.msra.mxu0 0.0
        %6774 = vmatprep.subr.mxu0 0.0
        %6775 = vmatpush2.msra.mxu0 0.0
        %6776 = vmatprep.subr.mxu0 0.0
        %6777 = vmatpush2.msra.mxu0 0.0
        %6778 = vmatprep.subr.mxu0 0.0
        %6779 = vmatpush2.msra.mxu0 0.0
        %6780 = vmatprep.subr.mxu0 0.0
        %6781 = vmatpush2.msra.mxu0 0.0
        %6782 = vmatprep.subr.mxu0 0.0
        %6783 = vmatpush2.msra.mxu0 0.0
        %6784 = vmatprep.subr.mxu0 0.0
        %6785 = vmatpush2.msra.mxu0 0.0
        %6786 = vmatprep.subr.mxu0 0.0
        %6787 = vmatpush2.msra.mxu0 0.0
        %6788 = vmatprep.subr.mxu0 0.0
        %6789 = vmatpush2.msra.mxu0 0.0
        %6790 = vmatprep.subr.mxu0 0.0
        %6791 = vmatpush2.msra.mxu0 0.0
        %6792 = vmatprep.subr.mxu0 0.0
        %6793 = vmatpush2.msra.mxu0 0.0
        %6794 = vmatprep.subr.mxu0 0.0
        %6795 = vmatpush2.msra.mxu0 0.0
        %6796 = vmatprep.subr.mxu0 0.0
        %6797 = vmatpush2.msra.mxu0 0.0
        %6798 = vmatprep.subr.mxu0 0.0
        %6799 = vmatpush2.msra.mxu0 0.0
        %6800 = vmatprep.subr.mxu0 0.0
        %6801 = vmatpush2.msra.mxu0 0.0
        %6802 = vmatprep.mubr.f32.mxu0 0.0
        %6803 = vmatmul.mubr.f32.gmra.mxu0 %v6736
        %v6804 = vpop.f32.mrf.mxu0
        %v6805 = vadd.f32 0.0, %v6804
        %v6806 = vpop.f32.mrf.mxu0
        %6807 = vdwg.mxu0
        %6808 = vrot.lane.b32.xlu0 %v6166, 104
        %v6809 = vpop.permute.xlu0 %6808
        %6810 = vrot.lane.b32.xlu0 %v6240, 104
        %v6811 = vpop.permute.xlu0 %6810
        %v6812 = vsel %vm587, %v6809, 0
        %v6814 = vsel %vm587, %v6811, 0
        %6816 = vmatprep.subr.mxu0 0.0
        %6817 = vmatpush1.xpose.msra.mxu0 0.0
        %6818 = vmatprep.subr.mxu0 0.0
        %6819 = vmatpush1.xpose.msra.mxu0 0.0
        %6820 = vmatprep.subr.mxu0 0.0
        %6821 = vmatpush1.xpose.msra.mxu0 0.0
        %6822 = vmatprep.subr.mxu0 0.0
        %6823 = vmatpush1.xpose.msra.mxu0 0.0
        %6824 = vmatprep.subr.mxu0 0.0
        %6825 = vmatpush1.xpose.msra.mxu0 0.0
        %6826 = vmatprep.subr.mxu0 0.0
        %6827 = vmatpush1.xpose.msra.mxu0 0.0
        %6828 = vmatprep.subr.mxu0 0.0
        %6829 = vmatpush1.xpose.msra.mxu0 0.0
        %6830 = vmatprep.subr.mxu0 0.0
        %6831 = vmatpush1.xpose.msra.mxu0 0.0
        %6832 = vmatprep.subr.mxu0 0.0
        %6833 = vmatpush1.xpose.msra.mxu0 0.0
        %6834 = vmatprep.subr.mxu0 0.0
        %6835 = vmatpush1.xpose.msra.mxu0 0.0
        %6836 = vmatprep.subr.mxu0 0.0
        %6837 = vmatpush1.xpose.msra.mxu0 0.0
        %6838 = vmatprep.subr.mxu0 0.0
        %6839 = vmatpush1.xpose.msra.mxu0 0.0
        %6840 = vmatprep.subr.mxu0 0.0
        %6841 = vmatpush1.xpose.msra.mxu0 0.0
        %6842 = vmatprep.subr.mxu0 0.0
        %6843 = vmatpush1.xpose.msra.mxu0 0.0
        %6844 = vmatprep.subr.mxu0 0.0
        %6845 = vmatpush1.xpose.msra.mxu0 0.0
        %6846 = vmatprep.subr.mxu0 0.0
        %6847 = vmatpush1.xpose.msra.mxu0 %v6814
        %6848 = vmatprep.subr.mxu0 0.0
        %6849 = vmatpush2.xpose.msra.mxu0 0.0
        %6850 = vmatprep.subr.mxu0 0.0
        %6851 = vmatpush2.xpose.msra.mxu0 0.0
        %6852 = vmatprep.subr.mxu0 0.0
        %6853 = vmatpush2.xpose.msra.mxu0 0.0
        %6854 = vmatprep.subr.mxu0 0.0
        %6855 = vmatpush2.xpose.msra.mxu0 0.0
        %6856 = vmatprep.subr.mxu0 0.0
        %6857 = vmatpush2.xpose.msra.mxu0 0.0
        %6858 = vmatprep.subr.mxu0 0.0
        %6859 = vmatpush2.xpose.msra.mxu0 0.0
        %6860 = vmatprep.subr.mxu0 0.0
        %6861 = vmatpush2.xpose.msra.mxu0 0.0
        %6862 = vmatprep.subr.mxu0 0.0
        %6863 = vmatpush2.xpose.msra.mxu0 0.0
        %6864 = vmatprep.subr.mxu0 0.0
        %6865 = vmatpush2.xpose.msra.mxu0 0.0
        %6866 = vmatprep.subr.mxu0 0.0
        %6867 = vmatpush2.xpose.msra.mxu0 0.0
        %6868 = vmatprep.subr.mxu0 0.0
        %6869 = vmatpush2.xpose.msra.mxu0 0.0
        %6870 = vmatprep.subr.mxu0 0.0
        %6871 = vmatpush2.xpose.msra.mxu0 0.0
        %6872 = vmatprep.subr.mxu0 0.0
        %6873 = vmatpush2.xpose.msra.mxu0 0.0
        %6874 = vmatprep.subr.mxu0 0.0
        %6875 = vmatpush2.xpose.msra.mxu0 0.0
        %6876 = vmatprep.subr.mxu0 0.0
        %6877 = vmatpush2.xpose.msra.mxu0 0.0
        %6878 = vmatprep.subr.mxu0 0.0
        %6879 = vmatpush2.xpose.msra.mxu0 0.0
        %6880 = vmatprep.mubr.f32.mxu0 0.0
        %6881 = vmatmul.mubr.f32.gmra.mxu0 %v6812
        %v6882 = vpop.f32.mrf.mxu0
        %v6883 = vadd.f32 %v585, %v6882
        %v6884 = vpop.f32.mrf.mxu0
        %6885 = vdwg.mxu0
        %v6886 = vsel %vm587, %v6883, -inf
        %6887 = vmax.xlane.f32.xlu0 %v6886
        %v6888 = vpop.xlane.xlu0 %6887
        %v6889 = vsub.f32 %v6883, %v6888
        %v6890 = vmul.f32 %v6889, 1.442695
        %v6891 = vpow.pop %v6890
        %v6892 = vsel %vm587, %v6891, 0.0
        %6893 = vadd.xlane.f32.xlu0 %v6892
        %v6894 = vpop.xlane.xlu0 %6893
        %v6895 = vrcp.pop %v6894
        %v6896 = vmul.f32 %v6891, %v6895
        %6897 = vrot.lane.b32.xlu0 %v6314, 104
        %v6898 = vpop.permute.xlu0 %6897
        %v6901 = vsel %vm587, %v6896, 0
        %6903 = vmatprep.subr.mxu0 0.0
        %6904 = vmatpush1.msra.mxu0 0.0
        %6905 = vmatprep.subr.mxu0 0.0
        %6906 = vmatpush1.msra.mxu0 0.0
        %6907 = vmatprep.subr.mxu0 0.0
        %6908 = vmatpush1.msra.mxu0 0.0
        %6909 = vmatprep.subr.mxu0 0.0
        %6910 = vmatpush1.msra.mxu0 0.0
        %6911 = vmatprep.subr.mxu0 0.0
        %6912 = vmatpush1.msra.mxu0 0.0
        %6913 = vmatprep.subr.mxu0 0.0
        %6914 = vmatpush1.msra.mxu0 0.0
        %6915 = vmatprep.subr.mxu0 0.0
        %6916 = vmatpush1.msra.mxu0 0.0
        %6917 = vmatprep.subr.mxu0 0.0
        %6918 = vmatpush1.msra.mxu0 0.0
        %6919 = vmatprep.subr.mxu0 0.0
        %6920 = vmatpush1.msra.mxu0 0.0
        %6921 = vmatprep.subr.mxu0 0.0
        %6922 = vmatpush1.msra.mxu0 0.0
        %6923 = vmatprep.subr.mxu0 0.0
        %6924 = vmatpush1.msra.mxu0 0.0
        %6925 = vmatprep.subr.mxu0 0.0
        %6926 = vmatpush1.msra.mxu0 0.0
        %6927 = vmatprep.subr.mxu0 0.0
        %6928 = vmatpush1.msra.mxu0 0.0
        %6929 = vmatprep.subr.mxu0 0.0
        %6930 = vmatpush1.msra.mxu0 0.0
        %6931 = vmatprep.subr.mxu0 0.0
        %6932 = vmatpush1.msra.mxu0 0.0
        %6933 = vmatprep.subr.mxu0 0.0
        %6934 = vmatpush1.msra.mxu0 %v6898
        %6935 = vmatprep.subr.mxu0 0.0
        %6936 = vmatpush2.msra.mxu0 0.0
        %6937 = vmatprep.subr.mxu0 0.0
        %6938 = vmatpush2.msra.mxu0 0.0
        %6939 = vmatprep.subr.mxu0 0.0
        %6940 = vmatpush2.msra.mxu0 0.0
        %6941 = vmatprep.subr.mxu0 0.0
        %6942 = vmatpush2.msra.mxu0 0.0
        %6943 = vmatprep.subr.mxu0 0.0
        %6944 = vmatpush2.msra.mxu0 0.0
        %6945 = vmatprep.subr.mxu0 0.0
        %6946 = vmatpush2.msra.mxu0 0.0
        %6947 = vmatprep.subr.mxu0 0.0
        %6948 = vmatpush2.msra.mxu0 0.0
        %6949 = vmatprep.subr.mxu0 0.0
        %6950 = vmatpush2.msra.mxu0 0.0
        %6951 = vmatprep.subr.mxu0 0.0
        %6952 = vmatpush2.msra.mxu0 0.0
        %6953 = vmatprep.subr.mxu0 0.0
        %6954 = vmatpush2.msra.mxu0 0.0
        %6955 = vmatprep.subr.mxu0 0.0
        %6956 = vmatpush2.msra.mxu0 0.0
        %6957 = vmatprep.subr.mxu0 0.0
        %6958 = vmatpush2.msra.mxu0 0.0
        %6959 = vmatprep.subr.mxu0 0.0
        %6960 = vmatpush2.msra.mxu0 0.0
        %6961 = vmatprep.subr.mxu0 0.0
        %6962 = vmatpush2.msra.mxu0 0.0
        %6963 = vmatprep.subr.mxu0 0.0
        %6964 = vmatpush2.msra.mxu0 0.0
        %6965 = vmatprep.subr.mxu0 0.0
        %6966 = vmatpush2.msra.mxu0 0.0
        %6967 = vmatprep.mubr.f32.mxu0 0.0
        %6968 = vmatmul.mubr.f32.gmra.mxu0 %v6901
        %v6969 = vpop.f32.mrf.mxu0
        %v6970 = vadd.f32 0.0, %v6969
        %v6971 = vpop.f32.mrf.mxu0
        %6972 = vdwg.mxu0
        %6974 = vrot.lane.b32.xlu0 %v6640, 8
        %v6975 = vpop.permute.xlu0 %6974
        %6978 = vrot.lane.b32.xlu0 %v6805, 16
        %v6979 = vpop.permute.xlu0 %6978
        %6982 = vrot.lane.b32.xlu0 %v6970, 24
        %v6983 = vpop.permute.xlu0 %6982
        %v6985 = vsel %vm587, %v6474, %v6975
        %v6986 = vsel %vm1257, %v6985, %v6979
        %v6987 = vsel %vm1259, %v6986, %v6983
        %v6988 = vlaneseq
        %v6989 = vshrl.u32 %v6988, 7
        %v6990 = vsub.s32 0, %v6989
        %v6991 = vrot.slane %v6091, %v6990
        %v6993 = vsel %vm359, %v6987, 0
        %6995 = vmatprep.subr.mxu0 0.0
        %6996 = vmatpush1.msra.mxu0 0.0
        %6997 = vmatprep.subr.mxu0 0.0
        %6998 = vmatpush1.msra.mxu0 0.0
        %6999 = vmatprep.subr.mxu0 0.0
        %7000 = vmatpush1.msra.mxu0 0.0
        %7001 = vmatprep.subr.mxu0 0.0
        %7002 = vmatpush1.msra.mxu0 0.0
        %7003 = vmatprep.subr.mxu0 0.0
        %7004 = vmatpush1.msra.mxu0 0.0
        %7005 = vmatprep.subr.mxu0 0.0
        %7006 = vmatpush1.msra.mxu0 0.0
        %7007 = vmatprep.subr.mxu0 0.0
        %7008 = vmatpush1.msra.mxu0 0.0
        %7009 = vmatprep.subr.mxu0 0.0
        %7010 = vmatpush1.msra.mxu0 0.0
        %7011 = vmatprep.subr.mxu0 0.0
        %7012 = vmatpush1.msra.mxu0 0.0
        %7013 = vmatprep.subr.mxu0 0.0
        %7014 = vmatpush1.msra.mxu0 0.0
        %7015 = vmatprep.subr.mxu0 0.0
        %7016 = vmatpush1.msra.mxu0 0.0
        %7017 = vmatprep.subr.mxu0 0.0
        %7018 = vmatpush1.msra.mxu0 0.0
        %7019 = vmatprep.subr.mxu0 0.0
        %7020 = vmatpush1.msra.mxu0 %v6087
        %7021 = vmatprep.subr.mxu0 0.0
        %7022 = vmatpush1.msra.mxu0 %v6086
        %7023 = vmatprep.subr.mxu0 0.0
        %7024 = vmatpush1.msra.mxu0 %v6085
        %7025 = vmatprep.subr.mxu0 0.0
        %7026 = vmatpush1.msra.mxu0 %v6084
        %7027 = vmatprep.subr.mxu0 0.0
        %7028 = vmatpush2.msra.mxu0 0.0
        %7029 = vmatprep.subr.mxu0 0.0
        %7030 = vmatpush2.msra.mxu0 0.0
        %7031 = vmatprep.subr.mxu0 0.0
        %7032 = vmatpush2.msra.mxu0 0.0
        %7033 = vmatprep.subr.mxu0 0.0
        %7034 = vmatpush2.msra.mxu0 0.0
        %7035 = vmatprep.subr.mxu0 0.0
        %7036 = vmatpush2.msra.mxu0 0.0
        %7037 = vmatprep.subr.mxu0 0.0
        %7038 = vmatpush2.msra.mxu0 0.0
        %7039 = vmatprep.subr.mxu0 0.0
        %7040 = vmatpush2.msra.mxu0 0.0
        %7041 = vmatprep.subr.mxu0 0.0
        %7042 = vmatpush2.msra.mxu0 0.0
        %7043 = vmatprep.subr.mxu0 0.0
        %7044 = vmatpush2.msra.mxu0 0.0
        %7045 = vmatprep.subr.mxu0 0.0
        %7046 = vmatpush2.msra.mxu0 0.0
        %7047 = vmatprep.subr.mxu0 0.0
        %7048 = vmatpush2.msra.mxu0 0.0
        %7049 = vmatprep.subr.mxu0 0.0
        %7050 = vmatpush2.msra.mxu0 0.0
        %7051 = vmatprep.subr.mxu0 0.0
        %7052 = vmatpush2.msra.mxu0 0.0
        %7053 = vmatprep.subr.mxu0 0.0
        %7054 = vmatpush2.msra.mxu0 0.0
        %7055 = vmatprep.subr.mxu0 0.0
        %7056 = vmatpush2.msra.mxu0 0.0
        %7057 = vmatprep.subr.mxu0 0.0
        %7058 = vmatpush2.msra.mxu0 0.0
        %7059 = vmatprep.mubr.f32.mxu0 0.0
        %7060 = vmatmul.mubr.f32.gmra.mxu0 %v6993
        %v7061 = vpop.f32.mrf.mxu0
        %v7062 = vadd.f32 %v6991, %v7061
        %v7063 = vpop.f32.mrf.mxu0
        %7064 = vdwg.mxu0
        %v7065 = vadd.f32 %v6067, %v7062
        %v7066 = vld [vmem:[%s6 + $0x2b] sm:$0x1]
        %v7067 = vld [vmem:[%s6 + $0x2c] sm:$0x1]
        %v7068 = vsel %vm359, %v7065, 0.0
        %7069 = vadd.xlane.f32.xlu0 %v7068
        %v7070 = vpop.xlane.xlu0 %7069
        %v7071 = vmul.f32 %v7070, %v1344
        %v7072 = vsub.f32 %v7065, %v7071
        %v7073 = vmul.f32 %v7072, %v7072
        %v7074 = vsel %vm359, %v7073, 0.0
        %7075 = vadd.xlane.f32.xlu0 %v7074
        %v7076 = vpop.xlane.xlu0 %7075
        %v7077 = vmul.f32 %v7076, %v1344
        %v7078 = vadd.f32 %v7077, 1e-05
        %v7079 = vrsqrt.pop %v7078
        %v7080 = vmul.f32 %v7072, %v7079
        %v7081 = vlaneseq
        %v7082 = vshrl.u32 %v7081, 7
        %v7083 = vsub.s32 0, %v7082
        %v7084 = vrot.slane %v7066, %v7083
        %v7085 = vmul.f32 %v7080, %v7084
        %v7086 = vlaneseq
        %v7087 = vshrl.u32 %v7086, 7
        %v7088 = vsub.s32 0, %v7087
        %v7089 = vrot.slane %v7067, %v7088
        %v7090 = vadd.f32 %v7085, %v7089
        %s7091 = scalar_lea.vmem %s4, 96
        %v7092 = vld [vmem:[%s7091] sm:$0xff]
        %v7093 = vld [vmem:[%s7091 + $0x8] sm:$0xff]
        %v7094 = vld [vmem:[%s7091 + $0x10] sm:$0xff]
        %v7095 = vld [vmem:[%s7091 + $0x18] sm:$0xff]
        %v7096 = vld [vmem:[%s7 + $0x3] sm:$0x1]
        %s7097 = scalar_lea.vmem %s5, 384
        %v7098 = vld [vmem:[%s7097] sm:$0xff]
        %v7099 = vld [vmem:[%s7097 + $0x8] sm:$0xff]
        %v7100 = vld [vmem:[%s7097 + $0x10] sm:$0xff]
        %v7101 = vld [vmem:[%s7097 + $0x18] sm:$0xff]
        %v7102 = vld [vmem:[%s7097 + $0x20] sm:$0xff]
        %v7103 = vld [vmem:[%s7097 + $0x28] sm:$0xff]
        %v7104 = vld [vmem:[%s7097 + $0x30] sm:$0xff]
        %v7105 = vld [vmem:[%s7097 + $0x38] sm:$0xff]
        %v7106 = vld [vmem:[%s7097 + $0x40] sm:$0xff]
        %v7107 = vld [vmem:[%s7097 + $0x48] sm:$0xff]
        %v7108 = vld [vmem:[%s7097 + $0x50] sm:$0xff]
        %v7109 = vld [vmem:[%s7097 + $0x58] sm:$0xff]
        %v7110 = vld [vmem:[%s7097 + $0x60] sm:$0xff]
        %v7111 = vld [vmem:[%s7097 + $0x68] sm:$0xff]
        %v7112 = vld [vmem:[%s7097 + $0x70] sm:$0xff]
        %v7113 = vld [vmem:[%s7097 + $0x78] sm:$0xff]
        %v7114 = vld [vmem:[%s6 + $0x2d] sm:$0x1]
        %v7115 = vlaneseq
        %v7116 = vshrl.u32 %v7115, 7
        %v7117 = vsub.s32 0, %v7116
        %v7118 = vrot.slane %v7096, %v7117
        %v7120 = vsel %vm359, %v7090, 0
        %7122 = vmatprep.subr.mxu0 0.0
        %7123 = vmatpush1.msra.mxu0 0.0
        %7124 = vmatprep.subr.mxu0 0.0
        %7125 = vmatpush1.msra.mxu0 0.0
        %7126 = vmatprep.subr.mxu0 0.0
        %7127 = vmatpush1.msra.mxu0 0.0
        %7128 = vmatprep.subr.mxu0 0.0
        %7129 = vmatpush1.msra.mxu0 0.0
        %7130 = vmatprep.subr.mxu0 0.0
        %7131 = vmatpush1.msra.mxu0 0.0
        %7132 = vmatprep.subr.mxu0 0.0
        %7133 = vmatpush1.msra.mxu0 0.0
        %7134 = vmatprep.subr.mxu0 0.0
        %7135 = vmatpush1.msra.mxu0 0.0
        %7136 = vmatprep.subr.mxu0 0.0
        %7137 = vmatpush1.msra.mxu0 0.0
        %7138 = vmatprep.subr.mxu0 0.0
        %7139 = vmatpush1.msra.mxu0 0.0
        %7140 = vmatprep.subr.mxu0 0.0
        %7141 = vmatpush1.msra.mxu0 0.0
        %7142 = vmatprep.subr.mxu0 0.0
        %7143 = vmatpush1.msra.mxu0 0.0
        %7144 = vmatprep.subr.mxu0 0.0
        %7145 = vmatpush1.msra.mxu0 0.0
        %7146 = vmatprep.subr.mxu0 0.0
        %7147 = vmatpush1.msra.mxu0 %v7095
        %7148 = vmatprep.subr.mxu0 0.0
        %7149 = vmatpush1.msra.mxu0 %v7094
        %7150 = vmatprep.subr.mxu0 0.0
        %7151 = vmatpush1.msra.mxu0 %v7093
        %7152 = vmatprep.subr.mxu0 0.0
        %7153 = vmatpush1.msra.mxu0 %v7092
        %7154 = vmatprep.subr.mxu0 0.0
        %7155 = vmatpush2.msra.mxu0 0.0
        %7156 = vmatprep.subr.mxu0 0.0
        %7157 = vmatpush2.msra.mxu0 0.0
        %7158 = vmatprep.subr.mxu0 0.0
        %7159 = vmatpush2.msra.mxu0 0.0
        %7160 = vmatprep.subr.mxu0 0.0
        %7161 = vmatpush2.msra.mxu0 0.0
        %7162 = vmatprep.subr.mxu0 0.0
        %7163 = vmatpush2.msra.mxu0 0.0
        %7164 = vmatprep.subr.mxu0 0.0
        %7165 = vmatpush2.msra.mxu0 0.0
        %7166 = vmatprep.subr.mxu0 0.0
        %7167 = vmatpush2.msra.mxu0 0.0
        %7168 = vmatprep.subr.mxu0 0.0
        %7169 = vmatpush2.msra.mxu0 0.0
        %7170 = vmatprep.subr.mxu0 0.0
        %7171 = vmatpush2.msra.mxu0 0.0
        %7172 = vmatprep.subr.mxu0 0.0
        %7173 = vmatpush2.msra.mxu0 0.0
        %7174 = vmatprep.subr.mxu0 0.0
        %7175 = vmatpush2.msra.mxu0 0.0
        %7176 = vmatprep.subr.mxu0 0.0
        %7177 = vmatpush2.msra.mxu0 0.0
        %7178 = vmatprep.subr.mxu0 0.0
        %7179 = vmatpush2.msra.mxu0 0.0
        %7180 = vmatprep.subr.mxu0 0.0
        %7181 = vmatpush2.msra.mxu0 0.0
        %7182 = vmatprep.subr.mxu0 0.0
        %7183 = vmatpush2.msra.mxu0 0.0
        %7184 = vmatprep.subr.mxu0 0.0
        %7185 = vmatpush2.msra.mxu0 0.0
        %7186 = vmatprep.mubr.f32.mxu0 0.0
        %7187 = vmatmul.mubr.f32.gmra.mxu0 %v7120
        %v7188 = vpop.f32.mrf.mxu0
        %v7189 = vadd.f32 %v7118, %v7188
        %v7190 = vpop.f32.mrf.mxu0
        %7191 = vdwg.mxu0
        %v7192 = vmax.f32 %v7189, 0.0
        %v7193 = vlaneseq
        %v7194 = vshrl.u32 %v7193, 7
        %v7195 = vsub.s32 0, %v7194
        %v7196 = vrot.slane %v7114, %v7195
        %7197 = vmatprep.subr.mxu0 0.0
        %7198 = vmatpush1.msra.mxu0 %v7113
        %7199 = vmatprep.subr.mxu0 0.0
        %7200 = vmatpush1.msra.mxu0 %v7112
        %7201 = vmatprep.subr.mxu0 0.0
        %7202 = vmatpush1.msra.mxu0 %v7111
        %7203 = vmatprep.subr.mxu0 0.0
        %7204 = vmatpush1.msra.mxu0 %v7110
        %7205 = vmatprep.subr.mxu0 0.0
        %7206 = vmatpush1.msra.mxu0 %v7109
        %7207 = vmatprep.subr.mxu0 0.0
        %7208 = vmatpush1.msra.mxu0 %v7108
        %7209 = vmatprep.subr.mxu0 0.0
        %7210 = vmatpush1.msra.mxu0 %v7107
        %7211 = vmatprep.subr.mxu0 0.0
        %7212 = vmatpush1.msra.mxu0 %v7106
        %7213 = vmatprep.subr.mxu0 0.0
        %7214 = vmatpush1.msra.mxu0 %v7105
        %7215 = vmatprep.subr.mxu0 0.0
        %7216 = vmatpush1.msra.mxu0 %v7104
        %7217 = vmatprep.subr.mxu0 0.0
        %7218 = vmatpush1.msra.mxu0 %v7103
        %7219 = vmatprep.subr.mxu0 0.0
        %7220 = vmatpush1.msra.mxu0 %v7102
        %7221 = vmatprep.subr.mxu0 0.0
        %7222 = vmatpush1.msra.mxu0 %v7101
        %7223 = vmatprep.subr.mxu0 0.0
        %7224 = vmatpush1.msra.mxu0 %v7100
        %7225 = vmatprep.subr.mxu0 0.0
        %7226 = vmatpush1.msra.mxu0 %v7099
        %7227 = vmatprep.subr.mxu0 0.0
        %7228 = vmatpush1.msra.mxu0 %v7098
        %7229 = vmatprep.subr.mxu0 0.0
        %7230 = vmatpush2.msra.mxu0 0.0
        %7231 = vmatprep.subr.mxu0 0.0
        %7232 = vmatpush2.msra.mxu0 0.0
        %7233 = vmatprep.subr.mxu0 0.0
        %7234 = vmatpush2.msra.mxu0 0.0
        %7235 = vmatprep.subr.mxu0 0.0
        %7236 = vmatpush2.msra.mxu0 0.0
        %7237 = vmatprep.subr.mxu0 0.0
        %7238 = vmatpush2.msra.mxu0 0.0
        %7239 = vmatprep.subr.mxu0 0.0
        %7240 = vmatpush2.msra.mxu0 0.0
        %7241 = vmatprep.subr.mxu0 0.0
        %7242 = vmatpush2.msra.mxu0 0.0
        %7243 = vmatprep.subr.mxu0 0.0
        %7244 = vmatpush2.msra.mxu0 0.0
        %7245 = vmatprep.subr.mxu0 0.0
        %7246 = vmatpush2.msra.mxu0 0.0
        %7247 = vmatprep.subr.mxu0 0.0
        %7248 = vmatpush2.msra.mxu0 0.0
        %7249 = vmatprep.subr.mxu0 0.0
        %7250 = vmatpush2.msra.mxu0 0.0
        %7251 = vmatprep.subr.mxu0 0.0
        %7252 = vmatpush2.msra.mxu0 0.0
        %7253 = vmatprep.subr.mxu0 0.0
        %7254 = vmatpush2.msra.mxu0 0.0
        %7255 = vmatprep.subr.mxu0 0.0
        %7256 = vmatpush2.msra.mxu0 0.0
        %7257 = vmatprep.subr.mxu0 0.0
        %7258 = vmatpush2.msra.mxu0 0.0
        %7259 = vmatprep.subr.mxu0 0.0
        %7260 = vmatpush2.msra.mxu0 0.0
        %7261 = vmatprep.mubr.f32.mxu0 0.0
        %7262 = vmatmul.mubr.f32.gmra.mxu0 %v7192
        %v7263 = vpop.f32.mrf.mxu0
        %v7264 = vadd.f32 %v7196, %v7263
        %v7265 = vpop.f32.mrf.mxu0
        %7266 = vdwg.mxu0
        %v7267 = vmax.f32 %v7264, 0.0
        %v7268 = vadd.f32 %v7090, %v7267
        %v7269 = vld [vmem:[%s6 + $0x2e] sm:$0x1]
        %v7270 = vld [vmem:[%s6 + $0x2f] sm:$0x1]
        %v7271 = vsel %vm359, %v7268, 0.0
        %7272 = vadd.xlane.f32.xlu0 %v7271
        %v7273 = vpop.xlane.xlu0 %7272
        %v7274 = vmul.f32 %v7273, %v1344
        %v7275 = vsub.f32 %v7268, %v7274
        %v7276 = vmul.f32 %v7275, %v7275
        %v7277 = vsel %vm359, %v7276, 0.0
        %7278 = vadd.xlane.f32.xlu0 %v7277
        %v7279 = vpop.xlane.xlu0 %7278
        %v7280 = vmul.f32 %v7279, %v1344
        %v7281 = vadd.f32 %v7280, 1e-05
        %v7282 = vrsqrt.pop %v7281
        %v7283 = vmul.f32 %v7275, %v7282
        %v7284 = vlaneseq
        %v7285 = vshrl.u32 %v7284, 7
        %v7286 = vsub.s32 0, %v7285
        %v7287 = vrot.slane %v7269, %v7286
        %v7288 = vmul.f32 %v7283, %v7287
        %v7289 = vlaneseq
        %v7290 = vshrl.u32 %v7289, 7
        %v7291 = vsub.s32 0, %v7290
        %v7292 = vrot.slane %v7270, %v7291
        %v7293 = vadd.f32 %v7288, %v7292
        %7294 = vst.msk [vmem:[%s322] sm:$0xff] %vm359, %v7293
        %s7295 = sand.u32 %s209, 1
        %s7296 = scalar_lea.sflag [#allocation4], %s7295
        %s7297 = sand.u32 %s209, 1
        %s7298 = smul.addr %s7297, 8
        %s7299 = scalar_lea.vmem [#allocation5], %s7298
        // Predicated region
        $region57: #{tpu_custom_call.1} parent=51 // pred_check
          %p7300 = pneg %p219
        $region58: #{tpu_custom_call.1} parent=51 // pred_check_branch
          %7302 = sbr.rel (%p7300) target = $region60
        $region59: #{tpu_custom_call.1} parent=51 // pred_region
          %s7304 = ssub.s32 128, 128
          %7305 = vsyncadd %s7296, %s7304
          %s7306 = smul.addr %s23, 128
          %s7307 = scalar_lea.hbm %s8, %s7306
          %s7309 = sshll.u32 %s7299, 4
          %s7310 = int_to_ptr.vmem [resolvable:$true] %s7309
          %7312 = dma.vmem_to_hbm [thread:$0]  %s7310, 128, %s7307, %s7296
        $region60: #{tpu_custom_call.1} parent=51 // pred_fallthru
          _
      $region52: #{tpu_custom_call.1} parent=5 // pred_fallthru
        _
      %p7313 = scmp.le.s32.totalorder 2, %s18
      // Predicated region
      $region61: #{tpu_custom_call.1} parent=5 // pred_check
        %p7314 = pneg %p7313
      $region62: #{tpu_custom_call.1} parent=5 // pred_check_branch
        %7316 = sbr.rel (%p7314) target = $region64
      $region63: #{tpu_custom_call.1} parent=5 // pred_region
        %s7317 = ssub.s32 %s18, 2
        // Predicated region
        $region65: #{tpu_custom_call.1} parent=63 // pred_check
          %p7318 = pneg %p225
        $region66: #{tpu_custom_call.1} parent=63 // pred_check_branch
          %7320 = sbr.rel (%p7318) target = $region68
        $region67: #{tpu_custom_call.1} parent=63 // pred_region
          %s7321 = sand.u32 %s210, 1
          %s7322 = scalar_lea.sflag [#allocation4], %s7321
          %s7323 = sand.u32 %s210, 1
          %s7324 = smul.addr %s7323, 8
          %s7325 = scalar_lea.vmem [#allocation5], %s7324
          %7326 = dma.done %s7322, 128
        $region68: #{tpu_custom_call.1} parent=63 // pred_fallthru
          _
      $region64: #{tpu_custom_call.1} parent=5 // pred_fallthru
        _
    $region6: #{tpu_custom_call.1} parent=1 // loop_footer
      %s22 = sadd.s32 1, %s18
    $region7: #{tpu_custom_call.1} parent=1 // loop_footer_branch
      %17 = sbr.rel target = $region3
    $region8: #{tpu_custom_call.1} parent=1 // loop_exit
      _
    %7327 = vsyncpa [#allocation3], 1
    %s7328 = scalar_lea.sflag [#allocation3], 1
    %7329 = vsyncpa %s7328, 1
    %7330 = vsyncpa [#allocation4], 1
    %s7331 = scalar_lea.sflag [#allocation4], 1
    %7332 = vsyncpa %s7331, 1

</llo_original>
